<compile_context>
chip_gen: v7x
topology: tpu7x:2x2x1
jax: 0.10.0
libtpu: 0.0.40
codegen_flags: <defaults>
</compile_context>

<pallas_src>
import functools

import jax
import jax.numpy as jnp
from jax.experimental import pallas as pl
from jax.experimental.pallas import tpu as pltpu

FP16_HUGE = 2.0 ** 15


def _global_attention_kernel(
    q2_ref,      # (B_BLK*Q, Cq)
    m2_ref,      # (B_BLK*K, Cm)
    maskT_ref,   # (B_BLK, 1, Q)
    wqg_ref,     # (Cq, H*Dk + H*Dv)   [query (key_scalar folded) | gating]
    wkv_ref,     # (Cm, Dk + Dv)       [key | value]
    gb_ref,      # (1, H*Dv)
    wo_ref,      # (H*Dv, O)
    ob_ref,      # (1, O)
    out_ref,     # (B_BLK*Q, O)
    *,
    b_blk: int,
    q_len: int,
    num_head: int,
    key_dim: int,
    value_dim: int,
    matmul_dtype,
):
    hdk = num_head * key_dim
    hdv = num_head * value_dim
    bq = b_blk * q_len
    mdt = matmul_dtype

    q2 = q2_ref[...].astype(mdt)                       # (BQ, Cq)
    m2 = m2_ref[...].astype(mdt)                       # (BQ, Cm)
    maskT = maskT_ref[...].astype(jnp.float32)         # (B, 1, Q)

    # --- fused, head-dense row-wise projections (lane-dense 2D matmuls) ---
    qg = jnp.dot(q2, wqg_ref[...].astype(mdt),
                 preferred_element_type=jnp.float32)   # (BQ, H*Dk + H*Dv)
    qp2 = qg[:, :hdk]                                  # (BQ, H*Dk), key_scalar folded in
    gate2 = jax.nn.sigmoid(qg[:, hdk:] + gb_ref[...])  # (BQ, H*Dv)

    kv2 = jnp.dot(m2, wkv_ref[...].astype(mdt),
                  preferred_element_type=jnp.float32)  # (BQ, Dk+Dv)

    # 3D per-batch views (only sublane-aligned leading-dim fold/unfold).
    kv3 = kv2.reshape(b_blk, q_len, key_dim + value_dim)
    k3 = kv3[:, :, :key_dim]                           # (B, K, Dk)
    v3 = kv3[:, :, key_dim:]                           # (B, K, Dv)
    qp3 = qp2.reshape(b_blk, q_len, hdk)               # (B, Q, H*Dk)

    # Masked mean of the *projected* queries (projection is linear, so this
    # equals projecting the masked mean) -> one batched MXU matmul.
    denom = jnp.sum(maskT, axis=-1, keepdims=True) + 1e-10                  # (B,1,1)
    q_mean = jnp.einsum('boq,bqf->bof', maskT, qp3,
                        preferred_element_type=jnp.float32) / denom         # (B,1,H*Dk)
    q_heads = q_mean.reshape(b_blk, num_head, key_dim)                      # (B,H,Dk)

    # Attention bias from the mask (Q == K), broadcast across heads.
    bias3 = FP16_HUGE * (maskT - 1.0)                                       # (B,1,K)

    # All heads at once: logits, softmax, weighted value average.
    logits = jnp.einsum('bhd,bkd->bhk', q_heads, k3,
                        preferred_element_type=jnp.float32) + bias3         # (B,H,K)
    m_max = jnp.max(logits, axis=-1, keepdims=True)
    e = jnp.exp(logits - m_max)
    w = e / jnp.sum(e, axis=-1, keepdims=True)                              # (B,H,K)
    wa = jnp.einsum('bhk,bkd->bhd', w, v3,
                    preferred_element_type=jnp.float32)                     # (B,H,Dv)

    # Broadcast per-batch weighted average across the Q rows, gate, and do a
    # single dense output projection over all heads.
    wa2 = wa.reshape(b_blk, 1, hdv)                                         # (B,1,H*Dv)
    wa_rep = jnp.broadcast_to(wa2, (b_blk, q_len, hdv)).reshape(bq, hdv)    # (BQ,H*Dv)
    gated = gate2 * wa_rep                                                  # (BQ,H*Dv)
    out = jnp.dot(gated.astype(mdt), wo_ref[...].astype(mdt),
                  preferred_element_type=jnp.float32) + ob_ref[...]         # (BQ,O)

    out_ref[...] = out.astype(out_ref.dtype)


def global_attention(q_data, m_data, q_mask, params, *,
                     block_batch=32, matmul_dtype=jnp.float32):
    """Pallas GlobalAttention forward (config.gating=True).

    q_data: (B, Q, Cq), m_data: (B, K, Cm) with Q == K, q_mask: (B, Q, 1).
    Returns float32 (B, Q, output_dim).
    """
    B, Q, Cq = q_data.shape
    Bm, K, Cm = m_data.shape
    assert B == Bm and Q == K, "GlobalAttention's mask bias requires N_queries == N_keys"

    query_w = params["query_w"]      # (Cq, H, Dk)
    key_w = params["key_w"]          # (Cm, Dk)
    value_w = params["value_w"]      # (Cm, Dv)
    gating_w = params["gating_w"]    # (Cq, H, Dv)
    gating_b = params["gating_b"]    # (H, Dv)
    output_w = params["output_w"]    # (H, Dv, O)
    output_b = params["output_b"]    # (O,)

    H, Dk = query_w.shape[1], query_w.shape[2]
    Dv = value_w.shape[1]
    O = output_w.shape[2]
    key_scalar = float(Dk) ** -0.5

    # --- pad the sequence to a multiple of 8 (f32 sublane tile); padded keys get
    #     mask=0 -> -FP16_HUGE bias -> zero attention weight. ---
    Qp = ((Q + 7) // 8) * 8
    if Qp != Q:
        p = Qp - Q
        q_data = jnp.pad(q_data, ((0, 0), (0, p), (0, 0)))
        m_data = jnp.pad(m_data, ((0, 0), (0, p), (0, 0)))
        q_mask = jnp.pad(q_mask, ((0, 0), (0, p), (0, 0)))

    # --- pad the batch to a multiple of the batch block ---
    b_blk = max(1, min(block_batch, B))
    Bp = ((B + b_blk - 1) // b_blk) * b_blk
    if Bp != B:
        p = Bp - B
        q_data = jnp.pad(q_data, ((0, p), (0, 0), (0, 0)))
        m_data = jnp.pad(m_data, ((0, p), (0, 0), (0, 0)))
        q_mask = jnp.pad(q_mask, ((0, p), (0, 0), (0, 0)))

    # --- layout glue (plain JAX, outside the kernel) ---
    q2 = q_data.reshape(Bp * Qp, Cq).astype(jnp.float32)     # lane-dense activation slab
    m2 = m_data.reshape(Bp * Qp, Cm).astype(jnp.float32)
    maskT = q_mask.reshape(Bp, 1, Qp).astype(jnp.float32)    # (B, 1, Q): mask as a row

    wq = (query_w.astype(jnp.float32) * key_scalar).reshape(Cq, H * Dk)
    wg = gating_w.astype(jnp.float32).reshape(Cq, H * Dv)
    wqg = jnp.concatenate([wq, wg], axis=1)                  # (Cq, H*Dk + H*Dv)
    wkv = jnp.concatenate([key_w.astype(jnp.float32),
                           value_w.astype(jnp.float32)], axis=1)   # (Cm, Dk+Dv)
    gb = gating_b.astype(jnp.float32).reshape(1, H * Dv)
    wo = output_w.astype(jnp.float32).reshape(H * Dv, O)     # flat head-major output weights
    ob = output_b.astype(jnp.float32).reshape(1, O)

    nb = Bp // b_blk
    bq = b_blk * Qp
    HDk, HDv, DKV = H * Dk, H * Dv, Dk + Dv

    kernel = functools.partial(
        _global_attention_kernel, b_blk=b_blk, q_len=Qp, num_head=H,
        key_dim=Dk, value_dim=Dv, matmul_dtype=matmul_dtype)

    grid_spec = pltpu.PrefetchScalarGridSpec(
        num_scalar_prefetch=0,
        grid=(nb,),
        in_specs=[
            pl.BlockSpec((bq, Cq), lambda b: (b, 0)),          # q_data (flat)
            pl.BlockSpec((bq, Cm), lambda b: (b, 0)),          # m_data (flat)
            pl.BlockSpec((b_blk, 1, Qp), lambda b: (b, 0, 0)), # q_mask (row form)
            pl.BlockSpec((Cq, HDk + HDv), lambda b: (0, 0)),   # fused query|gating weights
            pl.BlockSpec((Cm, DKV), lambda b: (0, 0)),         # fused key|value weights
            pl.BlockSpec((1, HDv), lambda b: (0, 0)),          # gating bias
            pl.BlockSpec((HDv, O), lambda b: (0, 0)),          # flat output weights
            pl.BlockSpec((1, O), lambda b: (0, 0)),            # output bias
        ],
        out_specs=pl.BlockSpec((bq, O), lambda b: (b, 0)),
    )
    # TODO(synk): O (=32) < 128 lanes means output stores are partially masked;
    # a wider lane-packed output layout would need the surrounding model to accept it.

    out2 = pl.pallas_call(
        kernel,
        out_shape=jax.ShapeDtypeStruct((Bp * Qp, O), jnp.float32),
        grid_spec=grid_spec,
        compiler_params=pltpu.CompilerParams(
            dimension_semantics=("parallel",)),
    )(q2, m2, maskT, wqg, wkv, gb, wo, ob)

    return out2.reshape(Bp, Qp, O)[:B, :Q, :]


def global_attention_reference(q_data, q_mask, m_data, params):
    """Pure-JAX mirror of the PyTorch forward (gating branch)."""
    key_scalar = float(params["query_w"].shape[-1]) ** -0.5
    v = jnp.einsum("bka,ac->bkc", m_data, params["value_w"])
    q_avg = jnp.sum(q_mask * q_data, axis=1) / (jnp.sum(q_mask, axis=1) + 1e-10)
    q = jnp.einsum("ba,ahc->bhc", q_avg, params["query_w"]) * key_scalar
    k = jnp.einsum("bka,ac->bkc", m_data, params["key_w"])
    bias = FP16_HUGE * (q_mask[:, None, :, 0] - 1.0)
    logits = jnp.einsum("bhc,bkc->bhk", q, k) + bias
    weights = jax.nn.softmax(logits, axis=-1)
    weighted_avg = jnp.einsum("bhk,bkc->bhc", weights, v)
    gate_values = jax.nn.sigmoid(
        jnp.einsum("bqc,chv->bqhv", q_data, params["gating_w"]) + params["gating_b"])
    weighted_avg = weighted_avg[:, None] * gate_values
    output = jnp.einsum("bqhc,hco->bqo", weighted_avg, params["output_w"]) + params["output_b"]
    return output


if __name__ == "__main__":
    # Shapes consistent with the module: q_dim = m_dim = 32, num_head = 4,
    # key_dim = value_dim = 8 per head, output_dim = 32, seq = 8.
    # batch = 64 with block_batch = 32 -> grid of 2 parallel steps.
    B, Q, Cq, Cm, H, Dk, Dv, O = 64, 8, 32, 32, 4, 8, 8, 32

    key = jax.random.PRNGKey(0)
    ks = jax.random.split(key, 9)

    q_data = jax.random.normal(ks[0], (B, Q, Cq), jnp.float32)
    m_data = jax.random.normal(ks[1], (B, Q, Cm), jnp.float32)
    q_mask = (jax.random.uniform(ks[2], (B, Q, 1)) > 0.25).astype(jnp.float32)

    params = {
        "query_w": 0.1 * jax.random.normal(ks[3], (Cq, H, Dk), jnp.float32),
        "key_w": 0.1 * jax.random.normal(ks[4], (Cm, Dk), jnp.float32),
        "value_w": 0.1 * jax.random.normal(ks[5], (Cm, Dv), jnp.float32),
        "gating_w": 0.1 * jax.random.normal(ks[6], (Cq, H, Dv), jnp.float32),
        "gating_b": jnp.ones((H, Dv), jnp.float32),
        "output_w": 0.1 * jax.random.normal(ks[7], (H, Dv, O), jnp.float32),
        "output_b": 0.05 * jax.random.normal(ks[8], (O,), jnp.float32),
    }

    out = global_attention(q_data, m_data, q_mask, params, block_batch=32)
    out = jax.block_until_ready(out)

    ref = global_attention_reference(q_data, q_mask, m_data, params)
    assert out.shape == (B, Q, O) and out.dtype == jnp.float32
    err = float(jnp.abs(out - ref).max())
    assert jnp.allclose(out, ref, atol=5e-4, rtol=5e-4), err

    print("KERNEL_OK")
</pallas_src>

<mosaic_0001>
module attributes {stable_mosaic.version = 11 : i64} {
  func.func @_global_attention_kernel(%arg0: i32, %arg1: memref<256x32xf32, #tpu.memory_space<vmem>>, %arg2: memref<256x32xf32, #tpu.memory_space<vmem>>, %arg3: memref<32x1x8xf32, #tpu.memory_space<vmem>>, %arg4: memref<32x64xf32, #tpu.memory_space<vmem>>, %arg5: memref<32x16xf32, #tpu.memory_space<vmem>>, %arg6: memref<1x32xf32, #tpu.memory_space<vmem>>, %arg7: memref<32x32xf32, #tpu.memory_space<vmem>>, %arg8: memref<1x32xf32, #tpu.memory_space<vmem>>, %arg9: memref<256x32xf32, #tpu.memory_space<vmem>>) attributes {dimension_semantics = [#tpu.dimension_semantics<parallel>], iteration_bounds = array<i64: 2>, scalar_prefetch = 0 : i64, scratch_operands = 0 : i64, tpu.core_type = #tpu.core_type<tc>, window_params = [{transform_indices = @transform_0, window_bounds = array<i64: 256, 32>}, {transform_indices = @transform_1, window_bounds = array<i64: 256, 32>}, {transform_indices = @transform_2, window_bounds = array<i64: 32, 1, 8>}, {pipeline_mode = #tpu.pipeline_mode<synchronous>, transform_indices = @transform_3, window_bounds = array<i64: 32, 64>}, {pipeline_mode = #tpu.pipeline_mode<synchronous>, transform_indices = @transform_4, window_bounds = array<i64: 32, 16>}, {pipeline_mode = #tpu.pipeline_mode<synchronous>, transform_indices = @transform_5, window_bounds = array<i64: 1, 32>}, {pipeline_mode = #tpu.pipeline_mode<synchronous>, transform_indices = @transform_6, window_bounds = array<i64: 32, 32>}, {pipeline_mode = #tpu.pipeline_mode<synchronous>, transform_indices = @transform_7, window_bounds = array<i64: 1, 32>}, {transform_indices = @transform_8, window_bounds = array<i64: 256, 32>}]} {
    %c0 = arith.constant 0 : index
    %c0_0 = arith.constant 0 : index
    %0 = vector.load %arg1[%c0, %c0_0] : memref<256x32xf32, #tpu.memory_space<vmem>>, vector<256x32xf32>
    %c0_1 = arith.constant 0 : index
    %c0_2 = arith.constant 0 : index
    %1 = vector.load %arg2[%c0_1, %c0_2] : memref<256x32xf32, #tpu.memory_space<vmem>>, vector<256x32xf32>
    %c0_3 = arith.constant 0 : index
    %c0_4 = arith.constant 0 : index
    %c0_5 = arith.constant 0 : index
    %2 = vector.load %arg3[%c0_3, %c0_4, %c0_5] : memref<32x1x8xf32, #tpu.memory_space<vmem>>, vector<32x1x8xf32>
    %c0_6 = arith.constant 0 : index
    %c0_7 = arith.constant 0 : index
    %3 = vector.load %arg4[%c0_6, %c0_7] : memref<32x64xf32, #tpu.memory_space<vmem>>, vector<32x64xf32>
    %cst = arith.constant dense<0.000000e+00> : vector<256x64xf32>
    %4 = tpu.matmul %0, %3, %cst {dimension_numbers = #tpu.dot_dimension_numbers<[1], [0], [0], [1], [0, 0, 1, 1], [], []>} : vector<256x32xf32>, vector<32x64xf32>, vector<256x64xf32> -> vector<256x64xf32>
    %5 = vector.extract_strided_slice %4 {offsets = [0, 0], sizes = [256, 32], strides = [1, 1]} : vector<256x64xf32> to vector<256x32xf32>
    %6 = vector.extract_strided_slice %4 {offsets = [0, 32], sizes = [256, 32], strides = [1, 1]} : vector<256x64xf32> to vector<256x32xf32>
    %c0_8 = arith.constant 0 : index
    %c0_9 = arith.constant 0 : index
    %7 = vector.load %arg6[%c0_8, %c0_9] : memref<1x32xf32, #tpu.memory_space<vmem>>, vector<1x32xf32>
    %8 = vector.broadcast %7 : vector<1x32xf32> to vector<256x32xf32>
    %9 = arith.addf %6, %8 : vector<256x32xf32>
    %10 = arith.negf %9 : vector<256x32xf32>
    %11 = math.exp %10 : vector<256x32xf32>
    %cst_10 = arith.constant 1.000000e+00 : f32
    %12 = vector.broadcast %cst_10 : f32 to vector<256x32xf32>
    %13 = arith.addf %12, %11 : vector<256x32xf32>
    %14 = arith.divf %12, %13 : vector<256x32xf32>
    %c0_11 = arith.constant 0 : index
    %c0_12 = arith.constant 0 : index
    %15 = vector.load %arg5[%c0_11, %c0_12] : memref<32x16xf32, #tpu.memory_space<vmem>>, vector<32x16xf32>
    %cst_13 = arith.constant dense<0.000000e+00> : vector<256x16xf32>
    %16 = tpu.matmul %1, %15, %cst_13 {dimension_numbers = #tpu.dot_dimension_numbers<[1], [0], [0], [1], [0, 0, 1, 1], [], []>} : vector<256x32xf32>, vector<32x16xf32>, vector<256x16xf32> -> vector<256x16xf32>
    %17 = vector.shape_cast %16 : vector<256x16xf32> to vector<32x8x16xf32>
    %18 = vector.extract_strided_slice %17 {offsets = [0, 0, 0], sizes = [32, 8, 8], strides = [1, 1, 1]} : vector<32x8x16xf32> to vector<32x8x8xf32>
    %19 = vector.extract_strided_slice %17 {offsets = [0, 0, 8], sizes = [32, 8, 8], strides = [1, 1, 1]} : vector<32x8x16xf32> to vector<32x8x8xf32>
    %20 = vector.shape_cast %5 : vector<256x32xf32> to vector<32x8x32xf32>
    %cst_14 = arith.constant dense<0.000000e+00> : vector<32x1xf32>
    %21 = vector.multi_reduction <add>, %2, %cst_14 [2] : vector<32x1x8xf32> to vector<32x1xf32>
    %22 = vector.shape_cast %21 : vector<32x1xf32> to vector<32x1x1xf32>
    %cst_15 = arith.constant 1.000000e-10 : f32
    %23 = vector.broadcast %cst_15 : f32 to vector<32x1x1xf32>
    %24 = arith.addf %22, %23 : vector<32x1x1xf32>
    "tpu.trace_start"() <{level = 10 : i32, message = "boq,bqf->bof"}> : () -> ()
    %cst_16 = arith.constant dense<0.000000e+00> : vector<32x1x32xf32>
    %25 = tpu.matmul %2, %20, %cst_16 {dimension_numbers = #tpu.dot_dimension_numbers<[2], [1], [1], [2], [0, 0, 0, 1, 1, 2], [0], [0]>} : vector<32x1x8xf32>, vector<32x8x32xf32>, vector<32x1x32xf32> -> vector<32x1x32xf32>
    "tpu.trace_stop"() : () -> ()
    %26 = vector.broadcast %24 : vector<32x1x1xf32> to vector<32x1x32xf32>
    %27 = arith.divf %25, %26 : vector<32x1x32xf32>
    %28 = vector.shape_cast %27 : vector<32x1x32xf32> to vector<32x4x8xf32>
    %cst_17 = arith.constant 1.000000e+00 : f32
    %29 = vector.broadcast %cst_17 : f32 to vector<32x1x8xf32>
    %30 = arith.subf %2, %29 : vector<32x1x8xf32>
    %cst_18 = arith.constant 3.276800e+04 : f32
    %31 = vector.broadcast %cst_18 : f32 to vector<32x1x8xf32>
    %32 = arith.mulf %31, %30 : vector<32x1x8xf32>
    "tpu.trace_start"() <{level = 10 : i32, message = "bhd,bkd->bhk"}> : () -> ()
    %cst_19 = arith.constant dense<0.000000e+00> : vector<32x4x8xf32>
    %33 = tpu.matmul %28, %18, %cst_19 {dimension_numbers = #tpu.dot_dimension_numbers<[2], [2], [1], [1], [0, 0, 0, 1, 1, 1], [0], [0]>} : vector<32x4x8xf32>, vector<32x8x8xf32>, vector<32x4x8xf32> -> vector<32x4x8xf32>
    "tpu.trace_stop"() : () -> ()
    %34 = vector.broadcast %32 : vector<32x1x8xf32> to vector<32x4x8xf32>
    %35 = arith.addf %33, %34 : vector<32x4x8xf32>
    %cst_20 = arith.constant dense<0xFF800000> : vector<32x4xf32>
    %36 = vector.multi_reduction <maximumf>, %35, %cst_20 [2] : vector<32x4x8xf32> to vector<32x4xf32>
    %37 = vector.shape_cast %36 : vector<32x4xf32> to vector<32x4x1xf32>
    %38 = vector.broadcast %37 : vector<32x4x1xf32> to vector<32x4x8xf32>
    %39 = arith.subf %35, %38 : vector<32x4x8xf32>
    %40 = math.exp %39 : vector<32x4x8xf32>
    %cst_21 = arith.constant dense<0.000000e+00> : vector<32x4xf32>
    %41 = vector.multi_reduction <add>, %40, %cst_21 [2] : vector<32x4x8xf32> to vector<32x4xf32>
    %42 = vector.shape_cast %41 : vector<32x4xf32> to vector<32x4x1xf32>
    %43 = vector.broadcast %42 : vector<32x4x1xf32> to vector<32x4x8xf32>
    %44 = arith.divf %40, %43 : vector<32x4x8xf32>
    "tpu.trace_start"() <{level = 10 : i32, message = "bhk,bkd->bhd"}> : () -> ()
    %cst_22 = arith.constant dense<0.000000e+00> : vector<32x4x8xf32>
    %45 = tpu.matmul %44, %19, %cst_22 {dimension_numbers = #tpu.dot_dimension_numbers<[2], [1], [1], [2], [0, 0, 0, 1, 1, 2], [0], [0]>} : vector<32x4x8xf32>, vector<32x8x8xf32>, vector<32x4x8xf32> -> vector<32x4x8xf32>
    "tpu.trace_stop"() : () -> ()
    %46 = vector.shape_cast %45 : vector<32x4x8xf32> to vector<32x1x32xf32>
    %47 = vector.shape_cast %46 : vector<32x1x32xf32> to vector<32x1x32xf32>
    %48 = vector.broadcast %47 : vector<32x1x32xf32> to vector<32x8x32xf32>
    %49 = vector.shape_cast %48 : vector<32x8x32xf32> to vector<256x32xf32>
    %50 = arith.mulf %14, %49 : vector<256x32xf32>
    %c0_23 = arith.constant 0 : index
    %c0_24 = arith.constant 0 : index
    %51 = vector.load %arg7[%c0_23, %c0_24] : memref<32x32xf32, #tpu.memory_space<vmem>>, vector<32x32xf32>
    %cst_25 = arith.constant dense<0.000000e+00> : vector<256x32xf32>
    %52 = tpu.matmul %50, %51, %cst_25 {dimension_numbers = #tpu.dot_dimension_numbers<[1], [0], [0], [1], [0, 0, 1, 1], [], []>} : vector<256x32xf32>, vector<32x32xf32>, vector<256x32xf32> -> vector<256x32xf32>
    %c0_26 = arith.constant 0 : index
    %c0_27 = arith.constant 0 : index
    %53 = vector.load %arg8[%c0_26, %c0_27] : memref<1x32xf32, #tpu.memory_space<vmem>>, vector<1x32xf32>
    %54 = vector.broadcast %53 : vector<1x32xf32> to vector<256x32xf32>
    %55 = arith.addf %52, %54 : vector<256x32xf32>
    %c0_28 = arith.constant 0 : index
    %c0_29 = arith.constant 0 : index
    %56 = vector.load %arg9[%c0_28, %c0_29] : memref<256x32xf32, #tpu.memory_space<vmem>>, vector<256x32xf32>
    tpu.vector_store %arg9[%c0_28, %c0_29], %55 {strides = array<i32>} : memref<256x32xf32, #tpu.memory_space<vmem>>, vector<256x32xf32>,
    return
  }
  func.func @transform_0(%arg0: i32) -> (i32, i32) {
    %c0_i32 = arith.constant 0 : i32
    %c0_i32_0 = arith.constant 0 : i32
    return %arg0, %c0_i32 : i32, i32
  }
  func.func @transform_1(%arg0: i32) -> (i32, i32) {
    %c0_i32 = arith.constant 0 : i32
    %c0_i32_0 = arith.constant 0 : i32
    return %arg0, %c0_i32 : i32, i32
  }
  func.func @transform_2(%arg0: i32) -> (i32, i32, i32) {
    %c0_i32 = arith.constant 0 : i32
    %c0_i32_0 = arith.constant 0 : i32
    %c0_i32_1 = arith.constant 0 : i32
    return %arg0, %c0_i32, %c0_i32_0 : i32, i32, i32
  }
  func.func @transform_3(%arg0: i32) -> (i32, i32) {
    %c0_i32 = arith.constant 0 : i32
    %c0_i32_0 = arith.constant 0 : i32
    %c0_i32_1 = arith.constant 0 : i32
    return %c0_i32, %c0_i32_0 : i32, i32
  }
  func.func @transform_4(%arg0: i32) -> (i32, i32) {
    %c0_i32 = arith.constant 0 : i32
    %c0_i32_0 = arith.constant 0 : i32
    %c0_i32_1 = arith.constant 0 : i32
    return %c0_i32, %c0_i32_0 : i32, i32
  }
  func.func @transform_5(%arg0: i32) -> (i32, i32) {
    %c0_i32 = arith.constant 0 : i32
    %c0_i32_0 = arith.constant 0 : i32
    %c0_i32_1 = arith.constant 0 : i32
    return %c0_i32, %c0_i32_0 : i32, i32
  }
  func.func @transform_6(%arg0: i32) -> (i32, i32) {
    %c0_i32 = arith.constant 0 : i32
    %c0_i32_0 = arith.constant 0 : i32
    %c0_i32_1 = arith.constant 0 : i32
    return %c0_i32, %c0_i32_0 : i32, i32
  }
  func.func @transform_7(%arg0: i32) -> (i32, i32) {
    %c0_i32 = arith.constant 0 : i32
    %c0_i32_0 = arith.constant 0 : i32
    %c0_i32_1 = arith.constant 0 : i32
    return %c0_i32, %c0_i32_0 : i32, i32
  }
  func.func @transform_8(%arg0: i32) -> (i32, i32) {
    %c0_i32 = arith.constant 0 : i32
    %c0_i32_0 = arith.constant 0 : i32
    return %arg0, %c0_i32 : i32, i32
  }
}

</mosaic_0001>

<llo_original>
// kernel: tpu_custom_call.1
$region0: #{tpu_custom_call.1}
  #allocation0 [shape = 'u32[]', space=smem, size = 0x4, offset = 0x4, fixed_abs, tag = 'smem constant byte address 0x4 - core index']
  #allocation1 [shape = 'u32[144,128]{1,0:T(1,128)}', space=vmem, size = 0x12000, scoped, tag = 'internal scratch']
  %s0 = inlined_call_operand.vmem [shape: f32[512,32], index: 0, kind: input, shape index: {}]
  %s1 = inlined_call_operand.vmem [shape: f32[512,32], index: 1, kind: input, shape index: {}]
  %s2 = inlined_call_operand.vmem [shape: f32[64,1,8], index: 2, kind: input, shape index: {}]
  %s3 = inlined_call_operand.vmem [shape: f32[32,64], index: 3, kind: input, shape index: {}]
  %s4 = inlined_call_operand.vmem [shape: f32[32,16], index: 4, kind: input, shape index: {}]
  %s5 = inlined_call_operand.vmem [shape: f32[1,32], index: 5, kind: input, shape index: {}]
  %s6 = inlined_call_operand.vmem [shape: f32[32,32], index: 6, kind: input, shape index: {}]
  %s7 = inlined_call_operand.vmem [shape: f32[1,32], index: 7, kind: input, shape index: {}]
  %s8 = inlined_call_operand.vmem [shape: f32[512,32], index: 8, kind: output, shape index: {}]
  %s9 = sld [smem:[#allocation0]]
  $region65: #{tpu_custom_call.1} parent=0
    _
  %s11 = ssub.s32 1, %s9
  %s12 = scalar_select 0, %s11, %s9
  loop: start=0, step=1, limit=4
  $region2: #{tpu_custom_call.1} parent=0 // loop_pre_header
    _
  $region3: #{tpu_custom_call.1} parent=0 // loop_header
    %s14 = sphi 0, %s18
    %p15 = scmp.ge.s32.totalorder %s14, 4
    %s24 = sphi 0, %s26
    %s27 = sphi 0, %s24
    %s28 = sphi 0, %s27
    %s44 = sphi 0, %s28
    %s50 = sphi 0, %s52
    %s53 = sphi 0, %s50
    %s54 = sphi 0, %s53
    %s70 = sphi 0, %s54
    %s76 = sphi 0, %s78
    %s79 = sphi 0, %s76
    %s80 = sphi 0, %s79
    %s96 = sphi 0, %s80
    %s100 = sphi 0, %s100
    %s102 = sphi 0, %s100
    %s103 = sphi 0, %s102
    %s117 = sphi 0, %s103
    %s121 = sphi 0, %s121
    %s123 = sphi 0, %s121
    %s124 = sphi 0, %s123
    %s138 = sphi 0, %s124
    %s142 = sphi 0, %s142
    %s144 = sphi 0, %s142
    %s145 = sphi 0, %s144
    %s159 = sphi 0, %s145
    %s163 = sphi 0, %s163
    %s165 = sphi 0, %s163
    %s166 = sphi 0, %s165
    %s180 = sphi 0, %s166
    %s184 = sphi 0, %s184
    %s186 = sphi 0, %s184
    %s187 = sphi 0, %s186
    %s201 = sphi 0, %s187
    %s207 = sphi 0, %s209
    %s210 = sphi 0, %s207
    %s211 = sphi 0, %s210
    %s227 = sphi 0, %s211
  $region4: #{tpu_custom_call.1} parent=0 // loop_header_branch
    %17 = sbr.rel (%p15) target = $region8
  $region5: #{tpu_custom_call.1} parent=0 // loop_body
    %s19 = ssub.s32 %s14, 1
    %s20 = ssub.s32 %s14, 2
    %s21 = sadd.s32 %s14, 1
    %s22 = ssub.s32 %s14, %s21
    %p23 = scmp.eq.s32.totalorder %s22, 0
    %s25 = sadd.s32 %s24, 1
    %s26 = scalar_select %p23, %s24, %s25
    %p29 = pneg %p23
    %p30 = scmp.eq.s32.totalorder %s14, 1
    %p31 = por %p29, %p30
    %p32 = scmp.ne.s32.totalorder %s24, %s27
    %p33 = scmp.eq.s32.totalorder %s14, 0
    %p34 = por %p32, %p33
    %p35 = scmp.ne.s32.totalorder %s24, %s27
    %p36 = scmp.eq.s32.totalorder %s19, 1
    %p37 = por %p35, %p36
    %p38 = scmp.ne.s32.totalorder %s27, %s28
    %p39 = scmp.eq.s32.totalorder %s19, 0
    %p40 = por %p38, %p39
    %p41 = scmp.ne.s32.totalorder %s27, %s28
    %p42 = scmp.eq.s32.totalorder %s20, 1
    %p43 = por %p41, %p42
    %p45 = scmp.ne.s32.totalorder %s28, %s44
    %p46 = scmp.eq.s32.totalorder %s20, 0
    %p47 = por %p45, %p46
    %s48 = ssub.s32 %s14, %s21
    %p49 = scmp.eq.s32.totalorder %s48, 0
    %s51 = sadd.s32 %s50, 1
    %s52 = scalar_select %p49, %s50, %s51
    %p55 = pneg %p49
    %p56 = scmp.eq.s32.totalorder %s14, 1
    %p57 = por %p55, %p56
    %p58 = scmp.ne.s32.totalorder %s50, %s53
    %p59 = scmp.eq.s32.totalorder %s14, 0
    %p60 = por %p58, %p59
    %p61 = scmp.ne.s32.totalorder %s50, %s53
    %p62 = scmp.eq.s32.totalorder %s19, 1
    %p63 = por %p61, %p62
    %p64 = scmp.ne.s32.totalorder %s53, %s54
    %p65 = scmp.eq.s32.totalorder %s19, 0
    %p66 = por %p64, %p65
    %p67 = scmp.ne.s32.totalorder %s53, %s54
    %p68 = scmp.eq.s32.totalorder %s20, 1
    %p69 = por %p67, %p68
    %p71 = scmp.ne.s32.totalorder %s54, %s70
    %p72 = scmp.eq.s32.totalorder %s20, 0
    %p73 = por %p71, %p72
    %s74 = ssub.s32 %s14, %s21
    %p75 = scmp.eq.s32.totalorder %s74, 0
    %s77 = sadd.s32 %s76, 1
    %s78 = scalar_select %p75, %s76, %s77
    %p81 = pneg %p75
    %p82 = scmp.eq.s32.totalorder %s14, 1
    %p83 = por %p81, %p82
    %p84 = scmp.ne.s32.totalorder %s76, %s79
    %p85 = scmp.eq.s32.totalorder %s14, 0
    %p86 = por %p84, %p85
    %p87 = scmp.ne.s32.totalorder %s76, %s79
    %p88 = scmp.eq.s32.totalorder %s19, 1
    %p89 = por %p87, %p88
    %p90 = scmp.ne.s32.totalorder %s79, %s80
    %p91 = scmp.eq.s32.totalorder %s19, 0
    %p92 = por %p90, %p91
    %p93 = scmp.ne.s32.totalorder %s79, %s80
    %p94 = scmp.eq.s32.totalorder %s20, 1
    %p95 = por %p93, %p94
    %p97 = scmp.ne.s32.totalorder %s80, %s96
    %p98 = scmp.eq.s32.totalorder %s20, 0
    %p99 = por %p97, %p98
    %s101 = sadd.s32 %s100, 1
    %p104 = scmp.eq.s32.totalorder %s14, 1
    %p105 = scmp.ne.s32.totalorder %s100, %s102
    %p106 = scmp.eq.s32.totalorder %s14, 0
    %p107 = por %p105, %p106
    %p108 = scmp.ne.s32.totalorder %s100, %s102
    %p109 = scmp.eq.s32.totalorder %s19, 1
    %p110 = por %p108, %p109
    %p111 = scmp.ne.s32.totalorder %s102, %s103
    %p112 = scmp.eq.s32.totalorder %s19, 0
    %p113 = por %p111, %p112
    %p114 = scmp.ne.s32.totalorder %s102, %s103
    %p115 = scmp.eq.s32.totalorder %s20, 1
    %p116 = por %p114, %p115
    %p118 = scmp.ne.s32.totalorder %s103, %s117
    %p119 = scmp.eq.s32.totalorder %s20, 0
    %p120 = por %p118, %p119
    %s122 = sadd.s32 %s121, 1
    %p125 = scmp.eq.s32.totalorder %s14, 1
    %p126 = scmp.ne.s32.totalorder %s121, %s123
    %p127 = scmp.eq.s32.totalorder %s14, 0
    %p128 = por %p126, %p127
    %p129 = scmp.ne.s32.totalorder %s121, %s123
    %p130 = scmp.eq.s32.totalorder %s19, 1
    %p131 = por %p129, %p130
    %p132 = scmp.ne.s32.totalorder %s123, %s124
    %p133 = scmp.eq.s32.totalorder %s19, 0
    %p134 = por %p132, %p133
    %p135 = scmp.ne.s32.totalorder %s123, %s124
    %p136 = scmp.eq.s32.totalorder %s20, 1
    %p137 = por %p135, %p136
    %p139 = scmp.ne.s32.totalorder %s124, %s138
    %p140 = scmp.eq.s32.totalorder %s20, 0
    %p141 = por %p139, %p140
    %s143 = sadd.s32 %s142, 1
    %p146 = scmp.eq.s32.totalorder %s14, 1
    %p147 = scmp.ne.s32.totalorder %s142, %s144
    %p148 = scmp.eq.s32.totalorder %s14, 0
    %p149 = por %p147, %p148
    %p150 = scmp.ne.s32.totalorder %s142, %s144
    %p151 = scmp.eq.s32.totalorder %s19, 1
    %p152 = por %p150, %p151
    %p153 = scmp.ne.s32.totalorder %s144, %s145
    %p154 = scmp.eq.s32.totalorder %s19, 0
    %p155 = por %p153, %p154
    %p156 = scmp.ne.s32.totalorder %s144, %s145
    %p157 = scmp.eq.s32.totalorder %s20, 1
    %p158 = por %p156, %p157
    %p160 = scmp.ne.s32.totalorder %s145, %s159
    %p161 = scmp.eq.s32.totalorder %s20, 0
    %p162 = por %p160, %p161
    %s164 = sadd.s32 %s163, 1
    %p167 = scmp.eq.s32.totalorder %s14, 1
    %p168 = scmp.ne.s32.totalorder %s163, %s165
    %p169 = scmp.eq.s32.totalorder %s14, 0
    %p170 = por %p168, %p169
    %p171 = scmp.ne.s32.totalorder %s163, %s165
    %p172 = scmp.eq.s32.totalorder %s19, 1
    %p173 = por %p171, %p172
    %p174 = scmp.ne.s32.totalorder %s165, %s166
    %p175 = scmp.eq.s32.totalorder %s19, 0
    %p176 = por %p174, %p175
    %p177 = scmp.ne.s32.totalorder %s165, %s166
    %p178 = scmp.eq.s32.totalorder %s20, 1
    %p179 = por %p177, %p178
    %p181 = scmp.ne.s32.totalorder %s166, %s180
    %p182 = scmp.eq.s32.totalorder %s20, 0
    %p183 = por %p181, %p182
    %s185 = sadd.s32 %s184, 1
    %p188 = scmp.eq.s32.totalorder %s14, 1
    %p189 = scmp.ne.s32.totalorder %s184, %s186
    %p190 = scmp.eq.s32.totalorder %s14, 0
    %p191 = por %p189, %p190
    %p192 = scmp.ne.s32.totalorder %s184, %s186
    %p193 = scmp.eq.s32.totalorder %s19, 1
    %p194 = por %p192, %p193
    %p195 = scmp.ne.s32.totalorder %s186, %s187
    %p196 = scmp.eq.s32.totalorder %s19, 0
    %p197 = por %p195, %p196
    %p198 = scmp.ne.s32.totalorder %s186, %s187
    %p199 = scmp.eq.s32.totalorder %s20, 1
    %p200 = por %p198, %p199
    %p202 = scmp.ne.s32.totalorder %s187, %s201
    %p203 = scmp.eq.s32.totalorder %s20, 0
    %p204 = por %p202, %p203
    %s205 = ssub.s32 %s14, %s21
    %p206 = scmp.eq.s32.totalorder %s205, 0
    %s208 = sadd.s32 %s207, 1
    %s209 = scalar_select %p206, %s207, %s208
    %p212 = pneg %p206
    %p213 = scmp.eq.s32.totalorder %s14, 1
    %p214 = por %p212, %p213
    %p215 = scmp.ne.s32.totalorder %s207, %s210
    %p216 = scmp.eq.s32.totalorder %s14, 0
    %p217 = por %p215, %p216
    %p218 = scmp.ne.s32.totalorder %s207, %s210
    %p219 = scmp.eq.s32.totalorder %s19, 1
    %p220 = por %p218, %p219
    %p221 = scmp.ne.s32.totalorder %s210, %s211
    %p222 = scmp.eq.s32.totalorder %s19, 0
    %p223 = por %p221, %p222
    %p224 = scmp.ne.s32.totalorder %s210, %s211
    %p225 = scmp.eq.s32.totalorder %s20, 1
    %p226 = por %p224, %p225
    %p228 = scmp.ne.s32.totalorder %s211, %s227
    %p229 = scmp.eq.s32.totalorder %s20, 0
    %p230 = por %p228, %p229
    %p231 = scmp.le.s32.totalorder 1, %s14
    %p232 = scmp.lt.s32.totalorder %s14, 3
    %p233 = pnand %p231, %p232
    %p234 = pneg %p233
    // Predicated region
    $region9: #{tpu_custom_call.1} parent=5 // pred_check
      _
    $region10: #{tpu_custom_call.1} parent=5 // pred_check_branch
      %236 = sbr.rel (%p233) target = $region12
    $region11: #{tpu_custom_call.1} parent=5 // pred_region
      %s237 = ssub.s32 %s14, 1
      // Predicated region
      $region13: #{tpu_custom_call.1} parent=11 // pred_check
        %p238 = pneg %p113
      $region14: #{tpu_custom_call.1} parent=11 // pred_check_branch
        %240 = sbr.rel (%p238) target = $region16
      $region15: #{tpu_custom_call.1} parent=11 // pred_region
        _
      $region16: #{tpu_custom_call.1} parent=11 // pred_fallthru
        _
      // Predicated region
      $region17: #{tpu_custom_call.1} parent=11 // pred_check
        %p241 = pneg %p134
      $region18: #{tpu_custom_call.1} parent=11 // pred_check_branch
        %243 = sbr.rel (%p241) target = $region20
      $region19: #{tpu_custom_call.1} parent=11 // pred_region
        _
      $region20: #{tpu_custom_call.1} parent=11 // pred_fallthru
        _
      // Predicated region
      $region21: #{tpu_custom_call.1} parent=11 // pred_check
        %p244 = pneg %p155
      $region22: #{tpu_custom_call.1} parent=11 // pred_check_branch
        %246 = sbr.rel (%p244) target = $region24
      $region23: #{tpu_custom_call.1} parent=11 // pred_region
        _
      $region24: #{tpu_custom_call.1} parent=11 // pred_fallthru
        _
      // Predicated region
      $region25: #{tpu_custom_call.1} parent=11 // pred_check
        %p247 = pneg %p176
      $region26: #{tpu_custom_call.1} parent=11 // pred_check_branch
        %249 = sbr.rel (%p247) target = $region28
      $region27: #{tpu_custom_call.1} parent=11 // pred_region
        _
      $region28: #{tpu_custom_call.1} parent=11 // pred_fallthru
        _
      // Predicated region
      $region29: #{tpu_custom_call.1} parent=11 // pred_check
        %p250 = pneg %p197
      $region30: #{tpu_custom_call.1} parent=11 // pred_check_branch
        %252 = sbr.rel (%p250) target = $region32
      $region31: #{tpu_custom_call.1} parent=11 // pred_region
        _
      $region32: #{tpu_custom_call.1} parent=11 // pred_fallthru
        _
    $region12: #{tpu_custom_call.1} parent=5 // pred_fallthru
      _
    %p253 = scmp.lt.s32.totalorder %s14, 2
    // Predicated region
    $region33: #{tpu_custom_call.1} parent=5 // pred_check
      %p254 = pneg %p253
    $region34: #{tpu_custom_call.1} parent=5 // pred_check_branch
      %256 = sbr.rel (%p254) target = $region36
    $region35: #{tpu_custom_call.1} parent=5 // pred_region
      // Predicated region
      $region37: #{tpu_custom_call.1} parent=35 // pred_check
        %p257 = pneg %p34
      $region38: #{tpu_custom_call.1} parent=35 // pred_check_branch
        %259 = sbr.rel (%p257) target = $region40
      $region39: #{tpu_custom_call.1} parent=35 // pred_region
        %s260 = smul.u32 32, %s14
        %p261 = scmp.lt.s32.totalorder %s260, 63
        %s262 = scalar_select %p261, %s260, 63
        %s263 = smul.addr %s262, 8
        %s264 = scalar_lea.vmem %s0, %s263
        %s265 = smul.u32 32, %s14
      $region40: #{tpu_custom_call.1} parent=35 // pred_fallthru
        _
      // Predicated region
      $region41: #{tpu_custom_call.1} parent=35 // pred_check
        %p266 = pneg %p60
      $region42: #{tpu_custom_call.1} parent=35 // pred_check_branch
        %268 = sbr.rel (%p266) target = $region44
      $region43: #{tpu_custom_call.1} parent=35 // pred_region
        %s269 = smul.u32 32, %s14
        %p270 = scmp.lt.s32.totalorder %s269, 63
        %s271 = scalar_select %p270, %s269, 63
        %s272 = smul.addr %s271, 8
        %s273 = scalar_lea.vmem %s1, %s272
        %s274 = smul.u32 32, %s14
      $region44: #{tpu_custom_call.1} parent=35 // pred_fallthru
        _
      // Predicated region
      $region45: #{tpu_custom_call.1} parent=35 // pred_check
        %p275 = pneg %p86
      $region46: #{tpu_custom_call.1} parent=35 // pred_check_branch
        %277 = sbr.rel (%p275) target = $region48
      $region47: #{tpu_custom_call.1} parent=35 // pred_region
        %s278 = smul.u32 32, %s14
        %p279 = scmp.lt.s32.totalorder %s278, 63
        %s280 = scalar_select %p279, %s278, 63
        %s281 = scalar_lea.vmem %s2, %s280
        %s282 = smul.u32 32, %s14
      $region48: #{tpu_custom_call.1} parent=35 // pred_fallthru
        _
    $region36: #{tpu_custom_call.1} parent=5 // pred_fallthru
      _
    %p283 = scmp.le.s32.totalorder 1, %s14
    %p284 = scmp.lt.s32.totalorder %s14, 3
    %p285 = pnand %p283, %p284
    %p286 = pneg %p285
    // Predicated region
    $region49: #{tpu_custom_call.1} parent=5 // pred_check
      _
    $region50: #{tpu_custom_call.1} parent=5 // pred_check_branch
      %288 = sbr.rel (%p285) target = $region52
    $region51: #{tpu_custom_call.1} parent=5 // pred_region
      %s289 = ssub.s32 %s14, 1
      %s290 = smul.u32 32, %s19
      %p291 = scmp.lt.s32.totalorder %s290, 63
      %s292 = scalar_select %p291, %s290, 63
      %s293 = smul.addr %s292, 8
      %s294 = scalar_lea.vmem %s0, %s293
      %p295 = pneg %p40
      %p296 = pneg %p37
      %s297 = smul.u32 32, %s19
      %p298 = scmp.lt.s32.totalorder %s297, 63
      %s299 = scalar_select %p298, %s297, 63
      %s300 = smul.addr %s299, 8
      %s301 = scalar_lea.vmem %s1, %s300
      %p302 = pneg %p66
      %p303 = pneg %p63
      %s304 = smul.u32 32, %s19
      %p305 = scmp.lt.s32.totalorder %s304, 63
      %s306 = scalar_select %p305, %s304, 63
      %s307 = scalar_lea.vmem %s2, %s306
      %p308 = pneg %p92
      %p309 = pneg %p89
      %p310 = pneg %p113
      %p311 = pneg %p110
      %p312 = pneg %p134
      %p313 = pneg %p131
      %p314 = pneg %p155
      %p315 = pneg %p152
      %p316 = pneg %p176
      %p317 = pneg %p173
      %p318 = pneg %p197
      %p319 = pneg %p194
      %p320 = pneg %p223
      %p321 = pneg %p220
      %s322 = smul.u32 32, %s19
      %p323 = scmp.lt.s32.totalorder %s322, 63
      %s324 = scalar_select %p323, %s322, 63
      %s325 = smul.addr %s324, 8
      %s326 = scalar_lea.vmem %s8, %s325
      %s327 = smul.u32 32, %s19
      %p328 = scmp.lt.s32.totalorder %s327, 63
      %s329 = scalar_select %p328, %s327, 63
      %s330 = smul.addr %s329, 8
      %s331 = scalar_lea.vmem %s0, %s330
      %s332 = smul.u32 32, %s19
      %s333 = smul.u32 32, %s19
      %p334 = scmp.lt.s32.totalorder %s333, 63
      %s335 = scalar_select %p334, %s333, 63
      %s336 = smul.addr %s335, 8
      %s337 = scalar_lea.vmem %s1, %s336
      %s338 = smul.u32 32, %s19
      %s339 = smul.u32 32, %s19
      %p340 = scmp.lt.s32.totalorder %s339, 63
      %s341 = scalar_select %p340, %s339, 63
      %s342 = scalar_lea.vmem %s2, %s341
      %s343 = smul.u32 32, %s19
      %s344 = smul.u32 32, %s19
      %p345 = scmp.lt.s32.totalorder %s344, 63
      %s346 = scalar_select %p345, %s344, 63
      %s347 = smul.addr %s346, 8
      %s348 = scalar_lea.vmem %s8, %s347
      %s349 = smul.u32 32, %s19
      %v350 = vld [vmem:[%s331] sm:$0xff]
      %v351 = vld [vmem:[%s331 + $0x8] sm:$0xff]
      %v352 = vld [vmem:[%s331 + $0x10] sm:$0xff]
      %v353 = vld [vmem:[%s331 + $0x18] sm:$0xff]
      %v354 = vld [vmem:[%s331 + $0x20] sm:$0xff]
      %v355 = vld [vmem:[%s331 + $0x28] sm:$0xff]
      %v356 = vld [vmem:[%s331 + $0x30] sm:$0xff]
      %v357 = vld [vmem:[%s331 + $0x38] sm:$0xff]
      %v358 = vld [vmem:[%s331 + $0x40] sm:$0xff]
      %v359 = vld [vmem:[%s331 + $0x48] sm:$0xff]
      %v360 = vld [vmem:[%s331 + $0x50] sm:$0xff]
      %v361 = vld [vmem:[%s331 + $0x58] sm:$0xff]
      %v362 = vld [vmem:[%s331 + $0x60] sm:$0xff]
      %v363 = vld [vmem:[%s331 + $0x68] sm:$0xff]
      %v364 = vld [vmem:[%s331 + $0x70] sm:$0xff]
      %v365 = vld [vmem:[%s331 + $0x78] sm:$0xff]
      %v366 = vld [vmem:[%s331 + $0x80] sm:$0xff]
      %v367 = vld [vmem:[%s331 + $0x88] sm:$0xff]
      %v368 = vld [vmem:[%s331 + $0x90] sm:$0xff]
      %v369 = vld [vmem:[%s331 + $0x98] sm:$0xff]
      %v370 = vld [vmem:[%s331 + $0xa0] sm:$0xff]
      %v371 = vld [vmem:[%s331 + $0xa8] sm:$0xff]
      %v372 = vld [vmem:[%s331 + $0xb0] sm:$0xff]
      %v373 = vld [vmem:[%s331 + $0xb8] sm:$0xff]
      %v374 = vld [vmem:[%s331 + $0xc0] sm:$0xff]
      %v375 = vld [vmem:[%s331 + $0xc8] sm:$0xff]
      %v376 = vld [vmem:[%s331 + $0xd0] sm:$0xff]
      %v377 = vld [vmem:[%s331 + $0xd8] sm:$0xff]
      %v378 = vld [vmem:[%s331 + $0xe0] sm:$0xff]
      %v379 = vld [vmem:[%s331 + $0xe8] sm:$0xff]
      %v380 = vld [vmem:[%s331 + $0xf0] sm:$0xff]
      %v381 = vld [vmem:[%s331 + $0xf8] sm:$0xff]
      %v382 = vld [vmem:[%s337] sm:$0xff]
      %v383 = vld [vmem:[%s337 + $0x8] sm:$0xff]
      %v384 = vld [vmem:[%s337 + $0x10] sm:$0xff]
      %v385 = vld [vmem:[%s337 + $0x18] sm:$0xff]
      %v386 = vld [vmem:[%s337 + $0x20] sm:$0xff]
      %v387 = vld [vmem:[%s337 + $0x28] sm:$0xff]
      %v388 = vld [vmem:[%s337 + $0x30] sm:$0xff]
      %v389 = vld [vmem:[%s337 + $0x38] sm:$0xff]
      %v390 = vld [vmem:[%s337 + $0x40] sm:$0xff]
      %v391 = vld [vmem:[%s337 + $0x48] sm:$0xff]
      %v392 = vld [vmem:[%s337 + $0x50] sm:$0xff]
      %v393 = vld [vmem:[%s337 + $0x58] sm:$0xff]
      %v394 = vld [vmem:[%s337 + $0x60] sm:$0xff]
      %v395 = vld [vmem:[%s337 + $0x68] sm:$0xff]
      %v396 = vld [vmem:[%s337 + $0x70] sm:$0xff]
      %v397 = vld [vmem:[%s337 + $0x78] sm:$0xff]
      %v398 = vld [vmem:[%s337 + $0x80] sm:$0xff]
      %v399 = vld [vmem:[%s337 + $0x88] sm:$0xff]
      %v400 = vld [vmem:[%s337 + $0x90] sm:$0xff]
      %v401 = vld [vmem:[%s337 + $0x98] sm:$0xff]
      %v402 = vld [vmem:[%s337 + $0xa0] sm:$0xff]
      %v403 = vld [vmem:[%s337 + $0xa8] sm:$0xff]
      %v404 = vld [vmem:[%s337 + $0xb0] sm:$0xff]
      %v405 = vld [vmem:[%s337 + $0xb8] sm:$0xff]
      %v406 = vld [vmem:[%s337 + $0xc0] sm:$0xff]
      %v407 = vld [vmem:[%s337 + $0xc8] sm:$0xff]
      %v408 = vld [vmem:[%s337 + $0xd0] sm:$0xff]
      %v409 = vld [vmem:[%s337 + $0xd8] sm:$0xff]
      %v410 = vld [vmem:[%s337 + $0xe0] sm:$0xff]
      %v411 = vld [vmem:[%s337 + $0xe8] sm:$0xff]
      %v412 = vld [vmem:[%s337 + $0xf0] sm:$0xff]
      %v413 = vld [vmem:[%s337 + $0xf8] sm:$0xff]
      %v414 = vld [vmem:[%s342] sm:$0x1]
      %v415 = vld [vmem:[%s342 + $0x1] sm:$0x1]
      %v416 = vld [vmem:[%s342 + $0x2] sm:$0x1]
      %v417 = vld [vmem:[%s342 + $0x3] sm:$0x1]
      %v418 = vld [vmem:[%s342 + $0x4] sm:$0x1]
      %v419 = vld [vmem:[%s342 + $0x5] sm:$0x1]
      %v420 = vld [vmem:[%s342 + $0x6] sm:$0x1]
      %v421 = vld [vmem:[%s342 + $0x7] sm:$0x1]
      %v422 = vld [vmem:[%s342 + $0x8] sm:$0x1]
      %v423 = vld [vmem:[%s342 + $0x9] sm:$0x1]
      %v424 = vld [vmem:[%s342 + $0xa] sm:$0x1]
      %v425 = vld [vmem:[%s342 + $0xb] sm:$0x1]
      %v426 = vld [vmem:[%s342 + $0xc] sm:$0x1]
      %v427 = vld [vmem:[%s342 + $0xd] sm:$0x1]
      %v428 = vld [vmem:[%s342 + $0xe] sm:$0x1]
      %v429 = vld [vmem:[%s342 + $0xf] sm:$0x1]
      %v430 = vld [vmem:[%s342 + $0x10] sm:$0x1]
      %v431 = vld [vmem:[%s342 + $0x11] sm:$0x1]
      %v432 = vld [vmem:[%s342 + $0x12] sm:$0x1]
      %v433 = vld [vmem:[%s342 + $0x13] sm:$0x1]
      %v434 = vld [vmem:[%s342 + $0x14] sm:$0x1]
      %v435 = vld [vmem:[%s342 + $0x15] sm:$0x1]
      %v436 = vld [vmem:[%s342 + $0x16] sm:$0x1]
      %v437 = vld [vmem:[%s342 + $0x17] sm:$0x1]
      %v438 = vld [vmem:[%s342 + $0x18] sm:$0x1]
      %v439 = vld [vmem:[%s342 + $0x19] sm:$0x1]
      %v440 = vld [vmem:[%s342 + $0x1a] sm:$0x1]
      %v441 = vld [vmem:[%s342 + $0x1b] sm:$0x1]
      %v442 = vld [vmem:[%s342 + $0x1c] sm:$0x1]
      %v443 = vld [vmem:[%s342 + $0x1d] sm:$0x1]
      %v444 = vld [vmem:[%s342 + $0x1e] sm:$0x1]
      %v445 = vld [vmem:[%s342 + $0x1f] sm:$0x1]
      %v446 = vld [vmem:[%s3] sm:$0xff]
      %v447 = vld [vmem:[%s3 + $0x8] sm:$0xff]
      %v448 = vld [vmem:[%s3 + $0x10] sm:$0xff]
      %v449 = vld [vmem:[%s3 + $0x18] sm:$0xff]
      %vm450 = vcmask 261120
      %v452 = vsel %vm450, %v350, 0
      %v455 = vsel %vm450, %v351, 0
      %v458 = vsel %vm450, %v352, 0
      %v461 = vsel %vm450, %v353, 0
      %v464 = vsel %vm450, %v354, 0
      %v467 = vsel %vm450, %v355, 0
      %v470 = vsel %vm450, %v356, 0
      %v473 = vsel %vm450, %v357, 0
      %v476 = vsel %vm450, %v358, 0
      %v479 = vsel %vm450, %v359, 0
      %v482 = vsel %vm450, %v360, 0
      %v485 = vsel %vm450, %v361, 0
      %v488 = vsel %vm450, %v362, 0
      %v491 = vsel %vm450, %v363, 0
      %v494 = vsel %vm450, %v364, 0
      %v497 = vsel %vm450, %v365, 0
      %v500 = vsel %vm450, %v366, 0
      %v503 = vsel %vm450, %v367, 0
      %v506 = vsel %vm450, %v368, 0
      %v509 = vsel %vm450, %v369, 0
      %v512 = vsel %vm450, %v370, 0
      %v515 = vsel %vm450, %v371, 0
      %v518 = vsel %vm450, %v372, 0
      %v521 = vsel %vm450, %v373, 0
      %v524 = vsel %vm450, %v374, 0
      %v527 = vsel %vm450, %v375, 0
      %v530 = vsel %vm450, %v376, 0
      %v533 = vsel %vm450, %v377, 0
      %v536 = vsel %vm450, %v378, 0
      %v539 = vsel %vm450, %v379, 0
      %v542 = vsel %vm450, %v380, 0
      %v545 = vsel %vm450, %v381, 0
      %547 = vmatprep.subr.mxu0 0.0
      %548 = vmatpush1.msra.mxu0 %v446
      %549 = vmatprep.subr.mxu0 0.0
      %550 = vmatpush1.msra.mxu0 %v447
      %551 = vmatprep.subr.mxu0 0.0
      %552 = vmatpush1.msra.mxu0 %v448
      %553 = vmatprep.subr.mxu0 0.0
      %554 = vmatpush1.msra.mxu0 %v449
      %555 = vmatprep.subr.mxu0 0.0
      %556 = vmatpush1.msra.mxu0 0.0
      %557 = vmatprep.subr.mxu0 0.0
      %558 = vmatpush1.msra.mxu0 0.0
      %559 = vmatprep.subr.mxu0 0.0
      %560 = vmatpush1.msra.mxu0 0.0
      %561 = vmatprep.subr.mxu0 0.0
      %562 = vmatpush1.msra.mxu0 0.0
      %563 = vmatprep.subr.mxu0 0.0
      %564 = vmatpush1.msra.mxu0 0.0
      %565 = vmatprep.subr.mxu0 0.0
      %566 = vmatpush1.msra.mxu0 0.0
      %567 = vmatprep.subr.mxu0 0.0
      %568 = vmatpush1.msra.mxu0 0.0
      %569 = vmatprep.subr.mxu0 0.0
      %570 = vmatpush1.msra.mxu0 0.0
      %571 = vmatprep.subr.mxu0 0.0
      %572 = vmatpush1.msra.mxu0 0.0
      %573 = vmatprep.subr.mxu0 0.0
      %574 = vmatpush1.msra.mxu0 0.0
      %575 = vmatprep.subr.mxu0 0.0
      %576 = vmatpush1.msra.mxu0 0.0
      %577 = vmatprep.subr.mxu0 0.0
      %578 = vmatpush1.msra.mxu0 0.0
      %579 = vmatprep.subr.mxu0 0.0
      %580 = vmatpush1.msra.mxu0 0.0
      %581 = vmatprep.subr.mxu0 0.0
      %582 = vmatpush1.msra.mxu0 0.0
      %583 = vmatprep.subr.mxu0 0.0
      %584 = vmatpush1.msra.mxu0 0.0
      %585 = vmatprep.subr.mxu0 0.0
      %586 = vmatpush1.msra.mxu0 0.0
      %587 = vmatprep.subr.mxu0 0.0
      %588 = vmatpush1.msra.mxu0 0.0
      %589 = vmatprep.subr.mxu0 0.0
      %590 = vmatpush1.msra.mxu0 0.0
      %591 = vmatprep.subr.mxu0 0.0
      %592 = vmatpush1.msra.mxu0 0.0
      %593 = vmatprep.subr.mxu0 0.0
      %594 = vmatpush1.msra.mxu0 0.0
      %595 = vmatprep.subr.mxu0 0.0
      %596 = vmatpush1.msra.mxu0 0.0
      %597 = vmatprep.subr.mxu0 0.0
      %598 = vmatpush1.msra.mxu0 0.0
      %599 = vmatprep.subr.mxu0 0.0
      %600 = vmatpush1.msra.mxu0 0.0
      %601 = vmatprep.subr.mxu0 0.0
      %602 = vmatpush1.msra.mxu0 0.0
      %603 = vmatprep.subr.mxu0 0.0
      %604 = vmatpush1.msra.mxu0 0.0
      %605 = vmatprep.subr.mxu0 0.0
      %606 = vmatpush1.msra.mxu0 0.0
      %607 = vmatprep.subr.mxu0 0.0
      %608 = vmatpush1.msra.mxu0 0.0
      %609 = vmatprep.subr.mxu0 0.0
      %610 = vmatpush1.msra.mxu0 0.0
      %611 = vmatprep.mubr.f32.mxu0 0.0
      %612 = vmatmul.mubr.f32.gmra.mrb[0].mxu0 %v452
      %v613 = vpop.f32.mrb[0].mxu0
      %v614 = vadd.f32 0.0, %v613
      %v615 = vpop.f32.mrb[0].mxu0
      %616 = vmatprep.mubr.f32.mxu0 0.0
      %617 = vmatmul.mubr.f32.gmra.mrb[0].mxu0 %v455
      %v618 = vpop.f32.mrb[0].mxu0
      %v619 = vadd.f32 0.0, %v618
      %v620 = vpop.f32.mrb[0].mxu0
      %621 = vmatprep.mubr.f32.mxu0 0.0
      %622 = vmatmul.mubr.f32.gmra.mrb[0].mxu0 %v458
      %v623 = vpop.f32.mrb[0].mxu0
      %v624 = vadd.f32 0.0, %v623
      %v625 = vpop.f32.mrb[0].mxu0
      %626 = vmatprep.mubr.f32.mxu0 0.0
      %627 = vmatmul.mubr.f32.gmra.mrb[0].mxu0 %v461
      %v628 = vpop.f32.mrb[0].mxu0
      %v629 = vadd.f32 0.0, %v628
      %v630 = vpop.f32.mrb[0].mxu0
      %631 = vmatprep.mubr.f32.mxu0 0.0
      %632 = vmatmul.mubr.f32.gmra.mrb[0].mxu0 %v464
      %v633 = vpop.f32.mrb[0].mxu0
      %v634 = vadd.f32 0.0, %v633
      %v635 = vpop.f32.mrb[0].mxu0
      %636 = vmatprep.mubr.f32.mxu0 0.0
      %637 = vmatmul.mubr.f32.gmra.mrb[0].mxu0 %v467
      %v638 = vpop.f32.mrb[0].mxu0
      %v639 = vadd.f32 0.0, %v638
      %v640 = vpop.f32.mrb[0].mxu0
      %641 = vmatprep.mubr.f32.mxu0 0.0
      %642 = vmatmul.mubr.f32.gmra.mrb[0].mxu0 %v470
      %v643 = vpop.f32.mrb[0].mxu0
      %v644 = vadd.f32 0.0, %v643
      %v645 = vpop.f32.mrb[0].mxu0
      %646 = vmatprep.mubr.f32.mxu0 0.0
      %647 = vmatmul.mubr.f32.gmra.mrb[0].mxu0 %v473
      %v648 = vpop.f32.mrb[0].mxu0
      %v649 = vadd.f32 0.0, %v648
      %v650 = vpop.f32.mrb[0].mxu0
      %651 = vmatprep.mubr.f32.mxu0 0.0
      %652 = vmatmul.mubr.f32.gmra.mrb[0].mxu0 %v476
      %v653 = vpop.f32.mrb[0].mxu0
      %v654 = vadd.f32 0.0, %v653
      %v655 = vpop.f32.mrb[0].mxu0
      %656 = vmatprep.mubr.f32.mxu0 0.0
      %657 = vmatmul.mubr.f32.gmra.mrb[0].mxu0 %v479
      %v658 = vpop.f32.mrb[0].mxu0
      %v659 = vadd.f32 0.0, %v658
      %v660 = vpop.f32.mrb[0].mxu0
      %661 = vmatprep.mubr.f32.mxu0 0.0
      %662 = vmatmul.mubr.f32.gmra.mrb[0].mxu0 %v482
      %v663 = vpop.f32.mrb[0].mxu0
      %v664 = vadd.f32 0.0, %v663
      %v665 = vpop.f32.mrb[0].mxu0
      %666 = vmatprep.mubr.f32.mxu0 0.0
      %667 = vmatmul.mubr.f32.gmra.mrb[0].mxu0 %v485
      %v668 = vpop.f32.mrb[0].mxu0
      %v669 = vadd.f32 0.0, %v668
      %v670 = vpop.f32.mrb[0].mxu0
      %671 = vmatprep.mubr.f32.mxu0 0.0
      %672 = vmatmul.mubr.f32.gmra.mrb[0].mxu0 %v488
      %v673 = vpop.f32.mrb[0].mxu0
      %v674 = vadd.f32 0.0, %v673
      %v675 = vpop.f32.mrb[0].mxu0
      %676 = vmatprep.mubr.f32.mxu0 0.0
      %677 = vmatmul.mubr.f32.gmra.mrb[0].mxu0 %v491
      %v678 = vpop.f32.mrb[0].mxu0
      %v679 = vadd.f32 0.0, %v678
      %v680 = vpop.f32.mrb[0].mxu0
      %681 = vmatprep.mubr.f32.mxu0 0.0
      %682 = vmatmul.mubr.f32.gmra.mrb[0].mxu0 %v494
      %v683 = vpop.f32.mrb[0].mxu0
      %v684 = vadd.f32 0.0, %v683
      %v685 = vpop.f32.mrb[0].mxu0
      %686 = vmatprep.mubr.f32.mxu0 0.0
      %687 = vmatmul.mubr.f32.gmra.mrb[0].mxu0 %v497
      %v688 = vpop.f32.mrb[0].mxu0
      %v689 = vadd.f32 0.0, %v688
      %v690 = vpop.f32.mrb[0].mxu0
      %691 = vmatprep.mubr.f32.mxu0 0.0
      %692 = vmatmul.mubr.f32.gmra.mrb[0].mxu0 %v500
      %v693 = vpop.f32.mrb[0].mxu0
      %v694 = vadd.f32 0.0, %v693
      %v695 = vpop.f32.mrb[0].mxu0
      %696 = vmatprep.mubr.f32.mxu0 0.0
      %697 = vmatmul.mubr.f32.gmra.mrb[0].mxu0 %v503
      %v698 = vpop.f32.mrb[0].mxu0
      %v699 = vadd.f32 0.0, %v698
      %v700 = vpop.f32.mrb[0].mxu0
      %701 = vmatprep.mubr.f32.mxu0 0.0
      %702 = vmatmul.mubr.f32.gmra.mrb[0].mxu0 %v506
      %v703 = vpop.f32.mrb[0].mxu0
      %v704 = vadd.f32 0.0, %v703
      %v705 = vpop.f32.mrb[0].mxu0
      %706 = vmatprep.mubr.f32.mxu0 0.0
      %707 = vmatmul.mubr.f32.gmra.mrb[0].mxu0 %v509
      %v708 = vpop.f32.mrb[0].mxu0
      %v709 = vadd.f32 0.0, %v708
      %v710 = vpop.f32.mrb[0].mxu0
      %711 = vmatprep.mubr.f32.mxu0 0.0
      %712 = vmatmul.mubr.f32.gmra.mrb[0].mxu0 %v512
      %v713 = vpop.f32.mrb[0].mxu0
      %v714 = vadd.f32 0.0, %v713
      %v715 = vpop.f32.mrb[0].mxu0
      %716 = vmatprep.mubr.f32.mxu0 0.0
      %717 = vmatmul.mubr.f32.gmra.mrb[0].mxu0 %v515
      %v718 = vpop.f32.mrb[0].mxu0
      %v719 = vadd.f32 0.0, %v718
      %v720 = vpop.f32.mrb[0].mxu0
      %721 = vmatprep.mubr.f32.mxu0 0.0
      %722 = vmatmul.mubr.f32.gmra.mrb[0].mxu0 %v518
      %v723 = vpop.f32.mrb[0].mxu0
      %v724 = vadd.f32 0.0, %v723
      %v725 = vpop.f32.mrb[0].mxu0
      %726 = vmatprep.mubr.f32.mxu0 0.0
      %727 = vmatmul.mubr.f32.gmra.mrb[0].mxu0 %v521
      %v728 = vpop.f32.mrb[0].mxu0
      %v729 = vadd.f32 0.0, %v728
      %v730 = vpop.f32.mrb[0].mxu0
      %731 = vmatprep.mubr.f32.mxu0 0.0
      %732 = vmatmul.mubr.f32.gmra.mrb[0].mxu0 %v524
      %v733 = vpop.f32.mrb[0].mxu0
      %v734 = vadd.f32 0.0, %v733
      %v735 = vpop.f32.mrb[0].mxu0
      %736 = vmatprep.mubr.f32.mxu0 0.0
      %737 = vmatmul.mubr.f32.gmra.mrb[0].mxu0 %v527
      %v738 = vpop.f32.mrb[0].mxu0
      %v739 = vadd.f32 0.0, %v738
      %v740 = vpop.f32.mrb[0].mxu0
      %741 = vmatprep.mubr.f32.mxu0 0.0
      %742 = vmatmul.mubr.f32.gmra.mrb[0].mxu0 %v530
      %v743 = vpop.f32.mrb[0].mxu0
      %v744 = vadd.f32 0.0, %v743
      %v745 = vpop.f32.mrb[0].mxu0
      %746 = vmatprep.mubr.f32.mxu0 0.0
      %747 = vmatmul.mubr.f32.gmra.mrb[0].mxu0 %v533
      %v748 = vpop.f32.mrb[0].mxu0
      %v749 = vadd.f32 0.0, %v748
      %v750 = vpop.f32.mrb[0].mxu0
      %751 = vmatprep.mubr.f32.mxu0 0.0
      %752 = vmatmul.mubr.f32.gmra.mrb[0].mxu0 %v536
      %v753 = vpop.f32.mrb[0].mxu0
      %v754 = vadd.f32 0.0, %v753
      %v755 = vpop.f32.mrb[0].mxu0
      %756 = vmatprep.mubr.f32.mxu0 0.0
      %757 = vmatmul.mubr.f32.gmra.mrb[0].mxu0 %v539
      %v758 = vpop.f32.mrb[0].mxu0
      %v759 = vadd.f32 0.0, %v758
      %v760 = vpop.f32.mrb[0].mxu0
      %761 = vmatprep.mubr.f32.mxu0 0.0
      %762 = vmatmul.mubr.f32.gmra.mrb[0].mxu0 %v542
      %v763 = vpop.f32.mrb[0].mxu0
      %v764 = vadd.f32 0.0, %v763
      %v765 = vpop.f32.mrb[0].mxu0
      %766 = vmatprep.mubr.f32.mxu0 0.0
      %767 = vmatmul.mubr.f32.gmra.mrb[0].mxu0 %v545
      %v768 = vpop.f32.mrb[0].mxu0
      %v769 = vadd.f32 0.0, %v768
      %v770 = vpop.f32.mrb[0].mxu0
      %771 = vdwg.mxu0
      %v772 = vld [vmem:[%s5] sm:$0x1]
      %v774 = vlaneseq
      %v775 = vshrl.u32 %v774, 7
      %v776 = vsub.s32 0, %v775
      %v777 = vrot.slane %v772, %v776
      %778 = vrot.lane.b32.xlu0 %v777, 32
      %v779 = vpop.permute.xlu0 %778
      %v781 = vadd.f32 %v614, %v779
      %v782 = vadd.f32 %v619, %v779
      %v783 = vadd.f32 %v624, %v779
      %v784 = vadd.f32 %v629, %v779
      %v785 = vadd.f32 %v634, %v779
      %v786 = vadd.f32 %v639, %v779
      %v787 = vadd.f32 %v644, %v779
      %v788 = vadd.f32 %v649, %v779
      %v789 = vadd.f32 %v654, %v779
      %v790 = vadd.f32 %v659, %v779
      %v791 = vadd.f32 %v664, %v779
      %v792 = vadd.f32 %v669, %v779
      %v793 = vadd.f32 %v674, %v779
      %v794 = vadd.f32 %v679, %v779
      %v795 = vadd.f32 %v684, %v779
      %v796 = vadd.f32 %v689, %v779
      %v797 = vadd.f32 %v694, %v779
      %v798 = vadd.f32 %v699, %v779
      %v799 = vadd.f32 %v704, %v779
      %v800 = vadd.f32 %v709, %v779
      %v801 = vadd.f32 %v714, %v779
      %v802 = vadd.f32 %v719, %v779
      %v803 = vadd.f32 %v724, %v779
      %v804 = vadd.f32 %v729, %v779
      %v805 = vadd.f32 %v734, %v779
      %v806 = vadd.f32 %v739, %v779
      %v807 = vadd.f32 %v744, %v779
      %v808 = vadd.f32 %v749, %v779
      %v809 = vadd.f32 %v754, %v779
      %v810 = vadd.f32 %v759, %v779
      %v811 = vadd.f32 %v764, %v779
      %v812 = vadd.f32 %v769, %v779
      %v813 = vxor.u32 %v781, 2147483648
      %v814 = vxor.u32 %v782, 2147483648
      %v815 = vxor.u32 %v783, 2147483648
      %v816 = vxor.u32 %v784, 2147483648
      %v817 = vxor.u32 %v785, 2147483648
      %v818 = vxor.u32 %v786, 2147483648
      %v819 = vxor.u32 %v787, 2147483648
      %v820 = vxor.u32 %v788, 2147483648
      %v821 = vxor.u32 %v789, 2147483648
      %v822 = vxor.u32 %v790, 2147483648
      %v823 = vxor.u32 %v791, 2147483648
      %v824 = vxor.u32 %v792, 2147483648
      %v825 = vxor.u32 %v793, 2147483648
      %v826 = vxor.u32 %v794, 2147483648
      %v827 = vxor.u32 %v795, 2147483648
      %v828 = vxor.u32 %v796, 2147483648
      %v829 = vxor.u32 %v797, 2147483648
      %v830 = vxor.u32 %v798, 2147483648
      %v831 = vxor.u32 %v799, 2147483648
      %v832 = vxor.u32 %v800, 2147483648
      %v833 = vxor.u32 %v801, 2147483648
      %v834 = vxor.u32 %v802, 2147483648
      %v835 = vxor.u32 %v803, 2147483648
      %v836 = vxor.u32 %v804, 2147483648
      %v837 = vxor.u32 %v805, 2147483648
      %v838 = vxor.u32 %v806, 2147483648
      %v839 = vxor.u32 %v807, 2147483648
      %v840 = vxor.u32 %v808, 2147483648
      %v841 = vxor.u32 %v809, 2147483648
      %v842 = vxor.u32 %v810, 2147483648
      %v843 = vxor.u32 %v811, 2147483648
      %v844 = vxor.u32 %v812, 2147483648
      %v845 = vmul.f32 %v813, 1.442695
      %v846 = vpow.pop %v845
      %v847 = vmul.f32 %v814, 1.442695
      %v848 = vpow.pop %v847
      %v849 = vmul.f32 %v815, 1.442695
      %v850 = vpow.pop %v849
      %v851 = vmul.f32 %v816, 1.442695
      %v852 = vpow.pop %v851
      %v853 = vmul.f32 %v817, 1.442695
      %v854 = vpow.pop %v853
      %v855 = vmul.f32 %v818, 1.442695
      %v856 = vpow.pop %v855
      %v857 = vmul.f32 %v819, 1.442695
      %v858 = vpow.pop %v857
      %v859 = vmul.f32 %v820, 1.442695
      %v860 = vpow.pop %v859
      %v861 = vmul.f32 %v821, 1.442695
      %v862 = vpow.pop %v861
      %v863 = vmul.f32 %v822, 1.442695
      %v864 = vpow.pop %v863
      %v865 = vmul.f32 %v823, 1.442695
      %v866 = vpow.pop %v865
      %v867 = vmul.f32 %v824, 1.442695
      %v868 = vpow.pop %v867
      %v869 = vmul.f32 %v825, 1.442695
      %v870 = vpow.pop %v869
      %v871 = vmul.f32 %v826, 1.442695
      %v872 = vpow.pop %v871
      %v873 = vmul.f32 %v827, 1.442695
      %v874 = vpow.pop %v873
      %v875 = vmul.f32 %v828, 1.442695
      %v876 = vpow.pop %v875
      %v877 = vmul.f32 %v829, 1.442695
      %v878 = vpow.pop %v877
      %v879 = vmul.f32 %v830, 1.442695
      %v880 = vpow.pop %v879
      %v881 = vmul.f32 %v831, 1.442695
      %v882 = vpow.pop %v881
      %v883 = vmul.f32 %v832, 1.442695
      %v884 = vpow.pop %v883
      %v885 = vmul.f32 %v833, 1.442695
      %v886 = vpow.pop %v885
      %v887 = vmul.f32 %v834, 1.442695
      %v888 = vpow.pop %v887
      %v889 = vmul.f32 %v835, 1.442695
      %v890 = vpow.pop %v889
      %v891 = vmul.f32 %v836, 1.442695
      %v892 = vpow.pop %v891
      %v893 = vmul.f32 %v837, 1.442695
      %v894 = vpow.pop %v893
      %v895 = vmul.f32 %v838, 1.442695
      %v896 = vpow.pop %v895
      %v897 = vmul.f32 %v839, 1.442695
      %v898 = vpow.pop %v897
      %v899 = vmul.f32 %v840, 1.442695
      %v900 = vpow.pop %v899
      %v901 = vmul.f32 %v841, 1.442695
      %v902 = vpow.pop %v901
      %v903 = vmul.f32 %v842, 1.442695
      %v904 = vpow.pop %v903
      %v905 = vmul.f32 %v843, 1.442695
      %v906 = vpow.pop %v905
      %v907 = vmul.f32 %v844, 1.442695
      %v908 = vpow.pop %v907
      %v909 = vadd.f32 %v846, 1.0
      %v910 = vadd.f32 %v848, 1.0
      %v911 = vadd.f32 %v850, 1.0
      %v912 = vadd.f32 %v852, 1.0
      %v913 = vadd.f32 %v854, 1.0
      %v914 = vadd.f32 %v856, 1.0
      %v915 = vadd.f32 %v858, 1.0
      %v916 = vadd.f32 %v860, 1.0
      %v917 = vadd.f32 %v862, 1.0
      %v918 = vadd.f32 %v864, 1.0
      %v919 = vadd.f32 %v866, 1.0
      %v920 = vadd.f32 %v868, 1.0
      %v921 = vadd.f32 %v870, 1.0
      %v922 = vadd.f32 %v872, 1.0
      %v923 = vadd.f32 %v874, 1.0
      %v924 = vadd.f32 %v876, 1.0
      %v925 = vadd.f32 %v878, 1.0
      %v926 = vadd.f32 %v880, 1.0
      %v927 = vadd.f32 %v882, 1.0
      %v928 = vadd.f32 %v884, 1.0
      %v929 = vadd.f32 %v886, 1.0
      %v930 = vadd.f32 %v888, 1.0
      %v931 = vadd.f32 %v890, 1.0
      %v932 = vadd.f32 %v892, 1.0
      %v933 = vadd.f32 %v894, 1.0
      %v934 = vadd.f32 %v896, 1.0
      %v935 = vadd.f32 %v898, 1.0
      %v936 = vadd.f32 %v900, 1.0
      %v937 = vadd.f32 %v902, 1.0
      %v938 = vadd.f32 %v904, 1.0
      %v939 = vadd.f32 %v906, 1.0
      %v940 = vadd.f32 %v908, 1.0
      %v941 = vrcp.pop %v909
      %v942 = vmul.f32 1.0, %v941
      %v943 = vrcp.pop %v910
      %v944 = vmul.f32 1.0, %v943
      %v945 = vrcp.pop %v911
      %v946 = vmul.f32 1.0, %v945
      %v947 = vrcp.pop %v912
      %v948 = vmul.f32 1.0, %v947
      %v949 = vrcp.pop %v913
      %v950 = vmul.f32 1.0, %v949
      %v951 = vrcp.pop %v914
      %v952 = vmul.f32 1.0, %v951
      %v953 = vrcp.pop %v915
      %v954 = vmul.f32 1.0, %v953
      %v955 = vrcp.pop %v916
      %v956 = vmul.f32 1.0, %v955
      %v957 = vrcp.pop %v917
      %v958 = vmul.f32 1.0, %v957
      %v959 = vrcp.pop %v918
      %v960 = vmul.f32 1.0, %v959
      %v961 = vrcp.pop %v919
      %v962 = vmul.f32 1.0, %v961
      %v963 = vrcp.pop %v920
      %v964 = vmul.f32 1.0, %v963
      %v965 = vrcp.pop %v921
      %v966 = vmul.f32 1.0, %v965
      %v967 = vrcp.pop %v922
      %v968 = vmul.f32 1.0, %v967
      %v969 = vrcp.pop %v923
      %v970 = vmul.f32 1.0, %v969
      %v971 = vrcp.pop %v924
      %v972 = vmul.f32 1.0, %v971
      %v973 = vrcp.pop %v925
      %v974 = vmul.f32 1.0, %v973
      %v975 = vrcp.pop %v926
      %v976 = vmul.f32 1.0, %v975
      %v977 = vrcp.pop %v927
      %v978 = vmul.f32 1.0, %v977
      %v979 = vrcp.pop %v928
      %v980 = vmul.f32 1.0, %v979
      %v981 = vrcp.pop %v929
      %v982 = vmul.f32 1.0, %v981
      %v983 = vrcp.pop %v930
      %v984 = vmul.f32 1.0, %v983
      %v985 = vrcp.pop %v931
      %v986 = vmul.f32 1.0, %v985
      %v987 = vrcp.pop %v932
      %v988 = vmul.f32 1.0, %v987
      %v989 = vrcp.pop %v933
      %v990 = vmul.f32 1.0, %v989
      %v991 = vrcp.pop %v934
      %v992 = vmul.f32 1.0, %v991
      %v993 = vrcp.pop %v935
      %v994 = vmul.f32 1.0, %v993
      %v995 = vrcp.pop %v936
      %v996 = vmul.f32 1.0, %v995
      %v997 = vrcp.pop %v937
      %v998 = vmul.f32 1.0, %v997
      %v999 = vrcp.pop %v938
      %v1000 = vmul.f32 1.0, %v999
      %v1001 = vrcp.pop %v939
      %v1002 = vmul.f32 1.0, %v1001
      %v1003 = vrcp.pop %v940
      %v1004 = vmul.f32 1.0, %v1003
      %v1005 = vld [vmem:[%s4] sm:$0xff]
      %v1006 = vld [vmem:[%s4 + $0x8] sm:$0xff]
      %v1007 = vld [vmem:[%s4 + $0x10] sm:$0xff]
      %v1008 = vld [vmem:[%s4 + $0x18] sm:$0xff]
      %v1010 = vsel %vm450, %v382, 0
      %v1013 = vsel %vm450, %v383, 0
      %v1016 = vsel %vm450, %v384, 0
      %v1019 = vsel %vm450, %v385, 0
      %v1022 = vsel %vm450, %v386, 0
      %v1025 = vsel %vm450, %v387, 0
      %v1028 = vsel %vm450, %v388, 0
      %v1031 = vsel %vm450, %v389, 0
      %v1034 = vsel %vm450, %v390, 0
      %v1037 = vsel %vm450, %v391, 0
      %v1040 = vsel %vm450, %v392, 0
      %v1043 = vsel %vm450, %v393, 0
      %v1046 = vsel %vm450, %v394, 0
      %v1049 = vsel %vm450, %v395, 0
      %v1052 = vsel %vm450, %v396, 0
      %v1055 = vsel %vm450, %v397, 0
      %v1058 = vsel %vm450, %v398, 0
      %v1061 = vsel %vm450, %v399, 0
      %v1064 = vsel %vm450, %v400, 0
      %v1067 = vsel %vm450, %v401, 0
      %v1070 = vsel %vm450, %v402, 0
      %v1073 = vsel %vm450, %v403, 0
      %v1076 = vsel %vm450, %v404, 0
      %v1079 = vsel %vm450, %v405, 0
      %v1082 = vsel %vm450, %v406, 0
      %v1085 = vsel %vm450, %v407, 0
      %v1088 = vsel %vm450, %v408, 0
      %v1091 = vsel %vm450, %v409, 0
      %v1094 = vsel %vm450, %v410, 0
      %v1097 = vsel %vm450, %v411, 0
      %v1100 = vsel %vm450, %v412, 0
      %v1103 = vsel %vm450, %v413, 0
      %1105 = vmatprep.subr.mxu0 0.0
      %1106 = vmatpush1.msra.mxu0 %v1005
      %1107 = vmatprep.subr.mxu0 0.0
      %1108 = vmatpush1.msra.mxu0 %v1006
      %1109 = vmatprep.subr.mxu0 0.0
      %1110 = vmatpush1.msra.mxu0 %v1007
      %1111 = vmatprep.subr.mxu0 0.0
      %1112 = vmatpush1.msra.mxu0 %v1008
      %1113 = vmatprep.subr.mxu0 0.0
      %1114 = vmatpush1.msra.mxu0 0.0
      %1115 = vmatprep.subr.mxu0 0.0
      %1116 = vmatpush1.msra.mxu0 0.0
      %1117 = vmatprep.subr.mxu0 0.0
      %1118 = vmatpush1.msra.mxu0 0.0
      %1119 = vmatprep.subr.mxu0 0.0
      %1120 = vmatpush1.msra.mxu0 0.0
      %1121 = vmatprep.subr.mxu0 0.0
      %1122 = vmatpush1.msra.mxu0 0.0
      %1123 = vmatprep.subr.mxu0 0.0
      %1124 = vmatpush1.msra.mxu0 0.0
      %1125 = vmatprep.subr.mxu0 0.0
      %1126 = vmatpush1.msra.mxu0 0.0
      %1127 = vmatprep.subr.mxu0 0.0
      %1128 = vmatpush1.msra.mxu0 0.0
      %1129 = vmatprep.subr.mxu0 0.0
      %1130 = vmatpush1.msra.mxu0 0.0
      %1131 = vmatprep.subr.mxu0 0.0
      %1132 = vmatpush1.msra.mxu0 0.0
      %1133 = vmatprep.subr.mxu0 0.0
      %1134 = vmatpush1.msra.mxu0 0.0
      %1135 = vmatprep.subr.mxu0 0.0
      %1136 = vmatpush1.msra.mxu0 0.0
      %1137 = vmatprep.subr.mxu0 0.0
      %1138 = vmatpush1.msra.mxu0 0.0
      %1139 = vmatprep.subr.mxu0 0.0
      %1140 = vmatpush1.msra.mxu0 0.0
      %1141 = vmatprep.subr.mxu0 0.0
      %1142 = vmatpush1.msra.mxu0 0.0
      %1143 = vmatprep.subr.mxu0 0.0
      %1144 = vmatpush1.msra.mxu0 0.0
      %1145 = vmatprep.subr.mxu0 0.0
      %1146 = vmatpush1.msra.mxu0 0.0
      %1147 = vmatprep.subr.mxu0 0.0
      %1148 = vmatpush1.msra.mxu0 0.0
      %1149 = vmatprep.subr.mxu0 0.0
      %1150 = vmatpush1.msra.mxu0 0.0
      %1151 = vmatprep.subr.mxu0 0.0
      %1152 = vmatpush1.msra.mxu0 0.0
      %1153 = vmatprep.subr.mxu0 0.0
      %1154 = vmatpush1.msra.mxu0 0.0
      %1155 = vmatprep.subr.mxu0 0.0
      %1156 = vmatpush1.msra.mxu0 0.0
      %1157 = vmatprep.subr.mxu0 0.0
      %1158 = vmatpush1.msra.mxu0 0.0
      %1159 = vmatprep.subr.mxu0 0.0
      %1160 = vmatpush1.msra.mxu0 0.0
      %1161 = vmatprep.subr.mxu0 0.0
      %1162 = vmatpush1.msra.mxu0 0.0
      %1163 = vmatprep.subr.mxu0 0.0
      %1164 = vmatpush1.msra.mxu0 0.0
      %1165 = vmatprep.subr.mxu0 0.0
      %1166 = vmatpush1.msra.mxu0 0.0
      %1167 = vmatprep.subr.mxu0 0.0
      %1168 = vmatpush1.msra.mxu0 0.0
      %1169 = vmatprep.mubr.f32.mxu0 0.0
      %1170 = vmatmul.mubr.f32.gmra.mrb[0].mxu0 %v1010
      %v1171 = vpop.f32.mrb[0].mxu0
      %v1172 = vadd.f32 0.0, %v1171
      %v1173 = vpop.f32.mrb[0].mxu0
      %1174 = vmatprep.mubr.f32.mxu0 0.0
      %1175 = vmatmul.mubr.f32.gmra.mrb[0].mxu0 %v1013
      %v1176 = vpop.f32.mrb[0].mxu0
      %v1177 = vadd.f32 0.0, %v1176
      %v1178 = vpop.f32.mrb[0].mxu0
      %1179 = vmatprep.mubr.f32.mxu0 0.0
      %1180 = vmatmul.mubr.f32.gmra.mrb[0].mxu0 %v1016
      %v1181 = vpop.f32.mrb[0].mxu0
      %v1182 = vadd.f32 0.0, %v1181
      %v1183 = vpop.f32.mrb[0].mxu0
      %1184 = vmatprep.mubr.f32.mxu0 0.0
      %1185 = vmatmul.mubr.f32.gmra.mrb[0].mxu0 %v1019
      %v1186 = vpop.f32.mrb[0].mxu0
      %v1187 = vadd.f32 0.0, %v1186
      %v1188 = vpop.f32.mrb[0].mxu0
      %1189 = vmatprep.mubr.f32.mxu0 0.0
      %1190 = vmatmul.mubr.f32.gmra.mrb[0].mxu0 %v1022
      %v1191 = vpop.f32.mrb[0].mxu0
      %v1192 = vadd.f32 0.0, %v1191
      %v1193 = vpop.f32.mrb[0].mxu0
      %1194 = vmatprep.mubr.f32.mxu0 0.0
      %1195 = vmatmul.mubr.f32.gmra.mrb[0].mxu0 %v1025
      %v1196 = vpop.f32.mrb[0].mxu0
      %v1197 = vadd.f32 0.0, %v1196
      %v1198 = vpop.f32.mrb[0].mxu0
      %1199 = vmatprep.mubr.f32.mxu0 0.0
      %1200 = vmatmul.mubr.f32.gmra.mrb[0].mxu0 %v1028
      %v1201 = vpop.f32.mrb[0].mxu0
      %v1202 = vadd.f32 0.0, %v1201
      %v1203 = vpop.f32.mrb[0].mxu0
      %1204 = vmatprep.mubr.f32.mxu0 0.0
      %1205 = vmatmul.mubr.f32.gmra.mrb[0].mxu0 %v1031
      %v1206 = vpop.f32.mrb[0].mxu0
      %v1207 = vadd.f32 0.0, %v1206
      %v1208 = vpop.f32.mrb[0].mxu0
      %1209 = vmatprep.mubr.f32.mxu0 0.0
      %1210 = vmatmul.mubr.f32.gmra.mrb[0].mxu0 %v1034
      %v1211 = vpop.f32.mrb[0].mxu0
      %v1212 = vadd.f32 0.0, %v1211
      %v1213 = vpop.f32.mrb[0].mxu0
      %1214 = vmatprep.mubr.f32.mxu0 0.0
      %1215 = vmatmul.mubr.f32.gmra.mrb[0].mxu0 %v1037
      %v1216 = vpop.f32.mrb[0].mxu0
      %v1217 = vadd.f32 0.0, %v1216
      %v1218 = vpop.f32.mrb[0].mxu0
      %1219 = vmatprep.mubr.f32.mxu0 0.0
      %1220 = vmatmul.mubr.f32.gmra.mrb[0].mxu0 %v1040
      %v1221 = vpop.f32.mrb[0].mxu0
      %v1222 = vadd.f32 0.0, %v1221
      %v1223 = vpop.f32.mrb[0].mxu0
      %1224 = vmatprep.mubr.f32.mxu0 0.0
      %1225 = vmatmul.mubr.f32.gmra.mrb[0].mxu0 %v1043
      %v1226 = vpop.f32.mrb[0].mxu0
      %v1227 = vadd.f32 0.0, %v1226
      %v1228 = vpop.f32.mrb[0].mxu0
      %1229 = vmatprep.mubr.f32.mxu0 0.0
      %1230 = vmatmul.mubr.f32.gmra.mrb[0].mxu0 %v1046
      %v1231 = vpop.f32.mrb[0].mxu0
      %v1232 = vadd.f32 0.0, %v1231
      %v1233 = vpop.f32.mrb[0].mxu0
      %1234 = vmatprep.mubr.f32.mxu0 0.0
      %1235 = vmatmul.mubr.f32.gmra.mrb[0].mxu0 %v1049
      %v1236 = vpop.f32.mrb[0].mxu0
      %v1237 = vadd.f32 0.0, %v1236
      %v1238 = vpop.f32.mrb[0].mxu0
      %1239 = vmatprep.mubr.f32.mxu0 0.0
      %1240 = vmatmul.mubr.f32.gmra.mrb[0].mxu0 %v1052
      %v1241 = vpop.f32.mrb[0].mxu0
      %v1242 = vadd.f32 0.0, %v1241
      %v1243 = vpop.f32.mrb[0].mxu0
      %1244 = vmatprep.mubr.f32.mxu0 0.0
      %1245 = vmatmul.mubr.f32.gmra.mrb[0].mxu0 %v1055
      %v1246 = vpop.f32.mrb[0].mxu0
      %v1247 = vadd.f32 0.0, %v1246
      %v1248 = vpop.f32.mrb[0].mxu0
      %1249 = vmatprep.mubr.f32.mxu0 0.0
      %1250 = vmatmul.mubr.f32.gmra.mrb[0].mxu0 %v1058
      %v1251 = vpop.f32.mrb[0].mxu0
      %v1252 = vadd.f32 0.0, %v1251
      %v1253 = vpop.f32.mrb[0].mxu0
      %1254 = vmatprep.mubr.f32.mxu0 0.0
      %1255 = vmatmul.mubr.f32.gmra.mrb[0].mxu0 %v1061
      %v1256 = vpop.f32.mrb[0].mxu0
      %v1257 = vadd.f32 0.0, %v1256
      %v1258 = vpop.f32.mrb[0].mxu0
      %1259 = vmatprep.mubr.f32.mxu0 0.0
      %1260 = vmatmul.mubr.f32.gmra.mrb[0].mxu0 %v1064
      %v1261 = vpop.f32.mrb[0].mxu0
      %v1262 = vadd.f32 0.0, %v1261
      %v1263 = vpop.f32.mrb[0].mxu0
      %1264 = vmatprep.mubr.f32.mxu0 0.0
      %1265 = vmatmul.mubr.f32.gmra.mrb[0].mxu0 %v1067
      %v1266 = vpop.f32.mrb[0].mxu0
      %v1267 = vadd.f32 0.0, %v1266
      %v1268 = vpop.f32.mrb[0].mxu0
      %1269 = vmatprep.mubr.f32.mxu0 0.0
      %1270 = vmatmul.mubr.f32.gmra.mrb[0].mxu0 %v1070
      %v1271 = vpop.f32.mrb[0].mxu0
      %v1272 = vadd.f32 0.0, %v1271
      %v1273 = vpop.f32.mrb[0].mxu0
      %1274 = vmatprep.mubr.f32.mxu0 0.0
      %1275 = vmatmul.mubr.f32.gmra.mrb[0].mxu0 %v1073
      %v1276 = vpop.f32.mrb[0].mxu0
      %v1277 = vadd.f32 0.0, %v1276
      %v1278 = vpop.f32.mrb[0].mxu0
      %1279 = vmatprep.mubr.f32.mxu0 0.0
      %1280 = vmatmul.mubr.f32.gmra.mrb[0].mxu0 %v1076
      %v1281 = vpop.f32.mrb[0].mxu0
      %v1282 = vadd.f32 0.0, %v1281
      %v1283 = vpop.f32.mrb[0].mxu0
      %1284 = vmatprep.mubr.f32.mxu0 0.0
      %1285 = vmatmul.mubr.f32.gmra.mrb[0].mxu0 %v1079
      %v1286 = vpop.f32.mrb[0].mxu0
      %v1287 = vadd.f32 0.0, %v1286
      %v1288 = vpop.f32.mrb[0].mxu0
      %1289 = vmatprep.mubr.f32.mxu0 0.0
      %1290 = vmatmul.mubr.f32.gmra.mrb[0].mxu0 %v1082
      %v1291 = vpop.f32.mrb[0].mxu0
      %v1292 = vadd.f32 0.0, %v1291
      %v1293 = vpop.f32.mrb[0].mxu0
      %1294 = vmatprep.mubr.f32.mxu0 0.0
      %1295 = vmatmul.mubr.f32.gmra.mrb[0].mxu0 %v1085
      %v1296 = vpop.f32.mrb[0].mxu0
      %v1297 = vadd.f32 0.0, %v1296
      %v1298 = vpop.f32.mrb[0].mxu0
      %1299 = vmatprep.mubr.f32.mxu0 0.0
      %1300 = vmatmul.mubr.f32.gmra.mrb[0].mxu0 %v1088
      %v1301 = vpop.f32.mrb[0].mxu0
      %v1302 = vadd.f32 0.0, %v1301
      %v1303 = vpop.f32.mrb[0].mxu0
      %1304 = vmatprep.mubr.f32.mxu0 0.0
      %1305 = vmatmul.mubr.f32.gmra.mrb[0].mxu0 %v1091
      %v1306 = vpop.f32.mrb[0].mxu0
      %v1307 = vadd.f32 0.0, %v1306
      %v1308 = vpop.f32.mrb[0].mxu0
      %1309 = vmatprep.mubr.f32.mxu0 0.0
      %1310 = vmatmul.mubr.f32.gmra.mrb[0].mxu0 %v1094
      %v1311 = vpop.f32.mrb[0].mxu0
      %v1312 = vadd.f32 0.0, %v1311
      %v1313 = vpop.f32.mrb[0].mxu0
      %1314 = vmatprep.mubr.f32.mxu0 0.0
      %1315 = vmatmul.mubr.f32.gmra.mrb[0].mxu0 %v1097
      %v1316 = vpop.f32.mrb[0].mxu0
      %v1317 = vadd.f32 0.0, %v1316
      %v1318 = vpop.f32.mrb[0].mxu0
      %1319 = vmatprep.mubr.f32.mxu0 0.0
      %1320 = vmatmul.mubr.f32.gmra.mrb[0].mxu0 %v1100
      %v1321 = vpop.f32.mrb[0].mxu0
      %v1322 = vadd.f32 0.0, %v1321
      %v1323 = vpop.f32.mrb[0].mxu0
      %1324 = vmatprep.mubr.f32.mxu0 0.0
      %1325 = vmatmul.mubr.f32.gmra.mrb[0].mxu0 %v1103
      %v1326 = vpop.f32.mrb[0].mxu0
      %v1327 = vadd.f32 0.0, %v1326
      %v1328 = vpop.f32.mrb[0].mxu0
      %1329 = vdwg.mxu0
      %vm1330 = vcmask 57344
      %v1331 = vsel %vm1330, %v414, 0.0
      %1332 = vadd.xlane.f32.xlu0 %v1331
      %v1333 = vpop.xlane.xlu0 %1332
      %v1334 = vsel %vm1330, %v415, 0.0
      %1335 = vadd.xlane.f32.xlu0 %v1334
      %v1336 = vpop.xlane.xlu0 %1335
      %v1337 = vsel %vm1330, %v416, 0.0
      %1338 = vadd.xlane.f32.xlu0 %v1337
      %v1339 = vpop.xlane.xlu0 %1338
      %v1340 = vsel %vm1330, %v417, 0.0
      %1341 = vadd.xlane.f32.xlu0 %v1340
      %v1342 = vpop.xlane.xlu0 %1341
      %v1343 = vsel %vm1330, %v418, 0.0
      %1344 = vadd.xlane.f32.xlu0 %v1343
      %v1345 = vpop.xlane.xlu0 %1344
      %v1346 = vsel %vm1330, %v419, 0.0
      %1347 = vadd.xlane.f32.xlu0 %v1346
      %v1348 = vpop.xlane.xlu0 %1347
      %v1349 = vsel %vm1330, %v420, 0.0
      %1350 = vadd.xlane.f32.xlu0 %v1349
      %v1351 = vpop.xlane.xlu0 %1350
      %v1352 = vsel %vm1330, %v421, 0.0
      %1353 = vadd.xlane.f32.xlu0 %v1352
      %v1354 = vpop.xlane.xlu0 %1353
      %v1355 = vsel %vm1330, %v422, 0.0
      %1356 = vadd.xlane.f32.xlu0 %v1355
      %v1357 = vpop.xlane.xlu0 %1356
      %v1358 = vsel %vm1330, %v423, 0.0
      %1359 = vadd.xlane.f32.xlu0 %v1358
      %v1360 = vpop.xlane.xlu0 %1359
      %v1361 = vsel %vm1330, %v424, 0.0
      %1362 = vadd.xlane.f32.xlu0 %v1361
      %v1363 = vpop.xlane.xlu0 %1362
      %v1364 = vsel %vm1330, %v425, 0.0
      %1365 = vadd.xlane.f32.xlu0 %v1364
      %v1366 = vpop.xlane.xlu0 %1365
      %v1367 = vsel %vm1330, %v426, 0.0
      %1368 = vadd.xlane.f32.xlu0 %v1367
      %v1369 = vpop.xlane.xlu0 %1368
      %v1370 = vsel %vm1330, %v427, 0.0
      %1371 = vadd.xlane.f32.xlu0 %v1370
      %v1372 = vpop.xlane.xlu0 %1371
      %v1373 = vsel %vm1330, %v428, 0.0
      %1374 = vadd.xlane.f32.xlu0 %v1373
      %v1375 = vpop.xlane.xlu0 %1374
      %v1376 = vsel %vm1330, %v429, 0.0
      %1377 = vadd.xlane.f32.xlu0 %v1376
      %v1378 = vpop.xlane.xlu0 %1377
      %v1379 = vsel %vm1330, %v430, 0.0
      %1380 = vadd.xlane.f32.xlu0 %v1379
      %v1381 = vpop.xlane.xlu0 %1380
      %v1382 = vsel %vm1330, %v431, 0.0
      %1383 = vadd.xlane.f32.xlu0 %v1382
      %v1384 = vpop.xlane.xlu0 %1383
      %v1385 = vsel %vm1330, %v432, 0.0
      %1386 = vadd.xlane.f32.xlu0 %v1385
      %v1387 = vpop.xlane.xlu0 %1386
      %v1388 = vsel %vm1330, %v433, 0.0
      %1389 = vadd.xlane.f32.xlu0 %v1388
      %v1390 = vpop.xlane.xlu0 %1389
      %v1391 = vsel %vm1330, %v434, 0.0
      %1392 = vadd.xlane.f32.xlu0 %v1391
      %v1393 = vpop.xlane.xlu0 %1392
      %v1394 = vsel %vm1330, %v435, 0.0
      %1395 = vadd.xlane.f32.xlu0 %v1394
      %v1396 = vpop.xlane.xlu0 %1395
      %v1397 = vsel %vm1330, %v436, 0.0
      %1398 = vadd.xlane.f32.xlu0 %v1397
      %v1399 = vpop.xlane.xlu0 %1398
      %v1400 = vsel %vm1330, %v437, 0.0
      %1401 = vadd.xlane.f32.xlu0 %v1400
      %v1402 = vpop.xlane.xlu0 %1401
      %v1403 = vsel %vm1330, %v438, 0.0
      %1404 = vadd.xlane.f32.xlu0 %v1403
      %v1405 = vpop.xlane.xlu0 %1404
      %v1406 = vsel %vm1330, %v439, 0.0
      %1407 = vadd.xlane.f32.xlu0 %v1406
      %v1408 = vpop.xlane.xlu0 %1407
      %v1409 = vsel %vm1330, %v440, 0.0
      %1410 = vadd.xlane.f32.xlu0 %v1409
      %v1411 = vpop.xlane.xlu0 %1410
      %v1412 = vsel %vm1330, %v441, 0.0
      %1413 = vadd.xlane.f32.xlu0 %v1412
      %v1414 = vpop.xlane.xlu0 %1413
      %v1415 = vsel %vm1330, %v442, 0.0
      %1416 = vadd.xlane.f32.xlu0 %v1415
      %v1417 = vpop.xlane.xlu0 %1416
      %v1418 = vsel %vm1330, %v443, 0.0
      %1419 = vadd.xlane.f32.xlu0 %v1418
      %v1420 = vpop.xlane.xlu0 %1419
      %v1421 = vsel %vm1330, %v444, 0.0
      %1422 = vadd.xlane.f32.xlu0 %v1421
      %v1423 = vpop.xlane.xlu0 %1422
      %v1424 = vsel %vm1330, %v445, 0.0
      %1425 = vadd.xlane.f32.xlu0 %v1424
      %v1426 = vpop.xlane.xlu0 %1425
      %v1427 = vadd.f32 %v1333, 1e-10
      %v1428 = vadd.f32 %v1336, 1e-10
      %v1429 = vadd.f32 %v1339, 1e-10
      %v1430 = vadd.f32 %v1342, 1e-10
      %v1431 = vadd.f32 %v1345, 1e-10
      %v1432 = vadd.f32 %v1348, 1e-10
      %v1433 = vadd.f32 %v1351, 1e-10
      %v1434 = vadd.f32 %v1354, 1e-10
      %v1435 = vadd.f32 %v1357, 1e-10
      %v1436 = vadd.f32 %v1360, 1e-10
      %v1437 = vadd.f32 %v1363, 1e-10
      %v1438 = vadd.f32 %v1366, 1e-10
      %v1439 = vadd.f32 %v1369, 1e-10
      %v1440 = vadd.f32 %v1372, 1e-10
      %v1441 = vadd.f32 %v1375, 1e-10
      %v1442 = vadd.f32 %v1378, 1e-10
      %v1443 = vadd.f32 %v1381, 1e-10
      %v1444 = vadd.f32 %v1384, 1e-10
      %v1445 = vadd.f32 %v1387, 1e-10
      %v1446 = vadd.f32 %v1390, 1e-10
      %v1447 = vadd.f32 %v1393, 1e-10
      %v1448 = vadd.f32 %v1396, 1e-10
      %v1449 = vadd.f32 %v1399, 1e-10
      %v1450 = vadd.f32 %v1402, 1e-10
      %v1451 = vadd.f32 %v1405, 1e-10
      %v1452 = vadd.f32 %v1408, 1e-10
      %v1453 = vadd.f32 %v1411, 1e-10
      %v1454 = vadd.f32 %v1414, 1e-10
      %v1455 = vadd.f32 %v1417, 1e-10
      %v1456 = vadd.f32 %v1420, 1e-10
      %v1457 = vadd.f32 %v1423, 1e-10
      %v1458 = vadd.f32 %v1426, 1e-10
      %vm1459 = vcmask 64512
      %v1461 = vsel %vm1459, %v414, 0
      %1463 = vmatprep.subr.mxu0 0.0
      %1464 = vmatpush1.msra.mxu0 %v614
      %1465 = vmatprep.subr.mxu0 0.0
      %1466 = vmatpush1.msra.mxu0 0.0
      %1467 = vmatprep.subr.mxu0 0.0
      %1468 = vmatpush1.msra.mxu0 0.0
      %1469 = vmatprep.subr.mxu0 0.0
      %1470 = vmatpush1.msra.mxu0 0.0
      %1471 = vmatprep.subr.mxu0 0.0
      %1472 = vmatpush1.msra.mxu0 0.0
      %1473 = vmatprep.subr.mxu0 0.0
      %1474 = vmatpush1.msra.mxu0 0.0
      %1475 = vmatprep.subr.mxu0 0.0
      %1476 = vmatpush1.msra.mxu0 0.0
      %1477 = vmatprep.subr.mxu0 0.0
      %1478 = vmatpush1.msra.mxu0 0.0
      %1479 = vmatprep.subr.mxu0 0.0
      %1480 = vmatpush1.msra.mxu0 0.0
      %1481 = vmatprep.subr.mxu0 0.0
      %1482 = vmatpush1.msra.mxu0 0.0
      %1483 = vmatprep.subr.mxu0 0.0
      %1484 = vmatpush1.msra.mxu0 0.0
      %1485 = vmatprep.subr.mxu0 0.0
      %1486 = vmatpush1.msra.mxu0 0.0
      %1487 = vmatprep.subr.mxu0 0.0
      %1488 = vmatpush1.msra.mxu0 0.0
      %1489 = vmatprep.subr.mxu0 0.0
      %1490 = vmatpush1.msra.mxu0 0.0
      %1491 = vmatprep.subr.mxu0 0.0
      %1492 = vmatpush1.msra.mxu0 0.0
      %1493 = vmatprep.subr.mxu0 0.0
      %1494 = vmatpush1.msra.mxu0 0.0
      %1495 = vmatprep.subr.mxu0 0.0
      %1496 = vmatpush1.msra.mxu0 0.0
      %1497 = vmatprep.subr.mxu0 0.0
      %1498 = vmatpush1.msra.mxu0 0.0
      %1499 = vmatprep.subr.mxu0 0.0
      %1500 = vmatpush1.msra.mxu0 0.0
      %1501 = vmatprep.subr.mxu0 0.0
      %1502 = vmatpush1.msra.mxu0 0.0
      %1503 = vmatprep.subr.mxu0 0.0
      %1504 = vmatpush1.msra.mxu0 0.0
      %1505 = vmatprep.subr.mxu0 0.0
      %1506 = vmatpush1.msra.mxu0 0.0
      %1507 = vmatprep.subr.mxu0 0.0
      %1508 = vmatpush1.msra.mxu0 0.0
      %1509 = vmatprep.subr.mxu0 0.0
      %1510 = vmatpush1.msra.mxu0 0.0
      %1511 = vmatprep.subr.mxu0 0.0
      %1512 = vmatpush1.msra.mxu0 0.0
      %1513 = vmatprep.subr.mxu0 0.0
      %1514 = vmatpush1.msra.mxu0 0.0
      %1515 = vmatprep.subr.mxu0 0.0
      %1516 = vmatpush1.msra.mxu0 0.0
      %1517 = vmatprep.subr.mxu0 0.0
      %1518 = vmatpush1.msra.mxu0 0.0
      %1519 = vmatprep.subr.mxu0 0.0
      %1520 = vmatpush1.msra.mxu0 0.0
      %1521 = vmatprep.subr.mxu0 0.0
      %1522 = vmatpush1.msra.mxu0 0.0
      %1523 = vmatprep.subr.mxu0 0.0
      %1524 = vmatpush1.msra.mxu0 0.0
      %1525 = vmatprep.subr.mxu0 0.0
      %1526 = vmatpush1.msra.mxu0 0.0
      %1527 = vmatprep.mubr.f32.mxu0 0.0
      %1528 = vmatmul.mubr.f32.gmra.mrb[0].mxu0 %v1461
      %v1529 = vpop.f32.mrb[0].mxu0
      %v1530 = vadd.f32 0.0, %v1529
      %v1531 = vpop.f32.mrb[0].mxu0
      %1532 = vdwg.mxu0
      %v1534 = vsel %vm1459, %v415, 0
      %1536 = vmatprep.subr.mxu0 0.0
      %1537 = vmatpush1.msra.mxu0 %v619
      %1538 = vmatprep.subr.mxu0 0.0
      %1539 = vmatpush1.msra.mxu0 0.0
      %1540 = vmatprep.subr.mxu0 0.0
      %1541 = vmatpush1.msra.mxu0 0.0
      %1542 = vmatprep.subr.mxu0 0.0
      %1543 = vmatpush1.msra.mxu0 0.0
      %1544 = vmatprep.subr.mxu0 0.0
      %1545 = vmatpush1.msra.mxu0 0.0
      %1546 = vmatprep.subr.mxu0 0.0
      %1547 = vmatpush1.msra.mxu0 0.0
      %1548 = vmatprep.subr.mxu0 0.0
      %1549 = vmatpush1.msra.mxu0 0.0
      %1550 = vmatprep.subr.mxu0 0.0
      %1551 = vmatpush1.msra.mxu0 0.0
      %1552 = vmatprep.subr.mxu0 0.0
      %1553 = vmatpush1.msra.mxu0 0.0
      %1554 = vmatprep.subr.mxu0 0.0
      %1555 = vmatpush1.msra.mxu0 0.0
      %1556 = vmatprep.subr.mxu0 0.0
      %1557 = vmatpush1.msra.mxu0 0.0
      %1558 = vmatprep.subr.mxu0 0.0
      %1559 = vmatpush1.msra.mxu0 0.0
      %1560 = vmatprep.subr.mxu0 0.0
      %1561 = vmatpush1.msra.mxu0 0.0
      %1562 = vmatprep.subr.mxu0 0.0
      %1563 = vmatpush1.msra.mxu0 0.0
      %1564 = vmatprep.subr.mxu0 0.0
      %1565 = vmatpush1.msra.mxu0 0.0
      %1566 = vmatprep.subr.mxu0 0.0
      %1567 = vmatpush1.msra.mxu0 0.0
      %1568 = vmatprep.subr.mxu0 0.0
      %1569 = vmatpush1.msra.mxu0 0.0
      %1570 = vmatprep.subr.mxu0 0.0
      %1571 = vmatpush1.msra.mxu0 0.0
      %1572 = vmatprep.subr.mxu0 0.0
      %1573 = vmatpush1.msra.mxu0 0.0
      %1574 = vmatprep.subr.mxu0 0.0
      %1575 = vmatpush1.msra.mxu0 0.0
      %1576 = vmatprep.subr.mxu0 0.0
      %1577 = vmatpush1.msra.mxu0 0.0
      %1578 = vmatprep.subr.mxu0 0.0
      %1579 = vmatpush1.msra.mxu0 0.0
      %1580 = vmatprep.subr.mxu0 0.0
      %1581 = vmatpush1.msra.mxu0 0.0
      %1582 = vmatprep.subr.mxu0 0.0
      %1583 = vmatpush1.msra.mxu0 0.0
      %1584 = vmatprep.subr.mxu0 0.0
      %1585 = vmatpush1.msra.mxu0 0.0
      %1586 = vmatprep.subr.mxu0 0.0
      %1587 = vmatpush1.msra.mxu0 0.0
      %1588 = vmatprep.subr.mxu0 0.0
      %1589 = vmatpush1.msra.mxu0 0.0
      %1590 = vmatprep.subr.mxu0 0.0
      %1591 = vmatpush1.msra.mxu0 0.0
      %1592 = vmatprep.subr.mxu0 0.0
      %1593 = vmatpush1.msra.mxu0 0.0
      %1594 = vmatprep.subr.mxu0 0.0
      %1595 = vmatpush1.msra.mxu0 0.0
      %1596 = vmatprep.subr.mxu0 0.0
      %1597 = vmatpush1.msra.mxu0 0.0
      %1598 = vmatprep.subr.mxu0 0.0
      %1599 = vmatpush1.msra.mxu0 0.0
      %1600 = vmatprep.mubr.f32.mxu0 0.0
      %1601 = vmatmul.mubr.f32.gmra.mrb[0].mxu0 %v1534
      %v1602 = vpop.f32.mrb[0].mxu0
      %v1603 = vadd.f32 0.0, %v1602
      %v1604 = vpop.f32.mrb[0].mxu0
      %1605 = vdwg.mxu0
      %v1607 = vsel %vm1459, %v416, 0
      %1609 = vmatprep.subr.mxu0 0.0
      %1610 = vmatpush1.msra.mxu0 %v624
      %1611 = vmatprep.subr.mxu0 0.0
      %1612 = vmatpush1.msra.mxu0 0.0
      %1613 = vmatprep.subr.mxu0 0.0
      %1614 = vmatpush1.msra.mxu0 0.0
      %1615 = vmatprep.subr.mxu0 0.0
      %1616 = vmatpush1.msra.mxu0 0.0
      %1617 = vmatprep.subr.mxu0 0.0
      %1618 = vmatpush1.msra.mxu0 0.0
      %1619 = vmatprep.subr.mxu0 0.0
      %1620 = vmatpush1.msra.mxu0 0.0
      %1621 = vmatprep.subr.mxu0 0.0
      %1622 = vmatpush1.msra.mxu0 0.0
      %1623 = vmatprep.subr.mxu0 0.0
      %1624 = vmatpush1.msra.mxu0 0.0
      %1625 = vmatprep.subr.mxu0 0.0
      %1626 = vmatpush1.msra.mxu0 0.0
      %1627 = vmatprep.subr.mxu0 0.0
      %1628 = vmatpush1.msra.mxu0 0.0
      %1629 = vmatprep.subr.mxu0 0.0
      %1630 = vmatpush1.msra.mxu0 0.0
      %1631 = vmatprep.subr.mxu0 0.0
      %1632 = vmatpush1.msra.mxu0 0.0
      %1633 = vmatprep.subr.mxu0 0.0
      %1634 = vmatpush1.msra.mxu0 0.0
      %1635 = vmatprep.subr.mxu0 0.0
      %1636 = vmatpush1.msra.mxu0 0.0
      %1637 = vmatprep.subr.mxu0 0.0
      %1638 = vmatpush1.msra.mxu0 0.0
      %1639 = vmatprep.subr.mxu0 0.0
      %1640 = vmatpush1.msra.mxu0 0.0
      %1641 = vmatprep.subr.mxu0 0.0
      %1642 = vmatpush1.msra.mxu0 0.0
      %1643 = vmatprep.subr.mxu0 0.0
      %1644 = vmatpush1.msra.mxu0 0.0
      %1645 = vmatprep.subr.mxu0 0.0
      %1646 = vmatpush1.msra.mxu0 0.0
      %1647 = vmatprep.subr.mxu0 0.0
      %1648 = vmatpush1.msra.mxu0 0.0
      %1649 = vmatprep.subr.mxu0 0.0
      %1650 = vmatpush1.msra.mxu0 0.0
      %1651 = vmatprep.subr.mxu0 0.0
      %1652 = vmatpush1.msra.mxu0 0.0
      %1653 = vmatprep.subr.mxu0 0.0
      %1654 = vmatpush1.msra.mxu0 0.0
      %1655 = vmatprep.subr.mxu0 0.0
      %1656 = vmatpush1.msra.mxu0 0.0
      %1657 = vmatprep.subr.mxu0 0.0
      %1658 = vmatpush1.msra.mxu0 0.0
      %1659 = vmatprep.subr.mxu0 0.0
      %1660 = vmatpush1.msra.mxu0 0.0
      %1661 = vmatprep.subr.mxu0 0.0
      %1662 = vmatpush1.msra.mxu0 0.0
      %1663 = vmatprep.subr.mxu0 0.0
      %1664 = vmatpush1.msra.mxu0 0.0
      %1665 = vmatprep.subr.mxu0 0.0
      %1666 = vmatpush1.msra.mxu0 0.0
      %1667 = vmatprep.subr.mxu0 0.0
      %1668 = vmatpush1.msra.mxu0 0.0
      %1669 = vmatprep.subr.mxu0 0.0
      %1670 = vmatpush1.msra.mxu0 0.0
      %1671 = vmatprep.subr.mxu0 0.0
      %1672 = vmatpush1.msra.mxu0 0.0
      %1673 = vmatprep.mubr.f32.mxu0 0.0
      %1674 = vmatmul.mubr.f32.gmra.mrb[0].mxu0 %v1607
      %v1675 = vpop.f32.mrb[0].mxu0
      %v1676 = vadd.f32 0.0, %v1675
      %v1677 = vpop.f32.mrb[0].mxu0
      %1678 = vdwg.mxu0
      %v1680 = vsel %vm1459, %v417, 0
      %1682 = vmatprep.subr.mxu0 0.0
      %1683 = vmatpush1.msra.mxu0 %v629
      %1684 = vmatprep.subr.mxu0 0.0
      %1685 = vmatpush1.msra.mxu0 0.0
      %1686 = vmatprep.subr.mxu0 0.0
      %1687 = vmatpush1.msra.mxu0 0.0
      %1688 = vmatprep.subr.mxu0 0.0
      %1689 = vmatpush1.msra.mxu0 0.0
      %1690 = vmatprep.subr.mxu0 0.0
      %1691 = vmatpush1.msra.mxu0 0.0
      %1692 = vmatprep.subr.mxu0 0.0
      %1693 = vmatpush1.msra.mxu0 0.0
      %1694 = vmatprep.subr.mxu0 0.0
      %1695 = vmatpush1.msra.mxu0 0.0
      %1696 = vmatprep.subr.mxu0 0.0
      %1697 = vmatpush1.msra.mxu0 0.0
      %1698 = vmatprep.subr.mxu0 0.0
      %1699 = vmatpush1.msra.mxu0 0.0
      %1700 = vmatprep.subr.mxu0 0.0
      %1701 = vmatpush1.msra.mxu0 0.0
      %1702 = vmatprep.subr.mxu0 0.0
      %1703 = vmatpush1.msra.mxu0 0.0
      %1704 = vmatprep.subr.mxu0 0.0
      %1705 = vmatpush1.msra.mxu0 0.0
      %1706 = vmatprep.subr.mxu0 0.0
      %1707 = vmatpush1.msra.mxu0 0.0
      %1708 = vmatprep.subr.mxu0 0.0
      %1709 = vmatpush1.msra.mxu0 0.0
      %1710 = vmatprep.subr.mxu0 0.0
      %1711 = vmatpush1.msra.mxu0 0.0
      %1712 = vmatprep.subr.mxu0 0.0
      %1713 = vmatpush1.msra.mxu0 0.0
      %1714 = vmatprep.subr.mxu0 0.0
      %1715 = vmatpush1.msra.mxu0 0.0
      %1716 = vmatprep.subr.mxu0 0.0
      %1717 = vmatpush1.msra.mxu0 0.0
      %1718 = vmatprep.subr.mxu0 0.0
      %1719 = vmatpush1.msra.mxu0 0.0
      %1720 = vmatprep.subr.mxu0 0.0
      %1721 = vmatpush1.msra.mxu0 0.0
      %1722 = vmatprep.subr.mxu0 0.0
      %1723 = vmatpush1.msra.mxu0 0.0
      %1724 = vmatprep.subr.mxu0 0.0
      %1725 = vmatpush1.msra.mxu0 0.0
      %1726 = vmatprep.subr.mxu0 0.0
      %1727 = vmatpush1.msra.mxu0 0.0
      %1728 = vmatprep.subr.mxu0 0.0
      %1729 = vmatpush1.msra.mxu0 0.0
      %1730 = vmatprep.subr.mxu0 0.0
      %1731 = vmatpush1.msra.mxu0 0.0
      %1732 = vmatprep.subr.mxu0 0.0
      %1733 = vmatpush1.msra.mxu0 0.0
      %1734 = vmatprep.subr.mxu0 0.0
      %1735 = vmatpush1.msra.mxu0 0.0
      %1736 = vmatprep.subr.mxu0 0.0
      %1737 = vmatpush1.msra.mxu0 0.0
      %1738 = vmatprep.subr.mxu0 0.0
      %1739 = vmatpush1.msra.mxu0 0.0
      %1740 = vmatprep.subr.mxu0 0.0
      %1741 = vmatpush1.msra.mxu0 0.0
      %1742 = vmatprep.subr.mxu0 0.0
      %1743 = vmatpush1.msra.mxu0 0.0
      %1744 = vmatprep.subr.mxu0 0.0
      %1745 = vmatpush1.msra.mxu0 0.0
      %1746 = vmatprep.mubr.f32.mxu0 0.0
      %1747 = vmatmul.mubr.f32.gmra.mrb[0].mxu0 %v1680
      %v1748 = vpop.f32.mrb[0].mxu0
      %v1749 = vadd.f32 0.0, %v1748
      %v1750 = vpop.f32.mrb[0].mxu0
      %1751 = vdwg.mxu0
      %v1753 = vsel %vm1459, %v418, 0
      %1755 = vmatprep.subr.mxu0 0.0
      %1756 = vmatpush1.msra.mxu0 %v634
      %1757 = vmatprep.subr.mxu0 0.0
      %1758 = vmatpush1.msra.mxu0 0.0
      %1759 = vmatprep.subr.mxu0 0.0
      %1760 = vmatpush1.msra.mxu0 0.0
      %1761 = vmatprep.subr.mxu0 0.0
      %1762 = vmatpush1.msra.mxu0 0.0
      %1763 = vmatprep.subr.mxu0 0.0
      %1764 = vmatpush1.msra.mxu0 0.0
      %1765 = vmatprep.subr.mxu0 0.0
      %1766 = vmatpush1.msra.mxu0 0.0
      %1767 = vmatprep.subr.mxu0 0.0
      %1768 = vmatpush1.msra.mxu0 0.0
      %1769 = vmatprep.subr.mxu0 0.0
      %1770 = vmatpush1.msra.mxu0 0.0
      %1771 = vmatprep.subr.mxu0 0.0
      %1772 = vmatpush1.msra.mxu0 0.0
      %1773 = vmatprep.subr.mxu0 0.0
      %1774 = vmatpush1.msra.mxu0 0.0
      %1775 = vmatprep.subr.mxu0 0.0
      %1776 = vmatpush1.msra.mxu0 0.0
      %1777 = vmatprep.subr.mxu0 0.0
      %1778 = vmatpush1.msra.mxu0 0.0
      %1779 = vmatprep.subr.mxu0 0.0
      %1780 = vmatpush1.msra.mxu0 0.0
      %1781 = vmatprep.subr.mxu0 0.0
      %1782 = vmatpush1.msra.mxu0 0.0
      %1783 = vmatprep.subr.mxu0 0.0
      %1784 = vmatpush1.msra.mxu0 0.0
      %1785 = vmatprep.subr.mxu0 0.0
      %1786 = vmatpush1.msra.mxu0 0.0
      %1787 = vmatprep.subr.mxu0 0.0
      %1788 = vmatpush1.msra.mxu0 0.0
      %1789 = vmatprep.subr.mxu0 0.0
      %1790 = vmatpush1.msra.mxu0 0.0
      %1791 = vmatprep.subr.mxu0 0.0
      %1792 = vmatpush1.msra.mxu0 0.0
      %1793 = vmatprep.subr.mxu0 0.0
      %1794 = vmatpush1.msra.mxu0 0.0
      %1795 = vmatprep.subr.mxu0 0.0
      %1796 = vmatpush1.msra.mxu0 0.0
      %1797 = vmatprep.subr.mxu0 0.0
      %1798 = vmatpush1.msra.mxu0 0.0
      %1799 = vmatprep.subr.mxu0 0.0
      %1800 = vmatpush1.msra.mxu0 0.0
      %1801 = vmatprep.subr.mxu0 0.0
      %1802 = vmatpush1.msra.mxu0 0.0
      %1803 = vmatprep.subr.mxu0 0.0
      %1804 = vmatpush1.msra.mxu0 0.0
      %1805 = vmatprep.subr.mxu0 0.0
      %1806 = vmatpush1.msra.mxu0 0.0
      %1807 = vmatprep.subr.mxu0 0.0
      %1808 = vmatpush1.msra.mxu0 0.0
      %1809 = vmatprep.subr.mxu0 0.0
      %1810 = vmatpush1.msra.mxu0 0.0
      %1811 = vmatprep.subr.mxu0 0.0
      %1812 = vmatpush1.msra.mxu0 0.0
      %1813 = vmatprep.subr.mxu0 0.0
      %1814 = vmatpush1.msra.mxu0 0.0
      %1815 = vmatprep.subr.mxu0 0.0
      %1816 = vmatpush1.msra.mxu0 0.0
      %1817 = vmatprep.subr.mxu0 0.0
      %1818 = vmatpush1.msra.mxu0 0.0
      %1819 = vmatprep.mubr.f32.mxu0 0.0
      %1820 = vmatmul.mubr.f32.gmra.mrb[0].mxu0 %v1753
      %v1821 = vpop.f32.mrb[0].mxu0
      %v1822 = vadd.f32 0.0, %v1821
      %v1823 = vpop.f32.mrb[0].mxu0
      %1824 = vdwg.mxu0
      %v1826 = vsel %vm1459, %v419, 0
      %1828 = vmatprep.subr.mxu0 0.0
      %1829 = vmatpush1.msra.mxu0 %v639
      %1830 = vmatprep.subr.mxu0 0.0
      %1831 = vmatpush1.msra.mxu0 0.0
      %1832 = vmatprep.subr.mxu0 0.0
      %1833 = vmatpush1.msra.mxu0 0.0
      %1834 = vmatprep.subr.mxu0 0.0
      %1835 = vmatpush1.msra.mxu0 0.0
      %1836 = vmatprep.subr.mxu0 0.0
      %1837 = vmatpush1.msra.mxu0 0.0
      %1838 = vmatprep.subr.mxu0 0.0
      %1839 = vmatpush1.msra.mxu0 0.0
      %1840 = vmatprep.subr.mxu0 0.0
      %1841 = vmatpush1.msra.mxu0 0.0
      %1842 = vmatprep.subr.mxu0 0.0
      %1843 = vmatpush1.msra.mxu0 0.0
      %1844 = vmatprep.subr.mxu0 0.0
      %1845 = vmatpush1.msra.mxu0 0.0
      %1846 = vmatprep.subr.mxu0 0.0
      %1847 = vmatpush1.msra.mxu0 0.0
      %1848 = vmatprep.subr.mxu0 0.0
      %1849 = vmatpush1.msra.mxu0 0.0
      %1850 = vmatprep.subr.mxu0 0.0
      %1851 = vmatpush1.msra.mxu0 0.0
      %1852 = vmatprep.subr.mxu0 0.0
      %1853 = vmatpush1.msra.mxu0 0.0
      %1854 = vmatprep.subr.mxu0 0.0
      %1855 = vmatpush1.msra.mxu0 0.0
      %1856 = vmatprep.subr.mxu0 0.0
      %1857 = vmatpush1.msra.mxu0 0.0
      %1858 = vmatprep.subr.mxu0 0.0
      %1859 = vmatpush1.msra.mxu0 0.0
      %1860 = vmatprep.subr.mxu0 0.0
      %1861 = vmatpush1.msra.mxu0 0.0
      %1862 = vmatprep.subr.mxu0 0.0
      %1863 = vmatpush1.msra.mxu0 0.0
      %1864 = vmatprep.subr.mxu0 0.0
      %1865 = vmatpush1.msra.mxu0 0.0
      %1866 = vmatprep.subr.mxu0 0.0
      %1867 = vmatpush1.msra.mxu0 0.0
      %1868 = vmatprep.subr.mxu0 0.0
      %1869 = vmatpush1.msra.mxu0 0.0
      %1870 = vmatprep.subr.mxu0 0.0
      %1871 = vmatpush1.msra.mxu0 0.0
      %1872 = vmatprep.subr.mxu0 0.0
      %1873 = vmatpush1.msra.mxu0 0.0
      %1874 = vmatprep.subr.mxu0 0.0
      %1875 = vmatpush1.msra.mxu0 0.0
      %1876 = vmatprep.subr.mxu0 0.0
      %1877 = vmatpush1.msra.mxu0 0.0
      %1878 = vmatprep.subr.mxu0 0.0
      %1879 = vmatpush1.msra.mxu0 0.0
      %1880 = vmatprep.subr.mxu0 0.0
      %1881 = vmatpush1.msra.mxu0 0.0
      %1882 = vmatprep.subr.mxu0 0.0
      %1883 = vmatpush1.msra.mxu0 0.0
      %1884 = vmatprep.subr.mxu0 0.0
      %1885 = vmatpush1.msra.mxu0 0.0
      %1886 = vmatprep.subr.mxu0 0.0
      %1887 = vmatpush1.msra.mxu0 0.0
      %1888 = vmatprep.subr.mxu0 0.0
      %1889 = vmatpush1.msra.mxu0 0.0
      %1890 = vmatprep.subr.mxu0 0.0
      %1891 = vmatpush1.msra.mxu0 0.0
      %1892 = vmatprep.mubr.f32.mxu0 0.0
      %1893 = vmatmul.mubr.f32.gmra.mrb[0].mxu0 %v1826
      %v1894 = vpop.f32.mrb[0].mxu0
      %v1895 = vadd.f32 0.0, %v1894
      %v1896 = vpop.f32.mrb[0].mxu0
      %1897 = vdwg.mxu0
      %v1899 = vsel %vm1459, %v420, 0
      %1901 = vmatprep.subr.mxu0 0.0
      %1902 = vmatpush1.msra.mxu0 %v644
      %1903 = vmatprep.subr.mxu0 0.0
      %1904 = vmatpush1.msra.mxu0 0.0
      %1905 = vmatprep.subr.mxu0 0.0
      %1906 = vmatpush1.msra.mxu0 0.0
      %1907 = vmatprep.subr.mxu0 0.0
      %1908 = vmatpush1.msra.mxu0 0.0
      %1909 = vmatprep.subr.mxu0 0.0
      %1910 = vmatpush1.msra.mxu0 0.0
      %1911 = vmatprep.subr.mxu0 0.0
      %1912 = vmatpush1.msra.mxu0 0.0
      %1913 = vmatprep.subr.mxu0 0.0
      %1914 = vmatpush1.msra.mxu0 0.0
      %1915 = vmatprep.subr.mxu0 0.0
      %1916 = vmatpush1.msra.mxu0 0.0
      %1917 = vmatprep.subr.mxu0 0.0
      %1918 = vmatpush1.msra.mxu0 0.0
      %1919 = vmatprep.subr.mxu0 0.0
      %1920 = vmatpush1.msra.mxu0 0.0
      %1921 = vmatprep.subr.mxu0 0.0
      %1922 = vmatpush1.msra.mxu0 0.0
      %1923 = vmatprep.subr.mxu0 0.0
      %1924 = vmatpush1.msra.mxu0 0.0
      %1925 = vmatprep.subr.mxu0 0.0
      %1926 = vmatpush1.msra.mxu0 0.0
      %1927 = vmatprep.subr.mxu0 0.0
      %1928 = vmatpush1.msra.mxu0 0.0
      %1929 = vmatprep.subr.mxu0 0.0
      %1930 = vmatpush1.msra.mxu0 0.0
      %1931 = vmatprep.subr.mxu0 0.0
      %1932 = vmatpush1.msra.mxu0 0.0
      %1933 = vmatprep.subr.mxu0 0.0
      %1934 = vmatpush1.msra.mxu0 0.0
      %1935 = vmatprep.subr.mxu0 0.0
      %1936 = vmatpush1.msra.mxu0 0.0
      %1937 = vmatprep.subr.mxu0 0.0
      %1938 = vmatpush1.msra.mxu0 0.0
      %1939 = vmatprep.subr.mxu0 0.0
      %1940 = vmatpush1.msra.mxu0 0.0
      %1941 = vmatprep.subr.mxu0 0.0
      %1942 = vmatpush1.msra.mxu0 0.0
      %1943 = vmatprep.subr.mxu0 0.0
      %1944 = vmatpush1.msra.mxu0 0.0
      %1945 = vmatprep.subr.mxu0 0.0
      %1946 = vmatpush1.msra.mxu0 0.0
      %1947 = vmatprep.subr.mxu0 0.0
      %1948 = vmatpush1.msra.mxu0 0.0
      %1949 = vmatprep.subr.mxu0 0.0
      %1950 = vmatpush1.msra.mxu0 0.0
      %1951 = vmatprep.subr.mxu0 0.0
      %1952 = vmatpush1.msra.mxu0 0.0
      %1953 = vmatprep.subr.mxu0 0.0
      %1954 = vmatpush1.msra.mxu0 0.0
      %1955 = vmatprep.subr.mxu0 0.0
      %1956 = vmatpush1.msra.mxu0 0.0
      %1957 = vmatprep.subr.mxu0 0.0
      %1958 = vmatpush1.msra.mxu0 0.0
      %1959 = vmatprep.subr.mxu0 0.0
      %1960 = vmatpush1.msra.mxu0 0.0
      %1961 = vmatprep.subr.mxu0 0.0
      %1962 = vmatpush1.msra.mxu0 0.0
      %1963 = vmatprep.subr.mxu0 0.0
      %1964 = vmatpush1.msra.mxu0 0.0
      %1965 = vmatprep.mubr.f32.mxu0 0.0
      %1966 = vmatmul.mubr.f32.gmra.mrb[0].mxu0 %v1899
      %v1967 = vpop.f32.mrb[0].mxu0
      %v1968 = vadd.f32 0.0, %v1967
      %v1969 = vpop.f32.mrb[0].mxu0
      %1970 = vdwg.mxu0
      %v1972 = vsel %vm1459, %v421, 0
      %1974 = vmatprep.subr.mxu0 0.0
      %1975 = vmatpush1.msra.mxu0 %v649
      %1976 = vmatprep.subr.mxu0 0.0
      %1977 = vmatpush1.msra.mxu0 0.0
      %1978 = vmatprep.subr.mxu0 0.0
      %1979 = vmatpush1.msra.mxu0 0.0
      %1980 = vmatprep.subr.mxu0 0.0
      %1981 = vmatpush1.msra.mxu0 0.0
      %1982 = vmatprep.subr.mxu0 0.0
      %1983 = vmatpush1.msra.mxu0 0.0
      %1984 = vmatprep.subr.mxu0 0.0
      %1985 = vmatpush1.msra.mxu0 0.0
      %1986 = vmatprep.subr.mxu0 0.0
      %1987 = vmatpush1.msra.mxu0 0.0
      %1988 = vmatprep.subr.mxu0 0.0
      %1989 = vmatpush1.msra.mxu0 0.0
      %1990 = vmatprep.subr.mxu0 0.0
      %1991 = vmatpush1.msra.mxu0 0.0
      %1992 = vmatprep.subr.mxu0 0.0
      %1993 = vmatpush1.msra.mxu0 0.0
      %1994 = vmatprep.subr.mxu0 0.0
      %1995 = vmatpush1.msra.mxu0 0.0
      %1996 = vmatprep.subr.mxu0 0.0
      %1997 = vmatpush1.msra.mxu0 0.0
      %1998 = vmatprep.subr.mxu0 0.0
      %1999 = vmatpush1.msra.mxu0 0.0
      %2000 = vmatprep.subr.mxu0 0.0
      %2001 = vmatpush1.msra.mxu0 0.0
      %2002 = vmatprep.subr.mxu0 0.0
      %2003 = vmatpush1.msra.mxu0 0.0
      %2004 = vmatprep.subr.mxu0 0.0
      %2005 = vmatpush1.msra.mxu0 0.0
      %2006 = vmatprep.subr.mxu0 0.0
      %2007 = vmatpush1.msra.mxu0 0.0
      %2008 = vmatprep.subr.mxu0 0.0
      %2009 = vmatpush1.msra.mxu0 0.0
      %2010 = vmatprep.subr.mxu0 0.0
      %2011 = vmatpush1.msra.mxu0 0.0
      %2012 = vmatprep.subr.mxu0 0.0
      %2013 = vmatpush1.msra.mxu0 0.0
      %2014 = vmatprep.subr.mxu0 0.0
      %2015 = vmatpush1.msra.mxu0 0.0
      %2016 = vmatprep.subr.mxu0 0.0
      %2017 = vmatpush1.msra.mxu0 0.0
      %2018 = vmatprep.subr.mxu0 0.0
      %2019 = vmatpush1.msra.mxu0 0.0
      %2020 = vmatprep.subr.mxu0 0.0
      %2021 = vmatpush1.msra.mxu0 0.0
      %2022 = vmatprep.subr.mxu0 0.0
      %2023 = vmatpush1.msra.mxu0 0.0
      %2024 = vmatprep.subr.mxu0 0.0
      %2025 = vmatpush1.msra.mxu0 0.0
      %2026 = vmatprep.subr.mxu0 0.0
      %2027 = vmatpush1.msra.mxu0 0.0
      %2028 = vmatprep.subr.mxu0 0.0
      %2029 = vmatpush1.msra.mxu0 0.0
      %2030 = vmatprep.subr.mxu0 0.0
      %2031 = vmatpush1.msra.mxu0 0.0
      %2032 = vmatprep.subr.mxu0 0.0
      %2033 = vmatpush1.msra.mxu0 0.0
      %2034 = vmatprep.subr.mxu0 0.0
      %2035 = vmatpush1.msra.mxu0 0.0
      %2036 = vmatprep.subr.mxu0 0.0
      %2037 = vmatpush1.msra.mxu0 0.0
      %2038 = vmatprep.mubr.f32.mxu0 0.0
      %2039 = vmatmul.mubr.f32.gmra.mrb[0].mxu0 %v1972
      %v2040 = vpop.f32.mrb[0].mxu0
      %v2041 = vadd.f32 0.0, %v2040
      %v2042 = vpop.f32.mrb[0].mxu0
      %2043 = vdwg.mxu0
      %v2045 = vsel %vm1459, %v422, 0
      %2047 = vmatprep.subr.mxu0 0.0
      %2048 = vmatpush1.msra.mxu0 %v654
      %2049 = vmatprep.subr.mxu0 0.0
      %2050 = vmatpush1.msra.mxu0 0.0
      %2051 = vmatprep.subr.mxu0 0.0
      %2052 = vmatpush1.msra.mxu0 0.0
      %2053 = vmatprep.subr.mxu0 0.0
      %2054 = vmatpush1.msra.mxu0 0.0
      %2055 = vmatprep.subr.mxu0 0.0
      %2056 = vmatpush1.msra.mxu0 0.0
      %2057 = vmatprep.subr.mxu0 0.0
      %2058 = vmatpush1.msra.mxu0 0.0
      %2059 = vmatprep.subr.mxu0 0.0
      %2060 = vmatpush1.msra.mxu0 0.0
      %2061 = vmatprep.subr.mxu0 0.0
      %2062 = vmatpush1.msra.mxu0 0.0
      %2063 = vmatprep.subr.mxu0 0.0
      %2064 = vmatpush1.msra.mxu0 0.0
      %2065 = vmatprep.subr.mxu0 0.0
      %2066 = vmatpush1.msra.mxu0 0.0
      %2067 = vmatprep.subr.mxu0 0.0
      %2068 = vmatpush1.msra.mxu0 0.0
      %2069 = vmatprep.subr.mxu0 0.0
      %2070 = vmatpush1.msra.mxu0 0.0
      %2071 = vmatprep.subr.mxu0 0.0
      %2072 = vmatpush1.msra.mxu0 0.0
      %2073 = vmatprep.subr.mxu0 0.0
      %2074 = vmatpush1.msra.mxu0 0.0
      %2075 = vmatprep.subr.mxu0 0.0
      %2076 = vmatpush1.msra.mxu0 0.0
      %2077 = vmatprep.subr.mxu0 0.0
      %2078 = vmatpush1.msra.mxu0 0.0
      %2079 = vmatprep.subr.mxu0 0.0
      %2080 = vmatpush1.msra.mxu0 0.0
      %2081 = vmatprep.subr.mxu0 0.0
      %2082 = vmatpush1.msra.mxu0 0.0
      %2083 = vmatprep.subr.mxu0 0.0
      %2084 = vmatpush1.msra.mxu0 0.0
      %2085 = vmatprep.subr.mxu0 0.0
      %2086 = vmatpush1.msra.mxu0 0.0
      %2087 = vmatprep.subr.mxu0 0.0
      %2088 = vmatpush1.msra.mxu0 0.0
      %2089 = vmatprep.subr.mxu0 0.0
      %2090 = vmatpush1.msra.mxu0 0.0
      %2091 = vmatprep.subr.mxu0 0.0
      %2092 = vmatpush1.msra.mxu0 0.0
      %2093 = vmatprep.subr.mxu0 0.0
      %2094 = vmatpush1.msra.mxu0 0.0
      %2095 = vmatprep.subr.mxu0 0.0
      %2096 = vmatpush1.msra.mxu0 0.0
      %2097 = vmatprep.subr.mxu0 0.0
      %2098 = vmatpush1.msra.mxu0 0.0
      %2099 = vmatprep.subr.mxu0 0.0
      %2100 = vmatpush1.msra.mxu0 0.0
      %2101 = vmatprep.subr.mxu0 0.0
      %2102 = vmatpush1.msra.mxu0 0.0
      %2103 = vmatprep.subr.mxu0 0.0
      %2104 = vmatpush1.msra.mxu0 0.0
      %2105 = vmatprep.subr.mxu0 0.0
      %2106 = vmatpush1.msra.mxu0 0.0
      %2107 = vmatprep.subr.mxu0 0.0
      %2108 = vmatpush1.msra.mxu0 0.0
      %2109 = vmatprep.subr.mxu0 0.0
      %2110 = vmatpush1.msra.mxu0 0.0
      %2111 = vmatprep.mubr.f32.mxu0 0.0
      %2112 = vmatmul.mubr.f32.gmra.mrb[0].mxu0 %v2045
      %v2113 = vpop.f32.mrb[0].mxu0
      %v2114 = vadd.f32 0.0, %v2113
      %v2115 = vpop.f32.mrb[0].mxu0
      %2116 = vdwg.mxu0
      %v2118 = vsel %vm1459, %v423, 0
      %2120 = vmatprep.subr.mxu0 0.0
      %2121 = vmatpush1.msra.mxu0 %v659
      %2122 = vmatprep.subr.mxu0 0.0
      %2123 = vmatpush1.msra.mxu0 0.0
      %2124 = vmatprep.subr.mxu0 0.0
      %2125 = vmatpush1.msra.mxu0 0.0
      %2126 = vmatprep.subr.mxu0 0.0
      %2127 = vmatpush1.msra.mxu0 0.0
      %2128 = vmatprep.subr.mxu0 0.0
      %2129 = vmatpush1.msra.mxu0 0.0
      %2130 = vmatprep.subr.mxu0 0.0
      %2131 = vmatpush1.msra.mxu0 0.0
      %2132 = vmatprep.subr.mxu0 0.0
      %2133 = vmatpush1.msra.mxu0 0.0
      %2134 = vmatprep.subr.mxu0 0.0
      %2135 = vmatpush1.msra.mxu0 0.0
      %2136 = vmatprep.subr.mxu0 0.0
      %2137 = vmatpush1.msra.mxu0 0.0
      %2138 = vmatprep.subr.mxu0 0.0
      %2139 = vmatpush1.msra.mxu0 0.0
      %2140 = vmatprep.subr.mxu0 0.0
      %2141 = vmatpush1.msra.mxu0 0.0
      %2142 = vmatprep.subr.mxu0 0.0
      %2143 = vmatpush1.msra.mxu0 0.0
      %2144 = vmatprep.subr.mxu0 0.0
      %2145 = vmatpush1.msra.mxu0 0.0
      %2146 = vmatprep.subr.mxu0 0.0
      %2147 = vmatpush1.msra.mxu0 0.0
      %2148 = vmatprep.subr.mxu0 0.0
      %2149 = vmatpush1.msra.mxu0 0.0
      %2150 = vmatprep.subr.mxu0 0.0
      %2151 = vmatpush1.msra.mxu0 0.0
      %2152 = vmatprep.subr.mxu0 0.0
      %2153 = vmatpush1.msra.mxu0 0.0
      %2154 = vmatprep.subr.mxu0 0.0
      %2155 = vmatpush1.msra.mxu0 0.0
      %2156 = vmatprep.subr.mxu0 0.0
      %2157 = vmatpush1.msra.mxu0 0.0
      %2158 = vmatprep.subr.mxu0 0.0
      %2159 = vmatpush1.msra.mxu0 0.0
      %2160 = vmatprep.subr.mxu0 0.0
      %2161 = vmatpush1.msra.mxu0 0.0
      %2162 = vmatprep.subr.mxu0 0.0
      %2163 = vmatpush1.msra.mxu0 0.0
      %2164 = vmatprep.subr.mxu0 0.0
      %2165 = vmatpush1.msra.mxu0 0.0
      %2166 = vmatprep.subr.mxu0 0.0
      %2167 = vmatpush1.msra.mxu0 0.0
      %2168 = vmatprep.subr.mxu0 0.0
      %2169 = vmatpush1.msra.mxu0 0.0
      %2170 = vmatprep.subr.mxu0 0.0
      %2171 = vmatpush1.msra.mxu0 0.0
      %2172 = vmatprep.subr.mxu0 0.0
      %2173 = vmatpush1.msra.mxu0 0.0
      %2174 = vmatprep.subr.mxu0 0.0
      %2175 = vmatpush1.msra.mxu0 0.0
      %2176 = vmatprep.subr.mxu0 0.0
      %2177 = vmatpush1.msra.mxu0 0.0
      %2178 = vmatprep.subr.mxu0 0.0
      %2179 = vmatpush1.msra.mxu0 0.0
      %2180 = vmatprep.subr.mxu0 0.0
      %2181 = vmatpush1.msra.mxu0 0.0
      %2182 = vmatprep.subr.mxu0 0.0
      %2183 = vmatpush1.msra.mxu0 0.0
      %2184 = vmatprep.mubr.f32.mxu0 0.0
      %2185 = vmatmul.mubr.f32.gmra.mrb[0].mxu0 %v2118
      %v2186 = vpop.f32.mrb[0].mxu0
      %v2187 = vadd.f32 0.0, %v2186
      %v2188 = vpop.f32.mrb[0].mxu0
      %2189 = vdwg.mxu0
      %v2191 = vsel %vm1459, %v424, 0
      %2193 = vmatprep.subr.mxu0 0.0
      %2194 = vmatpush1.msra.mxu0 %v664
      %2195 = vmatprep.subr.mxu0 0.0
      %2196 = vmatpush1.msra.mxu0 0.0
      %2197 = vmatprep.subr.mxu0 0.0
      %2198 = vmatpush1.msra.mxu0 0.0
      %2199 = vmatprep.subr.mxu0 0.0
      %2200 = vmatpush1.msra.mxu0 0.0
      %2201 = vmatprep.subr.mxu0 0.0
      %2202 = vmatpush1.msra.mxu0 0.0
      %2203 = vmatprep.subr.mxu0 0.0
      %2204 = vmatpush1.msra.mxu0 0.0
      %2205 = vmatprep.subr.mxu0 0.0
      %2206 = vmatpush1.msra.mxu0 0.0
      %2207 = vmatprep.subr.mxu0 0.0
      %2208 = vmatpush1.msra.mxu0 0.0
      %2209 = vmatprep.subr.mxu0 0.0
      %2210 = vmatpush1.msra.mxu0 0.0
      %2211 = vmatprep.subr.mxu0 0.0
      %2212 = vmatpush1.msra.mxu0 0.0
      %2213 = vmatprep.subr.mxu0 0.0
      %2214 = vmatpush1.msra.mxu0 0.0
      %2215 = vmatprep.subr.mxu0 0.0
      %2216 = vmatpush1.msra.mxu0 0.0
      %2217 = vmatprep.subr.mxu0 0.0
      %2218 = vmatpush1.msra.mxu0 0.0
      %2219 = vmatprep.subr.mxu0 0.0
      %2220 = vmatpush1.msra.mxu0 0.0
      %2221 = vmatprep.subr.mxu0 0.0
      %2222 = vmatpush1.msra.mxu0 0.0
      %2223 = vmatprep.subr.mxu0 0.0
      %2224 = vmatpush1.msra.mxu0 0.0
      %2225 = vmatprep.subr.mxu0 0.0
      %2226 = vmatpush1.msra.mxu0 0.0
      %2227 = vmatprep.subr.mxu0 0.0
      %2228 = vmatpush1.msra.mxu0 0.0
      %2229 = vmatprep.subr.mxu0 0.0
      %2230 = vmatpush1.msra.mxu0 0.0
      %2231 = vmatprep.subr.mxu0 0.0
      %2232 = vmatpush1.msra.mxu0 0.0
      %2233 = vmatprep.subr.mxu0 0.0
      %2234 = vmatpush1.msra.mxu0 0.0
      %2235 = vmatprep.subr.mxu0 0.0
      %2236 = vmatpush1.msra.mxu0 0.0
      %2237 = vmatprep.subr.mxu0 0.0
      %2238 = vmatpush1.msra.mxu0 0.0
      %2239 = vmatprep.subr.mxu0 0.0
      %2240 = vmatpush1.msra.mxu0 0.0
      %2241 = vmatprep.subr.mxu0 0.0
      %2242 = vmatpush1.msra.mxu0 0.0
      %2243 = vmatprep.subr.mxu0 0.0
      %2244 = vmatpush1.msra.mxu0 0.0
      %2245 = vmatprep.subr.mxu0 0.0
      %2246 = vmatpush1.msra.mxu0 0.0
      %2247 = vmatprep.subr.mxu0 0.0
      %2248 = vmatpush1.msra.mxu0 0.0
      %2249 = vmatprep.subr.mxu0 0.0
      %2250 = vmatpush1.msra.mxu0 0.0
      %2251 = vmatprep.subr.mxu0 0.0
      %2252 = vmatpush1.msra.mxu0 0.0
      %2253 = vmatprep.subr.mxu0 0.0
      %2254 = vmatpush1.msra.mxu0 0.0
      %2255 = vmatprep.subr.mxu0 0.0
      %2256 = vmatpush1.msra.mxu0 0.0
      %2257 = vmatprep.mubr.f32.mxu0 0.0
      %2258 = vmatmul.mubr.f32.gmra.mrb[0].mxu0 %v2191
      %v2259 = vpop.f32.mrb[0].mxu0
      %v2260 = vadd.f32 0.0, %v2259
      %v2261 = vpop.f32.mrb[0].mxu0
      %2262 = vdwg.mxu0
      %v2264 = vsel %vm1459, %v425, 0
      %2266 = vmatprep.subr.mxu0 0.0
      %2267 = vmatpush1.msra.mxu0 %v669
      %2268 = vmatprep.subr.mxu0 0.0
      %2269 = vmatpush1.msra.mxu0 0.0
      %2270 = vmatprep.subr.mxu0 0.0
      %2271 = vmatpush1.msra.mxu0 0.0
      %2272 = vmatprep.subr.mxu0 0.0
      %2273 = vmatpush1.msra.mxu0 0.0
      %2274 = vmatprep.subr.mxu0 0.0
      %2275 = vmatpush1.msra.mxu0 0.0
      %2276 = vmatprep.subr.mxu0 0.0
      %2277 = vmatpush1.msra.mxu0 0.0
      %2278 = vmatprep.subr.mxu0 0.0
      %2279 = vmatpush1.msra.mxu0 0.0
      %2280 = vmatprep.subr.mxu0 0.0
      %2281 = vmatpush1.msra.mxu0 0.0
      %2282 = vmatprep.subr.mxu0 0.0
      %2283 = vmatpush1.msra.mxu0 0.0
      %2284 = vmatprep.subr.mxu0 0.0
      %2285 = vmatpush1.msra.mxu0 0.0
      %2286 = vmatprep.subr.mxu0 0.0
      %2287 = vmatpush1.msra.mxu0 0.0
      %2288 = vmatprep.subr.mxu0 0.0
      %2289 = vmatpush1.msra.mxu0 0.0
      %2290 = vmatprep.subr.mxu0 0.0
      %2291 = vmatpush1.msra.mxu0 0.0
      %2292 = vmatprep.subr.mxu0 0.0
      %2293 = vmatpush1.msra.mxu0 0.0
      %2294 = vmatprep.subr.mxu0 0.0
      %2295 = vmatpush1.msra.mxu0 0.0
      %2296 = vmatprep.subr.mxu0 0.0
      %2297 = vmatpush1.msra.mxu0 0.0
      %2298 = vmatprep.subr.mxu0 0.0
      %2299 = vmatpush1.msra.mxu0 0.0
      %2300 = vmatprep.subr.mxu0 0.0
      %2301 = vmatpush1.msra.mxu0 0.0
      %2302 = vmatprep.subr.mxu0 0.0
      %2303 = vmatpush1.msra.mxu0 0.0
      %2304 = vmatprep.subr.mxu0 0.0
      %2305 = vmatpush1.msra.mxu0 0.0
      %2306 = vmatprep.subr.mxu0 0.0
      %2307 = vmatpush1.msra.mxu0 0.0
      %2308 = vmatprep.subr.mxu0 0.0
      %2309 = vmatpush1.msra.mxu0 0.0
      %2310 = vmatprep.subr.mxu0 0.0
      %2311 = vmatpush1.msra.mxu0 0.0
      %2312 = vmatprep.subr.mxu0 0.0
      %2313 = vmatpush1.msra.mxu0 0.0
      %2314 = vmatprep.subr.mxu0 0.0
      %2315 = vmatpush1.msra.mxu0 0.0
      %2316 = vmatprep.subr.mxu0 0.0
      %2317 = vmatpush1.msra.mxu0 0.0
      %2318 = vmatprep.subr.mxu0 0.0
      %2319 = vmatpush1.msra.mxu0 0.0
      %2320 = vmatprep.subr.mxu0 0.0
      %2321 = vmatpush1.msra.mxu0 0.0
      %2322 = vmatprep.subr.mxu0 0.0
      %2323 = vmatpush1.msra.mxu0 0.0
      %2324 = vmatprep.subr.mxu0 0.0
      %2325 = vmatpush1.msra.mxu0 0.0
      %2326 = vmatprep.subr.mxu0 0.0
      %2327 = vmatpush1.msra.mxu0 0.0
      %2328 = vmatprep.subr.mxu0 0.0
      %2329 = vmatpush1.msra.mxu0 0.0
      %2330 = vmatprep.mubr.f32.mxu0 0.0
      %2331 = vmatmul.mubr.f32.gmra.mrb[0].mxu0 %v2264
      %v2332 = vpop.f32.mrb[0].mxu0
      %v2333 = vadd.f32 0.0, %v2332
      %v2334 = vpop.f32.mrb[0].mxu0
      %2335 = vdwg.mxu0
      %v2337 = vsel %vm1459, %v426, 0
      %2339 = vmatprep.subr.mxu0 0.0
      %2340 = vmatpush1.msra.mxu0 %v674
      %2341 = vmatprep.subr.mxu0 0.0
      %2342 = vmatpush1.msra.mxu0 0.0
      %2343 = vmatprep.subr.mxu0 0.0
      %2344 = vmatpush1.msra.mxu0 0.0
      %2345 = vmatprep.subr.mxu0 0.0
      %2346 = vmatpush1.msra.mxu0 0.0
      %2347 = vmatprep.subr.mxu0 0.0
      %2348 = vmatpush1.msra.mxu0 0.0
      %2349 = vmatprep.subr.mxu0 0.0
      %2350 = vmatpush1.msra.mxu0 0.0
      %2351 = vmatprep.subr.mxu0 0.0
      %2352 = vmatpush1.msra.mxu0 0.0
      %2353 = vmatprep.subr.mxu0 0.0
      %2354 = vmatpush1.msra.mxu0 0.0
      %2355 = vmatprep.subr.mxu0 0.0
      %2356 = vmatpush1.msra.mxu0 0.0
      %2357 = vmatprep.subr.mxu0 0.0
      %2358 = vmatpush1.msra.mxu0 0.0
      %2359 = vmatprep.subr.mxu0 0.0
      %2360 = vmatpush1.msra.mxu0 0.0
      %2361 = vmatprep.subr.mxu0 0.0
      %2362 = vmatpush1.msra.mxu0 0.0
      %2363 = vmatprep.subr.mxu0 0.0
      %2364 = vmatpush1.msra.mxu0 0.0
      %2365 = vmatprep.subr.mxu0 0.0
      %2366 = vmatpush1.msra.mxu0 0.0
      %2367 = vmatprep.subr.mxu0 0.0
      %2368 = vmatpush1.msra.mxu0 0.0
      %2369 = vmatprep.subr.mxu0 0.0
      %2370 = vmatpush1.msra.mxu0 0.0
      %2371 = vmatprep.subr.mxu0 0.0
      %2372 = vmatpush1.msra.mxu0 0.0
      %2373 = vmatprep.subr.mxu0 0.0
      %2374 = vmatpush1.msra.mxu0 0.0
      %2375 = vmatprep.subr.mxu0 0.0
      %2376 = vmatpush1.msra.mxu0 0.0
      %2377 = vmatprep.subr.mxu0 0.0
      %2378 = vmatpush1.msra.mxu0 0.0
      %2379 = vmatprep.subr.mxu0 0.0
      %2380 = vmatpush1.msra.mxu0 0.0
      %2381 = vmatprep.subr.mxu0 0.0
      %2382 = vmatpush1.msra.mxu0 0.0
      %2383 = vmatprep.subr.mxu0 0.0
      %2384 = vmatpush1.msra.mxu0 0.0
      %2385 = vmatprep.subr.mxu0 0.0
      %2386 = vmatpush1.msra.mxu0 0.0
      %2387 = vmatprep.subr.mxu0 0.0
      %2388 = vmatpush1.msra.mxu0 0.0
      %2389 = vmatprep.subr.mxu0 0.0
      %2390 = vmatpush1.msra.mxu0 0.0
      %2391 = vmatprep.subr.mxu0 0.0
      %2392 = vmatpush1.msra.mxu0 0.0
      %2393 = vmatprep.subr.mxu0 0.0
      %2394 = vmatpush1.msra.mxu0 0.0
      %2395 = vmatprep.subr.mxu0 0.0
      %2396 = vmatpush1.msra.mxu0 0.0
      %2397 = vmatprep.subr.mxu0 0.0
      %2398 = vmatpush1.msra.mxu0 0.0
      %2399 = vmatprep.subr.mxu0 0.0
      %2400 = vmatpush1.msra.mxu0 0.0
      %2401 = vmatprep.subr.mxu0 0.0
      %2402 = vmatpush1.msra.mxu0 0.0
      %2403 = vmatprep.mubr.f32.mxu0 0.0
      %2404 = vmatmul.mubr.f32.gmra.mrb[0].mxu0 %v2337
      %v2405 = vpop.f32.mrb[0].mxu0
      %v2406 = vadd.f32 0.0, %v2405
      %v2407 = vpop.f32.mrb[0].mxu0
      %2408 = vdwg.mxu0
      %v2410 = vsel %vm1459, %v427, 0
      %2412 = vmatprep.subr.mxu0 0.0
      %2413 = vmatpush1.msra.mxu0 %v679
      %2414 = vmatprep.subr.mxu0 0.0
      %2415 = vmatpush1.msra.mxu0 0.0
      %2416 = vmatprep.subr.mxu0 0.0
      %2417 = vmatpush1.msra.mxu0 0.0
      %2418 = vmatprep.subr.mxu0 0.0
      %2419 = vmatpush1.msra.mxu0 0.0
      %2420 = vmatprep.subr.mxu0 0.0
      %2421 = vmatpush1.msra.mxu0 0.0
      %2422 = vmatprep.subr.mxu0 0.0
      %2423 = vmatpush1.msra.mxu0 0.0
      %2424 = vmatprep.subr.mxu0 0.0
      %2425 = vmatpush1.msra.mxu0 0.0
      %2426 = vmatprep.subr.mxu0 0.0
      %2427 = vmatpush1.msra.mxu0 0.0
      %2428 = vmatprep.subr.mxu0 0.0
      %2429 = vmatpush1.msra.mxu0 0.0
      %2430 = vmatprep.subr.mxu0 0.0
      %2431 = vmatpush1.msra.mxu0 0.0
      %2432 = vmatprep.subr.mxu0 0.0
      %2433 = vmatpush1.msra.mxu0 0.0
      %2434 = vmatprep.subr.mxu0 0.0
      %2435 = vmatpush1.msra.mxu0 0.0
      %2436 = vmatprep.subr.mxu0 0.0
      %2437 = vmatpush1.msra.mxu0 0.0
      %2438 = vmatprep.subr.mxu0 0.0
      %2439 = vmatpush1.msra.mxu0 0.0
      %2440 = vmatprep.subr.mxu0 0.0
      %2441 = vmatpush1.msra.mxu0 0.0
      %2442 = vmatprep.subr.mxu0 0.0
      %2443 = vmatpush1.msra.mxu0 0.0
      %2444 = vmatprep.subr.mxu0 0.0
      %2445 = vmatpush1.msra.mxu0 0.0
      %2446 = vmatprep.subr.mxu0 0.0
      %2447 = vmatpush1.msra.mxu0 0.0
      %2448 = vmatprep.subr.mxu0 0.0
      %2449 = vmatpush1.msra.mxu0 0.0
      %2450 = vmatprep.subr.mxu0 0.0
      %2451 = vmatpush1.msra.mxu0 0.0
      %2452 = vmatprep.subr.mxu0 0.0
      %2453 = vmatpush1.msra.mxu0 0.0
      %2454 = vmatprep.subr.mxu0 0.0
      %2455 = vmatpush1.msra.mxu0 0.0
      %2456 = vmatprep.subr.mxu0 0.0
      %2457 = vmatpush1.msra.mxu0 0.0
      %2458 = vmatprep.subr.mxu0 0.0
      %2459 = vmatpush1.msra.mxu0 0.0
      %2460 = vmatprep.subr.mxu0 0.0
      %2461 = vmatpush1.msra.mxu0 0.0
      %2462 = vmatprep.subr.mxu0 0.0
      %2463 = vmatpush1.msra.mxu0 0.0
      %2464 = vmatprep.subr.mxu0 0.0
      %2465 = vmatpush1.msra.mxu0 0.0
      %2466 = vmatprep.subr.mxu0 0.0
      %2467 = vmatpush1.msra.mxu0 0.0
      %2468 = vmatprep.subr.mxu0 0.0
      %2469 = vmatpush1.msra.mxu0 0.0
      %2470 = vmatprep.subr.mxu0 0.0
      %2471 = vmatpush1.msra.mxu0 0.0
      %2472 = vmatprep.subr.mxu0 0.0
      %2473 = vmatpush1.msra.mxu0 0.0
      %2474 = vmatprep.subr.mxu0 0.0
      %2475 = vmatpush1.msra.mxu0 0.0
      %2476 = vmatprep.mubr.f32.mxu0 0.0
      %2477 = vmatmul.mubr.f32.gmra.mrb[0].mxu0 %v2410
      %v2478 = vpop.f32.mrb[0].mxu0
      %v2479 = vadd.f32 0.0, %v2478
      %v2480 = vpop.f32.mrb[0].mxu0
      %2481 = vdwg.mxu0
      %v2483 = vsel %vm1459, %v428, 0
      %2485 = vmatprep.subr.mxu0 0.0
      %2486 = vmatpush1.msra.mxu0 %v684
      %2487 = vmatprep.subr.mxu0 0.0
      %2488 = vmatpush1.msra.mxu0 0.0
      %2489 = vmatprep.subr.mxu0 0.0
      %2490 = vmatpush1.msra.mxu0 0.0
      %2491 = vmatprep.subr.mxu0 0.0
      %2492 = vmatpush1.msra.mxu0 0.0
      %2493 = vmatprep.subr.mxu0 0.0
      %2494 = vmatpush1.msra.mxu0 0.0
      %2495 = vmatprep.subr.mxu0 0.0
      %2496 = vmatpush1.msra.mxu0 0.0
      %2497 = vmatprep.subr.mxu0 0.0
      %2498 = vmatpush1.msra.mxu0 0.0
      %2499 = vmatprep.subr.mxu0 0.0
      %2500 = vmatpush1.msra.mxu0 0.0
      %2501 = vmatprep.subr.mxu0 0.0
      %2502 = vmatpush1.msra.mxu0 0.0
      %2503 = vmatprep.subr.mxu0 0.0
      %2504 = vmatpush1.msra.mxu0 0.0
      %2505 = vmatprep.subr.mxu0 0.0
      %2506 = vmatpush1.msra.mxu0 0.0
      %2507 = vmatprep.subr.mxu0 0.0
      %2508 = vmatpush1.msra.mxu0 0.0
      %2509 = vmatprep.subr.mxu0 0.0
      %2510 = vmatpush1.msra.mxu0 0.0
      %2511 = vmatprep.subr.mxu0 0.0
      %2512 = vmatpush1.msra.mxu0 0.0
      %2513 = vmatprep.subr.mxu0 0.0
      %2514 = vmatpush1.msra.mxu0 0.0
      %2515 = vmatprep.subr.mxu0 0.0
      %2516 = vmatpush1.msra.mxu0 0.0
      %2517 = vmatprep.subr.mxu0 0.0
      %2518 = vmatpush1.msra.mxu0 0.0
      %2519 = vmatprep.subr.mxu0 0.0
      %2520 = vmatpush1.msra.mxu0 0.0
      %2521 = vmatprep.subr.mxu0 0.0
      %2522 = vmatpush1.msra.mxu0 0.0
      %2523 = vmatprep.subr.mxu0 0.0
      %2524 = vmatpush1.msra.mxu0 0.0
      %2525 = vmatprep.subr.mxu0 0.0
      %2526 = vmatpush1.msra.mxu0 0.0
      %2527 = vmatprep.subr.mxu0 0.0
      %2528 = vmatpush1.msra.mxu0 0.0
      %2529 = vmatprep.subr.mxu0 0.0
      %2530 = vmatpush1.msra.mxu0 0.0
      %2531 = vmatprep.subr.mxu0 0.0
      %2532 = vmatpush1.msra.mxu0 0.0
      %2533 = vmatprep.subr.mxu0 0.0
      %2534 = vmatpush1.msra.mxu0 0.0
      %2535 = vmatprep.subr.mxu0 0.0
      %2536 = vmatpush1.msra.mxu0 0.0
      %2537 = vmatprep.subr.mxu0 0.0
      %2538 = vmatpush1.msra.mxu0 0.0
      %2539 = vmatprep.subr.mxu0 0.0
      %2540 = vmatpush1.msra.mxu0 0.0
      %2541 = vmatprep.subr.mxu0 0.0
      %2542 = vmatpush1.msra.mxu0 0.0
      %2543 = vmatprep.subr.mxu0 0.0
      %2544 = vmatpush1.msra.mxu0 0.0
      %2545 = vmatprep.subr.mxu0 0.0
      %2546 = vmatpush1.msra.mxu0 0.0
      %2547 = vmatprep.subr.mxu0 0.0
      %2548 = vmatpush1.msra.mxu0 0.0
      %2549 = vmatprep.mubr.f32.mxu0 0.0
      %2550 = vmatmul.mubr.f32.gmra.mrb[0].mxu0 %v2483
      %v2551 = vpop.f32.mrb[0].mxu0
      %v2552 = vadd.f32 0.0, %v2551
      %v2553 = vpop.f32.mrb[0].mxu0
      %2554 = vdwg.mxu0
      %v2556 = vsel %vm1459, %v429, 0
      %2558 = vmatprep.subr.mxu0 0.0
      %2559 = vmatpush1.msra.mxu0 %v689
      %2560 = vmatprep.subr.mxu0 0.0
      %2561 = vmatpush1.msra.mxu0 0.0
      %2562 = vmatprep.subr.mxu0 0.0
      %2563 = vmatpush1.msra.mxu0 0.0
      %2564 = vmatprep.subr.mxu0 0.0
      %2565 = vmatpush1.msra.mxu0 0.0
      %2566 = vmatprep.subr.mxu0 0.0
      %2567 = vmatpush1.msra.mxu0 0.0
      %2568 = vmatprep.subr.mxu0 0.0
      %2569 = vmatpush1.msra.mxu0 0.0
      %2570 = vmatprep.subr.mxu0 0.0
      %2571 = vmatpush1.msra.mxu0 0.0
      %2572 = vmatprep.subr.mxu0 0.0
      %2573 = vmatpush1.msra.mxu0 0.0
      %2574 = vmatprep.subr.mxu0 0.0
      %2575 = vmatpush1.msra.mxu0 0.0
      %2576 = vmatprep.subr.mxu0 0.0
      %2577 = vmatpush1.msra.mxu0 0.0
      %2578 = vmatprep.subr.mxu0 0.0
      %2579 = vmatpush1.msra.mxu0 0.0
      %2580 = vmatprep.subr.mxu0 0.0
      %2581 = vmatpush1.msra.mxu0 0.0
      %2582 = vmatprep.subr.mxu0 0.0
      %2583 = vmatpush1.msra.mxu0 0.0
      %2584 = vmatprep.subr.mxu0 0.0
      %2585 = vmatpush1.msra.mxu0 0.0
      %2586 = vmatprep.subr.mxu0 0.0
      %2587 = vmatpush1.msra.mxu0 0.0
      %2588 = vmatprep.subr.mxu0 0.0
      %2589 = vmatpush1.msra.mxu0 0.0
      %2590 = vmatprep.subr.mxu0 0.0
      %2591 = vmatpush1.msra.mxu0 0.0
      %2592 = vmatprep.subr.mxu0 0.0
      %2593 = vmatpush1.msra.mxu0 0.0
      %2594 = vmatprep.subr.mxu0 0.0
      %2595 = vmatpush1.msra.mxu0 0.0
      %2596 = vmatprep.subr.mxu0 0.0
      %2597 = vmatpush1.msra.mxu0 0.0
      %2598 = vmatprep.subr.mxu0 0.0
      %2599 = vmatpush1.msra.mxu0 0.0
      %2600 = vmatprep.subr.mxu0 0.0
      %2601 = vmatpush1.msra.mxu0 0.0
      %2602 = vmatprep.subr.mxu0 0.0
      %2603 = vmatpush1.msra.mxu0 0.0
      %2604 = vmatprep.subr.mxu0 0.0
      %2605 = vmatpush1.msra.mxu0 0.0
      %2606 = vmatprep.subr.mxu0 0.0
      %2607 = vmatpush1.msra.mxu0 0.0
      %2608 = vmatprep.subr.mxu0 0.0
      %2609 = vmatpush1.msra.mxu0 0.0
      %2610 = vmatprep.subr.mxu0 0.0
      %2611 = vmatpush1.msra.mxu0 0.0
      %2612 = vmatprep.subr.mxu0 0.0
      %2613 = vmatpush1.msra.mxu0 0.0
      %2614 = vmatprep.subr.mxu0 0.0
      %2615 = vmatpush1.msra.mxu0 0.0
      %2616 = vmatprep.subr.mxu0 0.0
      %2617 = vmatpush1.msra.mxu0 0.0
      %2618 = vmatprep.subr.mxu0 0.0
      %2619 = vmatpush1.msra.mxu0 0.0
      %2620 = vmatprep.subr.mxu0 0.0
      %2621 = vmatpush1.msra.mxu0 0.0
      %2622 = vmatprep.mubr.f32.mxu0 0.0
      %2623 = vmatmul.mubr.f32.gmra.mrb[0].mxu0 %v2556
      %v2624 = vpop.f32.mrb[0].mxu0
      %v2625 = vadd.f32 0.0, %v2624
      %v2626 = vpop.f32.mrb[0].mxu0
      %2627 = vdwg.mxu0
      %v2629 = vsel %vm1459, %v430, 0
      %2631 = vmatprep.subr.mxu0 0.0
      %2632 = vmatpush1.msra.mxu0 %v694
      %2633 = vmatprep.subr.mxu0 0.0
      %2634 = vmatpush1.msra.mxu0 0.0
      %2635 = vmatprep.subr.mxu0 0.0
      %2636 = vmatpush1.msra.mxu0 0.0
      %2637 = vmatprep.subr.mxu0 0.0
      %2638 = vmatpush1.msra.mxu0 0.0
      %2639 = vmatprep.subr.mxu0 0.0
      %2640 = vmatpush1.msra.mxu0 0.0
      %2641 = vmatprep.subr.mxu0 0.0
      %2642 = vmatpush1.msra.mxu0 0.0
      %2643 = vmatprep.subr.mxu0 0.0
      %2644 = vmatpush1.msra.mxu0 0.0
      %2645 = vmatprep.subr.mxu0 0.0
      %2646 = vmatpush1.msra.mxu0 0.0
      %2647 = vmatprep.subr.mxu0 0.0
      %2648 = vmatpush1.msra.mxu0 0.0
      %2649 = vmatprep.subr.mxu0 0.0
      %2650 = vmatpush1.msra.mxu0 0.0
      %2651 = vmatprep.subr.mxu0 0.0
      %2652 = vmatpush1.msra.mxu0 0.0
      %2653 = vmatprep.subr.mxu0 0.0
      %2654 = vmatpush1.msra.mxu0 0.0
      %2655 = vmatprep.subr.mxu0 0.0
      %2656 = vmatpush1.msra.mxu0 0.0
      %2657 = vmatprep.subr.mxu0 0.0
      %2658 = vmatpush1.msra.mxu0 0.0
      %2659 = vmatprep.subr.mxu0 0.0
      %2660 = vmatpush1.msra.mxu0 0.0
      %2661 = vmatprep.subr.mxu0 0.0
      %2662 = vmatpush1.msra.mxu0 0.0
      %2663 = vmatprep.subr.mxu0 0.0
      %2664 = vmatpush1.msra.mxu0 0.0
      %2665 = vmatprep.subr.mxu0 0.0
      %2666 = vmatpush1.msra.mxu0 0.0
      %2667 = vmatprep.subr.mxu0 0.0
      %2668 = vmatpush1.msra.mxu0 0.0
      %2669 = vmatprep.subr.mxu0 0.0
      %2670 = vmatpush1.msra.mxu0 0.0
      %2671 = vmatprep.subr.mxu0 0.0
      %2672 = vmatpush1.msra.mxu0 0.0
      %2673 = vmatprep.subr.mxu0 0.0
      %2674 = vmatpush1.msra.mxu0 0.0
      %2675 = vmatprep.subr.mxu0 0.0
      %2676 = vmatpush1.msra.mxu0 0.0
      %2677 = vmatprep.subr.mxu0 0.0
      %2678 = vmatpush1.msra.mxu0 0.0
      %2679 = vmatprep.subr.mxu0 0.0
      %2680 = vmatpush1.msra.mxu0 0.0
      %2681 = vmatprep.subr.mxu0 0.0
      %2682 = vmatpush1.msra.mxu0 0.0
      %2683 = vmatprep.subr.mxu0 0.0
      %2684 = vmatpush1.msra.mxu0 0.0
      %2685 = vmatprep.subr.mxu0 0.0
      %2686 = vmatpush1.msra.mxu0 0.0
      %2687 = vmatprep.subr.mxu0 0.0
      %2688 = vmatpush1.msra.mxu0 0.0
      %2689 = vmatprep.subr.mxu0 0.0
      %2690 = vmatpush1.msra.mxu0 0.0
      %2691 = vmatprep.subr.mxu0 0.0
      %2692 = vmatpush1.msra.mxu0 0.0
      %2693 = vmatprep.subr.mxu0 0.0
      %2694 = vmatpush1.msra.mxu0 0.0
      %2695 = vmatprep.mubr.f32.mxu0 0.0
      %2696 = vmatmul.mubr.f32.gmra.mrb[0].mxu0 %v2629
      %v2697 = vpop.f32.mrb[0].mxu0
      %v2698 = vadd.f32 0.0, %v2697
      %v2699 = vpop.f32.mrb[0].mxu0
      %2700 = vdwg.mxu0
      %v2702 = vsel %vm1459, %v431, 0
      %2704 = vmatprep.subr.mxu0 0.0
      %2705 = vmatpush1.msra.mxu0 %v699
      %2706 = vmatprep.subr.mxu0 0.0
      %2707 = vmatpush1.msra.mxu0 0.0
      %2708 = vmatprep.subr.mxu0 0.0
      %2709 = vmatpush1.msra.mxu0 0.0
      %2710 = vmatprep.subr.mxu0 0.0
      %2711 = vmatpush1.msra.mxu0 0.0
      %2712 = vmatprep.subr.mxu0 0.0
      %2713 = vmatpush1.msra.mxu0 0.0
      %2714 = vmatprep.subr.mxu0 0.0
      %2715 = vmatpush1.msra.mxu0 0.0
      %2716 = vmatprep.subr.mxu0 0.0
      %2717 = vmatpush1.msra.mxu0 0.0
      %2718 = vmatprep.subr.mxu0 0.0
      %2719 = vmatpush1.msra.mxu0 0.0
      %2720 = vmatprep.subr.mxu0 0.0
      %2721 = vmatpush1.msra.mxu0 0.0
      %2722 = vmatprep.subr.mxu0 0.0
      %2723 = vmatpush1.msra.mxu0 0.0
      %2724 = vmatprep.subr.mxu0 0.0
      %2725 = vmatpush1.msra.mxu0 0.0
      %2726 = vmatprep.subr.mxu0 0.0
      %2727 = vmatpush1.msra.mxu0 0.0
      %2728 = vmatprep.subr.mxu0 0.0
      %2729 = vmatpush1.msra.mxu0 0.0
      %2730 = vmatprep.subr.mxu0 0.0
      %2731 = vmatpush1.msra.mxu0 0.0
      %2732 = vmatprep.subr.mxu0 0.0
      %2733 = vmatpush1.msra.mxu0 0.0
      %2734 = vmatprep.subr.mxu0 0.0
      %2735 = vmatpush1.msra.mxu0 0.0
      %2736 = vmatprep.subr.mxu0 0.0
      %2737 = vmatpush1.msra.mxu0 0.0
      %2738 = vmatprep.subr.mxu0 0.0
      %2739 = vmatpush1.msra.mxu0 0.0
      %2740 = vmatprep.subr.mxu0 0.0
      %2741 = vmatpush1.msra.mxu0 0.0
      %2742 = vmatprep.subr.mxu0 0.0
      %2743 = vmatpush1.msra.mxu0 0.0
      %2744 = vmatprep.subr.mxu0 0.0
      %2745 = vmatpush1.msra.mxu0 0.0
      %2746 = vmatprep.subr.mxu0 0.0
      %2747 = vmatpush1.msra.mxu0 0.0
      %2748 = vmatprep.subr.mxu0 0.0
      %2749 = vmatpush1.msra.mxu0 0.0
      %2750 = vmatprep.subr.mxu0 0.0
      %2751 = vmatpush1.msra.mxu0 0.0
      %2752 = vmatprep.subr.mxu0 0.0
      %2753 = vmatpush1.msra.mxu0 0.0
      %2754 = vmatprep.subr.mxu0 0.0
      %2755 = vmatpush1.msra.mxu0 0.0
      %2756 = vmatprep.subr.mxu0 0.0
      %2757 = vmatpush1.msra.mxu0 0.0
      %2758 = vmatprep.subr.mxu0 0.0
      %2759 = vmatpush1.msra.mxu0 0.0
      %2760 = vmatprep.subr.mxu0 0.0
      %2761 = vmatpush1.msra.mxu0 0.0
      %2762 = vmatprep.subr.mxu0 0.0
      %2763 = vmatpush1.msra.mxu0 0.0
      %2764 = vmatprep.subr.mxu0 0.0
      %2765 = vmatpush1.msra.mxu0 0.0
      %2766 = vmatprep.subr.mxu0 0.0
      %2767 = vmatpush1.msra.mxu0 0.0
      %2768 = vmatprep.mubr.f32.mxu0 0.0
      %2769 = vmatmul.mubr.f32.gmra.mrb[0].mxu0 %v2702
      %v2770 = vpop.f32.mrb[0].mxu0
      %v2771 = vadd.f32 0.0, %v2770
      %v2772 = vpop.f32.mrb[0].mxu0
      %2773 = vdwg.mxu0
      %v2775 = vsel %vm1459, %v432, 0
      %2777 = vmatprep.subr.mxu0 0.0
      %2778 = vmatpush1.msra.mxu0 %v704
      %2779 = vmatprep.subr.mxu0 0.0
      %2780 = vmatpush1.msra.mxu0 0.0
      %2781 = vmatprep.subr.mxu0 0.0
      %2782 = vmatpush1.msra.mxu0 0.0
      %2783 = vmatprep.subr.mxu0 0.0
      %2784 = vmatpush1.msra.mxu0 0.0
      %2785 = vmatprep.subr.mxu0 0.0
      %2786 = vmatpush1.msra.mxu0 0.0
      %2787 = vmatprep.subr.mxu0 0.0
      %2788 = vmatpush1.msra.mxu0 0.0
      %2789 = vmatprep.subr.mxu0 0.0
      %2790 = vmatpush1.msra.mxu0 0.0
      %2791 = vmatprep.subr.mxu0 0.0
      %2792 = vmatpush1.msra.mxu0 0.0
      %2793 = vmatprep.subr.mxu0 0.0
      %2794 = vmatpush1.msra.mxu0 0.0
      %2795 = vmatprep.subr.mxu0 0.0
      %2796 = vmatpush1.msra.mxu0 0.0
      %2797 = vmatprep.subr.mxu0 0.0
      %2798 = vmatpush1.msra.mxu0 0.0
      %2799 = vmatprep.subr.mxu0 0.0
      %2800 = vmatpush1.msra.mxu0 0.0
      %2801 = vmatprep.subr.mxu0 0.0
      %2802 = vmatpush1.msra.mxu0 0.0
      %2803 = vmatprep.subr.mxu0 0.0
      %2804 = vmatpush1.msra.mxu0 0.0
      %2805 = vmatprep.subr.mxu0 0.0
      %2806 = vmatpush1.msra.mxu0 0.0
      %2807 = vmatprep.subr.mxu0 0.0
      %2808 = vmatpush1.msra.mxu0 0.0
      %2809 = vmatprep.subr.mxu0 0.0
      %2810 = vmatpush1.msra.mxu0 0.0
      %2811 = vmatprep.subr.mxu0 0.0
      %2812 = vmatpush1.msra.mxu0 0.0
      %2813 = vmatprep.subr.mxu0 0.0
      %2814 = vmatpush1.msra.mxu0 0.0
      %2815 = vmatprep.subr.mxu0 0.0
      %2816 = vmatpush1.msra.mxu0 0.0
      %2817 = vmatprep.subr.mxu0 0.0
      %2818 = vmatpush1.msra.mxu0 0.0
      %2819 = vmatprep.subr.mxu0 0.0
      %2820 = vmatpush1.msra.mxu0 0.0
      %2821 = vmatprep.subr.mxu0 0.0
      %2822 = vmatpush1.msra.mxu0 0.0
      %2823 = vmatprep.subr.mxu0 0.0
      %2824 = vmatpush1.msra.mxu0 0.0
      %2825 = vmatprep.subr.mxu0 0.0
      %2826 = vmatpush1.msra.mxu0 0.0
      %2827 = vmatprep.subr.mxu0 0.0
      %2828 = vmatpush1.msra.mxu0 0.0
      %2829 = vmatprep.subr.mxu0 0.0
      %2830 = vmatpush1.msra.mxu0 0.0
      %2831 = vmatprep.subr.mxu0 0.0
      %2832 = vmatpush1.msra.mxu0 0.0
      %2833 = vmatprep.subr.mxu0 0.0
      %2834 = vmatpush1.msra.mxu0 0.0
      %2835 = vmatprep.subr.mxu0 0.0
      %2836 = vmatpush1.msra.mxu0 0.0
      %2837 = vmatprep.subr.mxu0 0.0
      %2838 = vmatpush1.msra.mxu0 0.0
      %2839 = vmatprep.subr.mxu0 0.0
      %2840 = vmatpush1.msra.mxu0 0.0
      %2841 = vmatprep.mubr.f32.mxu0 0.0
      %2842 = vmatmul.mubr.f32.gmra.mrb[0].mxu0 %v2775
      %v2843 = vpop.f32.mrb[0].mxu0
      %v2844 = vadd.f32 0.0, %v2843
      %v2845 = vpop.f32.mrb[0].mxu0
      %2846 = vdwg.mxu0
      %v2848 = vsel %vm1459, %v433, 0
      %2850 = vmatprep.subr.mxu0 0.0
      %2851 = vmatpush1.msra.mxu0 %v709
      %2852 = vmatprep.subr.mxu0 0.0
      %2853 = vmatpush1.msra.mxu0 0.0
      %2854 = vmatprep.subr.mxu0 0.0
      %2855 = vmatpush1.msra.mxu0 0.0
      %2856 = vmatprep.subr.mxu0 0.0
      %2857 = vmatpush1.msra.mxu0 0.0
      %2858 = vmatprep.subr.mxu0 0.0
      %2859 = vmatpush1.msra.mxu0 0.0
      %2860 = vmatprep.subr.mxu0 0.0
      %2861 = vmatpush1.msra.mxu0 0.0
      %2862 = vmatprep.subr.mxu0 0.0
      %2863 = vmatpush1.msra.mxu0 0.0
      %2864 = vmatprep.subr.mxu0 0.0
      %2865 = vmatpush1.msra.mxu0 0.0
      %2866 = vmatprep.subr.mxu0 0.0
      %2867 = vmatpush1.msra.mxu0 0.0
      %2868 = vmatprep.subr.mxu0 0.0
      %2869 = vmatpush1.msra.mxu0 0.0
      %2870 = vmatprep.subr.mxu0 0.0
      %2871 = vmatpush1.msra.mxu0 0.0
      %2872 = vmatprep.subr.mxu0 0.0
      %2873 = vmatpush1.msra.mxu0 0.0
      %2874 = vmatprep.subr.mxu0 0.0
      %2875 = vmatpush1.msra.mxu0 0.0
      %2876 = vmatprep.subr.mxu0 0.0
      %2877 = vmatpush1.msra.mxu0 0.0
      %2878 = vmatprep.subr.mxu0 0.0
      %2879 = vmatpush1.msra.mxu0 0.0
      %2880 = vmatprep.subr.mxu0 0.0
      %2881 = vmatpush1.msra.mxu0 0.0
      %2882 = vmatprep.subr.mxu0 0.0
      %2883 = vmatpush1.msra.mxu0 0.0
      %2884 = vmatprep.subr.mxu0 0.0
      %2885 = vmatpush1.msra.mxu0 0.0
      %2886 = vmatprep.subr.mxu0 0.0
      %2887 = vmatpush1.msra.mxu0 0.0
      %2888 = vmatprep.subr.mxu0 0.0
      %2889 = vmatpush1.msra.mxu0 0.0
      %2890 = vmatprep.subr.mxu0 0.0
      %2891 = vmatpush1.msra.mxu0 0.0
      %2892 = vmatprep.subr.mxu0 0.0
      %2893 = vmatpush1.msra.mxu0 0.0
      %2894 = vmatprep.subr.mxu0 0.0
      %2895 = vmatpush1.msra.mxu0 0.0
      %2896 = vmatprep.subr.mxu0 0.0
      %2897 = vmatpush1.msra.mxu0 0.0
      %2898 = vmatprep.subr.mxu0 0.0
      %2899 = vmatpush1.msra.mxu0 0.0
      %2900 = vmatprep.subr.mxu0 0.0
      %2901 = vmatpush1.msra.mxu0 0.0
      %2902 = vmatprep.subr.mxu0 0.0
      %2903 = vmatpush1.msra.mxu0 0.0
      %2904 = vmatprep.subr.mxu0 0.0
      %2905 = vmatpush1.msra.mxu0 0.0
      %2906 = vmatprep.subr.mxu0 0.0
      %2907 = vmatpush1.msra.mxu0 0.0
      %2908 = vmatprep.subr.mxu0 0.0
      %2909 = vmatpush1.msra.mxu0 0.0
      %2910 = vmatprep.subr.mxu0 0.0
      %2911 = vmatpush1.msra.mxu0 0.0
      %2912 = vmatprep.subr.mxu0 0.0
      %2913 = vmatpush1.msra.mxu0 0.0
      %2914 = vmatprep.mubr.f32.mxu0 0.0
      %2915 = vmatmul.mubr.f32.gmra.mrb[0].mxu0 %v2848
      %v2916 = vpop.f32.mrb[0].mxu0
      %v2917 = vadd.f32 0.0, %v2916
      %v2918 = vpop.f32.mrb[0].mxu0
      %2919 = vdwg.mxu0
      %v2921 = vsel %vm1459, %v434, 0
      %2923 = vmatprep.subr.mxu0 0.0
      %2924 = vmatpush1.msra.mxu0 %v714
      %2925 = vmatprep.subr.mxu0 0.0
      %2926 = vmatpush1.msra.mxu0 0.0
      %2927 = vmatprep.subr.mxu0 0.0
      %2928 = vmatpush1.msra.mxu0 0.0
      %2929 = vmatprep.subr.mxu0 0.0
      %2930 = vmatpush1.msra.mxu0 0.0
      %2931 = vmatprep.subr.mxu0 0.0
      %2932 = vmatpush1.msra.mxu0 0.0
      %2933 = vmatprep.subr.mxu0 0.0
      %2934 = vmatpush1.msra.mxu0 0.0
      %2935 = vmatprep.subr.mxu0 0.0
      %2936 = vmatpush1.msra.mxu0 0.0
      %2937 = vmatprep.subr.mxu0 0.0
      %2938 = vmatpush1.msra.mxu0 0.0
      %2939 = vmatprep.subr.mxu0 0.0
      %2940 = vmatpush1.msra.mxu0 0.0
      %2941 = vmatprep.subr.mxu0 0.0
      %2942 = vmatpush1.msra.mxu0 0.0
      %2943 = vmatprep.subr.mxu0 0.0
      %2944 = vmatpush1.msra.mxu0 0.0
      %2945 = vmatprep.subr.mxu0 0.0
      %2946 = vmatpush1.msra.mxu0 0.0
      %2947 = vmatprep.subr.mxu0 0.0
      %2948 = vmatpush1.msra.mxu0 0.0
      %2949 = vmatprep.subr.mxu0 0.0
      %2950 = vmatpush1.msra.mxu0 0.0
      %2951 = vmatprep.subr.mxu0 0.0
      %2952 = vmatpush1.msra.mxu0 0.0
      %2953 = vmatprep.subr.mxu0 0.0
      %2954 = vmatpush1.msra.mxu0 0.0
      %2955 = vmatprep.subr.mxu0 0.0
      %2956 = vmatpush1.msra.mxu0 0.0
      %2957 = vmatprep.subr.mxu0 0.0
      %2958 = vmatpush1.msra.mxu0 0.0
      %2959 = vmatprep.subr.mxu0 0.0
      %2960 = vmatpush1.msra.mxu0 0.0
      %2961 = vmatprep.subr.mxu0 0.0
      %2962 = vmatpush1.msra.mxu0 0.0
      %2963 = vmatprep.subr.mxu0 0.0
      %2964 = vmatpush1.msra.mxu0 0.0
      %2965 = vmatprep.subr.mxu0 0.0
      %2966 = vmatpush1.msra.mxu0 0.0
      %2967 = vmatprep.subr.mxu0 0.0
      %2968 = vmatpush1.msra.mxu0 0.0
      %2969 = vmatprep.subr.mxu0 0.0
      %2970 = vmatpush1.msra.mxu0 0.0
      %2971 = vmatprep.subr.mxu0 0.0
      %2972 = vmatpush1.msra.mxu0 0.0
      %2973 = vmatprep.subr.mxu0 0.0
      %2974 = vmatpush1.msra.mxu0 0.0
      %2975 = vmatprep.subr.mxu0 0.0
      %2976 = vmatpush1.msra.mxu0 0.0
      %2977 = vmatprep.subr.mxu0 0.0
      %2978 = vmatpush1.msra.mxu0 0.0
      %2979 = vmatprep.subr.mxu0 0.0
      %2980 = vmatpush1.msra.mxu0 0.0
      %2981 = vmatprep.subr.mxu0 0.0
      %2982 = vmatpush1.msra.mxu0 0.0
      %2983 = vmatprep.subr.mxu0 0.0
      %2984 = vmatpush1.msra.mxu0 0.0
      %2985 = vmatprep.subr.mxu0 0.0
      %2986 = vmatpush1.msra.mxu0 0.0
      %2987 = vmatprep.mubr.f32.mxu0 0.0
      %2988 = vmatmul.mubr.f32.gmra.mrb[0].mxu0 %v2921
      %v2989 = vpop.f32.mrb[0].mxu0
      %v2990 = vadd.f32 0.0, %v2989
      %v2991 = vpop.f32.mrb[0].mxu0
      %2992 = vdwg.mxu0
      %v2994 = vsel %vm1459, %v435, 0
      %2996 = vmatprep.subr.mxu0 0.0
      %2997 = vmatpush1.msra.mxu0 %v719
      %2998 = vmatprep.subr.mxu0 0.0
      %2999 = vmatpush1.msra.mxu0 0.0
      %3000 = vmatprep.subr.mxu0 0.0
      %3001 = vmatpush1.msra.mxu0 0.0
      %3002 = vmatprep.subr.mxu0 0.0
      %3003 = vmatpush1.msra.mxu0 0.0
      %3004 = vmatprep.subr.mxu0 0.0
      %3005 = vmatpush1.msra.mxu0 0.0
      %3006 = vmatprep.subr.mxu0 0.0
      %3007 = vmatpush1.msra.mxu0 0.0
      %3008 = vmatprep.subr.mxu0 0.0
      %3009 = vmatpush1.msra.mxu0 0.0
      %3010 = vmatprep.subr.mxu0 0.0
      %3011 = vmatpush1.msra.mxu0 0.0
      %3012 = vmatprep.subr.mxu0 0.0
      %3013 = vmatpush1.msra.mxu0 0.0
      %3014 = vmatprep.subr.mxu0 0.0
      %3015 = vmatpush1.msra.mxu0 0.0
      %3016 = vmatprep.subr.mxu0 0.0
      %3017 = vmatpush1.msra.mxu0 0.0
      %3018 = vmatprep.subr.mxu0 0.0
      %3019 = vmatpush1.msra.mxu0 0.0
      %3020 = vmatprep.subr.mxu0 0.0
      %3021 = vmatpush1.msra.mxu0 0.0
      %3022 = vmatprep.subr.mxu0 0.0
      %3023 = vmatpush1.msra.mxu0 0.0
      %3024 = vmatprep.subr.mxu0 0.0
      %3025 = vmatpush1.msra.mxu0 0.0
      %3026 = vmatprep.subr.mxu0 0.0
      %3027 = vmatpush1.msra.mxu0 0.0
      %3028 = vmatprep.subr.mxu0 0.0
      %3029 = vmatpush1.msra.mxu0 0.0
      %3030 = vmatprep.subr.mxu0 0.0
      %3031 = vmatpush1.msra.mxu0 0.0
      %3032 = vmatprep.subr.mxu0 0.0
      %3033 = vmatpush1.msra.mxu0 0.0
      %3034 = vmatprep.subr.mxu0 0.0
      %3035 = vmatpush1.msra.mxu0 0.0
      %3036 = vmatprep.subr.mxu0 0.0
      %3037 = vmatpush1.msra.mxu0 0.0
      %3038 = vmatprep.subr.mxu0 0.0
      %3039 = vmatpush1.msra.mxu0 0.0
      %3040 = vmatprep.subr.mxu0 0.0
      %3041 = vmatpush1.msra.mxu0 0.0
      %3042 = vmatprep.subr.mxu0 0.0
      %3043 = vmatpush1.msra.mxu0 0.0
      %3044 = vmatprep.subr.mxu0 0.0
      %3045 = vmatpush1.msra.mxu0 0.0
      %3046 = vmatprep.subr.mxu0 0.0
      %3047 = vmatpush1.msra.mxu0 0.0
      %3048 = vmatprep.subr.mxu0 0.0
      %3049 = vmatpush1.msra.mxu0 0.0
      %3050 = vmatprep.subr.mxu0 0.0
      %3051 = vmatpush1.msra.mxu0 0.0
      %3052 = vmatprep.subr.mxu0 0.0
      %3053 = vmatpush1.msra.mxu0 0.0
      %3054 = vmatprep.subr.mxu0 0.0
      %3055 = vmatpush1.msra.mxu0 0.0
      %3056 = vmatprep.subr.mxu0 0.0
      %3057 = vmatpush1.msra.mxu0 0.0
      %3058 = vmatprep.subr.mxu0 0.0
      %3059 = vmatpush1.msra.mxu0 0.0
      %3060 = vmatprep.mubr.f32.mxu0 0.0
      %3061 = vmatmul.mubr.f32.gmra.mrb[0].mxu0 %v2994
      %v3062 = vpop.f32.mrb[0].mxu0
      %v3063 = vadd.f32 0.0, %v3062
      %v3064 = vpop.f32.mrb[0].mxu0
      %3065 = vdwg.mxu0
      %v3067 = vsel %vm1459, %v436, 0
      %3069 = vmatprep.subr.mxu0 0.0
      %3070 = vmatpush1.msra.mxu0 %v724
      %3071 = vmatprep.subr.mxu0 0.0
      %3072 = vmatpush1.msra.mxu0 0.0
      %3073 = vmatprep.subr.mxu0 0.0
      %3074 = vmatpush1.msra.mxu0 0.0
      %3075 = vmatprep.subr.mxu0 0.0
      %3076 = vmatpush1.msra.mxu0 0.0
      %3077 = vmatprep.subr.mxu0 0.0
      %3078 = vmatpush1.msra.mxu0 0.0
      %3079 = vmatprep.subr.mxu0 0.0
      %3080 = vmatpush1.msra.mxu0 0.0
      %3081 = vmatprep.subr.mxu0 0.0
      %3082 = vmatpush1.msra.mxu0 0.0
      %3083 = vmatprep.subr.mxu0 0.0
      %3084 = vmatpush1.msra.mxu0 0.0
      %3085 = vmatprep.subr.mxu0 0.0
      %3086 = vmatpush1.msra.mxu0 0.0
      %3087 = vmatprep.subr.mxu0 0.0
      %3088 = vmatpush1.msra.mxu0 0.0
      %3089 = vmatprep.subr.mxu0 0.0
      %3090 = vmatpush1.msra.mxu0 0.0
      %3091 = vmatprep.subr.mxu0 0.0
      %3092 = vmatpush1.msra.mxu0 0.0
      %3093 = vmatprep.subr.mxu0 0.0
      %3094 = vmatpush1.msra.mxu0 0.0
      %3095 = vmatprep.subr.mxu0 0.0
      %3096 = vmatpush1.msra.mxu0 0.0
      %3097 = vmatprep.subr.mxu0 0.0
      %3098 = vmatpush1.msra.mxu0 0.0
      %3099 = vmatprep.subr.mxu0 0.0
      %3100 = vmatpush1.msra.mxu0 0.0
      %3101 = vmatprep.subr.mxu0 0.0
      %3102 = vmatpush1.msra.mxu0 0.0
      %3103 = vmatprep.subr.mxu0 0.0
      %3104 = vmatpush1.msra.mxu0 0.0
      %3105 = vmatprep.subr.mxu0 0.0
      %3106 = vmatpush1.msra.mxu0 0.0
      %3107 = vmatprep.subr.mxu0 0.0
      %3108 = vmatpush1.msra.mxu0 0.0
      %3109 = vmatprep.subr.mxu0 0.0
      %3110 = vmatpush1.msra.mxu0 0.0
      %3111 = vmatprep.subr.mxu0 0.0
      %3112 = vmatpush1.msra.mxu0 0.0
      %3113 = vmatprep.subr.mxu0 0.0
      %3114 = vmatpush1.msra.mxu0 0.0
      %3115 = vmatprep.subr.mxu0 0.0
      %3116 = vmatpush1.msra.mxu0 0.0
      %3117 = vmatprep.subr.mxu0 0.0
      %3118 = vmatpush1.msra.mxu0 0.0
      %3119 = vmatprep.subr.mxu0 0.0
      %3120 = vmatpush1.msra.mxu0 0.0
      %3121 = vmatprep.subr.mxu0 0.0
      %3122 = vmatpush1.msra.mxu0 0.0
      %3123 = vmatprep.subr.mxu0 0.0
      %3124 = vmatpush1.msra.mxu0 0.0
      %3125 = vmatprep.subr.mxu0 0.0
      %3126 = vmatpush1.msra.mxu0 0.0
      %3127 = vmatprep.subr.mxu0 0.0
      %3128 = vmatpush1.msra.mxu0 0.0
      %3129 = vmatprep.subr.mxu0 0.0
      %3130 = vmatpush1.msra.mxu0 0.0
      %3131 = vmatprep.subr.mxu0 0.0
      %3132 = vmatpush1.msra.mxu0 0.0
      %3133 = vmatprep.mubr.f32.mxu0 0.0
      %3134 = vmatmul.mubr.f32.gmra.mrb[0].mxu0 %v3067
      %v3135 = vpop.f32.mrb[0].mxu0
      %v3136 = vadd.f32 0.0, %v3135
      %v3137 = vpop.f32.mrb[0].mxu0
      %3138 = vdwg.mxu0
      %v3140 = vsel %vm1459, %v437, 0
      %3142 = vmatprep.subr.mxu0 0.0
      %3143 = vmatpush1.msra.mxu0 %v729
      %3144 = vmatprep.subr.mxu0 0.0
      %3145 = vmatpush1.msra.mxu0 0.0
      %3146 = vmatprep.subr.mxu0 0.0
      %3147 = vmatpush1.msra.mxu0 0.0
      %3148 = vmatprep.subr.mxu0 0.0
      %3149 = vmatpush1.msra.mxu0 0.0
      %3150 = vmatprep.subr.mxu0 0.0
      %3151 = vmatpush1.msra.mxu0 0.0
      %3152 = vmatprep.subr.mxu0 0.0
      %3153 = vmatpush1.msra.mxu0 0.0
      %3154 = vmatprep.subr.mxu0 0.0
      %3155 = vmatpush1.msra.mxu0 0.0
      %3156 = vmatprep.subr.mxu0 0.0
      %3157 = vmatpush1.msra.mxu0 0.0
      %3158 = vmatprep.subr.mxu0 0.0
      %3159 = vmatpush1.msra.mxu0 0.0
      %3160 = vmatprep.subr.mxu0 0.0
      %3161 = vmatpush1.msra.mxu0 0.0
      %3162 = vmatprep.subr.mxu0 0.0
      %3163 = vmatpush1.msra.mxu0 0.0
      %3164 = vmatprep.subr.mxu0 0.0
      %3165 = vmatpush1.msra.mxu0 0.0
      %3166 = vmatprep.subr.mxu0 0.0
      %3167 = vmatpush1.msra.mxu0 0.0
      %3168 = vmatprep.subr.mxu0 0.0
      %3169 = vmatpush1.msra.mxu0 0.0
      %3170 = vmatprep.subr.mxu0 0.0
      %3171 = vmatpush1.msra.mxu0 0.0
      %3172 = vmatprep.subr.mxu0 0.0
      %3173 = vmatpush1.msra.mxu0 0.0
      %3174 = vmatprep.subr.mxu0 0.0
      %3175 = vmatpush1.msra.mxu0 0.0
      %3176 = vmatprep.subr.mxu0 0.0
      %3177 = vmatpush1.msra.mxu0 0.0
      %3178 = vmatprep.subr.mxu0 0.0
      %3179 = vmatpush1.msra.mxu0 0.0
      %3180 = vmatprep.subr.mxu0 0.0
      %3181 = vmatpush1.msra.mxu0 0.0
      %3182 = vmatprep.subr.mxu0 0.0
      %3183 = vmatpush1.msra.mxu0 0.0
      %3184 = vmatprep.subr.mxu0 0.0
      %3185 = vmatpush1.msra.mxu0 0.0
      %3186 = vmatprep.subr.mxu0 0.0
      %3187 = vmatpush1.msra.mxu0 0.0
      %3188 = vmatprep.subr.mxu0 0.0
      %3189 = vmatpush1.msra.mxu0 0.0
      %3190 = vmatprep.subr.mxu0 0.0
      %3191 = vmatpush1.msra.mxu0 0.0
      %3192 = vmatprep.subr.mxu0 0.0
      %3193 = vmatpush1.msra.mxu0 0.0
      %3194 = vmatprep.subr.mxu0 0.0
      %3195 = vmatpush1.msra.mxu0 0.0
      %3196 = vmatprep.subr.mxu0 0.0
      %3197 = vmatpush1.msra.mxu0 0.0
      %3198 = vmatprep.subr.mxu0 0.0
      %3199 = vmatpush1.msra.mxu0 0.0
      %3200 = vmatprep.subr.mxu0 0.0
      %3201 = vmatpush1.msra.mxu0 0.0
      %3202 = vmatprep.subr.mxu0 0.0
      %3203 = vmatpush1.msra.mxu0 0.0
      %3204 = vmatprep.subr.mxu0 0.0
      %3205 = vmatpush1.msra.mxu0 0.0
      %3206 = vmatprep.mubr.f32.mxu0 0.0
      %3207 = vmatmul.mubr.f32.gmra.mrb[0].mxu0 %v3140
      %v3208 = vpop.f32.mrb[0].mxu0
      %v3209 = vadd.f32 0.0, %v3208
      %v3210 = vpop.f32.mrb[0].mxu0
      %3211 = vdwg.mxu0
      %v3213 = vsel %vm1459, %v438, 0
      %3215 = vmatprep.subr.mxu0 0.0
      %3216 = vmatpush1.msra.mxu0 %v734
      %3217 = vmatprep.subr.mxu0 0.0
      %3218 = vmatpush1.msra.mxu0 0.0
      %3219 = vmatprep.subr.mxu0 0.0
      %3220 = vmatpush1.msra.mxu0 0.0
      %3221 = vmatprep.subr.mxu0 0.0
      %3222 = vmatpush1.msra.mxu0 0.0
      %3223 = vmatprep.subr.mxu0 0.0
      %3224 = vmatpush1.msra.mxu0 0.0
      %3225 = vmatprep.subr.mxu0 0.0
      %3226 = vmatpush1.msra.mxu0 0.0
      %3227 = vmatprep.subr.mxu0 0.0
      %3228 = vmatpush1.msra.mxu0 0.0
      %3229 = vmatprep.subr.mxu0 0.0
      %3230 = vmatpush1.msra.mxu0 0.0
      %3231 = vmatprep.subr.mxu0 0.0
      %3232 = vmatpush1.msra.mxu0 0.0
      %3233 = vmatprep.subr.mxu0 0.0
      %3234 = vmatpush1.msra.mxu0 0.0
      %3235 = vmatprep.subr.mxu0 0.0
      %3236 = vmatpush1.msra.mxu0 0.0
      %3237 = vmatprep.subr.mxu0 0.0
      %3238 = vmatpush1.msra.mxu0 0.0
      %3239 = vmatprep.subr.mxu0 0.0
      %3240 = vmatpush1.msra.mxu0 0.0
      %3241 = vmatprep.subr.mxu0 0.0
      %3242 = vmatpush1.msra.mxu0 0.0
      %3243 = vmatprep.subr.mxu0 0.0
      %3244 = vmatpush1.msra.mxu0 0.0
      %3245 = vmatprep.subr.mxu0 0.0
      %3246 = vmatpush1.msra.mxu0 0.0
      %3247 = vmatprep.subr.mxu0 0.0
      %3248 = vmatpush1.msra.mxu0 0.0
      %3249 = vmatprep.subr.mxu0 0.0
      %3250 = vmatpush1.msra.mxu0 0.0
      %3251 = vmatprep.subr.mxu0 0.0
      %3252 = vmatpush1.msra.mxu0 0.0
      %3253 = vmatprep.subr.mxu0 0.0
      %3254 = vmatpush1.msra.mxu0 0.0
      %3255 = vmatprep.subr.mxu0 0.0
      %3256 = vmatpush1.msra.mxu0 0.0
      %3257 = vmatprep.subr.mxu0 0.0
      %3258 = vmatpush1.msra.mxu0 0.0
      %3259 = vmatprep.subr.mxu0 0.0
      %3260 = vmatpush1.msra.mxu0 0.0
      %3261 = vmatprep.subr.mxu0 0.0
      %3262 = vmatpush1.msra.mxu0 0.0
      %3263 = vmatprep.subr.mxu0 0.0
      %3264 = vmatpush1.msra.mxu0 0.0
      %3265 = vmatprep.subr.mxu0 0.0
      %3266 = vmatpush1.msra.mxu0 0.0
      %3267 = vmatprep.subr.mxu0 0.0
      %3268 = vmatpush1.msra.mxu0 0.0
      %3269 = vmatprep.subr.mxu0 0.0
      %3270 = vmatpush1.msra.mxu0 0.0
      %3271 = vmatprep.subr.mxu0 0.0
      %3272 = vmatpush1.msra.mxu0 0.0
      %3273 = vmatprep.subr.mxu0 0.0
      %3274 = vmatpush1.msra.mxu0 0.0
      %3275 = vmatprep.subr.mxu0 0.0
      %3276 = vmatpush1.msra.mxu0 0.0
      %3277 = vmatprep.subr.mxu0 0.0
      %3278 = vmatpush1.msra.mxu0 0.0
      %3279 = vmatprep.mubr.f32.mxu0 0.0
      %3280 = vmatmul.mubr.f32.gmra.mrb[0].mxu0 %v3213
      %v3281 = vpop.f32.mrb[0].mxu0
      %v3282 = vadd.f32 0.0, %v3281
      %v3283 = vpop.f32.mrb[0].mxu0
      %3284 = vdwg.mxu0
      %v3286 = vsel %vm1459, %v439, 0
      %3288 = vmatprep.subr.mxu0 0.0
      %3289 = vmatpush1.msra.mxu0 %v739
      %3290 = vmatprep.subr.mxu0 0.0
      %3291 = vmatpush1.msra.mxu0 0.0
      %3292 = vmatprep.subr.mxu0 0.0
      %3293 = vmatpush1.msra.mxu0 0.0
      %3294 = vmatprep.subr.mxu0 0.0
      %3295 = vmatpush1.msra.mxu0 0.0
      %3296 = vmatprep.subr.mxu0 0.0
      %3297 = vmatpush1.msra.mxu0 0.0
      %3298 = vmatprep.subr.mxu0 0.0
      %3299 = vmatpush1.msra.mxu0 0.0
      %3300 = vmatprep.subr.mxu0 0.0
      %3301 = vmatpush1.msra.mxu0 0.0
      %3302 = vmatprep.subr.mxu0 0.0
      %3303 = vmatpush1.msra.mxu0 0.0
      %3304 = vmatprep.subr.mxu0 0.0
      %3305 = vmatpush1.msra.mxu0 0.0
      %3306 = vmatprep.subr.mxu0 0.0
      %3307 = vmatpush1.msra.mxu0 0.0
      %3308 = vmatprep.subr.mxu0 0.0
      %3309 = vmatpush1.msra.mxu0 0.0
      %3310 = vmatprep.subr.mxu0 0.0
      %3311 = vmatpush1.msra.mxu0 0.0
      %3312 = vmatprep.subr.mxu0 0.0
      %3313 = vmatpush1.msra.mxu0 0.0
      %3314 = vmatprep.subr.mxu0 0.0
      %3315 = vmatpush1.msra.mxu0 0.0
      %3316 = vmatprep.subr.mxu0 0.0
      %3317 = vmatpush1.msra.mxu0 0.0
      %3318 = vmatprep.subr.mxu0 0.0
      %3319 = vmatpush1.msra.mxu0 0.0
      %3320 = vmatprep.subr.mxu0 0.0
      %3321 = vmatpush1.msra.mxu0 0.0
      %3322 = vmatprep.subr.mxu0 0.0
      %3323 = vmatpush1.msra.mxu0 0.0
      %3324 = vmatprep.subr.mxu0 0.0
      %3325 = vmatpush1.msra.mxu0 0.0
      %3326 = vmatprep.subr.mxu0 0.0
      %3327 = vmatpush1.msra.mxu0 0.0
      %3328 = vmatprep.subr.mxu0 0.0
      %3329 = vmatpush1.msra.mxu0 0.0
      %3330 = vmatprep.subr.mxu0 0.0
      %3331 = vmatpush1.msra.mxu0 0.0
      %3332 = vmatprep.subr.mxu0 0.0
      %3333 = vmatpush1.msra.mxu0 0.0
      %3334 = vmatprep.subr.mxu0 0.0
      %3335 = vmatpush1.msra.mxu0 0.0
      %3336 = vmatprep.subr.mxu0 0.0
      %3337 = vmatpush1.msra.mxu0 0.0
      %3338 = vmatprep.subr.mxu0 0.0
      %3339 = vmatpush1.msra.mxu0 0.0
      %3340 = vmatprep.subr.mxu0 0.0
      %3341 = vmatpush1.msra.mxu0 0.0
      %3342 = vmatprep.subr.mxu0 0.0
      %3343 = vmatpush1.msra.mxu0 0.0
      %3344 = vmatprep.subr.mxu0 0.0
      %3345 = vmatpush1.msra.mxu0 0.0
      %3346 = vmatprep.subr.mxu0 0.0
      %3347 = vmatpush1.msra.mxu0 0.0
      %3348 = vmatprep.subr.mxu0 0.0
      %3349 = vmatpush1.msra.mxu0 0.0
      %3350 = vmatprep.subr.mxu0 0.0
      %3351 = vmatpush1.msra.mxu0 0.0
      %3352 = vmatprep.mubr.f32.mxu0 0.0
      %3353 = vmatmul.mubr.f32.gmra.mrb[0].mxu0 %v3286
      %v3354 = vpop.f32.mrb[0].mxu0
      %v3355 = vadd.f32 0.0, %v3354
      %v3356 = vpop.f32.mrb[0].mxu0
      %3357 = vdwg.mxu0
      %v3359 = vsel %vm1459, %v440, 0
      %3361 = vmatprep.subr.mxu0 0.0
      %3362 = vmatpush1.msra.mxu0 %v744
      %3363 = vmatprep.subr.mxu0 0.0
      %3364 = vmatpush1.msra.mxu0 0.0
      %3365 = vmatprep.subr.mxu0 0.0
      %3366 = vmatpush1.msra.mxu0 0.0
      %3367 = vmatprep.subr.mxu0 0.0
      %3368 = vmatpush1.msra.mxu0 0.0
      %3369 = vmatprep.subr.mxu0 0.0
      %3370 = vmatpush1.msra.mxu0 0.0
      %3371 = vmatprep.subr.mxu0 0.0
      %3372 = vmatpush1.msra.mxu0 0.0
      %3373 = vmatprep.subr.mxu0 0.0
      %3374 = vmatpush1.msra.mxu0 0.0
      %3375 = vmatprep.subr.mxu0 0.0
      %3376 = vmatpush1.msra.mxu0 0.0
      %3377 = vmatprep.subr.mxu0 0.0
      %3378 = vmatpush1.msra.mxu0 0.0
      %3379 = vmatprep.subr.mxu0 0.0
      %3380 = vmatpush1.msra.mxu0 0.0
      %3381 = vmatprep.subr.mxu0 0.0
      %3382 = vmatpush1.msra.mxu0 0.0
      %3383 = vmatprep.subr.mxu0 0.0
      %3384 = vmatpush1.msra.mxu0 0.0
      %3385 = vmatprep.subr.mxu0 0.0
      %3386 = vmatpush1.msra.mxu0 0.0
      %3387 = vmatprep.subr.mxu0 0.0
      %3388 = vmatpush1.msra.mxu0 0.0
      %3389 = vmatprep.subr.mxu0 0.0
      %3390 = vmatpush1.msra.mxu0 0.0
      %3391 = vmatprep.subr.mxu0 0.0
      %3392 = vmatpush1.msra.mxu0 0.0
      %3393 = vmatprep.subr.mxu0 0.0
      %3394 = vmatpush1.msra.mxu0 0.0
      %3395 = vmatprep.subr.mxu0 0.0
      %3396 = vmatpush1.msra.mxu0 0.0
      %3397 = vmatprep.subr.mxu0 0.0
      %3398 = vmatpush1.msra.mxu0 0.0
      %3399 = vmatprep.subr.mxu0 0.0
      %3400 = vmatpush1.msra.mxu0 0.0
      %3401 = vmatprep.subr.mxu0 0.0
      %3402 = vmatpush1.msra.mxu0 0.0
      %3403 = vmatprep.subr.mxu0 0.0
      %3404 = vmatpush1.msra.mxu0 0.0
      %3405 = vmatprep.subr.mxu0 0.0
      %3406 = vmatpush1.msra.mxu0 0.0
      %3407 = vmatprep.subr.mxu0 0.0
      %3408 = vmatpush1.msra.mxu0 0.0
      %3409 = vmatprep.subr.mxu0 0.0
      %3410 = vmatpush1.msra.mxu0 0.0
      %3411 = vmatprep.subr.mxu0 0.0
      %3412 = vmatpush1.msra.mxu0 0.0
      %3413 = vmatprep.subr.mxu0 0.0
      %3414 = vmatpush1.msra.mxu0 0.0
      %3415 = vmatprep.subr.mxu0 0.0
      %3416 = vmatpush1.msra.mxu0 0.0
      %3417 = vmatprep.subr.mxu0 0.0
      %3418 = vmatpush1.msra.mxu0 0.0
      %3419 = vmatprep.subr.mxu0 0.0
      %3420 = vmatpush1.msra.mxu0 0.0
      %3421 = vmatprep.subr.mxu0 0.0
      %3422 = vmatpush1.msra.mxu0 0.0
      %3423 = vmatprep.subr.mxu0 0.0
      %3424 = vmatpush1.msra.mxu0 0.0
      %3425 = vmatprep.mubr.f32.mxu0 0.0
      %3426 = vmatmul.mubr.f32.gmra.mrb[0].mxu0 %v3359
      %v3427 = vpop.f32.mrb[0].mxu0
      %v3428 = vadd.f32 0.0, %v3427
      %v3429 = vpop.f32.mrb[0].mxu0
      %3430 = vdwg.mxu0
      %v3432 = vsel %vm1459, %v441, 0
      %3434 = vmatprep.subr.mxu0 0.0
      %3435 = vmatpush1.msra.mxu0 %v749
      %3436 = vmatprep.subr.mxu0 0.0
      %3437 = vmatpush1.msra.mxu0 0.0
      %3438 = vmatprep.subr.mxu0 0.0
      %3439 = vmatpush1.msra.mxu0 0.0
      %3440 = vmatprep.subr.mxu0 0.0
      %3441 = vmatpush1.msra.mxu0 0.0
      %3442 = vmatprep.subr.mxu0 0.0
      %3443 = vmatpush1.msra.mxu0 0.0
      %3444 = vmatprep.subr.mxu0 0.0
      %3445 = vmatpush1.msra.mxu0 0.0
      %3446 = vmatprep.subr.mxu0 0.0
      %3447 = vmatpush1.msra.mxu0 0.0
      %3448 = vmatprep.subr.mxu0 0.0
      %3449 = vmatpush1.msra.mxu0 0.0
      %3450 = vmatprep.subr.mxu0 0.0
      %3451 = vmatpush1.msra.mxu0 0.0
      %3452 = vmatprep.subr.mxu0 0.0
      %3453 = vmatpush1.msra.mxu0 0.0
      %3454 = vmatprep.subr.mxu0 0.0
      %3455 = vmatpush1.msra.mxu0 0.0
      %3456 = vmatprep.subr.mxu0 0.0
      %3457 = vmatpush1.msra.mxu0 0.0
      %3458 = vmatprep.subr.mxu0 0.0
      %3459 = vmatpush1.msra.mxu0 0.0
      %3460 = vmatprep.subr.mxu0 0.0
      %3461 = vmatpush1.msra.mxu0 0.0
      %3462 = vmatprep.subr.mxu0 0.0
      %3463 = vmatpush1.msra.mxu0 0.0
      %3464 = vmatprep.subr.mxu0 0.0
      %3465 = vmatpush1.msra.mxu0 0.0
      %3466 = vmatprep.subr.mxu0 0.0
      %3467 = vmatpush1.msra.mxu0 0.0
      %3468 = vmatprep.subr.mxu0 0.0
      %3469 = vmatpush1.msra.mxu0 0.0
      %3470 = vmatprep.subr.mxu0 0.0
      %3471 = vmatpush1.msra.mxu0 0.0
      %3472 = vmatprep.subr.mxu0 0.0
      %3473 = vmatpush1.msra.mxu0 0.0
      %3474 = vmatprep.subr.mxu0 0.0
      %3475 = vmatpush1.msra.mxu0 0.0
      %3476 = vmatprep.subr.mxu0 0.0
      %3477 = vmatpush1.msra.mxu0 0.0
      %3478 = vmatprep.subr.mxu0 0.0
      %3479 = vmatpush1.msra.mxu0 0.0
      %3480 = vmatprep.subr.mxu0 0.0
      %3481 = vmatpush1.msra.mxu0 0.0
      %3482 = vmatprep.subr.mxu0 0.0
      %3483 = vmatpush1.msra.mxu0 0.0
      %3484 = vmatprep.subr.mxu0 0.0
      %3485 = vmatpush1.msra.mxu0 0.0
      %3486 = vmatprep.subr.mxu0 0.0
      %3487 = vmatpush1.msra.mxu0 0.0
      %3488 = vmatprep.subr.mxu0 0.0
      %3489 = vmatpush1.msra.mxu0 0.0
      %3490 = vmatprep.subr.mxu0 0.0
      %3491 = vmatpush1.msra.mxu0 0.0
      %3492 = vmatprep.subr.mxu0 0.0
      %3493 = vmatpush1.msra.mxu0 0.0
      %3494 = vmatprep.subr.mxu0 0.0
      %3495 = vmatpush1.msra.mxu0 0.0
      %3496 = vmatprep.subr.mxu0 0.0
      %3497 = vmatpush1.msra.mxu0 0.0
      %3498 = vmatprep.mubr.f32.mxu0 0.0
      %3499 = vmatmul.mubr.f32.gmra.mrb[0].mxu0 %v3432
      %v3500 = vpop.f32.mrb[0].mxu0
      %v3501 = vadd.f32 0.0, %v3500
      %v3502 = vpop.f32.mrb[0].mxu0
      %3503 = vdwg.mxu0
      %v3505 = vsel %vm1459, %v442, 0
      %3507 = vmatprep.subr.mxu0 0.0
      %3508 = vmatpush1.msra.mxu0 %v754
      %3509 = vmatprep.subr.mxu0 0.0
      %3510 = vmatpush1.msra.mxu0 0.0
      %3511 = vmatprep.subr.mxu0 0.0
      %3512 = vmatpush1.msra.mxu0 0.0
      %3513 = vmatprep.subr.mxu0 0.0
      %3514 = vmatpush1.msra.mxu0 0.0
      %3515 = vmatprep.subr.mxu0 0.0
      %3516 = vmatpush1.msra.mxu0 0.0
      %3517 = vmatprep.subr.mxu0 0.0
      %3518 = vmatpush1.msra.mxu0 0.0
      %3519 = vmatprep.subr.mxu0 0.0
      %3520 = vmatpush1.msra.mxu0 0.0
      %3521 = vmatprep.subr.mxu0 0.0
      %3522 = vmatpush1.msra.mxu0 0.0
      %3523 = vmatprep.subr.mxu0 0.0
      %3524 = vmatpush1.msra.mxu0 0.0
      %3525 = vmatprep.subr.mxu0 0.0
      %3526 = vmatpush1.msra.mxu0 0.0
      %3527 = vmatprep.subr.mxu0 0.0
      %3528 = vmatpush1.msra.mxu0 0.0
      %3529 = vmatprep.subr.mxu0 0.0
      %3530 = vmatpush1.msra.mxu0 0.0
      %3531 = vmatprep.subr.mxu0 0.0
      %3532 = vmatpush1.msra.mxu0 0.0
      %3533 = vmatprep.subr.mxu0 0.0
      %3534 = vmatpush1.msra.mxu0 0.0
      %3535 = vmatprep.subr.mxu0 0.0
      %3536 = vmatpush1.msra.mxu0 0.0
      %3537 = vmatprep.subr.mxu0 0.0
      %3538 = vmatpush1.msra.mxu0 0.0
      %3539 = vmatprep.subr.mxu0 0.0
      %3540 = vmatpush1.msra.mxu0 0.0
      %3541 = vmatprep.subr.mxu0 0.0
      %3542 = vmatpush1.msra.mxu0 0.0
      %3543 = vmatprep.subr.mxu0 0.0
      %3544 = vmatpush1.msra.mxu0 0.0
      %3545 = vmatprep.subr.mxu0 0.0
      %3546 = vmatpush1.msra.mxu0 0.0
      %3547 = vmatprep.subr.mxu0 0.0
      %3548 = vmatpush1.msra.mxu0 0.0
      %3549 = vmatprep.subr.mxu0 0.0
      %3550 = vmatpush1.msra.mxu0 0.0
      %3551 = vmatprep.subr.mxu0 0.0
      %3552 = vmatpush1.msra.mxu0 0.0
      %3553 = vmatprep.subr.mxu0 0.0
      %3554 = vmatpush1.msra.mxu0 0.0
      %3555 = vmatprep.subr.mxu0 0.0
      %3556 = vmatpush1.msra.mxu0 0.0
      %3557 = vmatprep.subr.mxu0 0.0
      %3558 = vmatpush1.msra.mxu0 0.0
      %3559 = vmatprep.subr.mxu0 0.0
      %3560 = vmatpush1.msra.mxu0 0.0
      %3561 = vmatprep.subr.mxu0 0.0
      %3562 = vmatpush1.msra.mxu0 0.0
      %3563 = vmatprep.subr.mxu0 0.0
      %3564 = vmatpush1.msra.mxu0 0.0
      %3565 = vmatprep.subr.mxu0 0.0
      %3566 = vmatpush1.msra.mxu0 0.0
      %3567 = vmatprep.subr.mxu0 0.0
      %3568 = vmatpush1.msra.mxu0 0.0
      %3569 = vmatprep.subr.mxu0 0.0
      %3570 = vmatpush1.msra.mxu0 0.0
      %3571 = vmatprep.mubr.f32.mxu0 0.0
      %3572 = vmatmul.mubr.f32.gmra.mrb[0].mxu0 %v3505
      %v3573 = vpop.f32.mrb[0].mxu0
      %v3574 = vadd.f32 0.0, %v3573
      %v3575 = vpop.f32.mrb[0].mxu0
      %3576 = vdwg.mxu0
      %v3578 = vsel %vm1459, %v443, 0
      %3580 = vmatprep.subr.mxu0 0.0
      %3581 = vmatpush1.msra.mxu0 %v759
      %3582 = vmatprep.subr.mxu0 0.0
      %3583 = vmatpush1.msra.mxu0 0.0
      %3584 = vmatprep.subr.mxu0 0.0
      %3585 = vmatpush1.msra.mxu0 0.0
      %3586 = vmatprep.subr.mxu0 0.0
      %3587 = vmatpush1.msra.mxu0 0.0
      %3588 = vmatprep.subr.mxu0 0.0
      %3589 = vmatpush1.msra.mxu0 0.0
      %3590 = vmatprep.subr.mxu0 0.0
      %3591 = vmatpush1.msra.mxu0 0.0
      %3592 = vmatprep.subr.mxu0 0.0
      %3593 = vmatpush1.msra.mxu0 0.0
      %3594 = vmatprep.subr.mxu0 0.0
      %3595 = vmatpush1.msra.mxu0 0.0
      %3596 = vmatprep.subr.mxu0 0.0
      %3597 = vmatpush1.msra.mxu0 0.0
      %3598 = vmatprep.subr.mxu0 0.0
      %3599 = vmatpush1.msra.mxu0 0.0
      %3600 = vmatprep.subr.mxu0 0.0
      %3601 = vmatpush1.msra.mxu0 0.0
      %3602 = vmatprep.subr.mxu0 0.0
      %3603 = vmatpush1.msra.mxu0 0.0
      %3604 = vmatprep.subr.mxu0 0.0
      %3605 = vmatpush1.msra.mxu0 0.0
      %3606 = vmatprep.subr.mxu0 0.0
      %3607 = vmatpush1.msra.mxu0 0.0
      %3608 = vmatprep.subr.mxu0 0.0
      %3609 = vmatpush1.msra.mxu0 0.0
      %3610 = vmatprep.subr.mxu0 0.0
      %3611 = vmatpush1.msra.mxu0 0.0
      %3612 = vmatprep.subr.mxu0 0.0
      %3613 = vmatpush1.msra.mxu0 0.0
      %3614 = vmatprep.subr.mxu0 0.0
      %3615 = vmatpush1.msra.mxu0 0.0
      %3616 = vmatprep.subr.mxu0 0.0
      %3617 = vmatpush1.msra.mxu0 0.0
      %3618 = vmatprep.subr.mxu0 0.0
      %3619 = vmatpush1.msra.mxu0 0.0
      %3620 = vmatprep.subr.mxu0 0.0
      %3621 = vmatpush1.msra.mxu0 0.0
      %3622 = vmatprep.subr.mxu0 0.0
      %3623 = vmatpush1.msra.mxu0 0.0
      %3624 = vmatprep.subr.mxu0 0.0
      %3625 = vmatpush1.msra.mxu0 0.0
      %3626 = vmatprep.subr.mxu0 0.0
      %3627 = vmatpush1.msra.mxu0 0.0
      %3628 = vmatprep.subr.mxu0 0.0
      %3629 = vmatpush1.msra.mxu0 0.0
      %3630 = vmatprep.subr.mxu0 0.0
      %3631 = vmatpush1.msra.mxu0 0.0
      %3632 = vmatprep.subr.mxu0 0.0
      %3633 = vmatpush1.msra.mxu0 0.0
      %3634 = vmatprep.subr.mxu0 0.0
      %3635 = vmatpush1.msra.mxu0 0.0
      %3636 = vmatprep.subr.mxu0 0.0
      %3637 = vmatpush1.msra.mxu0 0.0
      %3638 = vmatprep.subr.mxu0 0.0
      %3639 = vmatpush1.msra.mxu0 0.0
      %3640 = vmatprep.subr.mxu0 0.0
      %3641 = vmatpush1.msra.mxu0 0.0
      %3642 = vmatprep.subr.mxu0 0.0
      %3643 = vmatpush1.msra.mxu0 0.0
      %3644 = vmatprep.mubr.f32.mxu0 0.0
      %3645 = vmatmul.mubr.f32.gmra.mrb[0].mxu0 %v3578
      %v3646 = vpop.f32.mrb[0].mxu0
      %v3647 = vadd.f32 0.0, %v3646
      %v3648 = vpop.f32.mrb[0].mxu0
      %3649 = vdwg.mxu0
      %v3651 = vsel %vm1459, %v444, 0
      %3653 = vmatprep.subr.mxu0 0.0
      %3654 = vmatpush1.msra.mxu0 %v764
      %3655 = vmatprep.subr.mxu0 0.0
      %3656 = vmatpush1.msra.mxu0 0.0
      %3657 = vmatprep.subr.mxu0 0.0
      %3658 = vmatpush1.msra.mxu0 0.0
      %3659 = vmatprep.subr.mxu0 0.0
      %3660 = vmatpush1.msra.mxu0 0.0
      %3661 = vmatprep.subr.mxu0 0.0
      %3662 = vmatpush1.msra.mxu0 0.0
      %3663 = vmatprep.subr.mxu0 0.0
      %3664 = vmatpush1.msra.mxu0 0.0
      %3665 = vmatprep.subr.mxu0 0.0
      %3666 = vmatpush1.msra.mxu0 0.0
      %3667 = vmatprep.subr.mxu0 0.0
      %3668 = vmatpush1.msra.mxu0 0.0
      %3669 = vmatprep.subr.mxu0 0.0
      %3670 = vmatpush1.msra.mxu0 0.0
      %3671 = vmatprep.subr.mxu0 0.0
      %3672 = vmatpush1.msra.mxu0 0.0
      %3673 = vmatprep.subr.mxu0 0.0
      %3674 = vmatpush1.msra.mxu0 0.0
      %3675 = vmatprep.subr.mxu0 0.0
      %3676 = vmatpush1.msra.mxu0 0.0
      %3677 = vmatprep.subr.mxu0 0.0
      %3678 = vmatpush1.msra.mxu0 0.0
      %3679 = vmatprep.subr.mxu0 0.0
      %3680 = vmatpush1.msra.mxu0 0.0
      %3681 = vmatprep.subr.mxu0 0.0
      %3682 = vmatpush1.msra.mxu0 0.0
      %3683 = vmatprep.subr.mxu0 0.0
      %3684 = vmatpush1.msra.mxu0 0.0
      %3685 = vmatprep.subr.mxu0 0.0
      %3686 = vmatpush1.msra.mxu0 0.0
      %3687 = vmatprep.subr.mxu0 0.0
      %3688 = vmatpush1.msra.mxu0 0.0
      %3689 = vmatprep.subr.mxu0 0.0
      %3690 = vmatpush1.msra.mxu0 0.0
      %3691 = vmatprep.subr.mxu0 0.0
      %3692 = vmatpush1.msra.mxu0 0.0
      %3693 = vmatprep.subr.mxu0 0.0
      %3694 = vmatpush1.msra.mxu0 0.0
      %3695 = vmatprep.subr.mxu0 0.0
      %3696 = vmatpush1.msra.mxu0 0.0
      %3697 = vmatprep.subr.mxu0 0.0
      %3698 = vmatpush1.msra.mxu0 0.0
      %3699 = vmatprep.subr.mxu0 0.0
      %3700 = vmatpush1.msra.mxu0 0.0
      %3701 = vmatprep.subr.mxu0 0.0
      %3702 = vmatpush1.msra.mxu0 0.0
      %3703 = vmatprep.subr.mxu0 0.0
      %3704 = vmatpush1.msra.mxu0 0.0
      %3705 = vmatprep.subr.mxu0 0.0
      %3706 = vmatpush1.msra.mxu0 0.0
      %3707 = vmatprep.subr.mxu0 0.0
      %3708 = vmatpush1.msra.mxu0 0.0
      %3709 = vmatprep.subr.mxu0 0.0
      %3710 = vmatpush1.msra.mxu0 0.0
      %3711 = vmatprep.subr.mxu0 0.0
      %3712 = vmatpush1.msra.mxu0 0.0
      %3713 = vmatprep.subr.mxu0 0.0
      %3714 = vmatpush1.msra.mxu0 0.0
      %3715 = vmatprep.subr.mxu0 0.0
      %3716 = vmatpush1.msra.mxu0 0.0
      %3717 = vmatprep.mubr.f32.mxu0 0.0
      %3718 = vmatmul.mubr.f32.gmra.mrb[0].mxu0 %v3651
      %v3719 = vpop.f32.mrb[0].mxu0
      %v3720 = vadd.f32 0.0, %v3719
      %v3721 = vpop.f32.mrb[0].mxu0
      %3722 = vdwg.mxu0
      %v3724 = vsel %vm1459, %v445, 0
      %3726 = vmatprep.subr.mxu0 0.0
      %3727 = vmatpush1.msra.mxu0 %v769
      %3728 = vmatprep.subr.mxu0 0.0
      %3729 = vmatpush1.msra.mxu0 0.0
      %3730 = vmatprep.subr.mxu0 0.0
      %3731 = vmatpush1.msra.mxu0 0.0
      %3732 = vmatprep.subr.mxu0 0.0
      %3733 = vmatpush1.msra.mxu0 0.0
      %3734 = vmatprep.subr.mxu0 0.0
      %3735 = vmatpush1.msra.mxu0 0.0
      %3736 = vmatprep.subr.mxu0 0.0
      %3737 = vmatpush1.msra.mxu0 0.0
      %3738 = vmatprep.subr.mxu0 0.0
      %3739 = vmatpush1.msra.mxu0 0.0
      %3740 = vmatprep.subr.mxu0 0.0
      %3741 = vmatpush1.msra.mxu0 0.0
      %3742 = vmatprep.subr.mxu0 0.0
      %3743 = vmatpush1.msra.mxu0 0.0
      %3744 = vmatprep.subr.mxu0 0.0
      %3745 = vmatpush1.msra.mxu0 0.0
      %3746 = vmatprep.subr.mxu0 0.0
      %3747 = vmatpush1.msra.mxu0 0.0
      %3748 = vmatprep.subr.mxu0 0.0
      %3749 = vmatpush1.msra.mxu0 0.0
      %3750 = vmatprep.subr.mxu0 0.0
      %3751 = vmatpush1.msra.mxu0 0.0
      %3752 = vmatprep.subr.mxu0 0.0
      %3753 = vmatpush1.msra.mxu0 0.0
      %3754 = vmatprep.subr.mxu0 0.0
      %3755 = vmatpush1.msra.mxu0 0.0
      %3756 = vmatprep.subr.mxu0 0.0
      %3757 = vmatpush1.msra.mxu0 0.0
      %3758 = vmatprep.subr.mxu0 0.0
      %3759 = vmatpush1.msra.mxu0 0.0
      %3760 = vmatprep.subr.mxu0 0.0
      %3761 = vmatpush1.msra.mxu0 0.0
      %3762 = vmatprep.subr.mxu0 0.0
      %3763 = vmatpush1.msra.mxu0 0.0
      %3764 = vmatprep.subr.mxu0 0.0
      %3765 = vmatpush1.msra.mxu0 0.0
      %3766 = vmatprep.subr.mxu0 0.0
      %3767 = vmatpush1.msra.mxu0 0.0
      %3768 = vmatprep.subr.mxu0 0.0
      %3769 = vmatpush1.msra.mxu0 0.0
      %3770 = vmatprep.subr.mxu0 0.0
      %3771 = vmatpush1.msra.mxu0 0.0
      %3772 = vmatprep.subr.mxu0 0.0
      %3773 = vmatpush1.msra.mxu0 0.0
      %3774 = vmatprep.subr.mxu0 0.0
      %3775 = vmatpush1.msra.mxu0 0.0
      %3776 = vmatprep.subr.mxu0 0.0
      %3777 = vmatpush1.msra.mxu0 0.0
      %3778 = vmatprep.subr.mxu0 0.0
      %3779 = vmatpush1.msra.mxu0 0.0
      %3780 = vmatprep.subr.mxu0 0.0
      %3781 = vmatpush1.msra.mxu0 0.0
      %3782 = vmatprep.subr.mxu0 0.0
      %3783 = vmatpush1.msra.mxu0 0.0
      %3784 = vmatprep.subr.mxu0 0.0
      %3785 = vmatpush1.msra.mxu0 0.0
      %3786 = vmatprep.subr.mxu0 0.0
      %3787 = vmatpush1.msra.mxu0 0.0
      %3788 = vmatprep.subr.mxu0 0.0
      %3789 = vmatpush1.msra.mxu0 0.0
      %3790 = vmatprep.mubr.f32.mxu0 0.0
      %3791 = vmatmul.mubr.f32.gmra.mrb[0].mxu0 %v3724
      %v3792 = vpop.f32.mrb[0].mxu0
      %v3793 = vadd.f32 0.0, %v3792
      %v3794 = vpop.f32.mrb[0].mxu0
      %3795 = vdwg.mxu0
      %v3796 = vrcp.pop %v1427
      %v3797 = vmul.f32 %v1530, %v3796
      %v3798 = vrcp.pop %v1428
      %v3799 = vmul.f32 %v1603, %v3798
      %v3800 = vrcp.pop %v1429
      %v3801 = vmul.f32 %v1676, %v3800
      %v3802 = vrcp.pop %v1430
      %v3803 = vmul.f32 %v1749, %v3802
      %v3804 = vrcp.pop %v1431
      %v3805 = vmul.f32 %v1822, %v3804
      %v3806 = vrcp.pop %v1432
      %v3807 = vmul.f32 %v1895, %v3806
      %v3808 = vrcp.pop %v1433
      %v3809 = vmul.f32 %v1968, %v3808
      %v3810 = vrcp.pop %v1434
      %v3811 = vmul.f32 %v2041, %v3810
      %v3812 = vrcp.pop %v1435
      %v3813 = vmul.f32 %v2114, %v3812
      %v3814 = vrcp.pop %v1436
      %v3815 = vmul.f32 %v2187, %v3814
      %v3816 = vrcp.pop %v1437
      %v3817 = vmul.f32 %v2260, %v3816
      %v3818 = vrcp.pop %v1438
      %v3819 = vmul.f32 %v2333, %v3818
      %v3820 = vrcp.pop %v1439
      %v3821 = vmul.f32 %v2406, %v3820
      %v3822 = vrcp.pop %v1440
      %v3823 = vmul.f32 %v2479, %v3822
      %v3824 = vrcp.pop %v1441
      %v3825 = vmul.f32 %v2552, %v3824
      %v3826 = vrcp.pop %v1442
      %v3827 = vmul.f32 %v2625, %v3826
      %v3828 = vrcp.pop %v1443
      %v3829 = vmul.f32 %v2698, %v3828
      %v3830 = vrcp.pop %v1444
      %v3831 = vmul.f32 %v2771, %v3830
      %v3832 = vrcp.pop %v1445
      %v3833 = vmul.f32 %v2844, %v3832
      %v3834 = vrcp.pop %v1446
      %v3835 = vmul.f32 %v2917, %v3834
      %v3836 = vrcp.pop %v1447
      %v3837 = vmul.f32 %v2990, %v3836
      %v3838 = vrcp.pop %v1448
      %v3839 = vmul.f32 %v3063, %v3838
      %v3840 = vrcp.pop %v1449
      %v3841 = vmul.f32 %v3136, %v3840
      %v3842 = vrcp.pop %v1450
      %v3843 = vmul.f32 %v3209, %v3842
      %v3844 = vrcp.pop %v1451
      %v3845 = vmul.f32 %v3282, %v3844
      %v3846 = vrcp.pop %v1452
      %v3847 = vmul.f32 %v3355, %v3846
      %v3848 = vrcp.pop %v1453
      %v3849 = vmul.f32 %v3428, %v3848
      %v3850 = vrcp.pop %v1454
      %v3851 = vmul.f32 %v3501, %v3850
      %v3852 = vrcp.pop %v1455
      %v3853 = vmul.f32 %v3574, %v3852
      %v3854 = vrcp.pop %v1456
      %v3855 = vmul.f32 %v3647, %v3854
      %v3856 = vrcp.pop %v1457
      %v3857 = vmul.f32 %v3720, %v3856
      %v3858 = vrcp.pop %v1458
      %v3859 = vmul.f32 %v3793, %v3858
      %3892 = vrot.lane.b32.xlu0 %v3797, 120
      %v3893 = vpop.permute.xlu0 %3892
      %3894 = vrot.lane.b32.xlu0 %v3799, 120
      %v3895 = vpop.permute.xlu0 %3894
      %3896 = vrot.lane.b32.xlu0 %v3801, 120
      %v3897 = vpop.permute.xlu0 %3896
      %3898 = vrot.lane.b32.xlu0 %v3803, 120
      %v3899 = vpop.permute.xlu0 %3898
      %3900 = vrot.lane.b32.xlu0 %v3805, 120
      %v3901 = vpop.permute.xlu0 %3900
      %3902 = vrot.lane.b32.xlu0 %v3807, 120
      %v3903 = vpop.permute.xlu0 %3902
      %3904 = vrot.lane.b32.xlu0 %v3809, 120
      %v3905 = vpop.permute.xlu0 %3904
      %3906 = vrot.lane.b32.xlu0 %v3811, 120
      %v3907 = vpop.permute.xlu0 %3906
      %3908 = vrot.lane.b32.xlu0 %v3813, 120
      %v3909 = vpop.permute.xlu0 %3908
      %3910 = vrot.lane.b32.xlu0 %v3815, 120
      %v3911 = vpop.permute.xlu0 %3910
      %3912 = vrot.lane.b32.xlu0 %v3817, 120
      %v3913 = vpop.permute.xlu0 %3912
      %3914 = vrot.lane.b32.xlu0 %v3819, 120
      %v3915 = vpop.permute.xlu0 %3914
      %3916 = vrot.lane.b32.xlu0 %v3821, 120
      %v3917 = vpop.permute.xlu0 %3916
      %3918 = vrot.lane.b32.xlu0 %v3823, 120
      %v3919 = vpop.permute.xlu0 %3918
      %3920 = vrot.lane.b32.xlu0 %v3825, 120
      %v3921 = vpop.permute.xlu0 %3920
      %3922 = vrot.lane.b32.xlu0 %v3827, 120
      %v3923 = vpop.permute.xlu0 %3922
      %3924 = vrot.lane.b32.xlu0 %v3829, 120
      %v3925 = vpop.permute.xlu0 %3924
      %3926 = vrot.lane.b32.xlu0 %v3831, 120
      %v3927 = vpop.permute.xlu0 %3926
      %3928 = vrot.lane.b32.xlu0 %v3833, 120
      %v3929 = vpop.permute.xlu0 %3928
      %3930 = vrot.lane.b32.xlu0 %v3835, 120
      %v3931 = vpop.permute.xlu0 %3930
      %3932 = vrot.lane.b32.xlu0 %v3837, 120
      %v3933 = vpop.permute.xlu0 %3932
      %3934 = vrot.lane.b32.xlu0 %v3839, 120
      %v3935 = vpop.permute.xlu0 %3934
      %3936 = vrot.lane.b32.xlu0 %v3841, 120
      %v3937 = vpop.permute.xlu0 %3936
      %3938 = vrot.lane.b32.xlu0 %v3843, 120
      %v3939 = vpop.permute.xlu0 %3938
      %3940 = vrot.lane.b32.xlu0 %v3845, 120
      %v3941 = vpop.permute.xlu0 %3940
      %3942 = vrot.lane.b32.xlu0 %v3847, 120
      %v3943 = vpop.permute.xlu0 %3942
      %3944 = vrot.lane.b32.xlu0 %v3849, 120
      %v3945 = vpop.permute.xlu0 %3944
      %3946 = vrot.lane.b32.xlu0 %v3851, 120
      %v3947 = vpop.permute.xlu0 %3946
      %3948 = vrot.lane.b32.xlu0 %v3853, 120
      %v3949 = vpop.permute.xlu0 %3948
      %3950 = vrot.lane.b32.xlu0 %v3855, 120
      %v3951 = vpop.permute.xlu0 %3950
      %3952 = vrot.lane.b32.xlu0 %v3857, 120
      %v3953 = vpop.permute.xlu0 %3952
      %3954 = vrot.lane.b32.xlu0 %v3859, 120
      %v3955 = vpop.permute.xlu0 %3954
      %3988 = vrot.lane.b32.xlu0 %v3797, 112
      %v3989 = vpop.permute.xlu0 %3988
      %3990 = vrot.lane.b32.xlu0 %v3799, 112
      %v3991 = vpop.permute.xlu0 %3990
      %3992 = vrot.lane.b32.xlu0 %v3801, 112
      %v3993 = vpop.permute.xlu0 %3992
      %3994 = vrot.lane.b32.xlu0 %v3803, 112
      %v3995 = vpop.permute.xlu0 %3994
      %3996 = vrot.lane.b32.xlu0 %v3805, 112
      %v3997 = vpop.permute.xlu0 %3996
      %3998 = vrot.lane.b32.xlu0 %v3807, 112
      %v3999 = vpop.permute.xlu0 %3998
      %4000 = vrot.lane.b32.xlu0 %v3809, 112
      %v4001 = vpop.permute.xlu0 %4000
      %4002 = vrot.lane.b32.xlu0 %v3811, 112
      %v4003 = vpop.permute.xlu0 %4002
      %4004 = vrot.lane.b32.xlu0 %v3813, 112
      %v4005 = vpop.permute.xlu0 %4004
      %4006 = vrot.lane.b32.xlu0 %v3815, 112
      %v4007 = vpop.permute.xlu0 %4006
      %4008 = vrot.lane.b32.xlu0 %v3817, 112
      %v4009 = vpop.permute.xlu0 %4008
      %4010 = vrot.lane.b32.xlu0 %v3819, 112
      %v4011 = vpop.permute.xlu0 %4010
      %4012 = vrot.lane.b32.xlu0 %v3821, 112
      %v4013 = vpop.permute.xlu0 %4012
      %4014 = vrot.lane.b32.xlu0 %v3823, 112
      %v4015 = vpop.permute.xlu0 %4014
      %4016 = vrot.lane.b32.xlu0 %v3825, 112
      %v4017 = vpop.permute.xlu0 %4016
      %4018 = vrot.lane.b32.xlu0 %v3827, 112
      %v4019 = vpop.permute.xlu0 %4018
      %4020 = vrot.lane.b32.xlu0 %v3829, 112
      %v4021 = vpop.permute.xlu0 %4020
      %4022 = vrot.lane.b32.xlu0 %v3831, 112
      %v4023 = vpop.permute.xlu0 %4022
      %4024 = vrot.lane.b32.xlu0 %v3833, 112
      %v4025 = vpop.permute.xlu0 %4024
      %4026 = vrot.lane.b32.xlu0 %v3835, 112
      %v4027 = vpop.permute.xlu0 %4026
      %4028 = vrot.lane.b32.xlu0 %v3837, 112
      %v4029 = vpop.permute.xlu0 %4028
      %4030 = vrot.lane.b32.xlu0 %v3839, 112
      %v4031 = vpop.permute.xlu0 %4030
      %4032 = vrot.lane.b32.xlu0 %v3841, 112
      %v4033 = vpop.permute.xlu0 %4032
      %4034 = vrot.lane.b32.xlu0 %v3843, 112
      %v4035 = vpop.permute.xlu0 %4034
      %4036 = vrot.lane.b32.xlu0 %v3845, 112
      %v4037 = vpop.permute.xlu0 %4036
      %4038 = vrot.lane.b32.xlu0 %v3847, 112
      %v4039 = vpop.permute.xlu0 %4038
      %4040 = vrot.lane.b32.xlu0 %v3849, 112
      %v4041 = vpop.permute.xlu0 %4040
      %4042 = vrot.lane.b32.xlu0 %v3851, 112
      %v4043 = vpop.permute.xlu0 %4042
      %4044 = vrot.lane.b32.xlu0 %v3853, 112
      %v4045 = vpop.permute.xlu0 %4044
      %4046 = vrot.lane.b32.xlu0 %v3855, 112
      %v4047 = vpop.permute.xlu0 %4046
      %4048 = vrot.lane.b32.xlu0 %v3857, 112
      %v4049 = vpop.permute.xlu0 %4048
      %4050 = vrot.lane.b32.xlu0 %v3859, 112
      %v4051 = vpop.permute.xlu0 %4050
      %4084 = vrot.lane.b32.xlu0 %v3797, 104
      %v4085 = vpop.permute.xlu0 %4084
      %4086 = vrot.lane.b32.xlu0 %v3799, 104
      %v4087 = vpop.permute.xlu0 %4086
      %4088 = vrot.lane.b32.xlu0 %v3801, 104
      %v4089 = vpop.permute.xlu0 %4088
      %4090 = vrot.lane.b32.xlu0 %v3803, 104
      %v4091 = vpop.permute.xlu0 %4090
      %4092 = vrot.lane.b32.xlu0 %v3805, 104
      %v4093 = vpop.permute.xlu0 %4092
      %4094 = vrot.lane.b32.xlu0 %v3807, 104
      %v4095 = vpop.permute.xlu0 %4094
      %4096 = vrot.lane.b32.xlu0 %v3809, 104
      %v4097 = vpop.permute.xlu0 %4096
      %4098 = vrot.lane.b32.xlu0 %v3811, 104
      %v4099 = vpop.permute.xlu0 %4098
      %4100 = vrot.lane.b32.xlu0 %v3813, 104
      %v4101 = vpop.permute.xlu0 %4100
      %4102 = vrot.lane.b32.xlu0 %v3815, 104
      %v4103 = vpop.permute.xlu0 %4102
      %4104 = vrot.lane.b32.xlu0 %v3817, 104
      %v4105 = vpop.permute.xlu0 %4104
      %4106 = vrot.lane.b32.xlu0 %v3819, 104
      %v4107 = vpop.permute.xlu0 %4106
      %4108 = vrot.lane.b32.xlu0 %v3821, 104
      %v4109 = vpop.permute.xlu0 %4108
      %4110 = vrot.lane.b32.xlu0 %v3823, 104
      %v4111 = vpop.permute.xlu0 %4110
      %4112 = vrot.lane.b32.xlu0 %v3825, 104
      %v4113 = vpop.permute.xlu0 %4112
      %4114 = vrot.lane.b32.xlu0 %v3827, 104
      %v4115 = vpop.permute.xlu0 %4114
      %4116 = vrot.lane.b32.xlu0 %v3829, 104
      %v4117 = vpop.permute.xlu0 %4116
      %4118 = vrot.lane.b32.xlu0 %v3831, 104
      %v4119 = vpop.permute.xlu0 %4118
      %4120 = vrot.lane.b32.xlu0 %v3833, 104
      %v4121 = vpop.permute.xlu0 %4120
      %4122 = vrot.lane.b32.xlu0 %v3835, 104
      %v4123 = vpop.permute.xlu0 %4122
      %4124 = vrot.lane.b32.xlu0 %v3837, 104
      %v4125 = vpop.permute.xlu0 %4124
      %4126 = vrot.lane.b32.xlu0 %v3839, 104
      %v4127 = vpop.permute.xlu0 %4126
      %4128 = vrot.lane.b32.xlu0 %v3841, 104
      %v4129 = vpop.permute.xlu0 %4128
      %4130 = vrot.lane.b32.xlu0 %v3843, 104
      %v4131 = vpop.permute.xlu0 %4130
      %4132 = vrot.lane.b32.xlu0 %v3845, 104
      %v4133 = vpop.permute.xlu0 %4132
      %4134 = vrot.lane.b32.xlu0 %v3847, 104
      %v4135 = vpop.permute.xlu0 %4134
      %4136 = vrot.lane.b32.xlu0 %v3849, 104
      %v4137 = vpop.permute.xlu0 %4136
      %4138 = vrot.lane.b32.xlu0 %v3851, 104
      %v4139 = vpop.permute.xlu0 %4138
      %4140 = vrot.lane.b32.xlu0 %v3853, 104
      %v4141 = vpop.permute.xlu0 %4140
      %4142 = vrot.lane.b32.xlu0 %v3855, 104
      %v4143 = vpop.permute.xlu0 %4142
      %4144 = vrot.lane.b32.xlu0 %v3857, 104
      %v4145 = vpop.permute.xlu0 %4144
      %4146 = vrot.lane.b32.xlu0 %v3859, 104
      %v4147 = vpop.permute.xlu0 %4146
      %v4180 = vcombine.low %v3797, %v3989
      %v4182 = vunpack.c.l.s4 1983009808
      %v4183 = vunpack.c.0.s8 %v4182
      %v4184 = vlaneseq
      %v4185 = vshrl.u32 %v4184, 7
      %v4186 = vsub.s32 %v4183, %v4185
      %v4187 = vrot.slane %v4180, %v4186
      %v4188 = vcombine.low %v3893, %v4085
      %v4190 = vunpack.c.l.s4 1983009808
      %v4191 = vunpack.c.0.s8 %v4190
      %v4192 = vlaneseq
      %v4193 = vshrl.u32 %v4192, 7
      %v4194 = vsub.s32 %v4191, %v4193
      %v4195 = vrot.slane %v4188, %v4194
      %v4196 = vcombine.low %v4187, %v4195
      %v4198 = vunpack.c.l.s4 1934713408
      %v4199 = vunpack.c.0.s8 %v4198
      %v4200 = vlaneseq
      %v4201 = vshrl.u32 %v4200, 7
      %v4202 = vsub.s32 %v4199, %v4201
      %v4203 = vrot.slane %v4196, %v4202
      %v4204 = vcombine.low %v3799, %v3991
      %v4206 = vunpack.c.l.s4 1983009808
      %v4207 = vunpack.c.0.s8 %v4206
      %v4208 = vlaneseq
      %v4209 = vshrl.u32 %v4208, 7
      %v4210 = vsub.s32 %v4207, %v4209
      %v4211 = vrot.slane %v4204, %v4210
      %v4212 = vcombine.low %v3895, %v4087
      %v4214 = vunpack.c.l.s4 1983009808
      %v4215 = vunpack.c.0.s8 %v4214
      %v4216 = vlaneseq
      %v4217 = vshrl.u32 %v4216, 7
      %v4218 = vsub.s32 %v4215, %v4217
      %v4219 = vrot.slane %v4212, %v4218
      %v4220 = vcombine.low %v4211, %v4219
      %v4222 = vunpack.c.l.s4 1934713408
      %v4223 = vunpack.c.0.s8 %v4222
      %v4224 = vlaneseq
      %v4225 = vshrl.u32 %v4224, 7
      %v4226 = vsub.s32 %v4223, %v4225
      %v4227 = vrot.slane %v4220, %v4226
      %v4228 = vcombine.low %v3801, %v3993
      %v4230 = vunpack.c.l.s4 1983009808
      %v4231 = vunpack.c.0.s8 %v4230
      %v4232 = vlaneseq
      %v4233 = vshrl.u32 %v4232, 7
      %v4234 = vsub.s32 %v4231, %v4233
      %v4235 = vrot.slane %v4228, %v4234
      %v4236 = vcombine.low %v3897, %v4089
      %v4238 = vunpack.c.l.s4 1983009808
      %v4239 = vunpack.c.0.s8 %v4238
      %v4240 = vlaneseq
      %v4241 = vshrl.u32 %v4240, 7
      %v4242 = vsub.s32 %v4239, %v4241
      %v4243 = vrot.slane %v4236, %v4242
      %v4244 = vcombine.low %v4235, %v4243
      %v4246 = vunpack.c.l.s4 1934713408
      %v4247 = vunpack.c.0.s8 %v4246
      %v4248 = vlaneseq
      %v4249 = vshrl.u32 %v4248, 7
      %v4250 = vsub.s32 %v4247, %v4249
      %v4251 = vrot.slane %v4244, %v4250
      %v4252 = vcombine.low %v3803, %v3995
      %v4254 = vunpack.c.l.s4 1983009808
      %v4255 = vunpack.c.0.s8 %v4254
      %v4256 = vlaneseq
      %v4257 = vshrl.u32 %v4256, 7
      %v4258 = vsub.s32 %v4255, %v4257
      %v4259 = vrot.slane %v4252, %v4258
      %v4260 = vcombine.low %v3899, %v4091
      %v4262 = vunpack.c.l.s4 1983009808
      %v4263 = vunpack.c.0.s8 %v4262
      %v4264 = vlaneseq
      %v4265 = vshrl.u32 %v4264, 7
      %v4266 = vsub.s32 %v4263, %v4265
      %v4267 = vrot.slane %v4260, %v4266
      %v4268 = vcombine.low %v4259, %v4267
      %v4270 = vunpack.c.l.s4 1934713408
      %v4271 = vunpack.c.0.s8 %v4270
      %v4272 = vlaneseq
      %v4273 = vshrl.u32 %v4272, 7
      %v4274 = vsub.s32 %v4271, %v4273
      %v4275 = vrot.slane %v4268, %v4274
      %v4276 = vcombine.low %v3805, %v3997
      %v4278 = vunpack.c.l.s4 1983009808
      %v4279 = vunpack.c.0.s8 %v4278
      %v4280 = vlaneseq
      %v4281 = vshrl.u32 %v4280, 7
      %v4282 = vsub.s32 %v4279, %v4281
      %v4283 = vrot.slane %v4276, %v4282
      %v4284 = vcombine.low %v3901, %v4093
      %v4286 = vunpack.c.l.s4 1983009808
      %v4287 = vunpack.c.0.s8 %v4286
      %v4288 = vlaneseq
      %v4289 = vshrl.u32 %v4288, 7
      %v4290 = vsub.s32 %v4287, %v4289
      %v4291 = vrot.slane %v4284, %v4290
      %v4292 = vcombine.low %v4283, %v4291
      %v4294 = vunpack.c.l.s4 1934713408
      %v4295 = vunpack.c.0.s8 %v4294
      %v4296 = vlaneseq
      %v4297 = vshrl.u32 %v4296, 7
      %v4298 = vsub.s32 %v4295, %v4297
      %v4299 = vrot.slane %v4292, %v4298
      %v4300 = vcombine.low %v3807, %v3999
      %v4302 = vunpack.c.l.s4 1983009808
      %v4303 = vunpack.c.0.s8 %v4302
      %v4304 = vlaneseq
      %v4305 = vshrl.u32 %v4304, 7
      %v4306 = vsub.s32 %v4303, %v4305
      %v4307 = vrot.slane %v4300, %v4306
      %v4308 = vcombine.low %v3903, %v4095
      %v4310 = vunpack.c.l.s4 1983009808
      %v4311 = vunpack.c.0.s8 %v4310
      %v4312 = vlaneseq
      %v4313 = vshrl.u32 %v4312, 7
      %v4314 = vsub.s32 %v4311, %v4313
      %v4315 = vrot.slane %v4308, %v4314
      %v4316 = vcombine.low %v4307, %v4315
      %v4318 = vunpack.c.l.s4 1934713408
      %v4319 = vunpack.c.0.s8 %v4318
      %v4320 = vlaneseq
      %v4321 = vshrl.u32 %v4320, 7
      %v4322 = vsub.s32 %v4319, %v4321
      %v4323 = vrot.slane %v4316, %v4322
      %v4324 = vcombine.low %v3809, %v4001
      %v4326 = vunpack.c.l.s4 1983009808
      %v4327 = vunpack.c.0.s8 %v4326
      %v4328 = vlaneseq
      %v4329 = vshrl.u32 %v4328, 7
      %v4330 = vsub.s32 %v4327, %v4329
      %v4331 = vrot.slane %v4324, %v4330
      %v4332 = vcombine.low %v3905, %v4097
      %v4334 = vunpack.c.l.s4 1983009808
      %v4335 = vunpack.c.0.s8 %v4334
      %v4336 = vlaneseq
      %v4337 = vshrl.u32 %v4336, 7
      %v4338 = vsub.s32 %v4335, %v4337
      %v4339 = vrot.slane %v4332, %v4338
      %v4340 = vcombine.low %v4331, %v4339
      %v4342 = vunpack.c.l.s4 1934713408
      %v4343 = vunpack.c.0.s8 %v4342
      %v4344 = vlaneseq
      %v4345 = vshrl.u32 %v4344, 7
      %v4346 = vsub.s32 %v4343, %v4345
      %v4347 = vrot.slane %v4340, %v4346
      %v4348 = vcombine.low %v3811, %v4003
      %v4350 = vunpack.c.l.s4 1983009808
      %v4351 = vunpack.c.0.s8 %v4350
      %v4352 = vlaneseq
      %v4353 = vshrl.u32 %v4352, 7
      %v4354 = vsub.s32 %v4351, %v4353
      %v4355 = vrot.slane %v4348, %v4354
      %v4356 = vcombine.low %v3907, %v4099
      %v4358 = vunpack.c.l.s4 1983009808
      %v4359 = vunpack.c.0.s8 %v4358
      %v4360 = vlaneseq
      %v4361 = vshrl.u32 %v4360, 7
      %v4362 = vsub.s32 %v4359, %v4361
      %v4363 = vrot.slane %v4356, %v4362
      %v4364 = vcombine.low %v4355, %v4363
      %v4366 = vunpack.c.l.s4 1934713408
      %v4367 = vunpack.c.0.s8 %v4366
      %v4368 = vlaneseq
      %v4369 = vshrl.u32 %v4368, 7
      %v4370 = vsub.s32 %v4367, %v4369
      %v4371 = vrot.slane %v4364, %v4370
      %v4372 = vcombine.low %v3813, %v4005
      %v4374 = vunpack.c.l.s4 1983009808
      %v4375 = vunpack.c.0.s8 %v4374
      %v4376 = vlaneseq
      %v4377 = vshrl.u32 %v4376, 7
      %v4378 = vsub.s32 %v4375, %v4377
      %v4379 = vrot.slane %v4372, %v4378
      %v4380 = vcombine.low %v3909, %v4101
      %v4382 = vunpack.c.l.s4 1983009808
      %v4383 = vunpack.c.0.s8 %v4382
      %v4384 = vlaneseq
      %v4385 = vshrl.u32 %v4384, 7
      %v4386 = vsub.s32 %v4383, %v4385
      %v4387 = vrot.slane %v4380, %v4386
      %v4388 = vcombine.low %v4379, %v4387
      %v4390 = vunpack.c.l.s4 1934713408
      %v4391 = vunpack.c.0.s8 %v4390
      %v4392 = vlaneseq
      %v4393 = vshrl.u32 %v4392, 7
      %v4394 = vsub.s32 %v4391, %v4393
      %v4395 = vrot.slane %v4388, %v4394
      %v4396 = vcombine.low %v3815, %v4007
      %v4398 = vunpack.c.l.s4 1983009808
      %v4399 = vunpack.c.0.s8 %v4398
      %v4400 = vlaneseq
      %v4401 = vshrl.u32 %v4400, 7
      %v4402 = vsub.s32 %v4399, %v4401
      %v4403 = vrot.slane %v4396, %v4402
      %v4404 = vcombine.low %v3911, %v4103
      %v4406 = vunpack.c.l.s4 1983009808
      %v4407 = vunpack.c.0.s8 %v4406
      %v4408 = vlaneseq
      %v4409 = vshrl.u32 %v4408, 7
      %v4410 = vsub.s32 %v4407, %v4409
      %v4411 = vrot.slane %v4404, %v4410
      %v4412 = vcombine.low %v4403, %v4411
      %v4414 = vunpack.c.l.s4 1934713408
      %v4415 = vunpack.c.0.s8 %v4414
      %v4416 = vlaneseq
      %v4417 = vshrl.u32 %v4416, 7
      %v4418 = vsub.s32 %v4415, %v4417
      %v4419 = vrot.slane %v4412, %v4418
      %v4420 = vcombine.low %v3817, %v4009
      %v4422 = vunpack.c.l.s4 1983009808
      %v4423 = vunpack.c.0.s8 %v4422
      %v4424 = vlaneseq
      %v4425 = vshrl.u32 %v4424, 7
      %v4426 = vsub.s32 %v4423, %v4425
      %v4427 = vrot.slane %v4420, %v4426
      %v4428 = vcombine.low %v3913, %v4105
      %v4430 = vunpack.c.l.s4 1983009808
      %v4431 = vunpack.c.0.s8 %v4430
      %v4432 = vlaneseq
      %v4433 = vshrl.u32 %v4432, 7
      %v4434 = vsub.s32 %v4431, %v4433
      %v4435 = vrot.slane %v4428, %v4434
      %v4436 = vcombine.low %v4427, %v4435
      %v4438 = vunpack.c.l.s4 1934713408
      %v4439 = vunpack.c.0.s8 %v4438
      %v4440 = vlaneseq
      %v4441 = vshrl.u32 %v4440, 7
      %v4442 = vsub.s32 %v4439, %v4441
      %v4443 = vrot.slane %v4436, %v4442
      %v4444 = vcombine.low %v3819, %v4011
      %v4446 = vunpack.c.l.s4 1983009808
      %v4447 = vunpack.c.0.s8 %v4446
      %v4448 = vlaneseq
      %v4449 = vshrl.u32 %v4448, 7
      %v4450 = vsub.s32 %v4447, %v4449
      %v4451 = vrot.slane %v4444, %v4450
      %v4452 = vcombine.low %v3915, %v4107
      %v4454 = vunpack.c.l.s4 1983009808
      %v4455 = vunpack.c.0.s8 %v4454
      %v4456 = vlaneseq
      %v4457 = vshrl.u32 %v4456, 7
      %v4458 = vsub.s32 %v4455, %v4457
      %v4459 = vrot.slane %v4452, %v4458
      %v4460 = vcombine.low %v4451, %v4459
      %v4462 = vunpack.c.l.s4 1934713408
      %v4463 = vunpack.c.0.s8 %v4462
      %v4464 = vlaneseq
      %v4465 = vshrl.u32 %v4464, 7
      %v4466 = vsub.s32 %v4463, %v4465
      %v4467 = vrot.slane %v4460, %v4466
      %v4468 = vcombine.low %v3821, %v4013
      %v4470 = vunpack.c.l.s4 1983009808
      %v4471 = vunpack.c.0.s8 %v4470
      %v4472 = vlaneseq
      %v4473 = vshrl.u32 %v4472, 7
      %v4474 = vsub.s32 %v4471, %v4473
      %v4475 = vrot.slane %v4468, %v4474
      %v4476 = vcombine.low %v3917, %v4109
      %v4478 = vunpack.c.l.s4 1983009808
      %v4479 = vunpack.c.0.s8 %v4478
      %v4480 = vlaneseq
      %v4481 = vshrl.u32 %v4480, 7
      %v4482 = vsub.s32 %v4479, %v4481
      %v4483 = vrot.slane %v4476, %v4482
      %v4484 = vcombine.low %v4475, %v4483
      %v4486 = vunpack.c.l.s4 1934713408
      %v4487 = vunpack.c.0.s8 %v4486
      %v4488 = vlaneseq
      %v4489 = vshrl.u32 %v4488, 7
      %v4490 = vsub.s32 %v4487, %v4489
      %v4491 = vrot.slane %v4484, %v4490
      %v4492 = vcombine.low %v3823, %v4015
      %v4494 = vunpack.c.l.s4 1983009808
      %v4495 = vunpack.c.0.s8 %v4494
      %v4496 = vlaneseq
      %v4497 = vshrl.u32 %v4496, 7
      %v4498 = vsub.s32 %v4495, %v4497
      %v4499 = vrot.slane %v4492, %v4498
      %v4500 = vcombine.low %v3919, %v4111
      %v4502 = vunpack.c.l.s4 1983009808
      %v4503 = vunpack.c.0.s8 %v4502
      %v4504 = vlaneseq
      %v4505 = vshrl.u32 %v4504, 7
      %v4506 = vsub.s32 %v4503, %v4505
      %v4507 = vrot.slane %v4500, %v4506
      %v4508 = vcombine.low %v4499, %v4507
      %v4510 = vunpack.c.l.s4 1934713408
      %v4511 = vunpack.c.0.s8 %v4510
      %v4512 = vlaneseq
      %v4513 = vshrl.u32 %v4512, 7
      %v4514 = vsub.s32 %v4511, %v4513
      %v4515 = vrot.slane %v4508, %v4514
      %v4516 = vcombine.low %v3825, %v4017
      %v4518 = vunpack.c.l.s4 1983009808
      %v4519 = vunpack.c.0.s8 %v4518
      %v4520 = vlaneseq
      %v4521 = vshrl.u32 %v4520, 7
      %v4522 = vsub.s32 %v4519, %v4521
      %v4523 = vrot.slane %v4516, %v4522
      %v4524 = vcombine.low %v3921, %v4113
      %v4526 = vunpack.c.l.s4 1983009808
      %v4527 = vunpack.c.0.s8 %v4526
      %v4528 = vlaneseq
      %v4529 = vshrl.u32 %v4528, 7
      %v4530 = vsub.s32 %v4527, %v4529
      %v4531 = vrot.slane %v4524, %v4530
      %v4532 = vcombine.low %v4523, %v4531
      %v4534 = vunpack.c.l.s4 1934713408
      %v4535 = vunpack.c.0.s8 %v4534
      %v4536 = vlaneseq
      %v4537 = vshrl.u32 %v4536, 7
      %v4538 = vsub.s32 %v4535, %v4537
      %v4539 = vrot.slane %v4532, %v4538
      %v4540 = vcombine.low %v3827, %v4019
      %v4542 = vunpack.c.l.s4 1983009808
      %v4543 = vunpack.c.0.s8 %v4542
      %v4544 = vlaneseq
      %v4545 = vshrl.u32 %v4544, 7
      %v4546 = vsub.s32 %v4543, %v4545
      %v4547 = vrot.slane %v4540, %v4546
      %v4548 = vcombine.low %v3923, %v4115
      %v4550 = vunpack.c.l.s4 1983009808
      %v4551 = vunpack.c.0.s8 %v4550
      %v4552 = vlaneseq
      %v4553 = vshrl.u32 %v4552, 7
      %v4554 = vsub.s32 %v4551, %v4553
      %v4555 = vrot.slane %v4548, %v4554
      %v4556 = vcombine.low %v4547, %v4555
      %v4558 = vunpack.c.l.s4 1934713408
      %v4559 = vunpack.c.0.s8 %v4558
      %v4560 = vlaneseq
      %v4561 = vshrl.u32 %v4560, 7
      %v4562 = vsub.s32 %v4559, %v4561
      %v4563 = vrot.slane %v4556, %v4562
      %v4564 = vcombine.low %v3829, %v4021
      %v4566 = vunpack.c.l.s4 1983009808
      %v4567 = vunpack.c.0.s8 %v4566
      %v4568 = vlaneseq
      %v4569 = vshrl.u32 %v4568, 7
      %v4570 = vsub.s32 %v4567, %v4569
      %v4571 = vrot.slane %v4564, %v4570
      %v4572 = vcombine.low %v3925, %v4117
      %v4574 = vunpack.c.l.s4 1983009808
      %v4575 = vunpack.c.0.s8 %v4574
      %v4576 = vlaneseq
      %v4577 = vshrl.u32 %v4576, 7
      %v4578 = vsub.s32 %v4575, %v4577
      %v4579 = vrot.slane %v4572, %v4578
      %v4580 = vcombine.low %v4571, %v4579
      %v4582 = vunpack.c.l.s4 1934713408
      %v4583 = vunpack.c.0.s8 %v4582
      %v4584 = vlaneseq
      %v4585 = vshrl.u32 %v4584, 7
      %v4586 = vsub.s32 %v4583, %v4585
      %v4587 = vrot.slane %v4580, %v4586
      %v4588 = vcombine.low %v3831, %v4023
      %v4590 = vunpack.c.l.s4 1983009808
      %v4591 = vunpack.c.0.s8 %v4590
      %v4592 = vlaneseq
      %v4593 = vshrl.u32 %v4592, 7
      %v4594 = vsub.s32 %v4591, %v4593
      %v4595 = vrot.slane %v4588, %v4594
      %v4596 = vcombine.low %v3927, %v4119
      %v4598 = vunpack.c.l.s4 1983009808
      %v4599 = vunpack.c.0.s8 %v4598
      %v4600 = vlaneseq
      %v4601 = vshrl.u32 %v4600, 7
      %v4602 = vsub.s32 %v4599, %v4601
      %v4603 = vrot.slane %v4596, %v4602
      %v4604 = vcombine.low %v4595, %v4603
      %v4606 = vunpack.c.l.s4 1934713408
      %v4607 = vunpack.c.0.s8 %v4606
      %v4608 = vlaneseq
      %v4609 = vshrl.u32 %v4608, 7
      %v4610 = vsub.s32 %v4607, %v4609
      %v4611 = vrot.slane %v4604, %v4610
      %v4612 = vcombine.low %v3833, %v4025
      %v4614 = vunpack.c.l.s4 1983009808
      %v4615 = vunpack.c.0.s8 %v4614
      %v4616 = vlaneseq
      %v4617 = vshrl.u32 %v4616, 7
      %v4618 = vsub.s32 %v4615, %v4617
      %v4619 = vrot.slane %v4612, %v4618
      %v4620 = vcombine.low %v3929, %v4121
      %v4622 = vunpack.c.l.s4 1983009808
      %v4623 = vunpack.c.0.s8 %v4622
      %v4624 = vlaneseq
      %v4625 = vshrl.u32 %v4624, 7
      %v4626 = vsub.s32 %v4623, %v4625
      %v4627 = vrot.slane %v4620, %v4626
      %v4628 = vcombine.low %v4619, %v4627
      %v4630 = vunpack.c.l.s4 1934713408
      %v4631 = vunpack.c.0.s8 %v4630
      %v4632 = vlaneseq
      %v4633 = vshrl.u32 %v4632, 7
      %v4634 = vsub.s32 %v4631, %v4633
      %v4635 = vrot.slane %v4628, %v4634
      %v4636 = vcombine.low %v3835, %v4027
      %v4638 = vunpack.c.l.s4 1983009808
      %v4639 = vunpack.c.0.s8 %v4638
      %v4640 = vlaneseq
      %v4641 = vshrl.u32 %v4640, 7
      %v4642 = vsub.s32 %v4639, %v4641
      %v4643 = vrot.slane %v4636, %v4642
      %v4644 = vcombine.low %v3931, %v4123
      %v4646 = vunpack.c.l.s4 1983009808
      %v4647 = vunpack.c.0.s8 %v4646
      %v4648 = vlaneseq
      %v4649 = vshrl.u32 %v4648, 7
      %v4650 = vsub.s32 %v4647, %v4649
      %v4651 = vrot.slane %v4644, %v4650
      %v4652 = vcombine.low %v4643, %v4651
      %v4654 = vunpack.c.l.s4 1934713408
      %v4655 = vunpack.c.0.s8 %v4654
      %v4656 = vlaneseq
      %v4657 = vshrl.u32 %v4656, 7
      %v4658 = vsub.s32 %v4655, %v4657
      %v4659 = vrot.slane %v4652, %v4658
      %v4660 = vcombine.low %v3837, %v4029
      %v4662 = vunpack.c.l.s4 1983009808
      %v4663 = vunpack.c.0.s8 %v4662
      %v4664 = vlaneseq
      %v4665 = vshrl.u32 %v4664, 7
      %v4666 = vsub.s32 %v4663, %v4665
      %v4667 = vrot.slane %v4660, %v4666
      %v4668 = vcombine.low %v3933, %v4125
      %v4670 = vunpack.c.l.s4 1983009808
      %v4671 = vunpack.c.0.s8 %v4670
      %v4672 = vlaneseq
      %v4673 = vshrl.u32 %v4672, 7
      %v4674 = vsub.s32 %v4671, %v4673
      %v4675 = vrot.slane %v4668, %v4674
      %v4676 = vcombine.low %v4667, %v4675
      %v4678 = vunpack.c.l.s4 1934713408
      %v4679 = vunpack.c.0.s8 %v4678
      %v4680 = vlaneseq
      %v4681 = vshrl.u32 %v4680, 7
      %v4682 = vsub.s32 %v4679, %v4681
      %v4683 = vrot.slane %v4676, %v4682
      %v4684 = vcombine.low %v3839, %v4031
      %v4686 = vunpack.c.l.s4 1983009808
      %v4687 = vunpack.c.0.s8 %v4686
      %v4688 = vlaneseq
      %v4689 = vshrl.u32 %v4688, 7
      %v4690 = vsub.s32 %v4687, %v4689
      %v4691 = vrot.slane %v4684, %v4690
      %v4692 = vcombine.low %v3935, %v4127
      %v4694 = vunpack.c.l.s4 1983009808
      %v4695 = vunpack.c.0.s8 %v4694
      %v4696 = vlaneseq
      %v4697 = vshrl.u32 %v4696, 7
      %v4698 = vsub.s32 %v4695, %v4697
      %v4699 = vrot.slane %v4692, %v4698
      %v4700 = vcombine.low %v4691, %v4699
      %v4702 = vunpack.c.l.s4 1934713408
      %v4703 = vunpack.c.0.s8 %v4702
      %v4704 = vlaneseq
      %v4705 = vshrl.u32 %v4704, 7
      %v4706 = vsub.s32 %v4703, %v4705
      %v4707 = vrot.slane %v4700, %v4706
      %v4708 = vcombine.low %v3841, %v4033
      %v4710 = vunpack.c.l.s4 1983009808
      %v4711 = vunpack.c.0.s8 %v4710
      %v4712 = vlaneseq
      %v4713 = vshrl.u32 %v4712, 7
      %v4714 = vsub.s32 %v4711, %v4713
      %v4715 = vrot.slane %v4708, %v4714
      %v4716 = vcombine.low %v3937, %v4129
      %v4718 = vunpack.c.l.s4 1983009808
      %v4719 = vunpack.c.0.s8 %v4718
      %v4720 = vlaneseq
      %v4721 = vshrl.u32 %v4720, 7
      %v4722 = vsub.s32 %v4719, %v4721
      %v4723 = vrot.slane %v4716, %v4722
      %v4724 = vcombine.low %v4715, %v4723
      %v4726 = vunpack.c.l.s4 1934713408
      %v4727 = vunpack.c.0.s8 %v4726
      %v4728 = vlaneseq
      %v4729 = vshrl.u32 %v4728, 7
      %v4730 = vsub.s32 %v4727, %v4729
      %v4731 = vrot.slane %v4724, %v4730
      %v4732 = vcombine.low %v3843, %v4035
      %v4734 = vunpack.c.l.s4 1983009808
      %v4735 = vunpack.c.0.s8 %v4734
      %v4736 = vlaneseq
      %v4737 = vshrl.u32 %v4736, 7
      %v4738 = vsub.s32 %v4735, %v4737
      %v4739 = vrot.slane %v4732, %v4738
      %v4740 = vcombine.low %v3939, %v4131
      %v4742 = vunpack.c.l.s4 1983009808
      %v4743 = vunpack.c.0.s8 %v4742
      %v4744 = vlaneseq
      %v4745 = vshrl.u32 %v4744, 7
      %v4746 = vsub.s32 %v4743, %v4745
      %v4747 = vrot.slane %v4740, %v4746
      %v4748 = vcombine.low %v4739, %v4747
      %v4750 = vunpack.c.l.s4 1934713408
      %v4751 = vunpack.c.0.s8 %v4750
      %v4752 = vlaneseq
      %v4753 = vshrl.u32 %v4752, 7
      %v4754 = vsub.s32 %v4751, %v4753
      %v4755 = vrot.slane %v4748, %v4754
      %v4756 = vcombine.low %v3845, %v4037
      %v4758 = vunpack.c.l.s4 1983009808
      %v4759 = vunpack.c.0.s8 %v4758
      %v4760 = vlaneseq
      %v4761 = vshrl.u32 %v4760, 7
      %v4762 = vsub.s32 %v4759, %v4761
      %v4763 = vrot.slane %v4756, %v4762
      %v4764 = vcombine.low %v3941, %v4133
      %v4766 = vunpack.c.l.s4 1983009808
      %v4767 = vunpack.c.0.s8 %v4766
      %v4768 = vlaneseq
      %v4769 = vshrl.u32 %v4768, 7
      %v4770 = vsub.s32 %v4767, %v4769
      %v4771 = vrot.slane %v4764, %v4770
      %v4772 = vcombine.low %v4763, %v4771
      %v4774 = vunpack.c.l.s4 1934713408
      %v4775 = vunpack.c.0.s8 %v4774
      %v4776 = vlaneseq
      %v4777 = vshrl.u32 %v4776, 7
      %v4778 = vsub.s32 %v4775, %v4777
      %v4779 = vrot.slane %v4772, %v4778
      %v4780 = vcombine.low %v3847, %v4039
      %v4782 = vunpack.c.l.s4 1983009808
      %v4783 = vunpack.c.0.s8 %v4782
      %v4784 = vlaneseq
      %v4785 = vshrl.u32 %v4784, 7
      %v4786 = vsub.s32 %v4783, %v4785
      %v4787 = vrot.slane %v4780, %v4786
      %v4788 = vcombine.low %v3943, %v4135
      %v4790 = vunpack.c.l.s4 1983009808
      %v4791 = vunpack.c.0.s8 %v4790
      %v4792 = vlaneseq
      %v4793 = vshrl.u32 %v4792, 7
      %v4794 = vsub.s32 %v4791, %v4793
      %v4795 = vrot.slane %v4788, %v4794
      %v4796 = vcombine.low %v4787, %v4795
      %v4798 = vunpack.c.l.s4 1934713408
      %v4799 = vunpack.c.0.s8 %v4798
      %v4800 = vlaneseq
      %v4801 = vshrl.u32 %v4800, 7
      %v4802 = vsub.s32 %v4799, %v4801
      %v4803 = vrot.slane %v4796, %v4802
      %v4804 = vcombine.low %v3849, %v4041
      %v4806 = vunpack.c.l.s4 1983009808
      %v4807 = vunpack.c.0.s8 %v4806
      %v4808 = vlaneseq
      %v4809 = vshrl.u32 %v4808, 7
      %v4810 = vsub.s32 %v4807, %v4809
      %v4811 = vrot.slane %v4804, %v4810
      %v4812 = vcombine.low %v3945, %v4137
      %v4814 = vunpack.c.l.s4 1983009808
      %v4815 = vunpack.c.0.s8 %v4814
      %v4816 = vlaneseq
      %v4817 = vshrl.u32 %v4816, 7
      %v4818 = vsub.s32 %v4815, %v4817
      %v4819 = vrot.slane %v4812, %v4818
      %v4820 = vcombine.low %v4811, %v4819
      %v4822 = vunpack.c.l.s4 1934713408
      %v4823 = vunpack.c.0.s8 %v4822
      %v4824 = vlaneseq
      %v4825 = vshrl.u32 %v4824, 7
      %v4826 = vsub.s32 %v4823, %v4825
      %v4827 = vrot.slane %v4820, %v4826
      %v4828 = vcombine.low %v3851, %v4043
      %v4830 = vunpack.c.l.s4 1983009808
      %v4831 = vunpack.c.0.s8 %v4830
      %v4832 = vlaneseq
      %v4833 = vshrl.u32 %v4832, 7
      %v4834 = vsub.s32 %v4831, %v4833
      %v4835 = vrot.slane %v4828, %v4834
      %v4836 = vcombine.low %v3947, %v4139
      %v4838 = vunpack.c.l.s4 1983009808
      %v4839 = vunpack.c.0.s8 %v4838
      %v4840 = vlaneseq
      %v4841 = vshrl.u32 %v4840, 7
      %v4842 = vsub.s32 %v4839, %v4841
      %v4843 = vrot.slane %v4836, %v4842
      %v4844 = vcombine.low %v4835, %v4843
      %v4846 = vunpack.c.l.s4 1934713408
      %v4847 = vunpack.c.0.s8 %v4846
      %v4848 = vlaneseq
      %v4849 = vshrl.u32 %v4848, 7
      %v4850 = vsub.s32 %v4847, %v4849
      %v4851 = vrot.slane %v4844, %v4850
      %v4852 = vcombine.low %v3853, %v4045
      %v4854 = vunpack.c.l.s4 1983009808
      %v4855 = vunpack.c.0.s8 %v4854
      %v4856 = vlaneseq
      %v4857 = vshrl.u32 %v4856, 7
      %v4858 = vsub.s32 %v4855, %v4857
      %v4859 = vrot.slane %v4852, %v4858
      %v4860 = vcombine.low %v3949, %v4141
      %v4862 = vunpack.c.l.s4 1983009808
      %v4863 = vunpack.c.0.s8 %v4862
      %v4864 = vlaneseq
      %v4865 = vshrl.u32 %v4864, 7
      %v4866 = vsub.s32 %v4863, %v4865
      %v4867 = vrot.slane %v4860, %v4866
      %v4868 = vcombine.low %v4859, %v4867
      %v4870 = vunpack.c.l.s4 1934713408
      %v4871 = vunpack.c.0.s8 %v4870
      %v4872 = vlaneseq
      %v4873 = vshrl.u32 %v4872, 7
      %v4874 = vsub.s32 %v4871, %v4873
      %v4875 = vrot.slane %v4868, %v4874
      %v4876 = vcombine.low %v3855, %v4047
      %v4878 = vunpack.c.l.s4 1983009808
      %v4879 = vunpack.c.0.s8 %v4878
      %v4880 = vlaneseq
      %v4881 = vshrl.u32 %v4880, 7
      %v4882 = vsub.s32 %v4879, %v4881
      %v4883 = vrot.slane %v4876, %v4882
      %v4884 = vcombine.low %v3951, %v4143
      %v4886 = vunpack.c.l.s4 1983009808
      %v4887 = vunpack.c.0.s8 %v4886
      %v4888 = vlaneseq
      %v4889 = vshrl.u32 %v4888, 7
      %v4890 = vsub.s32 %v4887, %v4889
      %v4891 = vrot.slane %v4884, %v4890
      %v4892 = vcombine.low %v4883, %v4891
      %v4894 = vunpack.c.l.s4 1934713408
      %v4895 = vunpack.c.0.s8 %v4894
      %v4896 = vlaneseq
      %v4897 = vshrl.u32 %v4896, 7
      %v4898 = vsub.s32 %v4895, %v4897
      %v4899 = vrot.slane %v4892, %v4898
      %v4900 = vcombine.low %v3857, %v4049
      %v4902 = vunpack.c.l.s4 1983009808
      %v4903 = vunpack.c.0.s8 %v4902
      %v4904 = vlaneseq
      %v4905 = vshrl.u32 %v4904, 7
      %v4906 = vsub.s32 %v4903, %v4905
      %v4907 = vrot.slane %v4900, %v4906
      %v4908 = vcombine.low %v3953, %v4145
      %v4910 = vunpack.c.l.s4 1983009808
      %v4911 = vunpack.c.0.s8 %v4910
      %v4912 = vlaneseq
      %v4913 = vshrl.u32 %v4912, 7
      %v4914 = vsub.s32 %v4911, %v4913
      %v4915 = vrot.slane %v4908, %v4914
      %v4916 = vcombine.low %v4907, %v4915
      %v4918 = vunpack.c.l.s4 1934713408
      %v4919 = vunpack.c.0.s8 %v4918
      %v4920 = vlaneseq
      %v4921 = vshrl.u32 %v4920, 7
      %v4922 = vsub.s32 %v4919, %v4921
      %v4923 = vrot.slane %v4916, %v4922
      %v4924 = vcombine.low %v3859, %v4051
      %v4926 = vunpack.c.l.s4 1983009808
      %v4927 = vunpack.c.0.s8 %v4926
      %v4928 = vlaneseq
      %v4929 = vshrl.u32 %v4928, 7
      %v4930 = vsub.s32 %v4927, %v4929
      %v4931 = vrot.slane %v4924, %v4930
      %v4932 = vcombine.low %v3955, %v4147
      %v4934 = vunpack.c.l.s4 1983009808
      %v4935 = vunpack.c.0.s8 %v4934
      %v4936 = vlaneseq
      %v4937 = vshrl.u32 %v4936, 7
      %v4938 = vsub.s32 %v4935, %v4937
      %v4939 = vrot.slane %v4932, %v4938
      %v4940 = vcombine.low %v4931, %v4939
      %v4942 = vunpack.c.l.s4 1934713408
      %v4943 = vunpack.c.0.s8 %v4942
      %v4944 = vlaneseq
      %v4945 = vshrl.u32 %v4944, 7
      %v4946 = vsub.s32 %v4943, %v4945
      %v4947 = vrot.slane %v4940, %v4946
      %v4948 = vsub.f32 %v414, 1.0
      %v4949 = vsub.f32 %v415, 1.0
      %v4950 = vsub.f32 %v416, 1.0
      %v4951 = vsub.f32 %v417, 1.0
      %v4952 = vsub.f32 %v418, 1.0
      %v4953 = vsub.f32 %v419, 1.0
      %v4954 = vsub.f32 %v420, 1.0
      %v4955 = vsub.f32 %v421, 1.0
      %v4956 = vsub.f32 %v422, 1.0
      %v4957 = vsub.f32 %v423, 1.0
      %v4958 = vsub.f32 %v424, 1.0
      %v4959 = vsub.f32 %v425, 1.0
      %v4960 = vsub.f32 %v426, 1.0
      %v4961 = vsub.f32 %v427, 1.0
      %v4962 = vsub.f32 %v428, 1.0
      %v4963 = vsub.f32 %v429, 1.0
      %v4964 = vsub.f32 %v430, 1.0
      %v4965 = vsub.f32 %v431, 1.0
      %v4966 = vsub.f32 %v432, 1.0
      %v4967 = vsub.f32 %v433, 1.0
      %v4968 = vsub.f32 %v434, 1.0
      %v4969 = vsub.f32 %v435, 1.0
      %v4970 = vsub.f32 %v436, 1.0
      %v4971 = vsub.f32 %v437, 1.0
      %v4972 = vsub.f32 %v438, 1.0
      %v4973 = vsub.f32 %v439, 1.0
      %v4974 = vsub.f32 %v440, 1.0
      %v4975 = vsub.f32 %v441, 1.0
      %v4976 = vsub.f32 %v442, 1.0
      %v4977 = vsub.f32 %v443, 1.0
      %v4978 = vsub.f32 %v444, 1.0
      %v4979 = vsub.f32 %v445, 1.0
      %v4980 = vmul.f32 %v4948, 32768.0
      %v4981 = vmul.f32 %v4949, 32768.0
      %v4982 = vmul.f32 %v4950, 32768.0
      %v4983 = vmul.f32 %v4951, 32768.0
      %v4984 = vmul.f32 %v4952, 32768.0
      %v4985 = vmul.f32 %v4953, 32768.0
      %v4986 = vmul.f32 %v4954, 32768.0
      %v4987 = vmul.f32 %v4955, 32768.0
      %v4988 = vmul.f32 %v4956, 32768.0
      %v4989 = vmul.f32 %v4957, 32768.0
      %v4990 = vmul.f32 %v4958, 32768.0
      %v4991 = vmul.f32 %v4959, 32768.0
      %v4992 = vmul.f32 %v4960, 32768.0
      %v4993 = vmul.f32 %v4961, 32768.0
      %v4994 = vmul.f32 %v4962, 32768.0
      %v4995 = vmul.f32 %v4963, 32768.0
      %v4996 = vmul.f32 %v4964, 32768.0
      %v4997 = vmul.f32 %v4965, 32768.0
      %v4998 = vmul.f32 %v4966, 32768.0
      %v4999 = vmul.f32 %v4967, 32768.0
      %v5000 = vmul.f32 %v4968, 32768.0
      %v5001 = vmul.f32 %v4969, 32768.0
      %v5002 = vmul.f32 %v4970, 32768.0
      %v5003 = vmul.f32 %v4971, 32768.0
      %v5004 = vmul.f32 %v4972, 32768.0
      %v5005 = vmul.f32 %v4973, 32768.0
      %v5006 = vmul.f32 %v4974, 32768.0
      %v5007 = vmul.f32 %v4975, 32768.0
      %v5008 = vmul.f32 %v4976, 32768.0
      %v5009 = vmul.f32 %v4977, 32768.0
      %v5010 = vmul.f32 %v4978, 32768.0
      %v5011 = vmul.f32 %v4979, 32768.0
      %v5044 = vlaneseq
      %v5045 = vshrl.u32 %v5044, 7
      %v5046 = vsub.s32 0, %v5045
      %v5047 = vrot.slane %v4980, %v5046
      %v5048 = vlaneseq
      %v5049 = vshrl.u32 %v5048, 7
      %v5050 = vsub.s32 0, %v5049
      %v5051 = vrot.slane %v4981, %v5050
      %v5052 = vlaneseq
      %v5053 = vshrl.u32 %v5052, 7
      %v5054 = vsub.s32 0, %v5053
      %v5055 = vrot.slane %v4982, %v5054
      %v5056 = vlaneseq
      %v5057 = vshrl.u32 %v5056, 7
      %v5058 = vsub.s32 0, %v5057
      %v5059 = vrot.slane %v4983, %v5058
      %v5060 = vlaneseq
      %v5061 = vshrl.u32 %v5060, 7
      %v5062 = vsub.s32 0, %v5061
      %v5063 = vrot.slane %v4984, %v5062
      %v5064 = vlaneseq
      %v5065 = vshrl.u32 %v5064, 7
      %v5066 = vsub.s32 0, %v5065
      %v5067 = vrot.slane %v4985, %v5066
      %v5068 = vlaneseq
      %v5069 = vshrl.u32 %v5068, 7
      %v5070 = vsub.s32 0, %v5069
      %v5071 = vrot.slane %v4986, %v5070
      %v5072 = vlaneseq
      %v5073 = vshrl.u32 %v5072, 7
      %v5074 = vsub.s32 0, %v5073
      %v5075 = vrot.slane %v4987, %v5074
      %v5076 = vlaneseq
      %v5077 = vshrl.u32 %v5076, 7
      %v5078 = vsub.s32 0, %v5077
      %v5079 = vrot.slane %v4988, %v5078
      %v5080 = vlaneseq
      %v5081 = vshrl.u32 %v5080, 7
      %v5082 = vsub.s32 0, %v5081
      %v5083 = vrot.slane %v4989, %v5082
      %v5084 = vlaneseq
      %v5085 = vshrl.u32 %v5084, 7
      %v5086 = vsub.s32 0, %v5085
      %v5087 = vrot.slane %v4990, %v5086
      %v5088 = vlaneseq
      %v5089 = vshrl.u32 %v5088, 7
      %v5090 = vsub.s32 0, %v5089
      %v5091 = vrot.slane %v4991, %v5090
      %v5092 = vlaneseq
      %v5093 = vshrl.u32 %v5092, 7
      %v5094 = vsub.s32 0, %v5093
      %v5095 = vrot.slane %v4992, %v5094
      %v5096 = vlaneseq
      %v5097 = vshrl.u32 %v5096, 7
      %v5098 = vsub.s32 0, %v5097
      %v5099 = vrot.slane %v4993, %v5098
      %v5100 = vlaneseq
      %v5101 = vshrl.u32 %v5100, 7
      %v5102 = vsub.s32 0, %v5101
      %v5103 = vrot.slane %v4994, %v5102
      %v5104 = vlaneseq
      %v5105 = vshrl.u32 %v5104, 7
      %v5106 = vsub.s32 0, %v5105
      %v5107 = vrot.slane %v4995, %v5106
      %v5108 = vlaneseq
      %v5109 = vshrl.u32 %v5108, 7
      %v5110 = vsub.s32 0, %v5109
      %v5111 = vrot.slane %v4996, %v5110
      %v5112 = vlaneseq
      %v5113 = vshrl.u32 %v5112, 7
      %v5114 = vsub.s32 0, %v5113
      %v5115 = vrot.slane %v4997, %v5114
      %v5116 = vlaneseq
      %v5117 = vshrl.u32 %v5116, 7
      %v5118 = vsub.s32 0, %v5117
      %v5119 = vrot.slane %v4998, %v5118
      %v5120 = vlaneseq
      %v5121 = vshrl.u32 %v5120, 7
      %v5122 = vsub.s32 0, %v5121
      %v5123 = vrot.slane %v4999, %v5122
      %v5124 = vlaneseq
      %v5125 = vshrl.u32 %v5124, 7
      %v5126 = vsub.s32 0, %v5125
      %v5127 = vrot.slane %v5000, %v5126
      %v5128 = vlaneseq
      %v5129 = vshrl.u32 %v5128, 7
      %v5130 = vsub.s32 0, %v5129
      %v5131 = vrot.slane %v5001, %v5130
      %v5132 = vlaneseq
      %v5133 = vshrl.u32 %v5132, 7
      %v5134 = vsub.s32 0, %v5133
      %v5135 = vrot.slane %v5002, %v5134
      %v5136 = vlaneseq
      %v5137 = vshrl.u32 %v5136, 7
      %v5138 = vsub.s32 0, %v5137
      %v5139 = vrot.slane %v5003, %v5138
      %v5140 = vlaneseq
      %v5141 = vshrl.u32 %v5140, 7
      %v5142 = vsub.s32 0, %v5141
      %v5143 = vrot.slane %v5004, %v5142
      %v5144 = vlaneseq
      %v5145 = vshrl.u32 %v5144, 7
      %v5146 = vsub.s32 0, %v5145
      %v5147 = vrot.slane %v5005, %v5146
      %v5148 = vlaneseq
      %v5149 = vshrl.u32 %v5148, 7
      %v5150 = vsub.s32 0, %v5149
      %v5151 = vrot.slane %v5006, %v5150
      %v5152 = vlaneseq
      %v5153 = vshrl.u32 %v5152, 7
      %v5154 = vsub.s32 0, %v5153
      %v5155 = vrot.slane %v5007, %v5154
      %v5156 = vlaneseq
      %v5157 = vshrl.u32 %v5156, 7
      %v5158 = vsub.s32 0, %v5157
      %v5159 = vrot.slane %v5008, %v5158
      %v5160 = vlaneseq
      %v5161 = vshrl.u32 %v5160, 7
      %v5162 = vsub.s32 0, %v5161
      %v5163 = vrot.slane %v5009, %v5162
      %v5164 = vlaneseq
      %v5165 = vshrl.u32 %v5164, 7
      %v5166 = vsub.s32 0, %v5165
      %v5167 = vrot.slane %v5010, %v5166
      %v5168 = vlaneseq
      %v5169 = vshrl.u32 %v5168, 7
      %v5170 = vsub.s32 0, %v5169
      %v5171 = vrot.slane %v5011, %v5170
      %v5205 = vsel %vm1459, %v4203, 0
      %v5208 = vsel %vm1459, %v1172, 0
      %5210 = vmatprep.subr.mxu0 0.0
      %5211 = vmatpush1.xpose.msra.mxu0 %v5208
      %5212 = vmatprep.subr.mxu0 0.0
      %5213 = vmatpush1.xpose.msra.mxu0 0.0
      %5214 = vmatprep.subr.mxu0 0.0
      %5215 = vmatpush1.xpose.msra.mxu0 0.0
      %5216 = vmatprep.subr.mxu0 0.0
      %5217 = vmatpush1.xpose.msra.mxu0 0.0
      %5218 = vmatprep.subr.mxu0 0.0
      %5219 = vmatpush1.xpose.msra.mxu0 0.0
      %5220 = vmatprep.subr.mxu0 0.0
      %5221 = vmatpush1.xpose.msra.mxu0 0.0
      %5222 = vmatprep.subr.mxu0 0.0
      %5223 = vmatpush1.xpose.msra.mxu0 0.0
      %5224 = vmatprep.subr.mxu0 0.0
      %5225 = vmatpush1.xpose.msra.mxu0 0.0
      %5226 = vmatprep.subr.mxu0 0.0
      %5227 = vmatpush1.xpose.msra.mxu0 0.0
      %5228 = vmatprep.subr.mxu0 0.0
      %5229 = vmatpush1.xpose.msra.mxu0 0.0
      %5230 = vmatprep.subr.mxu0 0.0
      %5231 = vmatpush1.xpose.msra.mxu0 0.0
      %5232 = vmatprep.subr.mxu0 0.0
      %5233 = vmatpush1.xpose.msra.mxu0 0.0
      %5234 = vmatprep.subr.mxu0 0.0
      %5235 = vmatpush1.xpose.msra.mxu0 0.0
      %5236 = vmatprep.subr.mxu0 0.0
      %5237 = vmatpush1.xpose.msra.mxu0 0.0
      %5238 = vmatprep.subr.mxu0 0.0
      %5239 = vmatpush1.xpose.msra.mxu0 0.0
      %5240 = vmatprep.subr.mxu0 0.0
      %5241 = vmatpush1.xpose.msra.mxu0 0.0
      %5242 = vmatprep.subr.mxu0 0.0
      %5243 = vmatpush1.xpose.msra.mxu0 0.0
      %5244 = vmatprep.subr.mxu0 0.0
      %5245 = vmatpush1.xpose.msra.mxu0 0.0
      %5246 = vmatprep.subr.mxu0 0.0
      %5247 = vmatpush1.xpose.msra.mxu0 0.0
      %5248 = vmatprep.subr.mxu0 0.0
      %5249 = vmatpush1.xpose.msra.mxu0 0.0
      %5250 = vmatprep.subr.mxu0 0.0
      %5251 = vmatpush1.xpose.msra.mxu0 0.0
      %5252 = vmatprep.subr.mxu0 0.0
      %5253 = vmatpush1.xpose.msra.mxu0 0.0
      %5254 = vmatprep.subr.mxu0 0.0
      %5255 = vmatpush1.xpose.msra.mxu0 0.0
      %5256 = vmatprep.subr.mxu0 0.0
      %5257 = vmatpush1.xpose.msra.mxu0 0.0
      %5258 = vmatprep.subr.mxu0 0.0
      %5259 = vmatpush1.xpose.msra.mxu0 0.0
      %5260 = vmatprep.subr.mxu0 0.0
      %5261 = vmatpush1.xpose.msra.mxu0 0.0
      %5262 = vmatprep.subr.mxu0 0.0
      %5263 = vmatpush1.xpose.msra.mxu0 0.0
      %5264 = vmatprep.subr.mxu0 0.0
      %5265 = vmatpush1.xpose.msra.mxu0 0.0
      %5266 = vmatprep.subr.mxu0 0.0
      %5267 = vmatpush1.xpose.msra.mxu0 0.0
      %5268 = vmatprep.subr.mxu0 0.0
      %5269 = vmatpush1.xpose.msra.mxu0 0.0
      %5270 = vmatprep.subr.mxu0 0.0
      %5271 = vmatpush1.xpose.msra.mxu0 0.0
      %5272 = vmatprep.subr.mxu0 0.0
      %5273 = vmatpush1.xpose.msra.mxu0 0.0
      %5274 = vmatprep.mubr.f32.mxu0 0.0
      %5275 = vmatmul.mubr.f32.gmra.mrb[0].mxu0 %v5205
      %v5276 = vpop.f32.mrb[0].mxu0
      %v5277 = vadd.f32 %v5047, %v5276
      %v5278 = vpop.f32.mrb[0].mxu0
      %5279 = vdwg.mxu0
      %v5281 = vsel %vm1459, %v4227, 0
      %v5284 = vsel %vm1459, %v1177, 0
      %5286 = vmatprep.subr.mxu0 0.0
      %5287 = vmatpush1.xpose.msra.mxu0 %v5284
      %5288 = vmatprep.subr.mxu0 0.0
      %5289 = vmatpush1.xpose.msra.mxu0 0.0
      %5290 = vmatprep.subr.mxu0 0.0
      %5291 = vmatpush1.xpose.msra.mxu0 0.0
      %5292 = vmatprep.subr.mxu0 0.0
      %5293 = vmatpush1.xpose.msra.mxu0 0.0
      %5294 = vmatprep.subr.mxu0 0.0
      %5295 = vmatpush1.xpose.msra.mxu0 0.0
      %5296 = vmatprep.subr.mxu0 0.0
      %5297 = vmatpush1.xpose.msra.mxu0 0.0
      %5298 = vmatprep.subr.mxu0 0.0
      %5299 = vmatpush1.xpose.msra.mxu0 0.0
      %5300 = vmatprep.subr.mxu0 0.0
      %5301 = vmatpush1.xpose.msra.mxu0 0.0
      %5302 = vmatprep.subr.mxu0 0.0
      %5303 = vmatpush1.xpose.msra.mxu0 0.0
      %5304 = vmatprep.subr.mxu0 0.0
      %5305 = vmatpush1.xpose.msra.mxu0 0.0
      %5306 = vmatprep.subr.mxu0 0.0
      %5307 = vmatpush1.xpose.msra.mxu0 0.0
      %5308 = vmatprep.subr.mxu0 0.0
      %5309 = vmatpush1.xpose.msra.mxu0 0.0
      %5310 = vmatprep.subr.mxu0 0.0
      %5311 = vmatpush1.xpose.msra.mxu0 0.0
      %5312 = vmatprep.subr.mxu0 0.0
      %5313 = vmatpush1.xpose.msra.mxu0 0.0
      %5314 = vmatprep.subr.mxu0 0.0
      %5315 = vmatpush1.xpose.msra.mxu0 0.0
      %5316 = vmatprep.subr.mxu0 0.0
      %5317 = vmatpush1.xpose.msra.mxu0 0.0
      %5318 = vmatprep.subr.mxu0 0.0
      %5319 = vmatpush1.xpose.msra.mxu0 0.0
      %5320 = vmatprep.subr.mxu0 0.0
      %5321 = vmatpush1.xpose.msra.mxu0 0.0
      %5322 = vmatprep.subr.mxu0 0.0
      %5323 = vmatpush1.xpose.msra.mxu0 0.0
      %5324 = vmatprep.subr.mxu0 0.0
      %5325 = vmatpush1.xpose.msra.mxu0 0.0
      %5326 = vmatprep.subr.mxu0 0.0
      %5327 = vmatpush1.xpose.msra.mxu0 0.0
      %5328 = vmatprep.subr.mxu0 0.0
      %5329 = vmatpush1.xpose.msra.mxu0 0.0
      %5330 = vmatprep.subr.mxu0 0.0
      %5331 = vmatpush1.xpose.msra.mxu0 0.0
      %5332 = vmatprep.subr.mxu0 0.0
      %5333 = vmatpush1.xpose.msra.mxu0 0.0
      %5334 = vmatprep.subr.mxu0 0.0
      %5335 = vmatpush1.xpose.msra.mxu0 0.0
      %5336 = vmatprep.subr.mxu0 0.0
      %5337 = vmatpush1.xpose.msra.mxu0 0.0
      %5338 = vmatprep.subr.mxu0 0.0
      %5339 = vmatpush1.xpose.msra.mxu0 0.0
      %5340 = vmatprep.subr.mxu0 0.0
      %5341 = vmatpush1.xpose.msra.mxu0 0.0
      %5342 = vmatprep.subr.mxu0 0.0
      %5343 = vmatpush1.xpose.msra.mxu0 0.0
      %5344 = vmatprep.subr.mxu0 0.0
      %5345 = vmatpush1.xpose.msra.mxu0 0.0
      %5346 = vmatprep.subr.mxu0 0.0
      %5347 = vmatpush1.xpose.msra.mxu0 0.0
      %5348 = vmatprep.subr.mxu0 0.0
      %5349 = vmatpush1.xpose.msra.mxu0 0.0
      %5350 = vmatprep.mubr.f32.mxu0 0.0
      %5351 = vmatmul.mubr.f32.gmra.mrb[0].mxu0 %v5281
      %v5352 = vpop.f32.mrb[0].mxu0
      %v5353 = vadd.f32 %v5051, %v5352
      %v5354 = vpop.f32.mrb[0].mxu0
      %5355 = vdwg.mxu0
      %v5357 = vsel %vm1459, %v4251, 0
      %v5360 = vsel %vm1459, %v1182, 0
      %5362 = vmatprep.subr.mxu0 0.0
      %5363 = vmatpush1.xpose.msra.mxu0 %v5360
      %5364 = vmatprep.subr.mxu0 0.0
      %5365 = vmatpush1.xpose.msra.mxu0 0.0
      %5366 = vmatprep.subr.mxu0 0.0
      %5367 = vmatpush1.xpose.msra.mxu0 0.0
      %5368 = vmatprep.subr.mxu0 0.0
      %5369 = vmatpush1.xpose.msra.mxu0 0.0
      %5370 = vmatprep.subr.mxu0 0.0
      %5371 = vmatpush1.xpose.msra.mxu0 0.0
      %5372 = vmatprep.subr.mxu0 0.0
      %5373 = vmatpush1.xpose.msra.mxu0 0.0
      %5374 = vmatprep.subr.mxu0 0.0
      %5375 = vmatpush1.xpose.msra.mxu0 0.0
      %5376 = vmatprep.subr.mxu0 0.0
      %5377 = vmatpush1.xpose.msra.mxu0 0.0
      %5378 = vmatprep.subr.mxu0 0.0
      %5379 = vmatpush1.xpose.msra.mxu0 0.0
      %5380 = vmatprep.subr.mxu0 0.0
      %5381 = vmatpush1.xpose.msra.mxu0 0.0
      %5382 = vmatprep.subr.mxu0 0.0
      %5383 = vmatpush1.xpose.msra.mxu0 0.0
      %5384 = vmatprep.subr.mxu0 0.0
      %5385 = vmatpush1.xpose.msra.mxu0 0.0
      %5386 = vmatprep.subr.mxu0 0.0
      %5387 = vmatpush1.xpose.msra.mxu0 0.0
      %5388 = vmatprep.subr.mxu0 0.0
      %5389 = vmatpush1.xpose.msra.mxu0 0.0
      %5390 = vmatprep.subr.mxu0 0.0
      %5391 = vmatpush1.xpose.msra.mxu0 0.0
      %5392 = vmatprep.subr.mxu0 0.0
      %5393 = vmatpush1.xpose.msra.mxu0 0.0
      %5394 = vmatprep.subr.mxu0 0.0
      %5395 = vmatpush1.xpose.msra.mxu0 0.0
      %5396 = vmatprep.subr.mxu0 0.0
      %5397 = vmatpush1.xpose.msra.mxu0 0.0
      %5398 = vmatprep.subr.mxu0 0.0
      %5399 = vmatpush1.xpose.msra.mxu0 0.0
      %5400 = vmatprep.subr.mxu0 0.0
      %5401 = vmatpush1.xpose.msra.mxu0 0.0
      %5402 = vmatprep.subr.mxu0 0.0
      %5403 = vmatpush1.xpose.msra.mxu0 0.0
      %5404 = vmatprep.subr.mxu0 0.0
      %5405 = vmatpush1.xpose.msra.mxu0 0.0
      %5406 = vmatprep.subr.mxu0 0.0
      %5407 = vmatpush1.xpose.msra.mxu0 0.0
      %5408 = vmatprep.subr.mxu0 0.0
      %5409 = vmatpush1.xpose.msra.mxu0 0.0
      %5410 = vmatprep.subr.mxu0 0.0
      %5411 = vmatpush1.xpose.msra.mxu0 0.0
      %5412 = vmatprep.subr.mxu0 0.0
      %5413 = vmatpush1.xpose.msra.mxu0 0.0
      %5414 = vmatprep.subr.mxu0 0.0
      %5415 = vmatpush1.xpose.msra.mxu0 0.0
      %5416 = vmatprep.subr.mxu0 0.0
      %5417 = vmatpush1.xpose.msra.mxu0 0.0
      %5418 = vmatprep.subr.mxu0 0.0
      %5419 = vmatpush1.xpose.msra.mxu0 0.0
      %5420 = vmatprep.subr.mxu0 0.0
      %5421 = vmatpush1.xpose.msra.mxu0 0.0
      %5422 = vmatprep.subr.mxu0 0.0
      %5423 = vmatpush1.xpose.msra.mxu0 0.0
      %5424 = vmatprep.subr.mxu0 0.0
      %5425 = vmatpush1.xpose.msra.mxu0 0.0
      %5426 = vmatprep.mubr.f32.mxu0 0.0
      %5427 = vmatmul.mubr.f32.gmra.mrb[0].mxu0 %v5357
      %v5428 = vpop.f32.mrb[0].mxu0
      %v5429 = vadd.f32 %v5055, %v5428
      %v5430 = vpop.f32.mrb[0].mxu0
      %5431 = vdwg.mxu0
      %v5433 = vsel %vm1459, %v4275, 0
      %v5436 = vsel %vm1459, %v1187, 0
      %5438 = vmatprep.subr.mxu0 0.0
      %5439 = vmatpush1.xpose.msra.mxu0 %v5436
      %5440 = vmatprep.subr.mxu0 0.0
      %5441 = vmatpush1.xpose.msra.mxu0 0.0
      %5442 = vmatprep.subr.mxu0 0.0
      %5443 = vmatpush1.xpose.msra.mxu0 0.0
      %5444 = vmatprep.subr.mxu0 0.0
      %5445 = vmatpush1.xpose.msra.mxu0 0.0
      %5446 = vmatprep.subr.mxu0 0.0
      %5447 = vmatpush1.xpose.msra.mxu0 0.0
      %5448 = vmatprep.subr.mxu0 0.0
      %5449 = vmatpush1.xpose.msra.mxu0 0.0
      %5450 = vmatprep.subr.mxu0 0.0
      %5451 = vmatpush1.xpose.msra.mxu0 0.0
      %5452 = vmatprep.subr.mxu0 0.0
      %5453 = vmatpush1.xpose.msra.mxu0 0.0
      %5454 = vmatprep.subr.mxu0 0.0
      %5455 = vmatpush1.xpose.msra.mxu0 0.0
      %5456 = vmatprep.subr.mxu0 0.0
      %5457 = vmatpush1.xpose.msra.mxu0 0.0
      %5458 = vmatprep.subr.mxu0 0.0
      %5459 = vmatpush1.xpose.msra.mxu0 0.0
      %5460 = vmatprep.subr.mxu0 0.0
      %5461 = vmatpush1.xpose.msra.mxu0 0.0
      %5462 = vmatprep.subr.mxu0 0.0
      %5463 = vmatpush1.xpose.msra.mxu0 0.0
      %5464 = vmatprep.subr.mxu0 0.0
      %5465 = vmatpush1.xpose.msra.mxu0 0.0
      %5466 = vmatprep.subr.mxu0 0.0
      %5467 = vmatpush1.xpose.msra.mxu0 0.0
      %5468 = vmatprep.subr.mxu0 0.0
      %5469 = vmatpush1.xpose.msra.mxu0 0.0
      %5470 = vmatprep.subr.mxu0 0.0
      %5471 = vmatpush1.xpose.msra.mxu0 0.0
      %5472 = vmatprep.subr.mxu0 0.0
      %5473 = vmatpush1.xpose.msra.mxu0 0.0
      %5474 = vmatprep.subr.mxu0 0.0
      %5475 = vmatpush1.xpose.msra.mxu0 0.0
      %5476 = vmatprep.subr.mxu0 0.0
      %5477 = vmatpush1.xpose.msra.mxu0 0.0
      %5478 = vmatprep.subr.mxu0 0.0
      %5479 = vmatpush1.xpose.msra.mxu0 0.0
      %5480 = vmatprep.subr.mxu0 0.0
      %5481 = vmatpush1.xpose.msra.mxu0 0.0
      %5482 = vmatprep.subr.mxu0 0.0
      %5483 = vmatpush1.xpose.msra.mxu0 0.0
      %5484 = vmatprep.subr.mxu0 0.0
      %5485 = vmatpush1.xpose.msra.mxu0 0.0
      %5486 = vmatprep.subr.mxu0 0.0
      %5487 = vmatpush1.xpose.msra.mxu0 0.0
      %5488 = vmatprep.subr.mxu0 0.0
      %5489 = vmatpush1.xpose.msra.mxu0 0.0
      %5490 = vmatprep.subr.mxu0 0.0
      %5491 = vmatpush1.xpose.msra.mxu0 0.0
      %5492 = vmatprep.subr.mxu0 0.0
      %5493 = vmatpush1.xpose.msra.mxu0 0.0
      %5494 = vmatprep.subr.mxu0 0.0
      %5495 = vmatpush1.xpose.msra.mxu0 0.0
      %5496 = vmatprep.subr.mxu0 0.0
      %5497 = vmatpush1.xpose.msra.mxu0 0.0
      %5498 = vmatprep.subr.mxu0 0.0
      %5499 = vmatpush1.xpose.msra.mxu0 0.0
      %5500 = vmatprep.subr.mxu0 0.0
      %5501 = vmatpush1.xpose.msra.mxu0 0.0
      %5502 = vmatprep.mubr.f32.mxu0 0.0
      %5503 = vmatmul.mubr.f32.gmra.mrb[0].mxu0 %v5433
      %v5504 = vpop.f32.mrb[0].mxu0
      %v5505 = vadd.f32 %v5059, %v5504
      %v5506 = vpop.f32.mrb[0].mxu0
      %5507 = vdwg.mxu0
      %v5509 = vsel %vm1459, %v4299, 0
      %v5512 = vsel %vm1459, %v1192, 0
      %5514 = vmatprep.subr.mxu0 0.0
      %5515 = vmatpush1.xpose.msra.mxu0 %v5512
      %5516 = vmatprep.subr.mxu0 0.0
      %5517 = vmatpush1.xpose.msra.mxu0 0.0
      %5518 = vmatprep.subr.mxu0 0.0
      %5519 = vmatpush1.xpose.msra.mxu0 0.0
      %5520 = vmatprep.subr.mxu0 0.0
      %5521 = vmatpush1.xpose.msra.mxu0 0.0
      %5522 = vmatprep.subr.mxu0 0.0
      %5523 = vmatpush1.xpose.msra.mxu0 0.0
      %5524 = vmatprep.subr.mxu0 0.0
      %5525 = vmatpush1.xpose.msra.mxu0 0.0
      %5526 = vmatprep.subr.mxu0 0.0
      %5527 = vmatpush1.xpose.msra.mxu0 0.0
      %5528 = vmatprep.subr.mxu0 0.0
      %5529 = vmatpush1.xpose.msra.mxu0 0.0
      %5530 = vmatprep.subr.mxu0 0.0
      %5531 = vmatpush1.xpose.msra.mxu0 0.0
      %5532 = vmatprep.subr.mxu0 0.0
      %5533 = vmatpush1.xpose.msra.mxu0 0.0
      %5534 = vmatprep.subr.mxu0 0.0
      %5535 = vmatpush1.xpose.msra.mxu0 0.0
      %5536 = vmatprep.subr.mxu0 0.0
      %5537 = vmatpush1.xpose.msra.mxu0 0.0
      %5538 = vmatprep.subr.mxu0 0.0
      %5539 = vmatpush1.xpose.msra.mxu0 0.0
      %5540 = vmatprep.subr.mxu0 0.0
      %5541 = vmatpush1.xpose.msra.mxu0 0.0
      %5542 = vmatprep.subr.mxu0 0.0
      %5543 = vmatpush1.xpose.msra.mxu0 0.0
      %5544 = vmatprep.subr.mxu0 0.0
      %5545 = vmatpush1.xpose.msra.mxu0 0.0
      %5546 = vmatprep.subr.mxu0 0.0
      %5547 = vmatpush1.xpose.msra.mxu0 0.0
      %5548 = vmatprep.subr.mxu0 0.0
      %5549 = vmatpush1.xpose.msra.mxu0 0.0
      %5550 = vmatprep.subr.mxu0 0.0
      %5551 = vmatpush1.xpose.msra.mxu0 0.0
      %5552 = vmatprep.subr.mxu0 0.0
      %5553 = vmatpush1.xpose.msra.mxu0 0.0
      %5554 = vmatprep.subr.mxu0 0.0
      %5555 = vmatpush1.xpose.msra.mxu0 0.0
      %5556 = vmatprep.subr.mxu0 0.0
      %5557 = vmatpush1.xpose.msra.mxu0 0.0
      %5558 = vmatprep.subr.mxu0 0.0
      %5559 = vmatpush1.xpose.msra.mxu0 0.0
      %5560 = vmatprep.subr.mxu0 0.0
      %5561 = vmatpush1.xpose.msra.mxu0 0.0
      %5562 = vmatprep.subr.mxu0 0.0
      %5563 = vmatpush1.xpose.msra.mxu0 0.0
      %5564 = vmatprep.subr.mxu0 0.0
      %5565 = vmatpush1.xpose.msra.mxu0 0.0
      %5566 = vmatprep.subr.mxu0 0.0
      %5567 = vmatpush1.xpose.msra.mxu0 0.0
      %5568 = vmatprep.subr.mxu0 0.0
      %5569 = vmatpush1.xpose.msra.mxu0 0.0
      %5570 = vmatprep.subr.mxu0 0.0
      %5571 = vmatpush1.xpose.msra.mxu0 0.0
      %5572 = vmatprep.subr.mxu0 0.0
      %5573 = vmatpush1.xpose.msra.mxu0 0.0
      %5574 = vmatprep.subr.mxu0 0.0
      %5575 = vmatpush1.xpose.msra.mxu0 0.0
      %5576 = vmatprep.subr.mxu0 0.0
      %5577 = vmatpush1.xpose.msra.mxu0 0.0
      %5578 = vmatprep.mubr.f32.mxu0 0.0
      %5579 = vmatmul.mubr.f32.gmra.mrb[0].mxu0 %v5509
      %v5580 = vpop.f32.mrb[0].mxu0
      %v5581 = vadd.f32 %v5063, %v5580
      %v5582 = vpop.f32.mrb[0].mxu0
      %5583 = vdwg.mxu0
      %v5585 = vsel %vm1459, %v4323, 0
      %v5588 = vsel %vm1459, %v1197, 0
      %5590 = vmatprep.subr.mxu0 0.0
      %5591 = vmatpush1.xpose.msra.mxu0 %v5588
      %5592 = vmatprep.subr.mxu0 0.0
      %5593 = vmatpush1.xpose.msra.mxu0 0.0
      %5594 = vmatprep.subr.mxu0 0.0
      %5595 = vmatpush1.xpose.msra.mxu0 0.0
      %5596 = vmatprep.subr.mxu0 0.0
      %5597 = vmatpush1.xpose.msra.mxu0 0.0
      %5598 = vmatprep.subr.mxu0 0.0
      %5599 = vmatpush1.xpose.msra.mxu0 0.0
      %5600 = vmatprep.subr.mxu0 0.0
      %5601 = vmatpush1.xpose.msra.mxu0 0.0
      %5602 = vmatprep.subr.mxu0 0.0
      %5603 = vmatpush1.xpose.msra.mxu0 0.0
      %5604 = vmatprep.subr.mxu0 0.0
      %5605 = vmatpush1.xpose.msra.mxu0 0.0
      %5606 = vmatprep.subr.mxu0 0.0
      %5607 = vmatpush1.xpose.msra.mxu0 0.0
      %5608 = vmatprep.subr.mxu0 0.0
      %5609 = vmatpush1.xpose.msra.mxu0 0.0
      %5610 = vmatprep.subr.mxu0 0.0
      %5611 = vmatpush1.xpose.msra.mxu0 0.0
      %5612 = vmatprep.subr.mxu0 0.0
      %5613 = vmatpush1.xpose.msra.mxu0 0.0
      %5614 = vmatprep.subr.mxu0 0.0
      %5615 = vmatpush1.xpose.msra.mxu0 0.0
      %5616 = vmatprep.subr.mxu0 0.0
      %5617 = vmatpush1.xpose.msra.mxu0 0.0
      %5618 = vmatprep.subr.mxu0 0.0
      %5619 = vmatpush1.xpose.msra.mxu0 0.0
      %5620 = vmatprep.subr.mxu0 0.0
      %5621 = vmatpush1.xpose.msra.mxu0 0.0
      %5622 = vmatprep.subr.mxu0 0.0
      %5623 = vmatpush1.xpose.msra.mxu0 0.0
      %5624 = vmatprep.subr.mxu0 0.0
      %5625 = vmatpush1.xpose.msra.mxu0 0.0
      %5626 = vmatprep.subr.mxu0 0.0
      %5627 = vmatpush1.xpose.msra.mxu0 0.0
      %5628 = vmatprep.subr.mxu0 0.0
      %5629 = vmatpush1.xpose.msra.mxu0 0.0
      %5630 = vmatprep.subr.mxu0 0.0
      %5631 = vmatpush1.xpose.msra.mxu0 0.0
      %5632 = vmatprep.subr.mxu0 0.0
      %5633 = vmatpush1.xpose.msra.mxu0 0.0
      %5634 = vmatprep.subr.mxu0 0.0
      %5635 = vmatpush1.xpose.msra.mxu0 0.0
      %5636 = vmatprep.subr.mxu0 0.0
      %5637 = vmatpush1.xpose.msra.mxu0 0.0
      %5638 = vmatprep.subr.mxu0 0.0
      %5639 = vmatpush1.xpose.msra.mxu0 0.0
      %5640 = vmatprep.subr.mxu0 0.0
      %5641 = vmatpush1.xpose.msra.mxu0 0.0
      %5642 = vmatprep.subr.mxu0 0.0
      %5643 = vmatpush1.xpose.msra.mxu0 0.0
      %5644 = vmatprep.subr.mxu0 0.0
      %5645 = vmatpush1.xpose.msra.mxu0 0.0
      %5646 = vmatprep.subr.mxu0 0.0
      %5647 = vmatpush1.xpose.msra.mxu0 0.0
      %5648 = vmatprep.subr.mxu0 0.0
      %5649 = vmatpush1.xpose.msra.mxu0 0.0
      %5650 = vmatprep.subr.mxu0 0.0
      %5651 = vmatpush1.xpose.msra.mxu0 0.0
      %5652 = vmatprep.subr.mxu0 0.0
      %5653 = vmatpush1.xpose.msra.mxu0 0.0
      %5654 = vmatprep.mubr.f32.mxu0 0.0
      %5655 = vmatmul.mubr.f32.gmra.mrb[0].mxu0 %v5585
      %v5656 = vpop.f32.mrb[0].mxu0
      %v5657 = vadd.f32 %v5067, %v5656
      %v5658 = vpop.f32.mrb[0].mxu0
      %5659 = vdwg.mxu0
      %v5661 = vsel %vm1459, %v4347, 0
      %v5664 = vsel %vm1459, %v1202, 0
      %5666 = vmatprep.subr.mxu0 0.0
      %5667 = vmatpush1.xpose.msra.mxu0 %v5664
      %5668 = vmatprep.subr.mxu0 0.0
      %5669 = vmatpush1.xpose.msra.mxu0 0.0
      %5670 = vmatprep.subr.mxu0 0.0
      %5671 = vmatpush1.xpose.msra.mxu0 0.0
      %5672 = vmatprep.subr.mxu0 0.0
      %5673 = vmatpush1.xpose.msra.mxu0 0.0
      %5674 = vmatprep.subr.mxu0 0.0
      %5675 = vmatpush1.xpose.msra.mxu0 0.0
      %5676 = vmatprep.subr.mxu0 0.0
      %5677 = vmatpush1.xpose.msra.mxu0 0.0
      %5678 = vmatprep.subr.mxu0 0.0
      %5679 = vmatpush1.xpose.msra.mxu0 0.0
      %5680 = vmatprep.subr.mxu0 0.0
      %5681 = vmatpush1.xpose.msra.mxu0 0.0
      %5682 = vmatprep.subr.mxu0 0.0
      %5683 = vmatpush1.xpose.msra.mxu0 0.0
      %5684 = vmatprep.subr.mxu0 0.0
      %5685 = vmatpush1.xpose.msra.mxu0 0.0
      %5686 = vmatprep.subr.mxu0 0.0
      %5687 = vmatpush1.xpose.msra.mxu0 0.0
      %5688 = vmatprep.subr.mxu0 0.0
      %5689 = vmatpush1.xpose.msra.mxu0 0.0
      %5690 = vmatprep.subr.mxu0 0.0
      %5691 = vmatpush1.xpose.msra.mxu0 0.0
      %5692 = vmatprep.subr.mxu0 0.0
      %5693 = vmatpush1.xpose.msra.mxu0 0.0
      %5694 = vmatprep.subr.mxu0 0.0
      %5695 = vmatpush1.xpose.msra.mxu0 0.0
      %5696 = vmatprep.subr.mxu0 0.0
      %5697 = vmatpush1.xpose.msra.mxu0 0.0
      %5698 = vmatprep.subr.mxu0 0.0
      %5699 = vmatpush1.xpose.msra.mxu0 0.0
      %5700 = vmatprep.subr.mxu0 0.0
      %5701 = vmatpush1.xpose.msra.mxu0 0.0
      %5702 = vmatprep.subr.mxu0 0.0
      %5703 = vmatpush1.xpose.msra.mxu0 0.0
      %5704 = vmatprep.subr.mxu0 0.0
      %5705 = vmatpush1.xpose.msra.mxu0 0.0
      %5706 = vmatprep.subr.mxu0 0.0
      %5707 = vmatpush1.xpose.msra.mxu0 0.0
      %5708 = vmatprep.subr.mxu0 0.0
      %5709 = vmatpush1.xpose.msra.mxu0 0.0
      %5710 = vmatprep.subr.mxu0 0.0
      %5711 = vmatpush1.xpose.msra.mxu0 0.0
      %5712 = vmatprep.subr.mxu0 0.0
      %5713 = vmatpush1.xpose.msra.mxu0 0.0
      %5714 = vmatprep.subr.mxu0 0.0
      %5715 = vmatpush1.xpose.msra.mxu0 0.0
      %5716 = vmatprep.subr.mxu0 0.0
      %5717 = vmatpush1.xpose.msra.mxu0 0.0
      %5718 = vmatprep.subr.mxu0 0.0
      %5719 = vmatpush1.xpose.msra.mxu0 0.0
      %5720 = vmatprep.subr.mxu0 0.0
      %5721 = vmatpush1.xpose.msra.mxu0 0.0
      %5722 = vmatprep.subr.mxu0 0.0
      %5723 = vmatpush1.xpose.msra.mxu0 0.0
      %5724 = vmatprep.subr.mxu0 0.0
      %5725 = vmatpush1.xpose.msra.mxu0 0.0
      %5726 = vmatprep.subr.mxu0 0.0
      %5727 = vmatpush1.xpose.msra.mxu0 0.0
      %5728 = vmatprep.subr.mxu0 0.0
      %5729 = vmatpush1.xpose.msra.mxu0 0.0
      %5730 = vmatprep.mubr.f32.mxu0 0.0
      %5731 = vmatmul.mubr.f32.gmra.mrb[0].mxu0 %v5661
      %v5732 = vpop.f32.mrb[0].mxu0
      %v5733 = vadd.f32 %v5071, %v5732
      %v5734 = vpop.f32.mrb[0].mxu0
      %5735 = vdwg.mxu0
      %v5737 = vsel %vm1459, %v4371, 0
      %v5740 = vsel %vm1459, %v1207, 0
      %5742 = vmatprep.subr.mxu0 0.0
      %5743 = vmatpush1.xpose.msra.mxu0 %v5740
      %5744 = vmatprep.subr.mxu0 0.0
      %5745 = vmatpush1.xpose.msra.mxu0 0.0
      %5746 = vmatprep.subr.mxu0 0.0
      %5747 = vmatpush1.xpose.msra.mxu0 0.0
      %5748 = vmatprep.subr.mxu0 0.0
      %5749 = vmatpush1.xpose.msra.mxu0 0.0
      %5750 = vmatprep.subr.mxu0 0.0
      %5751 = vmatpush1.xpose.msra.mxu0 0.0
      %5752 = vmatprep.subr.mxu0 0.0
      %5753 = vmatpush1.xpose.msra.mxu0 0.0
      %5754 = vmatprep.subr.mxu0 0.0
      %5755 = vmatpush1.xpose.msra.mxu0 0.0
      %5756 = vmatprep.subr.mxu0 0.0
      %5757 = vmatpush1.xpose.msra.mxu0 0.0
      %5758 = vmatprep.subr.mxu0 0.0
      %5759 = vmatpush1.xpose.msra.mxu0 0.0
      %5760 = vmatprep.subr.mxu0 0.0
      %5761 = vmatpush1.xpose.msra.mxu0 0.0
      %5762 = vmatprep.subr.mxu0 0.0
      %5763 = vmatpush1.xpose.msra.mxu0 0.0
      %5764 = vmatprep.subr.mxu0 0.0
      %5765 = vmatpush1.xpose.msra.mxu0 0.0
      %5766 = vmatprep.subr.mxu0 0.0
      %5767 = vmatpush1.xpose.msra.mxu0 0.0
      %5768 = vmatprep.subr.mxu0 0.0
      %5769 = vmatpush1.xpose.msra.mxu0 0.0
      %5770 = vmatprep.subr.mxu0 0.0
      %5771 = vmatpush1.xpose.msra.mxu0 0.0
      %5772 = vmatprep.subr.mxu0 0.0
      %5773 = vmatpush1.xpose.msra.mxu0 0.0
      %5774 = vmatprep.subr.mxu0 0.0
      %5775 = vmatpush1.xpose.msra.mxu0 0.0
      %5776 = vmatprep.subr.mxu0 0.0
      %5777 = vmatpush1.xpose.msra.mxu0 0.0
      %5778 = vmatprep.subr.mxu0 0.0
      %5779 = vmatpush1.xpose.msra.mxu0 0.0
      %5780 = vmatprep.subr.mxu0 0.0
      %5781 = vmatpush1.xpose.msra.mxu0 0.0
      %5782 = vmatprep.subr.mxu0 0.0
      %5783 = vmatpush1.xpose.msra.mxu0 0.0
      %5784 = vmatprep.subr.mxu0 0.0
      %5785 = vmatpush1.xpose.msra.mxu0 0.0
      %5786 = vmatprep.subr.mxu0 0.0
      %5787 = vmatpush1.xpose.msra.mxu0 0.0
      %5788 = vmatprep.subr.mxu0 0.0
      %5789 = vmatpush1.xpose.msra.mxu0 0.0
      %5790 = vmatprep.subr.mxu0 0.0
      %5791 = vmatpush1.xpose.msra.mxu0 0.0
      %5792 = vmatprep.subr.mxu0 0.0
      %5793 = vmatpush1.xpose.msra.mxu0 0.0
      %5794 = vmatprep.subr.mxu0 0.0
      %5795 = vmatpush1.xpose.msra.mxu0 0.0
      %5796 = vmatprep.subr.mxu0 0.0
      %5797 = vmatpush1.xpose.msra.mxu0 0.0
      %5798 = vmatprep.subr.mxu0 0.0
      %5799 = vmatpush1.xpose.msra.mxu0 0.0
      %5800 = vmatprep.subr.mxu0 0.0
      %5801 = vmatpush1.xpose.msra.mxu0 0.0
      %5802 = vmatprep.subr.mxu0 0.0
      %5803 = vmatpush1.xpose.msra.mxu0 0.0
      %5804 = vmatprep.subr.mxu0 0.0
      %5805 = vmatpush1.xpose.msra.mxu0 0.0
      %5806 = vmatprep.mubr.f32.mxu0 0.0
      %5807 = vmatmul.mubr.f32.gmra.mrb[0].mxu0 %v5737
      %v5808 = vpop.f32.mrb[0].mxu0
      %v5809 = vadd.f32 %v5075, %v5808
      %v5810 = vpop.f32.mrb[0].mxu0
      %5811 = vdwg.mxu0
      %v5813 = vsel %vm1459, %v4395, 0
      %v5816 = vsel %vm1459, %v1212, 0
      %5818 = vmatprep.subr.mxu0 0.0
      %5819 = vmatpush1.xpose.msra.mxu0 %v5816
      %5820 = vmatprep.subr.mxu0 0.0
      %5821 = vmatpush1.xpose.msra.mxu0 0.0
      %5822 = vmatprep.subr.mxu0 0.0
      %5823 = vmatpush1.xpose.msra.mxu0 0.0
      %5824 = vmatprep.subr.mxu0 0.0
      %5825 = vmatpush1.xpose.msra.mxu0 0.0
      %5826 = vmatprep.subr.mxu0 0.0
      %5827 = vmatpush1.xpose.msra.mxu0 0.0
      %5828 = vmatprep.subr.mxu0 0.0
      %5829 = vmatpush1.xpose.msra.mxu0 0.0
      %5830 = vmatprep.subr.mxu0 0.0
      %5831 = vmatpush1.xpose.msra.mxu0 0.0
      %5832 = vmatprep.subr.mxu0 0.0
      %5833 = vmatpush1.xpose.msra.mxu0 0.0
      %5834 = vmatprep.subr.mxu0 0.0
      %5835 = vmatpush1.xpose.msra.mxu0 0.0
      %5836 = vmatprep.subr.mxu0 0.0
      %5837 = vmatpush1.xpose.msra.mxu0 0.0
      %5838 = vmatprep.subr.mxu0 0.0
      %5839 = vmatpush1.xpose.msra.mxu0 0.0
      %5840 = vmatprep.subr.mxu0 0.0
      %5841 = vmatpush1.xpose.msra.mxu0 0.0
      %5842 = vmatprep.subr.mxu0 0.0
      %5843 = vmatpush1.xpose.msra.mxu0 0.0
      %5844 = vmatprep.subr.mxu0 0.0
      %5845 = vmatpush1.xpose.msra.mxu0 0.0
      %5846 = vmatprep.subr.mxu0 0.0
      %5847 = vmatpush1.xpose.msra.mxu0 0.0
      %5848 = vmatprep.subr.mxu0 0.0
      %5849 = vmatpush1.xpose.msra.mxu0 0.0
      %5850 = vmatprep.subr.mxu0 0.0
      %5851 = vmatpush1.xpose.msra.mxu0 0.0
      %5852 = vmatprep.subr.mxu0 0.0
      %5853 = vmatpush1.xpose.msra.mxu0 0.0
      %5854 = vmatprep.subr.mxu0 0.0
      %5855 = vmatpush1.xpose.msra.mxu0 0.0
      %5856 = vmatprep.subr.mxu0 0.0
      %5857 = vmatpush1.xpose.msra.mxu0 0.0
      %5858 = vmatprep.subr.mxu0 0.0
      %5859 = vmatpush1.xpose.msra.mxu0 0.0
      %5860 = vmatprep.subr.mxu0 0.0
      %5861 = vmatpush1.xpose.msra.mxu0 0.0
      %5862 = vmatprep.subr.mxu0 0.0
      %5863 = vmatpush1.xpose.msra.mxu0 0.0
      %5864 = vmatprep.subr.mxu0 0.0
      %5865 = vmatpush1.xpose.msra.mxu0 0.0
      %5866 = vmatprep.subr.mxu0 0.0
      %5867 = vmatpush1.xpose.msra.mxu0 0.0
      %5868 = vmatprep.subr.mxu0 0.0
      %5869 = vmatpush1.xpose.msra.mxu0 0.0
      %5870 = vmatprep.subr.mxu0 0.0
      %5871 = vmatpush1.xpose.msra.mxu0 0.0
      %5872 = vmatprep.subr.mxu0 0.0
      %5873 = vmatpush1.xpose.msra.mxu0 0.0
      %5874 = vmatprep.subr.mxu0 0.0
      %5875 = vmatpush1.xpose.msra.mxu0 0.0
      %5876 = vmatprep.subr.mxu0 0.0
      %5877 = vmatpush1.xpose.msra.mxu0 0.0
      %5878 = vmatprep.subr.mxu0 0.0
      %5879 = vmatpush1.xpose.msra.mxu0 0.0
      %5880 = vmatprep.subr.mxu0 0.0
      %5881 = vmatpush1.xpose.msra.mxu0 0.0
      %5882 = vmatprep.mubr.f32.mxu0 0.0
      %5883 = vmatmul.mubr.f32.gmra.mrb[0].mxu0 %v5813
      %v5884 = vpop.f32.mrb[0].mxu0
      %v5885 = vadd.f32 %v5079, %v5884
      %v5886 = vpop.f32.mrb[0].mxu0
      %5887 = vdwg.mxu0
      %v5889 = vsel %vm1459, %v4419, 0
      %v5892 = vsel %vm1459, %v1217, 0
      %5894 = vmatprep.subr.mxu0 0.0
      %5895 = vmatpush1.xpose.msra.mxu0 %v5892
      %5896 = vmatprep.subr.mxu0 0.0
      %5897 = vmatpush1.xpose.msra.mxu0 0.0
      %5898 = vmatprep.subr.mxu0 0.0
      %5899 = vmatpush1.xpose.msra.mxu0 0.0
      %5900 = vmatprep.subr.mxu0 0.0
      %5901 = vmatpush1.xpose.msra.mxu0 0.0
      %5902 = vmatprep.subr.mxu0 0.0
      %5903 = vmatpush1.xpose.msra.mxu0 0.0
      %5904 = vmatprep.subr.mxu0 0.0
      %5905 = vmatpush1.xpose.msra.mxu0 0.0
      %5906 = vmatprep.subr.mxu0 0.0
      %5907 = vmatpush1.xpose.msra.mxu0 0.0
      %5908 = vmatprep.subr.mxu0 0.0
      %5909 = vmatpush1.xpose.msra.mxu0 0.0
      %5910 = vmatprep.subr.mxu0 0.0
      %5911 = vmatpush1.xpose.msra.mxu0 0.0
      %5912 = vmatprep.subr.mxu0 0.0
      %5913 = vmatpush1.xpose.msra.mxu0 0.0
      %5914 = vmatprep.subr.mxu0 0.0
      %5915 = vmatpush1.xpose.msra.mxu0 0.0
      %5916 = vmatprep.subr.mxu0 0.0
      %5917 = vmatpush1.xpose.msra.mxu0 0.0
      %5918 = vmatprep.subr.mxu0 0.0
      %5919 = vmatpush1.xpose.msra.mxu0 0.0
      %5920 = vmatprep.subr.mxu0 0.0
      %5921 = vmatpush1.xpose.msra.mxu0 0.0
      %5922 = vmatprep.subr.mxu0 0.0
      %5923 = vmatpush1.xpose.msra.mxu0 0.0
      %5924 = vmatprep.subr.mxu0 0.0
      %5925 = vmatpush1.xpose.msra.mxu0 0.0
      %5926 = vmatprep.subr.mxu0 0.0
      %5927 = vmatpush1.xpose.msra.mxu0 0.0
      %5928 = vmatprep.subr.mxu0 0.0
      %5929 = vmatpush1.xpose.msra.mxu0 0.0
      %5930 = vmatprep.subr.mxu0 0.0
      %5931 = vmatpush1.xpose.msra.mxu0 0.0
      %5932 = vmatprep.subr.mxu0 0.0
      %5933 = vmatpush1.xpose.msra.mxu0 0.0
      %5934 = vmatprep.subr.mxu0 0.0
      %5935 = vmatpush1.xpose.msra.mxu0 0.0
      %5936 = vmatprep.subr.mxu0 0.0
      %5937 = vmatpush1.xpose.msra.mxu0 0.0
      %5938 = vmatprep.subr.mxu0 0.0
      %5939 = vmatpush1.xpose.msra.mxu0 0.0
      %5940 = vmatprep.subr.mxu0 0.0
      %5941 = vmatpush1.xpose.msra.mxu0 0.0
      %5942 = vmatprep.subr.mxu0 0.0
      %5943 = vmatpush1.xpose.msra.mxu0 0.0
      %5944 = vmatprep.subr.mxu0 0.0
      %5945 = vmatpush1.xpose.msra.mxu0 0.0
      %5946 = vmatprep.subr.mxu0 0.0
      %5947 = vmatpush1.xpose.msra.mxu0 0.0
      %5948 = vmatprep.subr.mxu0 0.0
      %5949 = vmatpush1.xpose.msra.mxu0 0.0
      %5950 = vmatprep.subr.mxu0 0.0
      %5951 = vmatpush1.xpose.msra.mxu0 0.0
      %5952 = vmatprep.subr.mxu0 0.0
      %5953 = vmatpush1.xpose.msra.mxu0 0.0
      %5954 = vmatprep.subr.mxu0 0.0
      %5955 = vmatpush1.xpose.msra.mxu0 0.0
      %5956 = vmatprep.subr.mxu0 0.0
      %5957 = vmatpush1.xpose.msra.mxu0 0.0
      %5958 = vmatprep.mubr.f32.mxu0 0.0
      %5959 = vmatmul.mubr.f32.gmra.mrb[0].mxu0 %v5889
      %v5960 = vpop.f32.mrb[0].mxu0
      %v5961 = vadd.f32 %v5083, %v5960
      %v5962 = vpop.f32.mrb[0].mxu0
      %5963 = vdwg.mxu0
      %v5965 = vsel %vm1459, %v4443, 0
      %v5968 = vsel %vm1459, %v1222, 0
      %5970 = vmatprep.subr.mxu0 0.0
      %5971 = vmatpush1.xpose.msra.mxu0 %v5968
      %5972 = vmatprep.subr.mxu0 0.0
      %5973 = vmatpush1.xpose.msra.mxu0 0.0
      %5974 = vmatprep.subr.mxu0 0.0
      %5975 = vmatpush1.xpose.msra.mxu0 0.0
      %5976 = vmatprep.subr.mxu0 0.0
      %5977 = vmatpush1.xpose.msra.mxu0 0.0
      %5978 = vmatprep.subr.mxu0 0.0
      %5979 = vmatpush1.xpose.msra.mxu0 0.0
      %5980 = vmatprep.subr.mxu0 0.0
      %5981 = vmatpush1.xpose.msra.mxu0 0.0
      %5982 = vmatprep.subr.mxu0 0.0
      %5983 = vmatpush1.xpose.msra.mxu0 0.0
      %5984 = vmatprep.subr.mxu0 0.0
      %5985 = vmatpush1.xpose.msra.mxu0 0.0
      %5986 = vmatprep.subr.mxu0 0.0
      %5987 = vmatpush1.xpose.msra.mxu0 0.0
      %5988 = vmatprep.subr.mxu0 0.0
      %5989 = vmatpush1.xpose.msra.mxu0 0.0
      %5990 = vmatprep.subr.mxu0 0.0
      %5991 = vmatpush1.xpose.msra.mxu0 0.0
      %5992 = vmatprep.subr.mxu0 0.0
      %5993 = vmatpush1.xpose.msra.mxu0 0.0
      %5994 = vmatprep.subr.mxu0 0.0
      %5995 = vmatpush1.xpose.msra.mxu0 0.0
      %5996 = vmatprep.subr.mxu0 0.0
      %5997 = vmatpush1.xpose.msra.mxu0 0.0
      %5998 = vmatprep.subr.mxu0 0.0
      %5999 = vmatpush1.xpose.msra.mxu0 0.0
      %6000 = vmatprep.subr.mxu0 0.0
      %6001 = vmatpush1.xpose.msra.mxu0 0.0
      %6002 = vmatprep.subr.mxu0 0.0
      %6003 = vmatpush1.xpose.msra.mxu0 0.0
      %6004 = vmatprep.subr.mxu0 0.0
      %6005 = vmatpush1.xpose.msra.mxu0 0.0
      %6006 = vmatprep.subr.mxu0 0.0
      %6007 = vmatpush1.xpose.msra.mxu0 0.0
      %6008 = vmatprep.subr.mxu0 0.0
      %6009 = vmatpush1.xpose.msra.mxu0 0.0
      %6010 = vmatprep.subr.mxu0 0.0
      %6011 = vmatpush1.xpose.msra.mxu0 0.0
      %6012 = vmatprep.subr.mxu0 0.0
      %6013 = vmatpush1.xpose.msra.mxu0 0.0
      %6014 = vmatprep.subr.mxu0 0.0
      %6015 = vmatpush1.xpose.msra.mxu0 0.0
      %6016 = vmatprep.subr.mxu0 0.0
      %6017 = vmatpush1.xpose.msra.mxu0 0.0
      %6018 = vmatprep.subr.mxu0 0.0
      %6019 = vmatpush1.xpose.msra.mxu0 0.0
      %6020 = vmatprep.subr.mxu0 0.0
      %6021 = vmatpush1.xpose.msra.mxu0 0.0
      %6022 = vmatprep.subr.mxu0 0.0
      %6023 = vmatpush1.xpose.msra.mxu0 0.0
      %6024 = vmatprep.subr.mxu0 0.0
      %6025 = vmatpush1.xpose.msra.mxu0 0.0
      %6026 = vmatprep.subr.mxu0 0.0
      %6027 = vmatpush1.xpose.msra.mxu0 0.0
      %6028 = vmatprep.subr.mxu0 0.0
      %6029 = vmatpush1.xpose.msra.mxu0 0.0
      %6030 = vmatprep.subr.mxu0 0.0
      %6031 = vmatpush1.xpose.msra.mxu0 0.0
      %6032 = vmatprep.subr.mxu0 0.0
      %6033 = vmatpush1.xpose.msra.mxu0 0.0
      %6034 = vmatprep.mubr.f32.mxu0 0.0
      %6035 = vmatmul.mubr.f32.gmra.mrb[0].mxu0 %v5965
      %v6036 = vpop.f32.mrb[0].mxu0
      %v6037 = vadd.f32 %v5087, %v6036
      %v6038 = vpop.f32.mrb[0].mxu0
      %6039 = vdwg.mxu0
      %v6041 = vsel %vm1459, %v4467, 0
      %v6044 = vsel %vm1459, %v1227, 0
      %6046 = vmatprep.subr.mxu0 0.0
      %6047 = vmatpush1.xpose.msra.mxu0 %v6044
      %6048 = vmatprep.subr.mxu0 0.0
      %6049 = vmatpush1.xpose.msra.mxu0 0.0
      %6050 = vmatprep.subr.mxu0 0.0
      %6051 = vmatpush1.xpose.msra.mxu0 0.0
      %6052 = vmatprep.subr.mxu0 0.0
      %6053 = vmatpush1.xpose.msra.mxu0 0.0
      %6054 = vmatprep.subr.mxu0 0.0
      %6055 = vmatpush1.xpose.msra.mxu0 0.0
      %6056 = vmatprep.subr.mxu0 0.0
      %6057 = vmatpush1.xpose.msra.mxu0 0.0
      %6058 = vmatprep.subr.mxu0 0.0
      %6059 = vmatpush1.xpose.msra.mxu0 0.0
      %6060 = vmatprep.subr.mxu0 0.0
      %6061 = vmatpush1.xpose.msra.mxu0 0.0
      %6062 = vmatprep.subr.mxu0 0.0
      %6063 = vmatpush1.xpose.msra.mxu0 0.0
      %6064 = vmatprep.subr.mxu0 0.0
      %6065 = vmatpush1.xpose.msra.mxu0 0.0
      %6066 = vmatprep.subr.mxu0 0.0
      %6067 = vmatpush1.xpose.msra.mxu0 0.0
      %6068 = vmatprep.subr.mxu0 0.0
      %6069 = vmatpush1.xpose.msra.mxu0 0.0
      %6070 = vmatprep.subr.mxu0 0.0
      %6071 = vmatpush1.xpose.msra.mxu0 0.0
      %6072 = vmatprep.subr.mxu0 0.0
      %6073 = vmatpush1.xpose.msra.mxu0 0.0
      %6074 = vmatprep.subr.mxu0 0.0
      %6075 = vmatpush1.xpose.msra.mxu0 0.0
      %6076 = vmatprep.subr.mxu0 0.0
      %6077 = vmatpush1.xpose.msra.mxu0 0.0
      %6078 = vmatprep.subr.mxu0 0.0
      %6079 = vmatpush1.xpose.msra.mxu0 0.0
      %6080 = vmatprep.subr.mxu0 0.0
      %6081 = vmatpush1.xpose.msra.mxu0 0.0
      %6082 = vmatprep.subr.mxu0 0.0
      %6083 = vmatpush1.xpose.msra.mxu0 0.0
      %6084 = vmatprep.subr.mxu0 0.0
      %6085 = vmatpush1.xpose.msra.mxu0 0.0
      %6086 = vmatprep.subr.mxu0 0.0
      %6087 = vmatpush1.xpose.msra.mxu0 0.0
      %6088 = vmatprep.subr.mxu0 0.0
      %6089 = vmatpush1.xpose.msra.mxu0 0.0
      %6090 = vmatprep.subr.mxu0 0.0
      %6091 = vmatpush1.xpose.msra.mxu0 0.0
      %6092 = vmatprep.subr.mxu0 0.0
      %6093 = vmatpush1.xpose.msra.mxu0 0.0
      %6094 = vmatprep.subr.mxu0 0.0
      %6095 = vmatpush1.xpose.msra.mxu0 0.0
      %6096 = vmatprep.subr.mxu0 0.0
      %6097 = vmatpush1.xpose.msra.mxu0 0.0
      %6098 = vmatprep.subr.mxu0 0.0
      %6099 = vmatpush1.xpose.msra.mxu0 0.0
      %6100 = vmatprep.subr.mxu0 0.0
      %6101 = vmatpush1.xpose.msra.mxu0 0.0
      %6102 = vmatprep.subr.mxu0 0.0
      %6103 = vmatpush1.xpose.msra.mxu0 0.0
      %6104 = vmatprep.subr.mxu0 0.0
      %6105 = vmatpush1.xpose.msra.mxu0 0.0
      %6106 = vmatprep.subr.mxu0 0.0
      %6107 = vmatpush1.xpose.msra.mxu0 0.0
      %6108 = vmatprep.subr.mxu0 0.0
      %6109 = vmatpush1.xpose.msra.mxu0 0.0
      %6110 = vmatprep.mubr.f32.mxu0 0.0
      %6111 = vmatmul.mubr.f32.gmra.mrb[0].mxu0 %v6041
      %v6112 = vpop.f32.mrb[0].mxu0
      %v6113 = vadd.f32 %v5091, %v6112
      %v6114 = vpop.f32.mrb[0].mxu0
      %6115 = vdwg.mxu0
      %v6117 = vsel %vm1459, %v4491, 0
      %v6120 = vsel %vm1459, %v1232, 0
      %6122 = vmatprep.subr.mxu0 0.0
      %6123 = vmatpush1.xpose.msra.mxu0 %v6120
      %6124 = vmatprep.subr.mxu0 0.0
      %6125 = vmatpush1.xpose.msra.mxu0 0.0
      %6126 = vmatprep.subr.mxu0 0.0
      %6127 = vmatpush1.xpose.msra.mxu0 0.0
      %6128 = vmatprep.subr.mxu0 0.0
      %6129 = vmatpush1.xpose.msra.mxu0 0.0
      %6130 = vmatprep.subr.mxu0 0.0
      %6131 = vmatpush1.xpose.msra.mxu0 0.0
      %6132 = vmatprep.subr.mxu0 0.0
      %6133 = vmatpush1.xpose.msra.mxu0 0.0
      %6134 = vmatprep.subr.mxu0 0.0
      %6135 = vmatpush1.xpose.msra.mxu0 0.0
      %6136 = vmatprep.subr.mxu0 0.0
      %6137 = vmatpush1.xpose.msra.mxu0 0.0
      %6138 = vmatprep.subr.mxu0 0.0
      %6139 = vmatpush1.xpose.msra.mxu0 0.0
      %6140 = vmatprep.subr.mxu0 0.0
      %6141 = vmatpush1.xpose.msra.mxu0 0.0
      %6142 = vmatprep.subr.mxu0 0.0
      %6143 = vmatpush1.xpose.msra.mxu0 0.0
      %6144 = vmatprep.subr.mxu0 0.0
      %6145 = vmatpush1.xpose.msra.mxu0 0.0
      %6146 = vmatprep.subr.mxu0 0.0
      %6147 = vmatpush1.xpose.msra.mxu0 0.0
      %6148 = vmatprep.subr.mxu0 0.0
      %6149 = vmatpush1.xpose.msra.mxu0 0.0
      %6150 = vmatprep.subr.mxu0 0.0
      %6151 = vmatpush1.xpose.msra.mxu0 0.0
      %6152 = vmatprep.subr.mxu0 0.0
      %6153 = vmatpush1.xpose.msra.mxu0 0.0
      %6154 = vmatprep.subr.mxu0 0.0
      %6155 = vmatpush1.xpose.msra.mxu0 0.0
      %6156 = vmatprep.subr.mxu0 0.0
      %6157 = vmatpush1.xpose.msra.mxu0 0.0
      %6158 = vmatprep.subr.mxu0 0.0
      %6159 = vmatpush1.xpose.msra.mxu0 0.0
      %6160 = vmatprep.subr.mxu0 0.0
      %6161 = vmatpush1.xpose.msra.mxu0 0.0
      %6162 = vmatprep.subr.mxu0 0.0
      %6163 = vmatpush1.xpose.msra.mxu0 0.0
      %6164 = vmatprep.subr.mxu0 0.0
      %6165 = vmatpush1.xpose.msra.mxu0 0.0
      %6166 = vmatprep.subr.mxu0 0.0
      %6167 = vmatpush1.xpose.msra.mxu0 0.0
      %6168 = vmatprep.subr.mxu0 0.0
      %6169 = vmatpush1.xpose.msra.mxu0 0.0
      %6170 = vmatprep.subr.mxu0 0.0
      %6171 = vmatpush1.xpose.msra.mxu0 0.0
      %6172 = vmatprep.subr.mxu0 0.0
      %6173 = vmatpush1.xpose.msra.mxu0 0.0
      %6174 = vmatprep.subr.mxu0 0.0
      %6175 = vmatpush1.xpose.msra.mxu0 0.0
      %6176 = vmatprep.subr.mxu0 0.0
      %6177 = vmatpush1.xpose.msra.mxu0 0.0
      %6178 = vmatprep.subr.mxu0 0.0
      %6179 = vmatpush1.xpose.msra.mxu0 0.0
      %6180 = vmatprep.subr.mxu0 0.0
      %6181 = vmatpush1.xpose.msra.mxu0 0.0
      %6182 = vmatprep.subr.mxu0 0.0
      %6183 = vmatpush1.xpose.msra.mxu0 0.0
      %6184 = vmatprep.subr.mxu0 0.0
      %6185 = vmatpush1.xpose.msra.mxu0 0.0
      %6186 = vmatprep.mubr.f32.mxu0 0.0
      %6187 = vmatmul.mubr.f32.gmra.mrb[0].mxu0 %v6117
      %v6188 = vpop.f32.mrb[0].mxu0
      %v6189 = vadd.f32 %v5095, %v6188
      %v6190 = vpop.f32.mrb[0].mxu0
      %6191 = vdwg.mxu0
      %v6193 = vsel %vm1459, %v4515, 0
      %v6196 = vsel %vm1459, %v1237, 0
      %6198 = vmatprep.subr.mxu0 0.0
      %6199 = vmatpush1.xpose.msra.mxu0 %v6196
      %6200 = vmatprep.subr.mxu0 0.0
      %6201 = vmatpush1.xpose.msra.mxu0 0.0
      %6202 = vmatprep.subr.mxu0 0.0
      %6203 = vmatpush1.xpose.msra.mxu0 0.0
      %6204 = vmatprep.subr.mxu0 0.0
      %6205 = vmatpush1.xpose.msra.mxu0 0.0
      %6206 = vmatprep.subr.mxu0 0.0
      %6207 = vmatpush1.xpose.msra.mxu0 0.0
      %6208 = vmatprep.subr.mxu0 0.0
      %6209 = vmatpush1.xpose.msra.mxu0 0.0
      %6210 = vmatprep.subr.mxu0 0.0
      %6211 = vmatpush1.xpose.msra.mxu0 0.0
      %6212 = vmatprep.subr.mxu0 0.0
      %6213 = vmatpush1.xpose.msra.mxu0 0.0
      %6214 = vmatprep.subr.mxu0 0.0
      %6215 = vmatpush1.xpose.msra.mxu0 0.0
      %6216 = vmatprep.subr.mxu0 0.0
      %6217 = vmatpush1.xpose.msra.mxu0 0.0
      %6218 = vmatprep.subr.mxu0 0.0
      %6219 = vmatpush1.xpose.msra.mxu0 0.0
      %6220 = vmatprep.subr.mxu0 0.0
      %6221 = vmatpush1.xpose.msra.mxu0 0.0
      %6222 = vmatprep.subr.mxu0 0.0
      %6223 = vmatpush1.xpose.msra.mxu0 0.0
      %6224 = vmatprep.subr.mxu0 0.0
      %6225 = vmatpush1.xpose.msra.mxu0 0.0
      %6226 = vmatprep.subr.mxu0 0.0
      %6227 = vmatpush1.xpose.msra.mxu0 0.0
      %6228 = vmatprep.subr.mxu0 0.0
      %6229 = vmatpush1.xpose.msra.mxu0 0.0
      %6230 = vmatprep.subr.mxu0 0.0
      %6231 = vmatpush1.xpose.msra.mxu0 0.0
      %6232 = vmatprep.subr.mxu0 0.0
      %6233 = vmatpush1.xpose.msra.mxu0 0.0
      %6234 = vmatprep.subr.mxu0 0.0
      %6235 = vmatpush1.xpose.msra.mxu0 0.0
      %6236 = vmatprep.subr.mxu0 0.0
      %6237 = vmatpush1.xpose.msra.mxu0 0.0
      %6238 = vmatprep.subr.mxu0 0.0
      %6239 = vmatpush1.xpose.msra.mxu0 0.0
      %6240 = vmatprep.subr.mxu0 0.0
      %6241 = vmatpush1.xpose.msra.mxu0 0.0
      %6242 = vmatprep.subr.mxu0 0.0
      %6243 = vmatpush1.xpose.msra.mxu0 0.0
      %6244 = vmatprep.subr.mxu0 0.0
      %6245 = vmatpush1.xpose.msra.mxu0 0.0
      %6246 = vmatprep.subr.mxu0 0.0
      %6247 = vmatpush1.xpose.msra.mxu0 0.0
      %6248 = vmatprep.subr.mxu0 0.0
      %6249 = vmatpush1.xpose.msra.mxu0 0.0
      %6250 = vmatprep.subr.mxu0 0.0
      %6251 = vmatpush1.xpose.msra.mxu0 0.0
      %6252 = vmatprep.subr.mxu0 0.0
      %6253 = vmatpush1.xpose.msra.mxu0 0.0
      %6254 = vmatprep.subr.mxu0 0.0
      %6255 = vmatpush1.xpose.msra.mxu0 0.0
      %6256 = vmatprep.subr.mxu0 0.0
      %6257 = vmatpush1.xpose.msra.mxu0 0.0
      %6258 = vmatprep.subr.mxu0 0.0
      %6259 = vmatpush1.xpose.msra.mxu0 0.0
      %6260 = vmatprep.subr.mxu0 0.0
      %6261 = vmatpush1.xpose.msra.mxu0 0.0
      %6262 = vmatprep.mubr.f32.mxu0 0.0
      %6263 = vmatmul.mubr.f32.gmra.mrb[0].mxu0 %v6193
      %v6264 = vpop.f32.mrb[0].mxu0
      %v6265 = vadd.f32 %v5099, %v6264
      %v6266 = vpop.f32.mrb[0].mxu0
      %6267 = vdwg.mxu0
      %v6269 = vsel %vm1459, %v4539, 0
      %v6272 = vsel %vm1459, %v1242, 0
      %6274 = vmatprep.subr.mxu0 0.0
      %6275 = vmatpush1.xpose.msra.mxu0 %v6272
      %6276 = vmatprep.subr.mxu0 0.0
      %6277 = vmatpush1.xpose.msra.mxu0 0.0
      %6278 = vmatprep.subr.mxu0 0.0
      %6279 = vmatpush1.xpose.msra.mxu0 0.0
      %6280 = vmatprep.subr.mxu0 0.0
      %6281 = vmatpush1.xpose.msra.mxu0 0.0
      %6282 = vmatprep.subr.mxu0 0.0
      %6283 = vmatpush1.xpose.msra.mxu0 0.0
      %6284 = vmatprep.subr.mxu0 0.0
      %6285 = vmatpush1.xpose.msra.mxu0 0.0
      %6286 = vmatprep.subr.mxu0 0.0
      %6287 = vmatpush1.xpose.msra.mxu0 0.0
      %6288 = vmatprep.subr.mxu0 0.0
      %6289 = vmatpush1.xpose.msra.mxu0 0.0
      %6290 = vmatprep.subr.mxu0 0.0
      %6291 = vmatpush1.xpose.msra.mxu0 0.0
      %6292 = vmatprep.subr.mxu0 0.0
      %6293 = vmatpush1.xpose.msra.mxu0 0.0
      %6294 = vmatprep.subr.mxu0 0.0
      %6295 = vmatpush1.xpose.msra.mxu0 0.0
      %6296 = vmatprep.subr.mxu0 0.0
      %6297 = vmatpush1.xpose.msra.mxu0 0.0
      %6298 = vmatprep.subr.mxu0 0.0
      %6299 = vmatpush1.xpose.msra.mxu0 0.0
      %6300 = vmatprep.subr.mxu0 0.0
      %6301 = vmatpush1.xpose.msra.mxu0 0.0
      %6302 = vmatprep.subr.mxu0 0.0
      %6303 = vmatpush1.xpose.msra.mxu0 0.0
      %6304 = vmatprep.subr.mxu0 0.0
      %6305 = vmatpush1.xpose.msra.mxu0 0.0
      %6306 = vmatprep.subr.mxu0 0.0
      %6307 = vmatpush1.xpose.msra.mxu0 0.0
      %6308 = vmatprep.subr.mxu0 0.0
      %6309 = vmatpush1.xpose.msra.mxu0 0.0
      %6310 = vmatprep.subr.mxu0 0.0
      %6311 = vmatpush1.xpose.msra.mxu0 0.0
      %6312 = vmatprep.subr.mxu0 0.0
      %6313 = vmatpush1.xpose.msra.mxu0 0.0
      %6314 = vmatprep.subr.mxu0 0.0
      %6315 = vmatpush1.xpose.msra.mxu0 0.0
      %6316 = vmatprep.subr.mxu0 0.0
      %6317 = vmatpush1.xpose.msra.mxu0 0.0
      %6318 = vmatprep.subr.mxu0 0.0
      %6319 = vmatpush1.xpose.msra.mxu0 0.0
      %6320 = vmatprep.subr.mxu0 0.0
      %6321 = vmatpush1.xpose.msra.mxu0 0.0
      %6322 = vmatprep.subr.mxu0 0.0
      %6323 = vmatpush1.xpose.msra.mxu0 0.0
      %6324 = vmatprep.subr.mxu0 0.0
      %6325 = vmatpush1.xpose.msra.mxu0 0.0
      %6326 = vmatprep.subr.mxu0 0.0
      %6327 = vmatpush1.xpose.msra.mxu0 0.0
      %6328 = vmatprep.subr.mxu0 0.0
      %6329 = vmatpush1.xpose.msra.mxu0 0.0
      %6330 = vmatprep.subr.mxu0 0.0
      %6331 = vmatpush1.xpose.msra.mxu0 0.0
      %6332 = vmatprep.subr.mxu0 0.0
      %6333 = vmatpush1.xpose.msra.mxu0 0.0
      %6334 = vmatprep.subr.mxu0 0.0
      %6335 = vmatpush1.xpose.msra.mxu0 0.0
      %6336 = vmatprep.subr.mxu0 0.0
      %6337 = vmatpush1.xpose.msra.mxu0 0.0
      %6338 = vmatprep.mubr.f32.mxu0 0.0
      %6339 = vmatmul.mubr.f32.gmra.mrb[0].mxu0 %v6269
      %v6340 = vpop.f32.mrb[0].mxu0
      %v6341 = vadd.f32 %v5103, %v6340
      %v6342 = vpop.f32.mrb[0].mxu0
      %6343 = vdwg.mxu0
      %v6345 = vsel %vm1459, %v4563, 0
      %v6348 = vsel %vm1459, %v1247, 0
      %6350 = vmatprep.subr.mxu0 0.0
      %6351 = vmatpush1.xpose.msra.mxu0 %v6348
      %6352 = vmatprep.subr.mxu0 0.0
      %6353 = vmatpush1.xpose.msra.mxu0 0.0
      %6354 = vmatprep.subr.mxu0 0.0
      %6355 = vmatpush1.xpose.msra.mxu0 0.0
      %6356 = vmatprep.subr.mxu0 0.0
      %6357 = vmatpush1.xpose.msra.mxu0 0.0
      %6358 = vmatprep.subr.mxu0 0.0
      %6359 = vmatpush1.xpose.msra.mxu0 0.0
      %6360 = vmatprep.subr.mxu0 0.0
      %6361 = vmatpush1.xpose.msra.mxu0 0.0
      %6362 = vmatprep.subr.mxu0 0.0
      %6363 = vmatpush1.xpose.msra.mxu0 0.0
      %6364 = vmatprep.subr.mxu0 0.0
      %6365 = vmatpush1.xpose.msra.mxu0 0.0
      %6366 = vmatprep.subr.mxu0 0.0
      %6367 = vmatpush1.xpose.msra.mxu0 0.0
      %6368 = vmatprep.subr.mxu0 0.0
      %6369 = vmatpush1.xpose.msra.mxu0 0.0
      %6370 = vmatprep.subr.mxu0 0.0
      %6371 = vmatpush1.xpose.msra.mxu0 0.0
      %6372 = vmatprep.subr.mxu0 0.0
      %6373 = vmatpush1.xpose.msra.mxu0 0.0
      %6374 = vmatprep.subr.mxu0 0.0
      %6375 = vmatpush1.xpose.msra.mxu0 0.0
      %6376 = vmatprep.subr.mxu0 0.0
      %6377 = vmatpush1.xpose.msra.mxu0 0.0
      %6378 = vmatprep.subr.mxu0 0.0
      %6379 = vmatpush1.xpose.msra.mxu0 0.0
      %6380 = vmatprep.subr.mxu0 0.0
      %6381 = vmatpush1.xpose.msra.mxu0 0.0
      %6382 = vmatprep.subr.mxu0 0.0
      %6383 = vmatpush1.xpose.msra.mxu0 0.0
      %6384 = vmatprep.subr.mxu0 0.0
      %6385 = vmatpush1.xpose.msra.mxu0 0.0
      %6386 = vmatprep.subr.mxu0 0.0
      %6387 = vmatpush1.xpose.msra.mxu0 0.0
      %6388 = vmatprep.subr.mxu0 0.0
      %6389 = vmatpush1.xpose.msra.mxu0 0.0
      %6390 = vmatprep.subr.mxu0 0.0
      %6391 = vmatpush1.xpose.msra.mxu0 0.0
      %6392 = vmatprep.subr.mxu0 0.0
      %6393 = vmatpush1.xpose.msra.mxu0 0.0
      %6394 = vmatprep.subr.mxu0 0.0
      %6395 = vmatpush1.xpose.msra.mxu0 0.0
      %6396 = vmatprep.subr.mxu0 0.0
      %6397 = vmatpush1.xpose.msra.mxu0 0.0
      %6398 = vmatprep.subr.mxu0 0.0
      %6399 = vmatpush1.xpose.msra.mxu0 0.0
      %6400 = vmatprep.subr.mxu0 0.0
      %6401 = vmatpush1.xpose.msra.mxu0 0.0
      %6402 = vmatprep.subr.mxu0 0.0
      %6403 = vmatpush1.xpose.msra.mxu0 0.0
      %6404 = vmatprep.subr.mxu0 0.0
      %6405 = vmatpush1.xpose.msra.mxu0 0.0
      %6406 = vmatprep.subr.mxu0 0.0
      %6407 = vmatpush1.xpose.msra.mxu0 0.0
      %6408 = vmatprep.subr.mxu0 0.0
      %6409 = vmatpush1.xpose.msra.mxu0 0.0
      %6410 = vmatprep.subr.mxu0 0.0
      %6411 = vmatpush1.xpose.msra.mxu0 0.0
      %6412 = vmatprep.subr.mxu0 0.0
      %6413 = vmatpush1.xpose.msra.mxu0 0.0
      %6414 = vmatprep.mubr.f32.mxu0 0.0
      %6415 = vmatmul.mubr.f32.gmra.mrb[0].mxu0 %v6345
      %v6416 = vpop.f32.mrb[0].mxu0
      %v6417 = vadd.f32 %v5107, %v6416
      %v6418 = vpop.f32.mrb[0].mxu0
      %6419 = vdwg.mxu0
      %v6421 = vsel %vm1459, %v4587, 0
      %v6424 = vsel %vm1459, %v1252, 0
      %6426 = vmatprep.subr.mxu0 0.0
      %6427 = vmatpush1.xpose.msra.mxu0 %v6424
      %6428 = vmatprep.subr.mxu0 0.0
      %6429 = vmatpush1.xpose.msra.mxu0 0.0
      %6430 = vmatprep.subr.mxu0 0.0
      %6431 = vmatpush1.xpose.msra.mxu0 0.0
      %6432 = vmatprep.subr.mxu0 0.0
      %6433 = vmatpush1.xpose.msra.mxu0 0.0
      %6434 = vmatprep.subr.mxu0 0.0
      %6435 = vmatpush1.xpose.msra.mxu0 0.0
      %6436 = vmatprep.subr.mxu0 0.0
      %6437 = vmatpush1.xpose.msra.mxu0 0.0
      %6438 = vmatprep.subr.mxu0 0.0
      %6439 = vmatpush1.xpose.msra.mxu0 0.0
      %6440 = vmatprep.subr.mxu0 0.0
      %6441 = vmatpush1.xpose.msra.mxu0 0.0
      %6442 = vmatprep.subr.mxu0 0.0
      %6443 = vmatpush1.xpose.msra.mxu0 0.0
      %6444 = vmatprep.subr.mxu0 0.0
      %6445 = vmatpush1.xpose.msra.mxu0 0.0
      %6446 = vmatprep.subr.mxu0 0.0
      %6447 = vmatpush1.xpose.msra.mxu0 0.0
      %6448 = vmatprep.subr.mxu0 0.0
      %6449 = vmatpush1.xpose.msra.mxu0 0.0
      %6450 = vmatprep.subr.mxu0 0.0
      %6451 = vmatpush1.xpose.msra.mxu0 0.0
      %6452 = vmatprep.subr.mxu0 0.0
      %6453 = vmatpush1.xpose.msra.mxu0 0.0
      %6454 = vmatprep.subr.mxu0 0.0
      %6455 = vmatpush1.xpose.msra.mxu0 0.0
      %6456 = vmatprep.subr.mxu0 0.0
      %6457 = vmatpush1.xpose.msra.mxu0 0.0
      %6458 = vmatprep.subr.mxu0 0.0
      %6459 = vmatpush1.xpose.msra.mxu0 0.0
      %6460 = vmatprep.subr.mxu0 0.0
      %6461 = vmatpush1.xpose.msra.mxu0 0.0
      %6462 = vmatprep.subr.mxu0 0.0
      %6463 = vmatpush1.xpose.msra.mxu0 0.0
      %6464 = vmatprep.subr.mxu0 0.0
      %6465 = vmatpush1.xpose.msra.mxu0 0.0
      %6466 = vmatprep.subr.mxu0 0.0
      %6467 = vmatpush1.xpose.msra.mxu0 0.0
      %6468 = vmatprep.subr.mxu0 0.0
      %6469 = vmatpush1.xpose.msra.mxu0 0.0
      %6470 = vmatprep.subr.mxu0 0.0
      %6471 = vmatpush1.xpose.msra.mxu0 0.0
      %6472 = vmatprep.subr.mxu0 0.0
      %6473 = vmatpush1.xpose.msra.mxu0 0.0
      %6474 = vmatprep.subr.mxu0 0.0
      %6475 = vmatpush1.xpose.msra.mxu0 0.0
      %6476 = vmatprep.subr.mxu0 0.0
      %6477 = vmatpush1.xpose.msra.mxu0 0.0
      %6478 = vmatprep.subr.mxu0 0.0
      %6479 = vmatpush1.xpose.msra.mxu0 0.0
      %6480 = vmatprep.subr.mxu0 0.0
      %6481 = vmatpush1.xpose.msra.mxu0 0.0
      %6482 = vmatprep.subr.mxu0 0.0
      %6483 = vmatpush1.xpose.msra.mxu0 0.0
      %6484 = vmatprep.subr.mxu0 0.0
      %6485 = vmatpush1.xpose.msra.mxu0 0.0
      %6486 = vmatprep.subr.mxu0 0.0
      %6487 = vmatpush1.xpose.msra.mxu0 0.0
      %6488 = vmatprep.subr.mxu0 0.0
      %6489 = vmatpush1.xpose.msra.mxu0 0.0
      %6490 = vmatprep.mubr.f32.mxu0 0.0
      %6491 = vmatmul.mubr.f32.gmra.mrb[0].mxu0 %v6421
      %v6492 = vpop.f32.mrb[0].mxu0
      %v6493 = vadd.f32 %v5111, %v6492
      %v6494 = vpop.f32.mrb[0].mxu0
      %6495 = vdwg.mxu0
      %v6497 = vsel %vm1459, %v4611, 0
      %v6500 = vsel %vm1459, %v1257, 0
      %6502 = vmatprep.subr.mxu0 0.0
      %6503 = vmatpush1.xpose.msra.mxu0 %v6500
      %6504 = vmatprep.subr.mxu0 0.0
      %6505 = vmatpush1.xpose.msra.mxu0 0.0
      %6506 = vmatprep.subr.mxu0 0.0
      %6507 = vmatpush1.xpose.msra.mxu0 0.0
      %6508 = vmatprep.subr.mxu0 0.0
      %6509 = vmatpush1.xpose.msra.mxu0 0.0
      %6510 = vmatprep.subr.mxu0 0.0
      %6511 = vmatpush1.xpose.msra.mxu0 0.0
      %6512 = vmatprep.subr.mxu0 0.0
      %6513 = vmatpush1.xpose.msra.mxu0 0.0
      %6514 = vmatprep.subr.mxu0 0.0
      %6515 = vmatpush1.xpose.msra.mxu0 0.0
      %6516 = vmatprep.subr.mxu0 0.0
      %6517 = vmatpush1.xpose.msra.mxu0 0.0
      %6518 = vmatprep.subr.mxu0 0.0
      %6519 = vmatpush1.xpose.msra.mxu0 0.0
      %6520 = vmatprep.subr.mxu0 0.0
      %6521 = vmatpush1.xpose.msra.mxu0 0.0
      %6522 = vmatprep.subr.mxu0 0.0
      %6523 = vmatpush1.xpose.msra.mxu0 0.0
      %6524 = vmatprep.subr.mxu0 0.0
      %6525 = vmatpush1.xpose.msra.mxu0 0.0
      %6526 = vmatprep.subr.mxu0 0.0
      %6527 = vmatpush1.xpose.msra.mxu0 0.0
      %6528 = vmatprep.subr.mxu0 0.0
      %6529 = vmatpush1.xpose.msra.mxu0 0.0
      %6530 = vmatprep.subr.mxu0 0.0
      %6531 = vmatpush1.xpose.msra.mxu0 0.0
      %6532 = vmatprep.subr.mxu0 0.0
      %6533 = vmatpush1.xpose.msra.mxu0 0.0
      %6534 = vmatprep.subr.mxu0 0.0
      %6535 = vmatpush1.xpose.msra.mxu0 0.0
      %6536 = vmatprep.subr.mxu0 0.0
      %6537 = vmatpush1.xpose.msra.mxu0 0.0
      %6538 = vmatprep.subr.mxu0 0.0
      %6539 = vmatpush1.xpose.msra.mxu0 0.0
      %6540 = vmatprep.subr.mxu0 0.0
      %6541 = vmatpush1.xpose.msra.mxu0 0.0
      %6542 = vmatprep.subr.mxu0 0.0
      %6543 = vmatpush1.xpose.msra.mxu0 0.0
      %6544 = vmatprep.subr.mxu0 0.0
      %6545 = vmatpush1.xpose.msra.mxu0 0.0
      %6546 = vmatprep.subr.mxu0 0.0
      %6547 = vmatpush1.xpose.msra.mxu0 0.0
      %6548 = vmatprep.subr.mxu0 0.0
      %6549 = vmatpush1.xpose.msra.mxu0 0.0
      %6550 = vmatprep.subr.mxu0 0.0
      %6551 = vmatpush1.xpose.msra.mxu0 0.0
      %6552 = vmatprep.subr.mxu0 0.0
      %6553 = vmatpush1.xpose.msra.mxu0 0.0
      %6554 = vmatprep.subr.mxu0 0.0
      %6555 = vmatpush1.xpose.msra.mxu0 0.0
      %6556 = vmatprep.subr.mxu0 0.0
      %6557 = vmatpush1.xpose.msra.mxu0 0.0
      %6558 = vmatprep.subr.mxu0 0.0
      %6559 = vmatpush1.xpose.msra.mxu0 0.0
      %6560 = vmatprep.subr.mxu0 0.0
      %6561 = vmatpush1.xpose.msra.mxu0 0.0
      %6562 = vmatprep.subr.mxu0 0.0
      %6563 = vmatpush1.xpose.msra.mxu0 0.0
      %6564 = vmatprep.subr.mxu0 0.0
      %6565 = vmatpush1.xpose.msra.mxu0 0.0
      %6566 = vmatprep.mubr.f32.mxu0 0.0
      %6567 = vmatmul.mubr.f32.gmra.mrb[0].mxu0 %v6497
      %v6568 = vpop.f32.mrb[0].mxu0
      %v6569 = vadd.f32 %v5115, %v6568
      %v6570 = vpop.f32.mrb[0].mxu0
      %6571 = vdwg.mxu0
      %v6573 = vsel %vm1459, %v4635, 0
      %v6576 = vsel %vm1459, %v1262, 0
      %6578 = vmatprep.subr.mxu0 0.0
      %6579 = vmatpush1.xpose.msra.mxu0 %v6576
      %6580 = vmatprep.subr.mxu0 0.0
      %6581 = vmatpush1.xpose.msra.mxu0 0.0
      %6582 = vmatprep.subr.mxu0 0.0
      %6583 = vmatpush1.xpose.msra.mxu0 0.0
      %6584 = vmatprep.subr.mxu0 0.0
      %6585 = vmatpush1.xpose.msra.mxu0 0.0
      %6586 = vmatprep.subr.mxu0 0.0
      %6587 = vmatpush1.xpose.msra.mxu0 0.0
      %6588 = vmatprep.subr.mxu0 0.0
      %6589 = vmatpush1.xpose.msra.mxu0 0.0
      %6590 = vmatprep.subr.mxu0 0.0
      %6591 = vmatpush1.xpose.msra.mxu0 0.0
      %6592 = vmatprep.subr.mxu0 0.0
      %6593 = vmatpush1.xpose.msra.mxu0 0.0
      %6594 = vmatprep.subr.mxu0 0.0
      %6595 = vmatpush1.xpose.msra.mxu0 0.0
      %6596 = vmatprep.subr.mxu0 0.0
      %6597 = vmatpush1.xpose.msra.mxu0 0.0
      %6598 = vmatprep.subr.mxu0 0.0
      %6599 = vmatpush1.xpose.msra.mxu0 0.0
      %6600 = vmatprep.subr.mxu0 0.0
      %6601 = vmatpush1.xpose.msra.mxu0 0.0
      %6602 = vmatprep.subr.mxu0 0.0
      %6603 = vmatpush1.xpose.msra.mxu0 0.0
      %6604 = vmatprep.subr.mxu0 0.0
      %6605 = vmatpush1.xpose.msra.mxu0 0.0
      %6606 = vmatprep.subr.mxu0 0.0
      %6607 = vmatpush1.xpose.msra.mxu0 0.0
      %6608 = vmatprep.subr.mxu0 0.0
      %6609 = vmatpush1.xpose.msra.mxu0 0.0
      %6610 = vmatprep.subr.mxu0 0.0
      %6611 = vmatpush1.xpose.msra.mxu0 0.0
      %6612 = vmatprep.subr.mxu0 0.0
      %6613 = vmatpush1.xpose.msra.mxu0 0.0
      %6614 = vmatprep.subr.mxu0 0.0
      %6615 = vmatpush1.xpose.msra.mxu0 0.0
      %6616 = vmatprep.subr.mxu0 0.0
      %6617 = vmatpush1.xpose.msra.mxu0 0.0
      %6618 = vmatprep.subr.mxu0 0.0
      %6619 = vmatpush1.xpose.msra.mxu0 0.0
      %6620 = vmatprep.subr.mxu0 0.0
      %6621 = vmatpush1.xpose.msra.mxu0 0.0
      %6622 = vmatprep.subr.mxu0 0.0
      %6623 = vmatpush1.xpose.msra.mxu0 0.0
      %6624 = vmatprep.subr.mxu0 0.0
      %6625 = vmatpush1.xpose.msra.mxu0 0.0
      %6626 = vmatprep.subr.mxu0 0.0
      %6627 = vmatpush1.xpose.msra.mxu0 0.0
      %6628 = vmatprep.subr.mxu0 0.0
      %6629 = vmatpush1.xpose.msra.mxu0 0.0
      %6630 = vmatprep.subr.mxu0 0.0
      %6631 = vmatpush1.xpose.msra.mxu0 0.0
      %6632 = vmatprep.subr.mxu0 0.0
      %6633 = vmatpush1.xpose.msra.mxu0 0.0
      %6634 = vmatprep.subr.mxu0 0.0
      %6635 = vmatpush1.xpose.msra.mxu0 0.0
      %6636 = vmatprep.subr.mxu0 0.0
      %6637 = vmatpush1.xpose.msra.mxu0 0.0
      %6638 = vmatprep.subr.mxu0 0.0
      %6639 = vmatpush1.xpose.msra.mxu0 0.0
      %6640 = vmatprep.subr.mxu0 0.0
      %6641 = vmatpush1.xpose.msra.mxu0 0.0
      %6642 = vmatprep.mubr.f32.mxu0 0.0
      %6643 = vmatmul.mubr.f32.gmra.mrb[0].mxu0 %v6573
      %v6644 = vpop.f32.mrb[0].mxu0
      %v6645 = vadd.f32 %v5119, %v6644
      %v6646 = vpop.f32.mrb[0].mxu0
      %6647 = vdwg.mxu0
      %v6649 = vsel %vm1459, %v4659, 0
      %v6652 = vsel %vm1459, %v1267, 0
      %6654 = vmatprep.subr.mxu0 0.0
      %6655 = vmatpush1.xpose.msra.mxu0 %v6652
      %6656 = vmatprep.subr.mxu0 0.0
      %6657 = vmatpush1.xpose.msra.mxu0 0.0
      %6658 = vmatprep.subr.mxu0 0.0
      %6659 = vmatpush1.xpose.msra.mxu0 0.0
      %6660 = vmatprep.subr.mxu0 0.0
      %6661 = vmatpush1.xpose.msra.mxu0 0.0
      %6662 = vmatprep.subr.mxu0 0.0
      %6663 = vmatpush1.xpose.msra.mxu0 0.0
      %6664 = vmatprep.subr.mxu0 0.0
      %6665 = vmatpush1.xpose.msra.mxu0 0.0
      %6666 = vmatprep.subr.mxu0 0.0
      %6667 = vmatpush1.xpose.msra.mxu0 0.0
      %6668 = vmatprep.subr.mxu0 0.0
      %6669 = vmatpush1.xpose.msra.mxu0 0.0
      %6670 = vmatprep.subr.mxu0 0.0
      %6671 = vmatpush1.xpose.msra.mxu0 0.0
      %6672 = vmatprep.subr.mxu0 0.0
      %6673 = vmatpush1.xpose.msra.mxu0 0.0
      %6674 = vmatprep.subr.mxu0 0.0
      %6675 = vmatpush1.xpose.msra.mxu0 0.0
      %6676 = vmatprep.subr.mxu0 0.0
      %6677 = vmatpush1.xpose.msra.mxu0 0.0
      %6678 = vmatprep.subr.mxu0 0.0
      %6679 = vmatpush1.xpose.msra.mxu0 0.0
      %6680 = vmatprep.subr.mxu0 0.0
      %6681 = vmatpush1.xpose.msra.mxu0 0.0
      %6682 = vmatprep.subr.mxu0 0.0
      %6683 = vmatpush1.xpose.msra.mxu0 0.0
      %6684 = vmatprep.subr.mxu0 0.0
      %6685 = vmatpush1.xpose.msra.mxu0 0.0
      %6686 = vmatprep.subr.mxu0 0.0
      %6687 = vmatpush1.xpose.msra.mxu0 0.0
      %6688 = vmatprep.subr.mxu0 0.0
      %6689 = vmatpush1.xpose.msra.mxu0 0.0
      %6690 = vmatprep.subr.mxu0 0.0
      %6691 = vmatpush1.xpose.msra.mxu0 0.0
      %6692 = vmatprep.subr.mxu0 0.0
      %6693 = vmatpush1.xpose.msra.mxu0 0.0
      %6694 = vmatprep.subr.mxu0 0.0
      %6695 = vmatpush1.xpose.msra.mxu0 0.0
      %6696 = vmatprep.subr.mxu0 0.0
      %6697 = vmatpush1.xpose.msra.mxu0 0.0
      %6698 = vmatprep.subr.mxu0 0.0
      %6699 = vmatpush1.xpose.msra.mxu0 0.0
      %6700 = vmatprep.subr.mxu0 0.0
      %6701 = vmatpush1.xpose.msra.mxu0 0.0
      %6702 = vmatprep.subr.mxu0 0.0
      %6703 = vmatpush1.xpose.msra.mxu0 0.0
      %6704 = vmatprep.subr.mxu0 0.0
      %6705 = vmatpush1.xpose.msra.mxu0 0.0
      %6706 = vmatprep.subr.mxu0 0.0
      %6707 = vmatpush1.xpose.msra.mxu0 0.0
      %6708 = vmatprep.subr.mxu0 0.0
      %6709 = vmatpush1.xpose.msra.mxu0 0.0
      %6710 = vmatprep.subr.mxu0 0.0
      %6711 = vmatpush1.xpose.msra.mxu0 0.0
      %6712 = vmatprep.subr.mxu0 0.0
      %6713 = vmatpush1.xpose.msra.mxu0 0.0
      %6714 = vmatprep.subr.mxu0 0.0
      %6715 = vmatpush1.xpose.msra.mxu0 0.0
      %6716 = vmatprep.subr.mxu0 0.0
      %6717 = vmatpush1.xpose.msra.mxu0 0.0
      %6718 = vmatprep.mubr.f32.mxu0 0.0
      %6719 = vmatmul.mubr.f32.gmra.mrb[0].mxu0 %v6649
      %v6720 = vpop.f32.mrb[0].mxu0
      %v6721 = vadd.f32 %v5123, %v6720
      %v6722 = vpop.f32.mrb[0].mxu0
      %6723 = vdwg.mxu0
      %v6725 = vsel %vm1459, %v4683, 0
      %v6728 = vsel %vm1459, %v1272, 0
      %6730 = vmatprep.subr.mxu0 0.0
      %6731 = vmatpush1.xpose.msra.mxu0 %v6728
      %6732 = vmatprep.subr.mxu0 0.0
      %6733 = vmatpush1.xpose.msra.mxu0 0.0
      %6734 = vmatprep.subr.mxu0 0.0
      %6735 = vmatpush1.xpose.msra.mxu0 0.0
      %6736 = vmatprep.subr.mxu0 0.0
      %6737 = vmatpush1.xpose.msra.mxu0 0.0
      %6738 = vmatprep.subr.mxu0 0.0
      %6739 = vmatpush1.xpose.msra.mxu0 0.0
      %6740 = vmatprep.subr.mxu0 0.0
      %6741 = vmatpush1.xpose.msra.mxu0 0.0
      %6742 = vmatprep.subr.mxu0 0.0
      %6743 = vmatpush1.xpose.msra.mxu0 0.0
      %6744 = vmatprep.subr.mxu0 0.0
      %6745 = vmatpush1.xpose.msra.mxu0 0.0
      %6746 = vmatprep.subr.mxu0 0.0
      %6747 = vmatpush1.xpose.msra.mxu0 0.0
      %6748 = vmatprep.subr.mxu0 0.0
      %6749 = vmatpush1.xpose.msra.mxu0 0.0
      %6750 = vmatprep.subr.mxu0 0.0
      %6751 = vmatpush1.xpose.msra.mxu0 0.0
      %6752 = vmatprep.subr.mxu0 0.0
      %6753 = vmatpush1.xpose.msra.mxu0 0.0
      %6754 = vmatprep.subr.mxu0 0.0
      %6755 = vmatpush1.xpose.msra.mxu0 0.0
      %6756 = vmatprep.subr.mxu0 0.0
      %6757 = vmatpush1.xpose.msra.mxu0 0.0
      %6758 = vmatprep.subr.mxu0 0.0
      %6759 = vmatpush1.xpose.msra.mxu0 0.0
      %6760 = vmatprep.subr.mxu0 0.0
      %6761 = vmatpush1.xpose.msra.mxu0 0.0
      %6762 = vmatprep.subr.mxu0 0.0
      %6763 = vmatpush1.xpose.msra.mxu0 0.0
      %6764 = vmatprep.subr.mxu0 0.0
      %6765 = vmatpush1.xpose.msra.mxu0 0.0
      %6766 = vmatprep.subr.mxu0 0.0
      %6767 = vmatpush1.xpose.msra.mxu0 0.0
      %6768 = vmatprep.subr.mxu0 0.0
      %6769 = vmatpush1.xpose.msra.mxu0 0.0
      %6770 = vmatprep.subr.mxu0 0.0
      %6771 = vmatpush1.xpose.msra.mxu0 0.0
      %6772 = vmatprep.subr.mxu0 0.0
      %6773 = vmatpush1.xpose.msra.mxu0 0.0
      %6774 = vmatprep.subr.mxu0 0.0
      %6775 = vmatpush1.xpose.msra.mxu0 0.0
      %6776 = vmatprep.subr.mxu0 0.0
      %6777 = vmatpush1.xpose.msra.mxu0 0.0
      %6778 = vmatprep.subr.mxu0 0.0
      %6779 = vmatpush1.xpose.msra.mxu0 0.0
      %6780 = vmatprep.subr.mxu0 0.0
      %6781 = vmatpush1.xpose.msra.mxu0 0.0
      %6782 = vmatprep.subr.mxu0 0.0
      %6783 = vmatpush1.xpose.msra.mxu0 0.0
      %6784 = vmatprep.subr.mxu0 0.0
      %6785 = vmatpush1.xpose.msra.mxu0 0.0
      %6786 = vmatprep.subr.mxu0 0.0
      %6787 = vmatpush1.xpose.msra.mxu0 0.0
      %6788 = vmatprep.subr.mxu0 0.0
      %6789 = vmatpush1.xpose.msra.mxu0 0.0
      %6790 = vmatprep.subr.mxu0 0.0
      %6791 = vmatpush1.xpose.msra.mxu0 0.0
      %6792 = vmatprep.subr.mxu0 0.0
      %6793 = vmatpush1.xpose.msra.mxu0 0.0
      %6794 = vmatprep.mubr.f32.mxu0 0.0
      %6795 = vmatmul.mubr.f32.gmra.mrb[0].mxu0 %v6725
      %v6796 = vpop.f32.mrb[0].mxu0
      %v6797 = vadd.f32 %v5127, %v6796
      %v6798 = vpop.f32.mrb[0].mxu0
      %6799 = vdwg.mxu0
      %v6801 = vsel %vm1459, %v4707, 0
      %v6804 = vsel %vm1459, %v1277, 0
      %6806 = vmatprep.subr.mxu0 0.0
      %6807 = vmatpush1.xpose.msra.mxu0 %v6804
      %6808 = vmatprep.subr.mxu0 0.0
      %6809 = vmatpush1.xpose.msra.mxu0 0.0
      %6810 = vmatprep.subr.mxu0 0.0
      %6811 = vmatpush1.xpose.msra.mxu0 0.0
      %6812 = vmatprep.subr.mxu0 0.0
      %6813 = vmatpush1.xpose.msra.mxu0 0.0
      %6814 = vmatprep.subr.mxu0 0.0
      %6815 = vmatpush1.xpose.msra.mxu0 0.0
      %6816 = vmatprep.subr.mxu0 0.0
      %6817 = vmatpush1.xpose.msra.mxu0 0.0
      %6818 = vmatprep.subr.mxu0 0.0
      %6819 = vmatpush1.xpose.msra.mxu0 0.0
      %6820 = vmatprep.subr.mxu0 0.0
      %6821 = vmatpush1.xpose.msra.mxu0 0.0
      %6822 = vmatprep.subr.mxu0 0.0
      %6823 = vmatpush1.xpose.msra.mxu0 0.0
      %6824 = vmatprep.subr.mxu0 0.0
      %6825 = vmatpush1.xpose.msra.mxu0 0.0
      %6826 = vmatprep.subr.mxu0 0.0
      %6827 = vmatpush1.xpose.msra.mxu0 0.0
      %6828 = vmatprep.subr.mxu0 0.0
      %6829 = vmatpush1.xpose.msra.mxu0 0.0
      %6830 = vmatprep.subr.mxu0 0.0
      %6831 = vmatpush1.xpose.msra.mxu0 0.0
      %6832 = vmatprep.subr.mxu0 0.0
      %6833 = vmatpush1.xpose.msra.mxu0 0.0
      %6834 = vmatprep.subr.mxu0 0.0
      %6835 = vmatpush1.xpose.msra.mxu0 0.0
      %6836 = vmatprep.subr.mxu0 0.0
      %6837 = vmatpush1.xpose.msra.mxu0 0.0
      %6838 = vmatprep.subr.mxu0 0.0
      %6839 = vmatpush1.xpose.msra.mxu0 0.0
      %6840 = vmatprep.subr.mxu0 0.0
      %6841 = vmatpush1.xpose.msra.mxu0 0.0
      %6842 = vmatprep.subr.mxu0 0.0
      %6843 = vmatpush1.xpose.msra.mxu0 0.0
      %6844 = vmatprep.subr.mxu0 0.0
      %6845 = vmatpush1.xpose.msra.mxu0 0.0
      %6846 = vmatprep.subr.mxu0 0.0
      %6847 = vmatpush1.xpose.msra.mxu0 0.0
      %6848 = vmatprep.subr.mxu0 0.0
      %6849 = vmatpush1.xpose.msra.mxu0 0.0
      %6850 = vmatprep.subr.mxu0 0.0
      %6851 = vmatpush1.xpose.msra.mxu0 0.0
      %6852 = vmatprep.subr.mxu0 0.0
      %6853 = vmatpush1.xpose.msra.mxu0 0.0
      %6854 = vmatprep.subr.mxu0 0.0
      %6855 = vmatpush1.xpose.msra.mxu0 0.0
      %6856 = vmatprep.subr.mxu0 0.0
      %6857 = vmatpush1.xpose.msra.mxu0 0.0
      %6858 = vmatprep.subr.mxu0 0.0
      %6859 = vmatpush1.xpose.msra.mxu0 0.0
      %6860 = vmatprep.subr.mxu0 0.0
      %6861 = vmatpush1.xpose.msra.mxu0 0.0
      %6862 = vmatprep.subr.mxu0 0.0
      %6863 = vmatpush1.xpose.msra.mxu0 0.0
      %6864 = vmatprep.subr.mxu0 0.0
      %6865 = vmatpush1.xpose.msra.mxu0 0.0
      %6866 = vmatprep.subr.mxu0 0.0
      %6867 = vmatpush1.xpose.msra.mxu0 0.0
      %6868 = vmatprep.subr.mxu0 0.0
      %6869 = vmatpush1.xpose.msra.mxu0 0.0
      %6870 = vmatprep.mubr.f32.mxu0 0.0
      %6871 = vmatmul.mubr.f32.gmra.mrb[0].mxu0 %v6801
      %v6872 = vpop.f32.mrb[0].mxu0
      %v6873 = vadd.f32 %v5131, %v6872
      %v6874 = vpop.f32.mrb[0].mxu0
      %6875 = vdwg.mxu0
      %v6877 = vsel %vm1459, %v4731, 0
      %v6880 = vsel %vm1459, %v1282, 0
      %6882 = vmatprep.subr.mxu0 0.0
      %6883 = vmatpush1.xpose.msra.mxu0 %v6880
      %6884 = vmatprep.subr.mxu0 0.0
      %6885 = vmatpush1.xpose.msra.mxu0 0.0
      %6886 = vmatprep.subr.mxu0 0.0
      %6887 = vmatpush1.xpose.msra.mxu0 0.0
      %6888 = vmatprep.subr.mxu0 0.0
      %6889 = vmatpush1.xpose.msra.mxu0 0.0
      %6890 = vmatprep.subr.mxu0 0.0
      %6891 = vmatpush1.xpose.msra.mxu0 0.0
      %6892 = vmatprep.subr.mxu0 0.0
      %6893 = vmatpush1.xpose.msra.mxu0 0.0
      %6894 = vmatprep.subr.mxu0 0.0
      %6895 = vmatpush1.xpose.msra.mxu0 0.0
      %6896 = vmatprep.subr.mxu0 0.0
      %6897 = vmatpush1.xpose.msra.mxu0 0.0
      %6898 = vmatprep.subr.mxu0 0.0
      %6899 = vmatpush1.xpose.msra.mxu0 0.0
      %6900 = vmatprep.subr.mxu0 0.0
      %6901 = vmatpush1.xpose.msra.mxu0 0.0
      %6902 = vmatprep.subr.mxu0 0.0
      %6903 = vmatpush1.xpose.msra.mxu0 0.0
      %6904 = vmatprep.subr.mxu0 0.0
      %6905 = vmatpush1.xpose.msra.mxu0 0.0
      %6906 = vmatprep.subr.mxu0 0.0
      %6907 = vmatpush1.xpose.msra.mxu0 0.0
      %6908 = vmatprep.subr.mxu0 0.0
      %6909 = vmatpush1.xpose.msra.mxu0 0.0
      %6910 = vmatprep.subr.mxu0 0.0
      %6911 = vmatpush1.xpose.msra.mxu0 0.0
      %6912 = vmatprep.subr.mxu0 0.0
      %6913 = vmatpush1.xpose.msra.mxu0 0.0
      %6914 = vmatprep.subr.mxu0 0.0
      %6915 = vmatpush1.xpose.msra.mxu0 0.0
      %6916 = vmatprep.subr.mxu0 0.0
      %6917 = vmatpush1.xpose.msra.mxu0 0.0
      %6918 = vmatprep.subr.mxu0 0.0
      %6919 = vmatpush1.xpose.msra.mxu0 0.0
      %6920 = vmatprep.subr.mxu0 0.0
      %6921 = vmatpush1.xpose.msra.mxu0 0.0
      %6922 = vmatprep.subr.mxu0 0.0
      %6923 = vmatpush1.xpose.msra.mxu0 0.0
      %6924 = vmatprep.subr.mxu0 0.0
      %6925 = vmatpush1.xpose.msra.mxu0 0.0
      %6926 = vmatprep.subr.mxu0 0.0
      %6927 = vmatpush1.xpose.msra.mxu0 0.0
      %6928 = vmatprep.subr.mxu0 0.0
      %6929 = vmatpush1.xpose.msra.mxu0 0.0
      %6930 = vmatprep.subr.mxu0 0.0
      %6931 = vmatpush1.xpose.msra.mxu0 0.0
      %6932 = vmatprep.subr.mxu0 0.0
      %6933 = vmatpush1.xpose.msra.mxu0 0.0
      %6934 = vmatprep.subr.mxu0 0.0
      %6935 = vmatpush1.xpose.msra.mxu0 0.0
      %6936 = vmatprep.subr.mxu0 0.0
      %6937 = vmatpush1.xpose.msra.mxu0 0.0
      %6938 = vmatprep.subr.mxu0 0.0
      %6939 = vmatpush1.xpose.msra.mxu0 0.0
      %6940 = vmatprep.subr.mxu0 0.0
      %6941 = vmatpush1.xpose.msra.mxu0 0.0
      %6942 = vmatprep.subr.mxu0 0.0
      %6943 = vmatpush1.xpose.msra.mxu0 0.0
      %6944 = vmatprep.subr.mxu0 0.0
      %6945 = vmatpush1.xpose.msra.mxu0 0.0
      %6946 = vmatprep.mubr.f32.mxu0 0.0
      %6947 = vmatmul.mubr.f32.gmra.mrb[0].mxu0 %v6877
      %v6948 = vpop.f32.mrb[0].mxu0
      %v6949 = vadd.f32 %v5135, %v6948
      %v6950 = vpop.f32.mrb[0].mxu0
      %6951 = vdwg.mxu0
      %v6953 = vsel %vm1459, %v4755, 0
      %v6956 = vsel %vm1459, %v1287, 0
      %6958 = vmatprep.subr.mxu0 0.0
      %6959 = vmatpush1.xpose.msra.mxu0 %v6956
      %6960 = vmatprep.subr.mxu0 0.0
      %6961 = vmatpush1.xpose.msra.mxu0 0.0
      %6962 = vmatprep.subr.mxu0 0.0
      %6963 = vmatpush1.xpose.msra.mxu0 0.0
      %6964 = vmatprep.subr.mxu0 0.0
      %6965 = vmatpush1.xpose.msra.mxu0 0.0
      %6966 = vmatprep.subr.mxu0 0.0
      %6967 = vmatpush1.xpose.msra.mxu0 0.0
      %6968 = vmatprep.subr.mxu0 0.0
      %6969 = vmatpush1.xpose.msra.mxu0 0.0
      %6970 = vmatprep.subr.mxu0 0.0
      %6971 = vmatpush1.xpose.msra.mxu0 0.0
      %6972 = vmatprep.subr.mxu0 0.0
      %6973 = vmatpush1.xpose.msra.mxu0 0.0
      %6974 = vmatprep.subr.mxu0 0.0
      %6975 = vmatpush1.xpose.msra.mxu0 0.0
      %6976 = vmatprep.subr.mxu0 0.0
      %6977 = vmatpush1.xpose.msra.mxu0 0.0
      %6978 = vmatprep.subr.mxu0 0.0
      %6979 = vmatpush1.xpose.msra.mxu0 0.0
      %6980 = vmatprep.subr.mxu0 0.0
      %6981 = vmatpush1.xpose.msra.mxu0 0.0
      %6982 = vmatprep.subr.mxu0 0.0
      %6983 = vmatpush1.xpose.msra.mxu0 0.0
      %6984 = vmatprep.subr.mxu0 0.0
      %6985 = vmatpush1.xpose.msra.mxu0 0.0
      %6986 = vmatprep.subr.mxu0 0.0
      %6987 = vmatpush1.xpose.msra.mxu0 0.0
      %6988 = vmatprep.subr.mxu0 0.0
      %6989 = vmatpush1.xpose.msra.mxu0 0.0
      %6990 = vmatprep.subr.mxu0 0.0
      %6991 = vmatpush1.xpose.msra.mxu0 0.0
      %6992 = vmatprep.subr.mxu0 0.0
      %6993 = vmatpush1.xpose.msra.mxu0 0.0
      %6994 = vmatprep.subr.mxu0 0.0
      %6995 = vmatpush1.xpose.msra.mxu0 0.0
      %6996 = vmatprep.subr.mxu0 0.0
      %6997 = vmatpush1.xpose.msra.mxu0 0.0
      %6998 = vmatprep.subr.mxu0 0.0
      %6999 = vmatpush1.xpose.msra.mxu0 0.0
      %7000 = vmatprep.subr.mxu0 0.0
      %7001 = vmatpush1.xpose.msra.mxu0 0.0
      %7002 = vmatprep.subr.mxu0 0.0
      %7003 = vmatpush1.xpose.msra.mxu0 0.0
      %7004 = vmatprep.subr.mxu0 0.0
      %7005 = vmatpush1.xpose.msra.mxu0 0.0
      %7006 = vmatprep.subr.mxu0 0.0
      %7007 = vmatpush1.xpose.msra.mxu0 0.0
      %7008 = vmatprep.subr.mxu0 0.0
      %7009 = vmatpush1.xpose.msra.mxu0 0.0
      %7010 = vmatprep.subr.mxu0 0.0
      %7011 = vmatpush1.xpose.msra.mxu0 0.0
      %7012 = vmatprep.subr.mxu0 0.0
      %7013 = vmatpush1.xpose.msra.mxu0 0.0
      %7014 = vmatprep.subr.mxu0 0.0
      %7015 = vmatpush1.xpose.msra.mxu0 0.0
      %7016 = vmatprep.subr.mxu0 0.0
      %7017 = vmatpush1.xpose.msra.mxu0 0.0
      %7018 = vmatprep.subr.mxu0 0.0
      %7019 = vmatpush1.xpose.msra.mxu0 0.0
      %7020 = vmatprep.subr.mxu0 0.0
      %7021 = vmatpush1.xpose.msra.mxu0 0.0
      %7022 = vmatprep.mubr.f32.mxu0 0.0
      %7023 = vmatmul.mubr.f32.gmra.mrb[0].mxu0 %v6953
      %v7024 = vpop.f32.mrb[0].mxu0
      %v7025 = vadd.f32 %v5139, %v7024
      %v7026 = vpop.f32.mrb[0].mxu0
      %7027 = vdwg.mxu0
      %v7029 = vsel %vm1459, %v4779, 0
      %v7032 = vsel %vm1459, %v1292, 0
      %7034 = vmatprep.subr.mxu0 0.0
      %7035 = vmatpush1.xpose.msra.mxu0 %v7032
      %7036 = vmatprep.subr.mxu0 0.0
      %7037 = vmatpush1.xpose.msra.mxu0 0.0
      %7038 = vmatprep.subr.mxu0 0.0
      %7039 = vmatpush1.xpose.msra.mxu0 0.0
      %7040 = vmatprep.subr.mxu0 0.0
      %7041 = vmatpush1.xpose.msra.mxu0 0.0
      %7042 = vmatprep.subr.mxu0 0.0
      %7043 = vmatpush1.xpose.msra.mxu0 0.0
      %7044 = vmatprep.subr.mxu0 0.0
      %7045 = vmatpush1.xpose.msra.mxu0 0.0
      %7046 = vmatprep.subr.mxu0 0.0
      %7047 = vmatpush1.xpose.msra.mxu0 0.0
      %7048 = vmatprep.subr.mxu0 0.0
      %7049 = vmatpush1.xpose.msra.mxu0 0.0
      %7050 = vmatprep.subr.mxu0 0.0
      %7051 = vmatpush1.xpose.msra.mxu0 0.0
      %7052 = vmatprep.subr.mxu0 0.0
      %7053 = vmatpush1.xpose.msra.mxu0 0.0
      %7054 = vmatprep.subr.mxu0 0.0
      %7055 = vmatpush1.xpose.msra.mxu0 0.0
      %7056 = vmatprep.subr.mxu0 0.0
      %7057 = vmatpush1.xpose.msra.mxu0 0.0
      %7058 = vmatprep.subr.mxu0 0.0
      %7059 = vmatpush1.xpose.msra.mxu0 0.0
      %7060 = vmatprep.subr.mxu0 0.0
      %7061 = vmatpush1.xpose.msra.mxu0 0.0
      %7062 = vmatprep.subr.mxu0 0.0
      %7063 = vmatpush1.xpose.msra.mxu0 0.0
      %7064 = vmatprep.subr.mxu0 0.0
      %7065 = vmatpush1.xpose.msra.mxu0 0.0
      %7066 = vmatprep.subr.mxu0 0.0
      %7067 = vmatpush1.xpose.msra.mxu0 0.0
      %7068 = vmatprep.subr.mxu0 0.0
      %7069 = vmatpush1.xpose.msra.mxu0 0.0
      %7070 = vmatprep.subr.mxu0 0.0
      %7071 = vmatpush1.xpose.msra.mxu0 0.0
      %7072 = vmatprep.subr.mxu0 0.0
      %7073 = vmatpush1.xpose.msra.mxu0 0.0
      %7074 = vmatprep.subr.mxu0 0.0
      %7075 = vmatpush1.xpose.msra.mxu0 0.0
      %7076 = vmatprep.subr.mxu0 0.0
      %7077 = vmatpush1.xpose.msra.mxu0 0.0
      %7078 = vmatprep.subr.mxu0 0.0
      %7079 = vmatpush1.xpose.msra.mxu0 0.0
      %7080 = vmatprep.subr.mxu0 0.0
      %7081 = vmatpush1.xpose.msra.mxu0 0.0
      %7082 = vmatprep.subr.mxu0 0.0
      %7083 = vmatpush1.xpose.msra.mxu0 0.0
      %7084 = vmatprep.subr.mxu0 0.0
      %7085 = vmatpush1.xpose.msra.mxu0 0.0
      %7086 = vmatprep.subr.mxu0 0.0
      %7087 = vmatpush1.xpose.msra.mxu0 0.0
      %7088 = vmatprep.subr.mxu0 0.0
      %7089 = vmatpush1.xpose.msra.mxu0 0.0
      %7090 = vmatprep.subr.mxu0 0.0
      %7091 = vmatpush1.xpose.msra.mxu0 0.0
      %7092 = vmatprep.subr.mxu0 0.0
      %7093 = vmatpush1.xpose.msra.mxu0 0.0
      %7094 = vmatprep.subr.mxu0 0.0
      %7095 = vmatpush1.xpose.msra.mxu0 0.0
      %7096 = vmatprep.subr.mxu0 0.0
      %7097 = vmatpush1.xpose.msra.mxu0 0.0
      %7098 = vmatprep.mubr.f32.mxu0 0.0
      %7099 = vmatmul.mubr.f32.gmra.mrb[0].mxu0 %v7029
      %v7100 = vpop.f32.mrb[0].mxu0
      %v7101 = vadd.f32 %v5143, %v7100
      %v7102 = vpop.f32.mrb[0].mxu0
      %7103 = vdwg.mxu0
      %v7105 = vsel %vm1459, %v4803, 0
      %v7108 = vsel %vm1459, %v1297, 0
      %7110 = vmatprep.subr.mxu0 0.0
      %7111 = vmatpush1.xpose.msra.mxu0 %v7108
      %7112 = vmatprep.subr.mxu0 0.0
      %7113 = vmatpush1.xpose.msra.mxu0 0.0
      %7114 = vmatprep.subr.mxu0 0.0
      %7115 = vmatpush1.xpose.msra.mxu0 0.0
      %7116 = vmatprep.subr.mxu0 0.0
      %7117 = vmatpush1.xpose.msra.mxu0 0.0
      %7118 = vmatprep.subr.mxu0 0.0
      %7119 = vmatpush1.xpose.msra.mxu0 0.0
      %7120 = vmatprep.subr.mxu0 0.0
      %7121 = vmatpush1.xpose.msra.mxu0 0.0
      %7122 = vmatprep.subr.mxu0 0.0
      %7123 = vmatpush1.xpose.msra.mxu0 0.0
      %7124 = vmatprep.subr.mxu0 0.0
      %7125 = vmatpush1.xpose.msra.mxu0 0.0
      %7126 = vmatprep.subr.mxu0 0.0
      %7127 = vmatpush1.xpose.msra.mxu0 0.0
      %7128 = vmatprep.subr.mxu0 0.0
      %7129 = vmatpush1.xpose.msra.mxu0 0.0
      %7130 = vmatprep.subr.mxu0 0.0
      %7131 = vmatpush1.xpose.msra.mxu0 0.0
      %7132 = vmatprep.subr.mxu0 0.0
      %7133 = vmatpush1.xpose.msra.mxu0 0.0
      %7134 = vmatprep.subr.mxu0 0.0
      %7135 = vmatpush1.xpose.msra.mxu0 0.0
      %7136 = vmatprep.subr.mxu0 0.0
      %7137 = vmatpush1.xpose.msra.mxu0 0.0
      %7138 = vmatprep.subr.mxu0 0.0
      %7139 = vmatpush1.xpose.msra.mxu0 0.0
      %7140 = vmatprep.subr.mxu0 0.0
      %7141 = vmatpush1.xpose.msra.mxu0 0.0
      %7142 = vmatprep.subr.mxu0 0.0
      %7143 = vmatpush1.xpose.msra.mxu0 0.0
      %7144 = vmatprep.subr.mxu0 0.0
      %7145 = vmatpush1.xpose.msra.mxu0 0.0
      %7146 = vmatprep.subr.mxu0 0.0
      %7147 = vmatpush1.xpose.msra.mxu0 0.0
      %7148 = vmatprep.subr.mxu0 0.0
      %7149 = vmatpush1.xpose.msra.mxu0 0.0
      %7150 = vmatprep.subr.mxu0 0.0
      %7151 = vmatpush1.xpose.msra.mxu0 0.0
      %7152 = vmatprep.subr.mxu0 0.0
      %7153 = vmatpush1.xpose.msra.mxu0 0.0
      %7154 = vmatprep.subr.mxu0 0.0
      %7155 = vmatpush1.xpose.msra.mxu0 0.0
      %7156 = vmatprep.subr.mxu0 0.0
      %7157 = vmatpush1.xpose.msra.mxu0 0.0
      %7158 = vmatprep.subr.mxu0 0.0
      %7159 = vmatpush1.xpose.msra.mxu0 0.0
      %7160 = vmatprep.subr.mxu0 0.0
      %7161 = vmatpush1.xpose.msra.mxu0 0.0
      %7162 = vmatprep.subr.mxu0 0.0
      %7163 = vmatpush1.xpose.msra.mxu0 0.0
      %7164 = vmatprep.subr.mxu0 0.0
      %7165 = vmatpush1.xpose.msra.mxu0 0.0
      %7166 = vmatprep.subr.mxu0 0.0
      %7167 = vmatpush1.xpose.msra.mxu0 0.0
      %7168 = vmatprep.subr.mxu0 0.0
      %7169 = vmatpush1.xpose.msra.mxu0 0.0
      %7170 = vmatprep.subr.mxu0 0.0
      %7171 = vmatpush1.xpose.msra.mxu0 0.0
      %7172 = vmatprep.subr.mxu0 0.0
      %7173 = vmatpush1.xpose.msra.mxu0 0.0
      %7174 = vmatprep.mubr.f32.mxu0 0.0
      %7175 = vmatmul.mubr.f32.gmra.mrb[0].mxu0 %v7105
      %v7176 = vpop.f32.mrb[0].mxu0
      %v7177 = vadd.f32 %v5147, %v7176
      %v7178 = vpop.f32.mrb[0].mxu0
      %7179 = vdwg.mxu0
      %v7181 = vsel %vm1459, %v4827, 0
      %v7184 = vsel %vm1459, %v1302, 0
      %7186 = vmatprep.subr.mxu0 0.0
      %7187 = vmatpush1.xpose.msra.mxu0 %v7184
      %7188 = vmatprep.subr.mxu0 0.0
      %7189 = vmatpush1.xpose.msra.mxu0 0.0
      %7190 = vmatprep.subr.mxu0 0.0
      %7191 = vmatpush1.xpose.msra.mxu0 0.0
      %7192 = vmatprep.subr.mxu0 0.0
      %7193 = vmatpush1.xpose.msra.mxu0 0.0
      %7194 = vmatprep.subr.mxu0 0.0
      %7195 = vmatpush1.xpose.msra.mxu0 0.0
      %7196 = vmatprep.subr.mxu0 0.0
      %7197 = vmatpush1.xpose.msra.mxu0 0.0
      %7198 = vmatprep.subr.mxu0 0.0
      %7199 = vmatpush1.xpose.msra.mxu0 0.0
      %7200 = vmatprep.subr.mxu0 0.0
      %7201 = vmatpush1.xpose.msra.mxu0 0.0
      %7202 = vmatprep.subr.mxu0 0.0
      %7203 = vmatpush1.xpose.msra.mxu0 0.0
      %7204 = vmatprep.subr.mxu0 0.0
      %7205 = vmatpush1.xpose.msra.mxu0 0.0
      %7206 = vmatprep.subr.mxu0 0.0
      %7207 = vmatpush1.xpose.msra.mxu0 0.0
      %7208 = vmatprep.subr.mxu0 0.0
      %7209 = vmatpush1.xpose.msra.mxu0 0.0
      %7210 = vmatprep.subr.mxu0 0.0
      %7211 = vmatpush1.xpose.msra.mxu0 0.0
      %7212 = vmatprep.subr.mxu0 0.0
      %7213 = vmatpush1.xpose.msra.mxu0 0.0
      %7214 = vmatprep.subr.mxu0 0.0
      %7215 = vmatpush1.xpose.msra.mxu0 0.0
      %7216 = vmatprep.subr.mxu0 0.0
      %7217 = vmatpush1.xpose.msra.mxu0 0.0
      %7218 = vmatprep.subr.mxu0 0.0
      %7219 = vmatpush1.xpose.msra.mxu0 0.0
      %7220 = vmatprep.subr.mxu0 0.0
      %7221 = vmatpush1.xpose.msra.mxu0 0.0
      %7222 = vmatprep.subr.mxu0 0.0
      %7223 = vmatpush1.xpose.msra.mxu0 0.0
      %7224 = vmatprep.subr.mxu0 0.0
      %7225 = vmatpush1.xpose.msra.mxu0 0.0
      %7226 = vmatprep.subr.mxu0 0.0
      %7227 = vmatpush1.xpose.msra.mxu0 0.0
      %7228 = vmatprep.subr.mxu0 0.0
      %7229 = vmatpush1.xpose.msra.mxu0 0.0
      %7230 = vmatprep.subr.mxu0 0.0
      %7231 = vmatpush1.xpose.msra.mxu0 0.0
      %7232 = vmatprep.subr.mxu0 0.0
      %7233 = vmatpush1.xpose.msra.mxu0 0.0
      %7234 = vmatprep.subr.mxu0 0.0
      %7235 = vmatpush1.xpose.msra.mxu0 0.0
      %7236 = vmatprep.subr.mxu0 0.0
      %7237 = vmatpush1.xpose.msra.mxu0 0.0
      %7238 = vmatprep.subr.mxu0 0.0
      %7239 = vmatpush1.xpose.msra.mxu0 0.0
      %7240 = vmatprep.subr.mxu0 0.0
      %7241 = vmatpush1.xpose.msra.mxu0 0.0
      %7242 = vmatprep.subr.mxu0 0.0
      %7243 = vmatpush1.xpose.msra.mxu0 0.0
      %7244 = vmatprep.subr.mxu0 0.0
      %7245 = vmatpush1.xpose.msra.mxu0 0.0
      %7246 = vmatprep.subr.mxu0 0.0
      %7247 = vmatpush1.xpose.msra.mxu0 0.0
      %7248 = vmatprep.subr.mxu0 0.0
      %7249 = vmatpush1.xpose.msra.mxu0 0.0
      %7250 = vmatprep.mubr.f32.mxu0 0.0
      %7251 = vmatmul.mubr.f32.gmra.mrb[0].mxu0 %v7181
      %v7252 = vpop.f32.mrb[0].mxu0
      %v7253 = vadd.f32 %v5151, %v7252
      %v7254 = vpop.f32.mrb[0].mxu0
      %7255 = vdwg.mxu0
      %v7257 = vsel %vm1459, %v4851, 0
      %v7260 = vsel %vm1459, %v1307, 0
      %7262 = vmatprep.subr.mxu0 0.0
      %7263 = vmatpush1.xpose.msra.mxu0 %v7260
      %7264 = vmatprep.subr.mxu0 0.0
      %7265 = vmatpush1.xpose.msra.mxu0 0.0
      %7266 = vmatprep.subr.mxu0 0.0
      %7267 = vmatpush1.xpose.msra.mxu0 0.0
      %7268 = vmatprep.subr.mxu0 0.0
      %7269 = vmatpush1.xpose.msra.mxu0 0.0
      %7270 = vmatprep.subr.mxu0 0.0
      %7271 = vmatpush1.xpose.msra.mxu0 0.0
      %7272 = vmatprep.subr.mxu0 0.0
      %7273 = vmatpush1.xpose.msra.mxu0 0.0
      %7274 = vmatprep.subr.mxu0 0.0
      %7275 = vmatpush1.xpose.msra.mxu0 0.0
      %7276 = vmatprep.subr.mxu0 0.0
      %7277 = vmatpush1.xpose.msra.mxu0 0.0
      %7278 = vmatprep.subr.mxu0 0.0
      %7279 = vmatpush1.xpose.msra.mxu0 0.0
      %7280 = vmatprep.subr.mxu0 0.0
      %7281 = vmatpush1.xpose.msra.mxu0 0.0
      %7282 = vmatprep.subr.mxu0 0.0
      %7283 = vmatpush1.xpose.msra.mxu0 0.0
      %7284 = vmatprep.subr.mxu0 0.0
      %7285 = vmatpush1.xpose.msra.mxu0 0.0
      %7286 = vmatprep.subr.mxu0 0.0
      %7287 = vmatpush1.xpose.msra.mxu0 0.0
      %7288 = vmatprep.subr.mxu0 0.0
      %7289 = vmatpush1.xpose.msra.mxu0 0.0
      %7290 = vmatprep.subr.mxu0 0.0
      %7291 = vmatpush1.xpose.msra.mxu0 0.0
      %7292 = vmatprep.subr.mxu0 0.0
      %7293 = vmatpush1.xpose.msra.mxu0 0.0
      %7294 = vmatprep.subr.mxu0 0.0
      %7295 = vmatpush1.xpose.msra.mxu0 0.0
      %7296 = vmatprep.subr.mxu0 0.0
      %7297 = vmatpush1.xpose.msra.mxu0 0.0
      %7298 = vmatprep.subr.mxu0 0.0
      %7299 = vmatpush1.xpose.msra.mxu0 0.0
      %7300 = vmatprep.subr.mxu0 0.0
      %7301 = vmatpush1.xpose.msra.mxu0 0.0
      %7302 = vmatprep.subr.mxu0 0.0
      %7303 = vmatpush1.xpose.msra.mxu0 0.0
      %7304 = vmatprep.subr.mxu0 0.0
      %7305 = vmatpush1.xpose.msra.mxu0 0.0
      %7306 = vmatprep.subr.mxu0 0.0
      %7307 = vmatpush1.xpose.msra.mxu0 0.0
      %7308 = vmatprep.subr.mxu0 0.0
      %7309 = vmatpush1.xpose.msra.mxu0 0.0
      %7310 = vmatprep.subr.mxu0 0.0
      %7311 = vmatpush1.xpose.msra.mxu0 0.0
      %7312 = vmatprep.subr.mxu0 0.0
      %7313 = vmatpush1.xpose.msra.mxu0 0.0
      %7314 = vmatprep.subr.mxu0 0.0
      %7315 = vmatpush1.xpose.msra.mxu0 0.0
      %7316 = vmatprep.subr.mxu0 0.0
      %7317 = vmatpush1.xpose.msra.mxu0 0.0
      %7318 = vmatprep.subr.mxu0 0.0
      %7319 = vmatpush1.xpose.msra.mxu0 0.0
      %7320 = vmatprep.subr.mxu0 0.0
      %7321 = vmatpush1.xpose.msra.mxu0 0.0
      %7322 = vmatprep.subr.mxu0 0.0
      %7323 = vmatpush1.xpose.msra.mxu0 0.0
      %7324 = vmatprep.subr.mxu0 0.0
      %7325 = vmatpush1.xpose.msra.mxu0 0.0
      %7326 = vmatprep.mubr.f32.mxu0 0.0
      %7327 = vmatmul.mubr.f32.gmra.mrb[0].mxu0 %v7257
      %v7328 = vpop.f32.mrb[0].mxu0
      %v7329 = vadd.f32 %v5155, %v7328
      %v7330 = vpop.f32.mrb[0].mxu0
      %7331 = vdwg.mxu0
      %v7333 = vsel %vm1459, %v4875, 0
      %v7336 = vsel %vm1459, %v1312, 0
      %7338 = vmatprep.subr.mxu0 0.0
      %7339 = vmatpush1.xpose.msra.mxu0 %v7336
      %7340 = vmatprep.subr.mxu0 0.0
      %7341 = vmatpush1.xpose.msra.mxu0 0.0
      %7342 = vmatprep.subr.mxu0 0.0
      %7343 = vmatpush1.xpose.msra.mxu0 0.0
      %7344 = vmatprep.subr.mxu0 0.0
      %7345 = vmatpush1.xpose.msra.mxu0 0.0
      %7346 = vmatprep.subr.mxu0 0.0
      %7347 = vmatpush1.xpose.msra.mxu0 0.0
      %7348 = vmatprep.subr.mxu0 0.0
      %7349 = vmatpush1.xpose.msra.mxu0 0.0
      %7350 = vmatprep.subr.mxu0 0.0
      %7351 = vmatpush1.xpose.msra.mxu0 0.0
      %7352 = vmatprep.subr.mxu0 0.0
      %7353 = vmatpush1.xpose.msra.mxu0 0.0
      %7354 = vmatprep.subr.mxu0 0.0
      %7355 = vmatpush1.xpose.msra.mxu0 0.0
      %7356 = vmatprep.subr.mxu0 0.0
      %7357 = vmatpush1.xpose.msra.mxu0 0.0
      %7358 = vmatprep.subr.mxu0 0.0
      %7359 = vmatpush1.xpose.msra.mxu0 0.0
      %7360 = vmatprep.subr.mxu0 0.0
      %7361 = vmatpush1.xpose.msra.mxu0 0.0
      %7362 = vmatprep.subr.mxu0 0.0
      %7363 = vmatpush1.xpose.msra.mxu0 0.0
      %7364 = vmatprep.subr.mxu0 0.0
      %7365 = vmatpush1.xpose.msra.mxu0 0.0
      %7366 = vmatprep.subr.mxu0 0.0
      %7367 = vmatpush1.xpose.msra.mxu0 0.0
      %7368 = vmatprep.subr.mxu0 0.0
      %7369 = vmatpush1.xpose.msra.mxu0 0.0
      %7370 = vmatprep.subr.mxu0 0.0
      %7371 = vmatpush1.xpose.msra.mxu0 0.0
      %7372 = vmatprep.subr.mxu0 0.0
      %7373 = vmatpush1.xpose.msra.mxu0 0.0
      %7374 = vmatprep.subr.mxu0 0.0
      %7375 = vmatpush1.xpose.msra.mxu0 0.0
      %7376 = vmatprep.subr.mxu0 0.0
      %7377 = vmatpush1.xpose.msra.mxu0 0.0
      %7378 = vmatprep.subr.mxu0 0.0
      %7379 = vmatpush1.xpose.msra.mxu0 0.0
      %7380 = vmatprep.subr.mxu0 0.0
      %7381 = vmatpush1.xpose.msra.mxu0 0.0
      %7382 = vmatprep.subr.mxu0 0.0
      %7383 = vmatpush1.xpose.msra.mxu0 0.0
      %7384 = vmatprep.subr.mxu0 0.0
      %7385 = vmatpush1.xpose.msra.mxu0 0.0
      %7386 = vmatprep.subr.mxu0 0.0
      %7387 = vmatpush1.xpose.msra.mxu0 0.0
      %7388 = vmatprep.subr.mxu0 0.0
      %7389 = vmatpush1.xpose.msra.mxu0 0.0
      %7390 = vmatprep.subr.mxu0 0.0
      %7391 = vmatpush1.xpose.msra.mxu0 0.0
      %7392 = vmatprep.subr.mxu0 0.0
      %7393 = vmatpush1.xpose.msra.mxu0 0.0
      %7394 = vmatprep.subr.mxu0 0.0
      %7395 = vmatpush1.xpose.msra.mxu0 0.0
      %7396 = vmatprep.subr.mxu0 0.0
      %7397 = vmatpush1.xpose.msra.mxu0 0.0
      %7398 = vmatprep.subr.mxu0 0.0
      %7399 = vmatpush1.xpose.msra.mxu0 0.0
      %7400 = vmatprep.subr.mxu0 0.0
      %7401 = vmatpush1.xpose.msra.mxu0 0.0
      %7402 = vmatprep.mubr.f32.mxu0 0.0
      %7403 = vmatmul.mubr.f32.gmra.mrb[0].mxu0 %v7333
      %v7404 = vpop.f32.mrb[0].mxu0
      %v7405 = vadd.f32 %v5159, %v7404
      %v7406 = vpop.f32.mrb[0].mxu0
      %7407 = vdwg.mxu0
      %v7409 = vsel %vm1459, %v4899, 0
      %v7412 = vsel %vm1459, %v1317, 0
      %7414 = vmatprep.subr.mxu0 0.0
      %7415 = vmatpush1.xpose.msra.mxu0 %v7412
      %7416 = vmatprep.subr.mxu0 0.0
      %7417 = vmatpush1.xpose.msra.mxu0 0.0
      %7418 = vmatprep.subr.mxu0 0.0
      %7419 = vmatpush1.xpose.msra.mxu0 0.0
      %7420 = vmatprep.subr.mxu0 0.0
      %7421 = vmatpush1.xpose.msra.mxu0 0.0
      %7422 = vmatprep.subr.mxu0 0.0
      %7423 = vmatpush1.xpose.msra.mxu0 0.0
      %7424 = vmatprep.subr.mxu0 0.0
      %7425 = vmatpush1.xpose.msra.mxu0 0.0
      %7426 = vmatprep.subr.mxu0 0.0
      %7427 = vmatpush1.xpose.msra.mxu0 0.0
      %7428 = vmatprep.subr.mxu0 0.0
      %7429 = vmatpush1.xpose.msra.mxu0 0.0
      %7430 = vmatprep.subr.mxu0 0.0
      %7431 = vmatpush1.xpose.msra.mxu0 0.0
      %7432 = vmatprep.subr.mxu0 0.0
      %7433 = vmatpush1.xpose.msra.mxu0 0.0
      %7434 = vmatprep.subr.mxu0 0.0
      %7435 = vmatpush1.xpose.msra.mxu0 0.0
      %7436 = vmatprep.subr.mxu0 0.0
      %7437 = vmatpush1.xpose.msra.mxu0 0.0
      %7438 = vmatprep.subr.mxu0 0.0
      %7439 = vmatpush1.xpose.msra.mxu0 0.0
      %7440 = vmatprep.subr.mxu0 0.0
      %7441 = vmatpush1.xpose.msra.mxu0 0.0
      %7442 = vmatprep.subr.mxu0 0.0
      %7443 = vmatpush1.xpose.msra.mxu0 0.0
      %7444 = vmatprep.subr.mxu0 0.0
      %7445 = vmatpush1.xpose.msra.mxu0 0.0
      %7446 = vmatprep.subr.mxu0 0.0
      %7447 = vmatpush1.xpose.msra.mxu0 0.0
      %7448 = vmatprep.subr.mxu0 0.0
      %7449 = vmatpush1.xpose.msra.mxu0 0.0
      %7450 = vmatprep.subr.mxu0 0.0
      %7451 = vmatpush1.xpose.msra.mxu0 0.0
      %7452 = vmatprep.subr.mxu0 0.0
      %7453 = vmatpush1.xpose.msra.mxu0 0.0
      %7454 = vmatprep.subr.mxu0 0.0
      %7455 = vmatpush1.xpose.msra.mxu0 0.0
      %7456 = vmatprep.subr.mxu0 0.0
      %7457 = vmatpush1.xpose.msra.mxu0 0.0
      %7458 = vmatprep.subr.mxu0 0.0
      %7459 = vmatpush1.xpose.msra.mxu0 0.0
      %7460 = vmatprep.subr.mxu0 0.0
      %7461 = vmatpush1.xpose.msra.mxu0 0.0
      %7462 = vmatprep.subr.mxu0 0.0
      %7463 = vmatpush1.xpose.msra.mxu0 0.0
      %7464 = vmatprep.subr.mxu0 0.0
      %7465 = vmatpush1.xpose.msra.mxu0 0.0
      %7466 = vmatprep.subr.mxu0 0.0
      %7467 = vmatpush1.xpose.msra.mxu0 0.0
      %7468 = vmatprep.subr.mxu0 0.0
      %7469 = vmatpush1.xpose.msra.mxu0 0.0
      %7470 = vmatprep.subr.mxu0 0.0
      %7471 = vmatpush1.xpose.msra.mxu0 0.0
      %7472 = vmatprep.subr.mxu0 0.0
      %7473 = vmatpush1.xpose.msra.mxu0 0.0
      %7474 = vmatprep.subr.mxu0 0.0
      %7475 = vmatpush1.xpose.msra.mxu0 0.0
      %7476 = vmatprep.subr.mxu0 0.0
      %7477 = vmatpush1.xpose.msra.mxu0 0.0
      %7478 = vmatprep.mubr.f32.mxu0 0.0
      %7479 = vmatmul.mubr.f32.gmra.mrb[0].mxu0 %v7409
      %v7480 = vpop.f32.mrb[0].mxu0
      %v7481 = vadd.f32 %v5163, %v7480
      %v7482 = vpop.f32.mrb[0].mxu0
      %7483 = vdwg.mxu0
      %v7485 = vsel %vm1459, %v4923, 0
      %v7488 = vsel %vm1459, %v1322, 0
      %7490 = vmatprep.subr.mxu0 0.0
      %7491 = vmatpush1.xpose.msra.mxu0 %v7488
      %7492 = vmatprep.subr.mxu0 0.0
      %7493 = vmatpush1.xpose.msra.mxu0 0.0
      %7494 = vmatprep.subr.mxu0 0.0
      %7495 = vmatpush1.xpose.msra.mxu0 0.0
      %7496 = vmatprep.subr.mxu0 0.0
      %7497 = vmatpush1.xpose.msra.mxu0 0.0
      %7498 = vmatprep.subr.mxu0 0.0
      %7499 = vmatpush1.xpose.msra.mxu0 0.0
      %7500 = vmatprep.subr.mxu0 0.0
      %7501 = vmatpush1.xpose.msra.mxu0 0.0
      %7502 = vmatprep.subr.mxu0 0.0
      %7503 = vmatpush1.xpose.msra.mxu0 0.0
      %7504 = vmatprep.subr.mxu0 0.0
      %7505 = vmatpush1.xpose.msra.mxu0 0.0
      %7506 = vmatprep.subr.mxu0 0.0
      %7507 = vmatpush1.xpose.msra.mxu0 0.0
      %7508 = vmatprep.subr.mxu0 0.0
      %7509 = vmatpush1.xpose.msra.mxu0 0.0
      %7510 = vmatprep.subr.mxu0 0.0
      %7511 = vmatpush1.xpose.msra.mxu0 0.0
      %7512 = vmatprep.subr.mxu0 0.0
      %7513 = vmatpush1.xpose.msra.mxu0 0.0
      %7514 = vmatprep.subr.mxu0 0.0
      %7515 = vmatpush1.xpose.msra.mxu0 0.0
      %7516 = vmatprep.subr.mxu0 0.0
      %7517 = vmatpush1.xpose.msra.mxu0 0.0
      %7518 = vmatprep.subr.mxu0 0.0
      %7519 = vmatpush1.xpose.msra.mxu0 0.0
      %7520 = vmatprep.subr.mxu0 0.0
      %7521 = vmatpush1.xpose.msra.mxu0 0.0
      %7522 = vmatprep.subr.mxu0 0.0
      %7523 = vmatpush1.xpose.msra.mxu0 0.0
      %7524 = vmatprep.subr.mxu0 0.0
      %7525 = vmatpush1.xpose.msra.mxu0 0.0
      %7526 = vmatprep.subr.mxu0 0.0
      %7527 = vmatpush1.xpose.msra.mxu0 0.0
      %7528 = vmatprep.subr.mxu0 0.0
      %7529 = vmatpush1.xpose.msra.mxu0 0.0
      %7530 = vmatprep.subr.mxu0 0.0
      %7531 = vmatpush1.xpose.msra.mxu0 0.0
      %7532 = vmatprep.subr.mxu0 0.0
      %7533 = vmatpush1.xpose.msra.mxu0 0.0
      %7534 = vmatprep.subr.mxu0 0.0
      %7535 = vmatpush1.xpose.msra.mxu0 0.0
      %7536 = vmatprep.subr.mxu0 0.0
      %7537 = vmatpush1.xpose.msra.mxu0 0.0
      %7538 = vmatprep.subr.mxu0 0.0
      %7539 = vmatpush1.xpose.msra.mxu0 0.0
      %7540 = vmatprep.subr.mxu0 0.0
      %7541 = vmatpush1.xpose.msra.mxu0 0.0
      %7542 = vmatprep.subr.mxu0 0.0
      %7543 = vmatpush1.xpose.msra.mxu0 0.0
      %7544 = vmatprep.subr.mxu0 0.0
      %7545 = vmatpush1.xpose.msra.mxu0 0.0
      %7546 = vmatprep.subr.mxu0 0.0
      %7547 = vmatpush1.xpose.msra.mxu0 0.0
      %7548 = vmatprep.subr.mxu0 0.0
      %7549 = vmatpush1.xpose.msra.mxu0 0.0
      %7550 = vmatprep.subr.mxu0 0.0
      %7551 = vmatpush1.xpose.msra.mxu0 0.0
      %7552 = vmatprep.subr.mxu0 0.0
      %7553 = vmatpush1.xpose.msra.mxu0 0.0
      %7554 = vmatprep.mubr.f32.mxu0 0.0
      %7555 = vmatmul.mubr.f32.gmra.mrb[0].mxu0 %v7485
      %v7556 = vpop.f32.mrb[0].mxu0
      %v7557 = vadd.f32 %v5167, %v7556
      %v7558 = vpop.f32.mrb[0].mxu0
      %7559 = vdwg.mxu0
      %v7561 = vsel %vm1459, %v4947, 0
      %v7564 = vsel %vm1459, %v1327, 0
      %7566 = vmatprep.subr.mxu0 0.0
      %7567 = vmatpush1.xpose.msra.mxu0 %v7564
      %7568 = vmatprep.subr.mxu0 0.0
      %7569 = vmatpush1.xpose.msra.mxu0 0.0
      %7570 = vmatprep.subr.mxu0 0.0
      %7571 = vmatpush1.xpose.msra.mxu0 0.0
      %7572 = vmatprep.subr.mxu0 0.0
      %7573 = vmatpush1.xpose.msra.mxu0 0.0
      %7574 = vmatprep.subr.mxu0 0.0
      %7575 = vmatpush1.xpose.msra.mxu0 0.0
      %7576 = vmatprep.subr.mxu0 0.0
      %7577 = vmatpush1.xpose.msra.mxu0 0.0
      %7578 = vmatprep.subr.mxu0 0.0
      %7579 = vmatpush1.xpose.msra.mxu0 0.0
      %7580 = vmatprep.subr.mxu0 0.0
      %7581 = vmatpush1.xpose.msra.mxu0 0.0
      %7582 = vmatprep.subr.mxu0 0.0
      %7583 = vmatpush1.xpose.msra.mxu0 0.0
      %7584 = vmatprep.subr.mxu0 0.0
      %7585 = vmatpush1.xpose.msra.mxu0 0.0
      %7586 = vmatprep.subr.mxu0 0.0
      %7587 = vmatpush1.xpose.msra.mxu0 0.0
      %7588 = vmatprep.subr.mxu0 0.0
      %7589 = vmatpush1.xpose.msra.mxu0 0.0
      %7590 = vmatprep.subr.mxu0 0.0
      %7591 = vmatpush1.xpose.msra.mxu0 0.0
      %7592 = vmatprep.subr.mxu0 0.0
      %7593 = vmatpush1.xpose.msra.mxu0 0.0
      %7594 = vmatprep.subr.mxu0 0.0
      %7595 = vmatpush1.xpose.msra.mxu0 0.0
      %7596 = vmatprep.subr.mxu0 0.0
      %7597 = vmatpush1.xpose.msra.mxu0 0.0
      %7598 = vmatprep.subr.mxu0 0.0
      %7599 = vmatpush1.xpose.msra.mxu0 0.0
      %7600 = vmatprep.subr.mxu0 0.0
      %7601 = vmatpush1.xpose.msra.mxu0 0.0
      %7602 = vmatprep.subr.mxu0 0.0
      %7603 = vmatpush1.xpose.msra.mxu0 0.0
      %7604 = vmatprep.subr.mxu0 0.0
      %7605 = vmatpush1.xpose.msra.mxu0 0.0
      %7606 = vmatprep.subr.mxu0 0.0
      %7607 = vmatpush1.xpose.msra.mxu0 0.0
      %7608 = vmatprep.subr.mxu0 0.0
      %7609 = vmatpush1.xpose.msra.mxu0 0.0
      %7610 = vmatprep.subr.mxu0 0.0
      %7611 = vmatpush1.xpose.msra.mxu0 0.0
      %7612 = vmatprep.subr.mxu0 0.0
      %7613 = vmatpush1.xpose.msra.mxu0 0.0
      %7614 = vmatprep.subr.mxu0 0.0
      %7615 = vmatpush1.xpose.msra.mxu0 0.0
      %7616 = vmatprep.subr.mxu0 0.0
      %7617 = vmatpush1.xpose.msra.mxu0 0.0
      %7618 = vmatprep.subr.mxu0 0.0
      %7619 = vmatpush1.xpose.msra.mxu0 0.0
      %7620 = vmatprep.subr.mxu0 0.0
      %7621 = vmatpush1.xpose.msra.mxu0 0.0
      %7622 = vmatprep.subr.mxu0 0.0
      %7623 = vmatpush1.xpose.msra.mxu0 0.0
      %7624 = vmatprep.subr.mxu0 0.0
      %7625 = vmatpush1.xpose.msra.mxu0 0.0
      %7626 = vmatprep.subr.mxu0 0.0
      %7627 = vmatpush1.xpose.msra.mxu0 0.0
      %7628 = vmatprep.subr.mxu0 0.0
      %7629 = vmatpush1.xpose.msra.mxu0 0.0
      %7630 = vmatprep.mubr.f32.mxu0 0.0
      %7631 = vmatmul.mubr.f32.gmra.mrb[0].mxu0 %v7561
      %v7632 = vpop.f32.mrb[0].mxu0
      %v7633 = vadd.f32 %v5171, %v7632
      %v7634 = vpop.f32.mrb[0].mxu0
      %7635 = vdwg.mxu0
      %vm7636 = vcmask 60416
      %v7637 = vsel %vm7636, %v5277, -inf
      %7638 = vmax.xlane.f32.xlu0 %v7637
      %v7639 = vpop.xlane.xlu0 %7638
      %v7640 = vsel %vm7636, %v5353, -inf
      %7641 = vmax.xlane.f32.xlu0 %v7640
      %v7642 = vpop.xlane.xlu0 %7641
      %v7643 = vsel %vm7636, %v5429, -inf
      %7644 = vmax.xlane.f32.xlu0 %v7643
      %v7645 = vpop.xlane.xlu0 %7644
      %v7646 = vsel %vm7636, %v5505, -inf
      %7647 = vmax.xlane.f32.xlu0 %v7646
      %v7648 = vpop.xlane.xlu0 %7647
      %v7649 = vsel %vm7636, %v5581, -inf
      %7650 = vmax.xlane.f32.xlu0 %v7649
      %v7651 = vpop.xlane.xlu0 %7650
      %v7652 = vsel %vm7636, %v5657, -inf
      %7653 = vmax.xlane.f32.xlu0 %v7652
      %v7654 = vpop.xlane.xlu0 %7653
      %v7655 = vsel %vm7636, %v5733, -inf
      %7656 = vmax.xlane.f32.xlu0 %v7655
      %v7657 = vpop.xlane.xlu0 %7656
      %v7658 = vsel %vm7636, %v5809, -inf
      %7659 = vmax.xlane.f32.xlu0 %v7658
      %v7660 = vpop.xlane.xlu0 %7659
      %v7661 = vsel %vm7636, %v5885, -inf
      %7662 = vmax.xlane.f32.xlu0 %v7661
      %v7663 = vpop.xlane.xlu0 %7662
      %v7664 = vsel %vm7636, %v5961, -inf
      %7665 = vmax.xlane.f32.xlu0 %v7664
      %v7666 = vpop.xlane.xlu0 %7665
      %v7667 = vsel %vm7636, %v6037, -inf
      %7668 = vmax.xlane.f32.xlu0 %v7667
      %v7669 = vpop.xlane.xlu0 %7668
      %v7670 = vsel %vm7636, %v6113, -inf
      %7671 = vmax.xlane.f32.xlu0 %v7670
      %v7672 = vpop.xlane.xlu0 %7671
      %v7673 = vsel %vm7636, %v6189, -inf
      %7674 = vmax.xlane.f32.xlu0 %v7673
      %v7675 = vpop.xlane.xlu0 %7674
      %v7676 = vsel %vm7636, %v6265, -inf
      %7677 = vmax.xlane.f32.xlu0 %v7676
      %v7678 = vpop.xlane.xlu0 %7677
      %v7679 = vsel %vm7636, %v6341, -inf
      %7680 = vmax.xlane.f32.xlu0 %v7679
      %v7681 = vpop.xlane.xlu0 %7680
      %v7682 = vsel %vm7636, %v6417, -inf
      %7683 = vmax.xlane.f32.xlu0 %v7682
      %v7684 = vpop.xlane.xlu0 %7683
      %v7685 = vsel %vm7636, %v6493, -inf
      %7686 = vmax.xlane.f32.xlu0 %v7685
      %v7687 = vpop.xlane.xlu0 %7686
      %v7688 = vsel %vm7636, %v6569, -inf
      %7689 = vmax.xlane.f32.xlu0 %v7688
      %v7690 = vpop.xlane.xlu0 %7689
      %v7691 = vsel %vm7636, %v6645, -inf
      %7692 = vmax.xlane.f32.xlu0 %v7691
      %v7693 = vpop.xlane.xlu0 %7692
      %v7694 = vsel %vm7636, %v6721, -inf
      %7695 = vmax.xlane.f32.xlu0 %v7694
      %v7696 = vpop.xlane.xlu0 %7695
      %v7697 = vsel %vm7636, %v6797, -inf
      %7698 = vmax.xlane.f32.xlu0 %v7697
      %v7699 = vpop.xlane.xlu0 %7698
      %v7700 = vsel %vm7636, %v6873, -inf
      %7701 = vmax.xlane.f32.xlu0 %v7700
      %v7702 = vpop.xlane.xlu0 %7701
      %v7703 = vsel %vm7636, %v6949, -inf
      %7704 = vmax.xlane.f32.xlu0 %v7703
      %v7705 = vpop.xlane.xlu0 %7704
      %v7706 = vsel %vm7636, %v7025, -inf
      %7707 = vmax.xlane.f32.xlu0 %v7706
      %v7708 = vpop.xlane.xlu0 %7707
      %v7709 = vsel %vm7636, %v7101, -inf
      %7710 = vmax.xlane.f32.xlu0 %v7709
      %v7711 = vpop.xlane.xlu0 %7710
      %v7712 = vsel %vm7636, %v7177, -inf
      %7713 = vmax.xlane.f32.xlu0 %v7712
      %v7714 = vpop.xlane.xlu0 %7713
      %v7715 = vsel %vm7636, %v7253, -inf
      %7716 = vmax.xlane.f32.xlu0 %v7715
      %v7717 = vpop.xlane.xlu0 %7716
      %v7718 = vsel %vm7636, %v7329, -inf
      %7719 = vmax.xlane.f32.xlu0 %v7718
      %v7720 = vpop.xlane.xlu0 %7719
      %v7721 = vsel %vm7636, %v7405, -inf
      %7722 = vmax.xlane.f32.xlu0 %v7721
      %v7723 = vpop.xlane.xlu0 %7722
      %v7724 = vsel %vm7636, %v7481, -inf
      %7725 = vmax.xlane.f32.xlu0 %v7724
      %v7726 = vpop.xlane.xlu0 %7725
      %v7727 = vsel %vm7636, %v7557, -inf
      %7728 = vmax.xlane.f32.xlu0 %v7727
      %v7729 = vpop.xlane.xlu0 %7728
      %v7730 = vsel %vm7636, %v7633, -inf
      %7731 = vmax.xlane.f32.xlu0 %v7730
      %v7732 = vpop.xlane.xlu0 %7731
      %v7733 = vsub.f32 %v5277, %v7639
      %v7734 = vsub.f32 %v5353, %v7642
      %v7735 = vsub.f32 %v5429, %v7645
      %v7736 = vsub.f32 %v5505, %v7648
      %v7737 = vsub.f32 %v5581, %v7651
      %v7738 = vsub.f32 %v5657, %v7654
      %v7739 = vsub.f32 %v5733, %v7657
      %v7740 = vsub.f32 %v5809, %v7660
      %v7741 = vsub.f32 %v5885, %v7663
      %v7742 = vsub.f32 %v5961, %v7666
      %v7743 = vsub.f32 %v6037, %v7669
      %v7744 = vsub.f32 %v6113, %v7672
      %v7745 = vsub.f32 %v6189, %v7675
      %v7746 = vsub.f32 %v6265, %v7678
      %v7747 = vsub.f32 %v6341, %v7681
      %v7748 = vsub.f32 %v6417, %v7684
      %v7749 = vsub.f32 %v6493, %v7687
      %v7750 = vsub.f32 %v6569, %v7690
      %v7751 = vsub.f32 %v6645, %v7693
      %v7752 = vsub.f32 %v6721, %v7696
      %v7753 = vsub.f32 %v6797, %v7699
      %v7754 = vsub.f32 %v6873, %v7702
      %v7755 = vsub.f32 %v6949, %v7705
      %v7756 = vsub.f32 %v7025, %v7708
      %v7757 = vsub.f32 %v7101, %v7711
      %v7758 = vsub.f32 %v7177, %v7714
      %v7759 = vsub.f32 %v7253, %v7717
      %v7760 = vsub.f32 %v7329, %v7720
      %v7761 = vsub.f32 %v7405, %v7723
      %v7762 = vsub.f32 %v7481, %v7726
      %v7763 = vsub.f32 %v7557, %v7729
      %v7764 = vsub.f32 %v7633, %v7732
      %v7765 = vmul.f32 %v7733, 1.442695
      %v7766 = vpow.pop %v7765
      %v7767 = vmul.f32 %v7734, 1.442695
      %v7768 = vpow.pop %v7767
      %v7769 = vmul.f32 %v7735, 1.442695
      %v7770 = vpow.pop %v7769
      %v7771 = vmul.f32 %v7736, 1.442695
      %v7772 = vpow.pop %v7771
      %v7773 = vmul.f32 %v7737, 1.442695
      %v7774 = vpow.pop %v7773
      %v7775 = vmul.f32 %v7738, 1.442695
      %v7776 = vpow.pop %v7775
      %v7777 = vmul.f32 %v7739, 1.442695
      %v7778 = vpow.pop %v7777
      %v7779 = vmul.f32 %v7740, 1.442695
      %v7780 = vpow.pop %v7779
      %v7781 = vmul.f32 %v7741, 1.442695
      %v7782 = vpow.pop %v7781
      %v7783 = vmul.f32 %v7742, 1.442695
      %v7784 = vpow.pop %v7783
      %v7785 = vmul.f32 %v7743, 1.442695
      %v7786 = vpow.pop %v7785
      %v7787 = vmul.f32 %v7744, 1.442695
      %v7788 = vpow.pop %v7787
      %v7789 = vmul.f32 %v7745, 1.442695
      %v7790 = vpow.pop %v7789
      %v7791 = vmul.f32 %v7746, 1.442695
      %v7792 = vpow.pop %v7791
      %v7793 = vmul.f32 %v7747, 1.442695
      %v7794 = vpow.pop %v7793
      %v7795 = vmul.f32 %v7748, 1.442695
      %v7796 = vpow.pop %v7795
      %v7797 = vmul.f32 %v7749, 1.442695
      %v7798 = vpow.pop %v7797
      %v7799 = vmul.f32 %v7750, 1.442695
      %v7800 = vpow.pop %v7799
      %v7801 = vmul.f32 %v7751, 1.442695
      %v7802 = vpow.pop %v7801
      %v7803 = vmul.f32 %v7752, 1.442695
      %v7804 = vpow.pop %v7803
      %v7805 = vmul.f32 %v7753, 1.442695
      %v7806 = vpow.pop %v7805
      %v7807 = vmul.f32 %v7754, 1.442695
      %v7808 = vpow.pop %v7807
      %v7809 = vmul.f32 %v7755, 1.442695
      %v7810 = vpow.pop %v7809
      %v7811 = vmul.f32 %v7756, 1.442695
      %v7812 = vpow.pop %v7811
      %v7813 = vmul.f32 %v7757, 1.442695
      %v7814 = vpow.pop %v7813
      %v7815 = vmul.f32 %v7758, 1.442695
      %v7816 = vpow.pop %v7815
      %v7817 = vmul.f32 %v7759, 1.442695
      %v7818 = vpow.pop %v7817
      %v7819 = vmul.f32 %v7760, 1.442695
      %v7820 = vpow.pop %v7819
      %v7821 = vmul.f32 %v7761, 1.442695
      %v7822 = vpow.pop %v7821
      %v7823 = vmul.f32 %v7762, 1.442695
      %v7824 = vpow.pop %v7823
      %v7825 = vmul.f32 %v7763, 1.442695
      %v7826 = vpow.pop %v7825
      %v7827 = vmul.f32 %v7764, 1.442695
      %v7828 = vpow.pop %v7827
      %v7829 = vsel %vm7636, %v7766, 0.0
      %7830 = vadd.xlane.f32.xlu0 %v7829
      %v7831 = vpop.xlane.xlu0 %7830
      %v7832 = vsel %vm7636, %v7768, 0.0
      %7833 = vadd.xlane.f32.xlu0 %v7832
      %v7834 = vpop.xlane.xlu0 %7833
      %v7835 = vsel %vm7636, %v7770, 0.0
      %7836 = vadd.xlane.f32.xlu0 %v7835
      %v7837 = vpop.xlane.xlu0 %7836
      %v7838 = vsel %vm7636, %v7772, 0.0
      %7839 = vadd.xlane.f32.xlu0 %v7838
      %v7840 = vpop.xlane.xlu0 %7839
      %v7841 = vsel %vm7636, %v7774, 0.0
      %7842 = vadd.xlane.f32.xlu0 %v7841
      %v7843 = vpop.xlane.xlu0 %7842
      %v7844 = vsel %vm7636, %v7776, 0.0
      %7845 = vadd.xlane.f32.xlu0 %v7844
      %v7846 = vpop.xlane.xlu0 %7845
      %v7847 = vsel %vm7636, %v7778, 0.0
      %7848 = vadd.xlane.f32.xlu0 %v7847
      %v7849 = vpop.xlane.xlu0 %7848
      %v7850 = vsel %vm7636, %v7780, 0.0
      %7851 = vadd.xlane.f32.xlu0 %v7850
      %v7852 = vpop.xlane.xlu0 %7851
      %v7853 = vsel %vm7636, %v7782, 0.0
      %7854 = vadd.xlane.f32.xlu0 %v7853
      %v7855 = vpop.xlane.xlu0 %7854
      %v7856 = vsel %vm7636, %v7784, 0.0
      %7857 = vadd.xlane.f32.xlu0 %v7856
      %v7858 = vpop.xlane.xlu0 %7857
      %v7859 = vsel %vm7636, %v7786, 0.0
      %7860 = vadd.xlane.f32.xlu0 %v7859
      %v7861 = vpop.xlane.xlu0 %7860
      %v7862 = vsel %vm7636, %v7788, 0.0
      %7863 = vadd.xlane.f32.xlu0 %v7862
      %v7864 = vpop.xlane.xlu0 %7863
      %v7865 = vsel %vm7636, %v7790, 0.0
      %7866 = vadd.xlane.f32.xlu0 %v7865
      %v7867 = vpop.xlane.xlu0 %7866
      %v7868 = vsel %vm7636, %v7792, 0.0
      %7869 = vadd.xlane.f32.xlu0 %v7868
      %v7870 = vpop.xlane.xlu0 %7869
      %v7871 = vsel %vm7636, %v7794, 0.0
      %7872 = vadd.xlane.f32.xlu0 %v7871
      %v7873 = vpop.xlane.xlu0 %7872
      %v7874 = vsel %vm7636, %v7796, 0.0
      %7875 = vadd.xlane.f32.xlu0 %v7874
      %v7876 = vpop.xlane.xlu0 %7875
      %v7877 = vsel %vm7636, %v7798, 0.0
      %7878 = vadd.xlane.f32.xlu0 %v7877
      %v7879 = vpop.xlane.xlu0 %7878
      %v7880 = vsel %vm7636, %v7800, 0.0
      %7881 = vadd.xlane.f32.xlu0 %v7880
      %v7882 = vpop.xlane.xlu0 %7881
      %v7883 = vsel %vm7636, %v7802, 0.0
      %7884 = vadd.xlane.f32.xlu0 %v7883
      %v7885 = vpop.xlane.xlu0 %7884
      %v7886 = vsel %vm7636, %v7804, 0.0
      %7887 = vadd.xlane.f32.xlu0 %v7886
      %v7888 = vpop.xlane.xlu0 %7887
      %v7889 = vsel %vm7636, %v7806, 0.0
      %7890 = vadd.xlane.f32.xlu0 %v7889
      %v7891 = vpop.xlane.xlu0 %7890
      %v7892 = vsel %vm7636, %v7808, 0.0
      %7893 = vadd.xlane.f32.xlu0 %v7892
      %v7894 = vpop.xlane.xlu0 %7893
      %v7895 = vsel %vm7636, %v7810, 0.0
      %7896 = vadd.xlane.f32.xlu0 %v7895
      %v7897 = vpop.xlane.xlu0 %7896
      %v7898 = vsel %vm7636, %v7812, 0.0
      %7899 = vadd.xlane.f32.xlu0 %v7898
      %v7900 = vpop.xlane.xlu0 %7899
      %v7901 = vsel %vm7636, %v7814, 0.0
      %7902 = vadd.xlane.f32.xlu0 %v7901
      %v7903 = vpop.xlane.xlu0 %7902
      %v7904 = vsel %vm7636, %v7816, 0.0
      %7905 = vadd.xlane.f32.xlu0 %v7904
      %v7906 = vpop.xlane.xlu0 %7905
      %v7907 = vsel %vm7636, %v7818, 0.0
      %7908 = vadd.xlane.f32.xlu0 %v7907
      %v7909 = vpop.xlane.xlu0 %7908
      %v7910 = vsel %vm7636, %v7820, 0.0
      %7911 = vadd.xlane.f32.xlu0 %v7910
      %v7912 = vpop.xlane.xlu0 %7911
      %v7913 = vsel %vm7636, %v7822, 0.0
      %7914 = vadd.xlane.f32.xlu0 %v7913
      %v7915 = vpop.xlane.xlu0 %7914
      %v7916 = vsel %vm7636, %v7824, 0.0
      %7917 = vadd.xlane.f32.xlu0 %v7916
      %v7918 = vpop.xlane.xlu0 %7917
      %v7919 = vsel %vm7636, %v7826, 0.0
      %7920 = vadd.xlane.f32.xlu0 %v7919
      %v7921 = vpop.xlane.xlu0 %7920
      %v7922 = vsel %vm7636, %v7828, 0.0
      %7923 = vadd.xlane.f32.xlu0 %v7922
      %v7924 = vpop.xlane.xlu0 %7923
      %v7925 = vrcp.pop %v7831
      %v7926 = vmul.f32 %v7766, %v7925
      %v7927 = vrcp.pop %v7834
      %v7928 = vmul.f32 %v7768, %v7927
      %v7929 = vrcp.pop %v7837
      %v7930 = vmul.f32 %v7770, %v7929
      %v7931 = vrcp.pop %v7840
      %v7932 = vmul.f32 %v7772, %v7931
      %v7933 = vrcp.pop %v7843
      %v7934 = vmul.f32 %v7774, %v7933
      %v7935 = vrcp.pop %v7846
      %v7936 = vmul.f32 %v7776, %v7935
      %v7937 = vrcp.pop %v7849
      %v7938 = vmul.f32 %v7778, %v7937
      %v7939 = vrcp.pop %v7852
      %v7940 = vmul.f32 %v7780, %v7939
      %v7941 = vrcp.pop %v7855
      %v7942 = vmul.f32 %v7782, %v7941
      %v7943 = vrcp.pop %v7858
      %v7944 = vmul.f32 %v7784, %v7943
      %v7945 = vrcp.pop %v7861
      %v7946 = vmul.f32 %v7786, %v7945
      %v7947 = vrcp.pop %v7864
      %v7948 = vmul.f32 %v7788, %v7947
      %v7949 = vrcp.pop %v7867
      %v7950 = vmul.f32 %v7790, %v7949
      %v7951 = vrcp.pop %v7870
      %v7952 = vmul.f32 %v7792, %v7951
      %v7953 = vrcp.pop %v7873
      %v7954 = vmul.f32 %v7794, %v7953
      %v7955 = vrcp.pop %v7876
      %v7956 = vmul.f32 %v7796, %v7955
      %v7957 = vrcp.pop %v7879
      %v7958 = vmul.f32 %v7798, %v7957
      %v7959 = vrcp.pop %v7882
      %v7960 = vmul.f32 %v7800, %v7959
      %v7961 = vrcp.pop %v7885
      %v7962 = vmul.f32 %v7802, %v7961
      %v7963 = vrcp.pop %v7888
      %v7964 = vmul.f32 %v7804, %v7963
      %v7965 = vrcp.pop %v7891
      %v7966 = vmul.f32 %v7806, %v7965
      %v7967 = vrcp.pop %v7894
      %v7968 = vmul.f32 %v7808, %v7967
      %v7969 = vrcp.pop %v7897
      %v7970 = vmul.f32 %v7810, %v7969
      %v7971 = vrcp.pop %v7900
      %v7972 = vmul.f32 %v7812, %v7971
      %v7973 = vrcp.pop %v7903
      %v7974 = vmul.f32 %v7814, %v7973
      %v7975 = vrcp.pop %v7906
      %v7976 = vmul.f32 %v7816, %v7975
      %v7977 = vrcp.pop %v7909
      %v7978 = vmul.f32 %v7818, %v7977
      %v7979 = vrcp.pop %v7912
      %v7980 = vmul.f32 %v7820, %v7979
      %v7981 = vrcp.pop %v7915
      %v7982 = vmul.f32 %v7822, %v7981
      %v7983 = vrcp.pop %v7918
      %v7984 = vmul.f32 %v7824, %v7983
      %v7985 = vrcp.pop %v7921
      %v7986 = vmul.f32 %v7826, %v7985
      %v7987 = vrcp.pop %v7924
      %v7988 = vmul.f32 %v7828, %v7987
      %7989 = vrot.lane.b32.xlu0 %v1172, 120
      %v7990 = vpop.permute.xlu0 %7989
      %v7993 = vsel %vm1459, %v7926, 0
      %7995 = vmatprep.subr.mxu0 0.0
      %7996 = vmatpush1.msra.mxu0 %v7990
      %7997 = vmatprep.subr.mxu0 0.0
      %7998 = vmatpush1.msra.mxu0 0.0
      %7999 = vmatprep.subr.mxu0 0.0
      %8000 = vmatpush1.msra.mxu0 0.0
      %8001 = vmatprep.subr.mxu0 0.0
      %8002 = vmatpush1.msra.mxu0 0.0
      %8003 = vmatprep.subr.mxu0 0.0
      %8004 = vmatpush1.msra.mxu0 0.0
      %8005 = vmatprep.subr.mxu0 0.0
      %8006 = vmatpush1.msra.mxu0 0.0
      %8007 = vmatprep.subr.mxu0 0.0
      %8008 = vmatpush1.msra.mxu0 0.0
      %8009 = vmatprep.subr.mxu0 0.0
      %8010 = vmatpush1.msra.mxu0 0.0
      %8011 = vmatprep.subr.mxu0 0.0
      %8012 = vmatpush1.msra.mxu0 0.0
      %8013 = vmatprep.subr.mxu0 0.0
      %8014 = vmatpush1.msra.mxu0 0.0
      %8015 = vmatprep.subr.mxu0 0.0
      %8016 = vmatpush1.msra.mxu0 0.0
      %8017 = vmatprep.subr.mxu0 0.0
      %8018 = vmatpush1.msra.mxu0 0.0
      %8019 = vmatprep.subr.mxu0 0.0
      %8020 = vmatpush1.msra.mxu0 0.0
      %8021 = vmatprep.subr.mxu0 0.0
      %8022 = vmatpush1.msra.mxu0 0.0
      %8023 = vmatprep.subr.mxu0 0.0
      %8024 = vmatpush1.msra.mxu0 0.0
      %8025 = vmatprep.subr.mxu0 0.0
      %8026 = vmatpush1.msra.mxu0 0.0
      %8027 = vmatprep.subr.mxu0 0.0
      %8028 = vmatpush1.msra.mxu0 0.0
      %8029 = vmatprep.subr.mxu0 0.0
      %8030 = vmatpush1.msra.mxu0 0.0
      %8031 = vmatprep.subr.mxu0 0.0
      %8032 = vmatpush1.msra.mxu0 0.0
      %8033 = vmatprep.subr.mxu0 0.0
      %8034 = vmatpush1.msra.mxu0 0.0
      %8035 = vmatprep.subr.mxu0 0.0
      %8036 = vmatpush1.msra.mxu0 0.0
      %8037 = vmatprep.subr.mxu0 0.0
      %8038 = vmatpush1.msra.mxu0 0.0
      %8039 = vmatprep.subr.mxu0 0.0
      %8040 = vmatpush1.msra.mxu0 0.0
      %8041 = vmatprep.subr.mxu0 0.0
      %8042 = vmatpush1.msra.mxu0 0.0
      %8043 = vmatprep.subr.mxu0 0.0
      %8044 = vmatpush1.msra.mxu0 0.0
      %8045 = vmatprep.subr.mxu0 0.0
      %8046 = vmatpush1.msra.mxu0 0.0
      %8047 = vmatprep.subr.mxu0 0.0
      %8048 = vmatpush1.msra.mxu0 0.0
      %8049 = vmatprep.subr.mxu0 0.0
      %8050 = vmatpush1.msra.mxu0 0.0
      %8051 = vmatprep.subr.mxu0 0.0
      %8052 = vmatpush1.msra.mxu0 0.0
      %8053 = vmatprep.subr.mxu0 0.0
      %8054 = vmatpush1.msra.mxu0 0.0
      %8055 = vmatprep.subr.mxu0 0.0
      %8056 = vmatpush1.msra.mxu0 0.0
      %8057 = vmatprep.subr.mxu0 0.0
      %8058 = vmatpush1.msra.mxu0 0.0
      %8059 = vmatprep.mubr.f32.mxu0 0.0
      %8060 = vmatmul.mubr.f32.gmra.mrb[0].mxu0 %v7993
      %v8061 = vpop.f32.mrb[0].mxu0
      %v8062 = vadd.f32 0.0, %v8061
      %v8063 = vpop.f32.mrb[0].mxu0
      %8064 = vdwg.mxu0
      %8065 = vrot.lane.b32.xlu0 %v1177, 120
      %v8066 = vpop.permute.xlu0 %8065
      %v8069 = vsel %vm1459, %v7928, 0
      %8071 = vmatprep.subr.mxu0 0.0
      %8072 = vmatpush1.msra.mxu0 %v8066
      %8073 = vmatprep.subr.mxu0 0.0
      %8074 = vmatpush1.msra.mxu0 0.0
      %8075 = vmatprep.subr.mxu0 0.0
      %8076 = vmatpush1.msra.mxu0 0.0
      %8077 = vmatprep.subr.mxu0 0.0
      %8078 = vmatpush1.msra.mxu0 0.0
      %8079 = vmatprep.subr.mxu0 0.0
      %8080 = vmatpush1.msra.mxu0 0.0
      %8081 = vmatprep.subr.mxu0 0.0
      %8082 = vmatpush1.msra.mxu0 0.0
      %8083 = vmatprep.subr.mxu0 0.0
      %8084 = vmatpush1.msra.mxu0 0.0
      %8085 = vmatprep.subr.mxu0 0.0
      %8086 = vmatpush1.msra.mxu0 0.0
      %8087 = vmatprep.subr.mxu0 0.0
      %8088 = vmatpush1.msra.mxu0 0.0
      %8089 = vmatprep.subr.mxu0 0.0
      %8090 = vmatpush1.msra.mxu0 0.0
      %8091 = vmatprep.subr.mxu0 0.0
      %8092 = vmatpush1.msra.mxu0 0.0
      %8093 = vmatprep.subr.mxu0 0.0
      %8094 = vmatpush1.msra.mxu0 0.0
      %8095 = vmatprep.subr.mxu0 0.0
      %8096 = vmatpush1.msra.mxu0 0.0
      %8097 = vmatprep.subr.mxu0 0.0
      %8098 = vmatpush1.msra.mxu0 0.0
      %8099 = vmatprep.subr.mxu0 0.0
      %8100 = vmatpush1.msra.mxu0 0.0
      %8101 = vmatprep.subr.mxu0 0.0
      %8102 = vmatpush1.msra.mxu0 0.0
      %8103 = vmatprep.subr.mxu0 0.0
      %8104 = vmatpush1.msra.mxu0 0.0
      %8105 = vmatprep.subr.mxu0 0.0
      %8106 = vmatpush1.msra.mxu0 0.0
      %8107 = vmatprep.subr.mxu0 0.0
      %8108 = vmatpush1.msra.mxu0 0.0
      %8109 = vmatprep.subr.mxu0 0.0
      %8110 = vmatpush1.msra.mxu0 0.0
      %8111 = vmatprep.subr.mxu0 0.0
      %8112 = vmatpush1.msra.mxu0 0.0
      %8113 = vmatprep.subr.mxu0 0.0
      %8114 = vmatpush1.msra.mxu0 0.0
      %8115 = vmatprep.subr.mxu0 0.0
      %8116 = vmatpush1.msra.mxu0 0.0
      %8117 = vmatprep.subr.mxu0 0.0
      %8118 = vmatpush1.msra.mxu0 0.0
      %8119 = vmatprep.subr.mxu0 0.0
      %8120 = vmatpush1.msra.mxu0 0.0
      %8121 = vmatprep.subr.mxu0 0.0
      %8122 = vmatpush1.msra.mxu0 0.0
      %8123 = vmatprep.subr.mxu0 0.0
      %8124 = vmatpush1.msra.mxu0 0.0
      %8125 = vmatprep.subr.mxu0 0.0
      %8126 = vmatpush1.msra.mxu0 0.0
      %8127 = vmatprep.subr.mxu0 0.0
      %8128 = vmatpush1.msra.mxu0 0.0
      %8129 = vmatprep.subr.mxu0 0.0
      %8130 = vmatpush1.msra.mxu0 0.0
      %8131 = vmatprep.subr.mxu0 0.0
      %8132 = vmatpush1.msra.mxu0 0.0
      %8133 = vmatprep.subr.mxu0 0.0
      %8134 = vmatpush1.msra.mxu0 0.0
      %8135 = vmatprep.mubr.f32.mxu0 0.0
      %8136 = vmatmul.mubr.f32.gmra.mrb[0].mxu0 %v8069
      %v8137 = vpop.f32.mrb[0].mxu0
      %v8138 = vadd.f32 0.0, %v8137
      %v8139 = vpop.f32.mrb[0].mxu0
      %8140 = vdwg.mxu0
      %8141 = vrot.lane.b32.xlu0 %v1182, 120
      %v8142 = vpop.permute.xlu0 %8141
      %v8145 = vsel %vm1459, %v7930, 0
      %8147 = vmatprep.subr.mxu0 0.0
      %8148 = vmatpush1.msra.mxu0 %v8142
      %8149 = vmatprep.subr.mxu0 0.0
      %8150 = vmatpush1.msra.mxu0 0.0
      %8151 = vmatprep.subr.mxu0 0.0
      %8152 = vmatpush1.msra.mxu0 0.0
      %8153 = vmatprep.subr.mxu0 0.0
      %8154 = vmatpush1.msra.mxu0 0.0
      %8155 = vmatprep.subr.mxu0 0.0
      %8156 = vmatpush1.msra.mxu0 0.0
      %8157 = vmatprep.subr.mxu0 0.0
      %8158 = vmatpush1.msra.mxu0 0.0
      %8159 = vmatprep.subr.mxu0 0.0
      %8160 = vmatpush1.msra.mxu0 0.0
      %8161 = vmatprep.subr.mxu0 0.0
      %8162 = vmatpush1.msra.mxu0 0.0
      %8163 = vmatprep.subr.mxu0 0.0
      %8164 = vmatpush1.msra.mxu0 0.0
      %8165 = vmatprep.subr.mxu0 0.0
      %8166 = vmatpush1.msra.mxu0 0.0
      %8167 = vmatprep.subr.mxu0 0.0
      %8168 = vmatpush1.msra.mxu0 0.0
      %8169 = vmatprep.subr.mxu0 0.0
      %8170 = vmatpush1.msra.mxu0 0.0
      %8171 = vmatprep.subr.mxu0 0.0
      %8172 = vmatpush1.msra.mxu0 0.0
      %8173 = vmatprep.subr.mxu0 0.0
      %8174 = vmatpush1.msra.mxu0 0.0
      %8175 = vmatprep.subr.mxu0 0.0
      %8176 = vmatpush1.msra.mxu0 0.0
      %8177 = vmatprep.subr.mxu0 0.0
      %8178 = vmatpush1.msra.mxu0 0.0
      %8179 = vmatprep.subr.mxu0 0.0
      %8180 = vmatpush1.msra.mxu0 0.0
      %8181 = vmatprep.subr.mxu0 0.0
      %8182 = vmatpush1.msra.mxu0 0.0
      %8183 = vmatprep.subr.mxu0 0.0
      %8184 = vmatpush1.msra.mxu0 0.0
      %8185 = vmatprep.subr.mxu0 0.0
      %8186 = vmatpush1.msra.mxu0 0.0
      %8187 = vmatprep.subr.mxu0 0.0
      %8188 = vmatpush1.msra.mxu0 0.0
      %8189 = vmatprep.subr.mxu0 0.0
      %8190 = vmatpush1.msra.mxu0 0.0
      %8191 = vmatprep.subr.mxu0 0.0
      %8192 = vmatpush1.msra.mxu0 0.0
      %8193 = vmatprep.subr.mxu0 0.0
      %8194 = vmatpush1.msra.mxu0 0.0
      %8195 = vmatprep.subr.mxu0 0.0
      %8196 = vmatpush1.msra.mxu0 0.0
      %8197 = vmatprep.subr.mxu0 0.0
      %8198 = vmatpush1.msra.mxu0 0.0
      %8199 = vmatprep.subr.mxu0 0.0
      %8200 = vmatpush1.msra.mxu0 0.0
      %8201 = vmatprep.subr.mxu0 0.0
      %8202 = vmatpush1.msra.mxu0 0.0
      %8203 = vmatprep.subr.mxu0 0.0
      %8204 = vmatpush1.msra.mxu0 0.0
      %8205 = vmatprep.subr.mxu0 0.0
      %8206 = vmatpush1.msra.mxu0 0.0
      %8207 = vmatprep.subr.mxu0 0.0
      %8208 = vmatpush1.msra.mxu0 0.0
      %8209 = vmatprep.subr.mxu0 0.0
      %8210 = vmatpush1.msra.mxu0 0.0
      %8211 = vmatprep.mubr.f32.mxu0 0.0
      %8212 = vmatmul.mubr.f32.gmra.mrb[0].mxu0 %v8145
      %v8213 = vpop.f32.mrb[0].mxu0
      %v8214 = vadd.f32 0.0, %v8213
      %v8215 = vpop.f32.mrb[0].mxu0
      %8216 = vdwg.mxu0
      %8217 = vrot.lane.b32.xlu0 %v1187, 120
      %v8218 = vpop.permute.xlu0 %8217
      %v8221 = vsel %vm1459, %v7932, 0
      %8223 = vmatprep.subr.mxu0 0.0
      %8224 = vmatpush1.msra.mxu0 %v8218
      %8225 = vmatprep.subr.mxu0 0.0
      %8226 = vmatpush1.msra.mxu0 0.0
      %8227 = vmatprep.subr.mxu0 0.0
      %8228 = vmatpush1.msra.mxu0 0.0
      %8229 = vmatprep.subr.mxu0 0.0
      %8230 = vmatpush1.msra.mxu0 0.0
      %8231 = vmatprep.subr.mxu0 0.0
      %8232 = vmatpush1.msra.mxu0 0.0
      %8233 = vmatprep.subr.mxu0 0.0
      %8234 = vmatpush1.msra.mxu0 0.0
      %8235 = vmatprep.subr.mxu0 0.0
      %8236 = vmatpush1.msra.mxu0 0.0
      %8237 = vmatprep.subr.mxu0 0.0
      %8238 = vmatpush1.msra.mxu0 0.0
      %8239 = vmatprep.subr.mxu0 0.0
      %8240 = vmatpush1.msra.mxu0 0.0
      %8241 = vmatprep.subr.mxu0 0.0
      %8242 = vmatpush1.msra.mxu0 0.0
      %8243 = vmatprep.subr.mxu0 0.0
      %8244 = vmatpush1.msra.mxu0 0.0
      %8245 = vmatprep.subr.mxu0 0.0
      %8246 = vmatpush1.msra.mxu0 0.0
      %8247 = vmatprep.subr.mxu0 0.0
      %8248 = vmatpush1.msra.mxu0 0.0
      %8249 = vmatprep.subr.mxu0 0.0
      %8250 = vmatpush1.msra.mxu0 0.0
      %8251 = vmatprep.subr.mxu0 0.0
      %8252 = vmatpush1.msra.mxu0 0.0
      %8253 = vmatprep.subr.mxu0 0.0
      %8254 = vmatpush1.msra.mxu0 0.0
      %8255 = vmatprep.subr.mxu0 0.0
      %8256 = vmatpush1.msra.mxu0 0.0
      %8257 = vmatprep.subr.mxu0 0.0
      %8258 = vmatpush1.msra.mxu0 0.0
      %8259 = vmatprep.subr.mxu0 0.0
      %8260 = vmatpush1.msra.mxu0 0.0
      %8261 = vmatprep.subr.mxu0 0.0
      %8262 = vmatpush1.msra.mxu0 0.0
      %8263 = vmatprep.subr.mxu0 0.0
      %8264 = vmatpush1.msra.mxu0 0.0
      %8265 = vmatprep.subr.mxu0 0.0
      %8266 = vmatpush1.msra.mxu0 0.0
      %8267 = vmatprep.subr.mxu0 0.0
      %8268 = vmatpush1.msra.mxu0 0.0
      %8269 = vmatprep.subr.mxu0 0.0
      %8270 = vmatpush1.msra.mxu0 0.0
      %8271 = vmatprep.subr.mxu0 0.0
      %8272 = vmatpush1.msra.mxu0 0.0
      %8273 = vmatprep.subr.mxu0 0.0
      %8274 = vmatpush1.msra.mxu0 0.0
      %8275 = vmatprep.subr.mxu0 0.0
      %8276 = vmatpush1.msra.mxu0 0.0
      %8277 = vmatprep.subr.mxu0 0.0
      %8278 = vmatpush1.msra.mxu0 0.0
      %8279 = vmatprep.subr.mxu0 0.0
      %8280 = vmatpush1.msra.mxu0 0.0
      %8281 = vmatprep.subr.mxu0 0.0
      %8282 = vmatpush1.msra.mxu0 0.0
      %8283 = vmatprep.subr.mxu0 0.0
      %8284 = vmatpush1.msra.mxu0 0.0
      %8285 = vmatprep.subr.mxu0 0.0
      %8286 = vmatpush1.msra.mxu0 0.0
      %8287 = vmatprep.mubr.f32.mxu0 0.0
      %8288 = vmatmul.mubr.f32.gmra.mrb[0].mxu0 %v8221
      %v8289 = vpop.f32.mrb[0].mxu0
      %v8290 = vadd.f32 0.0, %v8289
      %v8291 = vpop.f32.mrb[0].mxu0
      %8292 = vdwg.mxu0
      %8293 = vrot.lane.b32.xlu0 %v1192, 120
      %v8294 = vpop.permute.xlu0 %8293
      %v8297 = vsel %vm1459, %v7934, 0
      %8299 = vmatprep.subr.mxu0 0.0
      %8300 = vmatpush1.msra.mxu0 %v8294
      %8301 = vmatprep.subr.mxu0 0.0
      %8302 = vmatpush1.msra.mxu0 0.0
      %8303 = vmatprep.subr.mxu0 0.0
      %8304 = vmatpush1.msra.mxu0 0.0
      %8305 = vmatprep.subr.mxu0 0.0
      %8306 = vmatpush1.msra.mxu0 0.0
      %8307 = vmatprep.subr.mxu0 0.0
      %8308 = vmatpush1.msra.mxu0 0.0
      %8309 = vmatprep.subr.mxu0 0.0
      %8310 = vmatpush1.msra.mxu0 0.0
      %8311 = vmatprep.subr.mxu0 0.0
      %8312 = vmatpush1.msra.mxu0 0.0
      %8313 = vmatprep.subr.mxu0 0.0
      %8314 = vmatpush1.msra.mxu0 0.0
      %8315 = vmatprep.subr.mxu0 0.0
      %8316 = vmatpush1.msra.mxu0 0.0
      %8317 = vmatprep.subr.mxu0 0.0
      %8318 = vmatpush1.msra.mxu0 0.0
      %8319 = vmatprep.subr.mxu0 0.0
      %8320 = vmatpush1.msra.mxu0 0.0
      %8321 = vmatprep.subr.mxu0 0.0
      %8322 = vmatpush1.msra.mxu0 0.0
      %8323 = vmatprep.subr.mxu0 0.0
      %8324 = vmatpush1.msra.mxu0 0.0
      %8325 = vmatprep.subr.mxu0 0.0
      %8326 = vmatpush1.msra.mxu0 0.0
      %8327 = vmatprep.subr.mxu0 0.0
      %8328 = vmatpush1.msra.mxu0 0.0
      %8329 = vmatprep.subr.mxu0 0.0
      %8330 = vmatpush1.msra.mxu0 0.0
      %8331 = vmatprep.subr.mxu0 0.0
      %8332 = vmatpush1.msra.mxu0 0.0
      %8333 = vmatprep.subr.mxu0 0.0
      %8334 = vmatpush1.msra.mxu0 0.0
      %8335 = vmatprep.subr.mxu0 0.0
      %8336 = vmatpush1.msra.mxu0 0.0
      %8337 = vmatprep.subr.mxu0 0.0
      %8338 = vmatpush1.msra.mxu0 0.0
      %8339 = vmatprep.subr.mxu0 0.0
      %8340 = vmatpush1.msra.mxu0 0.0
      %8341 = vmatprep.subr.mxu0 0.0
      %8342 = vmatpush1.msra.mxu0 0.0
      %8343 = vmatprep.subr.mxu0 0.0
      %8344 = vmatpush1.msra.mxu0 0.0
      %8345 = vmatprep.subr.mxu0 0.0
      %8346 = vmatpush1.msra.mxu0 0.0
      %8347 = vmatprep.subr.mxu0 0.0
      %8348 = vmatpush1.msra.mxu0 0.0
      %8349 = vmatprep.subr.mxu0 0.0
      %8350 = vmatpush1.msra.mxu0 0.0
      %8351 = vmatprep.subr.mxu0 0.0
      %8352 = vmatpush1.msra.mxu0 0.0
      %8353 = vmatprep.subr.mxu0 0.0
      %8354 = vmatpush1.msra.mxu0 0.0
      %8355 = vmatprep.subr.mxu0 0.0
      %8356 = vmatpush1.msra.mxu0 0.0
      %8357 = vmatprep.subr.mxu0 0.0
      %8358 = vmatpush1.msra.mxu0 0.0
      %8359 = vmatprep.subr.mxu0 0.0
      %8360 = vmatpush1.msra.mxu0 0.0
      %8361 = vmatprep.subr.mxu0 0.0
      %8362 = vmatpush1.msra.mxu0 0.0
      %8363 = vmatprep.mubr.f32.mxu0 0.0
      %8364 = vmatmul.mubr.f32.gmra.mrb[0].mxu0 %v8297
      %v8365 = vpop.f32.mrb[0].mxu0
      %v8366 = vadd.f32 0.0, %v8365
      %v8367 = vpop.f32.mrb[0].mxu0
      %8368 = vdwg.mxu0
      %8369 = vrot.lane.b32.xlu0 %v1197, 120
      %v8370 = vpop.permute.xlu0 %8369
      %v8373 = vsel %vm1459, %v7936, 0
      %8375 = vmatprep.subr.mxu0 0.0
      %8376 = vmatpush1.msra.mxu0 %v8370
      %8377 = vmatprep.subr.mxu0 0.0
      %8378 = vmatpush1.msra.mxu0 0.0
      %8379 = vmatprep.subr.mxu0 0.0
      %8380 = vmatpush1.msra.mxu0 0.0
      %8381 = vmatprep.subr.mxu0 0.0
      %8382 = vmatpush1.msra.mxu0 0.0
      %8383 = vmatprep.subr.mxu0 0.0
      %8384 = vmatpush1.msra.mxu0 0.0
      %8385 = vmatprep.subr.mxu0 0.0
      %8386 = vmatpush1.msra.mxu0 0.0
      %8387 = vmatprep.subr.mxu0 0.0
      %8388 = vmatpush1.msra.mxu0 0.0
      %8389 = vmatprep.subr.mxu0 0.0
      %8390 = vmatpush1.msra.mxu0 0.0
      %8391 = vmatprep.subr.mxu0 0.0
      %8392 = vmatpush1.msra.mxu0 0.0
      %8393 = vmatprep.subr.mxu0 0.0
      %8394 = vmatpush1.msra.mxu0 0.0
      %8395 = vmatprep.subr.mxu0 0.0
      %8396 = vmatpush1.msra.mxu0 0.0
      %8397 = vmatprep.subr.mxu0 0.0
      %8398 = vmatpush1.msra.mxu0 0.0
      %8399 = vmatprep.subr.mxu0 0.0
      %8400 = vmatpush1.msra.mxu0 0.0
      %8401 = vmatprep.subr.mxu0 0.0
      %8402 = vmatpush1.msra.mxu0 0.0
      %8403 = vmatprep.subr.mxu0 0.0
      %8404 = vmatpush1.msra.mxu0 0.0
      %8405 = vmatprep.subr.mxu0 0.0
      %8406 = vmatpush1.msra.mxu0 0.0
      %8407 = vmatprep.subr.mxu0 0.0
      %8408 = vmatpush1.msra.mxu0 0.0
      %8409 = vmatprep.subr.mxu0 0.0
      %8410 = vmatpush1.msra.mxu0 0.0
      %8411 = vmatprep.subr.mxu0 0.0
      %8412 = vmatpush1.msra.mxu0 0.0
      %8413 = vmatprep.subr.mxu0 0.0
      %8414 = vmatpush1.msra.mxu0 0.0
      %8415 = vmatprep.subr.mxu0 0.0
      %8416 = vmatpush1.msra.mxu0 0.0
      %8417 = vmatprep.subr.mxu0 0.0
      %8418 = vmatpush1.msra.mxu0 0.0
      %8419 = vmatprep.subr.mxu0 0.0
      %8420 = vmatpush1.msra.mxu0 0.0
      %8421 = vmatprep.subr.mxu0 0.0
      %8422 = vmatpush1.msra.mxu0 0.0
      %8423 = vmatprep.subr.mxu0 0.0
      %8424 = vmatpush1.msra.mxu0 0.0
      %8425 = vmatprep.subr.mxu0 0.0
      %8426 = vmatpush1.msra.mxu0 0.0
      %8427 = vmatprep.subr.mxu0 0.0
      %8428 = vmatpush1.msra.mxu0 0.0
      %8429 = vmatprep.subr.mxu0 0.0
      %8430 = vmatpush1.msra.mxu0 0.0
      %8431 = vmatprep.subr.mxu0 0.0
      %8432 = vmatpush1.msra.mxu0 0.0
      %8433 = vmatprep.subr.mxu0 0.0
      %8434 = vmatpush1.msra.mxu0 0.0
      %8435 = vmatprep.subr.mxu0 0.0
      %8436 = vmatpush1.msra.mxu0 0.0
      %8437 = vmatprep.subr.mxu0 0.0
      %8438 = vmatpush1.msra.mxu0 0.0
      %8439 = vmatprep.mubr.f32.mxu0 0.0
      %8440 = vmatmul.mubr.f32.gmra.mrb[0].mxu0 %v8373
      %v8441 = vpop.f32.mrb[0].mxu0
      %v8442 = vadd.f32 0.0, %v8441
      %v8443 = vpop.f32.mrb[0].mxu0
      %8444 = vdwg.mxu0
      %8445 = vrot.lane.b32.xlu0 %v1202, 120
      %v8446 = vpop.permute.xlu0 %8445
      %v8449 = vsel %vm1459, %v7938, 0
      %8451 = vmatprep.subr.mxu0 0.0
      %8452 = vmatpush1.msra.mxu0 %v8446
      %8453 = vmatprep.subr.mxu0 0.0
      %8454 = vmatpush1.msra.mxu0 0.0
      %8455 = vmatprep.subr.mxu0 0.0
      %8456 = vmatpush1.msra.mxu0 0.0
      %8457 = vmatprep.subr.mxu0 0.0
      %8458 = vmatpush1.msra.mxu0 0.0
      %8459 = vmatprep.subr.mxu0 0.0
      %8460 = vmatpush1.msra.mxu0 0.0
      %8461 = vmatprep.subr.mxu0 0.0
      %8462 = vmatpush1.msra.mxu0 0.0
      %8463 = vmatprep.subr.mxu0 0.0
      %8464 = vmatpush1.msra.mxu0 0.0
      %8465 = vmatprep.subr.mxu0 0.0
      %8466 = vmatpush1.msra.mxu0 0.0
      %8467 = vmatprep.subr.mxu0 0.0
      %8468 = vmatpush1.msra.mxu0 0.0
      %8469 = vmatprep.subr.mxu0 0.0
      %8470 = vmatpush1.msra.mxu0 0.0
      %8471 = vmatprep.subr.mxu0 0.0
      %8472 = vmatpush1.msra.mxu0 0.0
      %8473 = vmatprep.subr.mxu0 0.0
      %8474 = vmatpush1.msra.mxu0 0.0
      %8475 = vmatprep.subr.mxu0 0.0
      %8476 = vmatpush1.msra.mxu0 0.0
      %8477 = vmatprep.subr.mxu0 0.0
      %8478 = vmatpush1.msra.mxu0 0.0
      %8479 = vmatprep.subr.mxu0 0.0
      %8480 = vmatpush1.msra.mxu0 0.0
      %8481 = vmatprep.subr.mxu0 0.0
      %8482 = vmatpush1.msra.mxu0 0.0
      %8483 = vmatprep.subr.mxu0 0.0
      %8484 = vmatpush1.msra.mxu0 0.0
      %8485 = vmatprep.subr.mxu0 0.0
      %8486 = vmatpush1.msra.mxu0 0.0
      %8487 = vmatprep.subr.mxu0 0.0
      %8488 = vmatpush1.msra.mxu0 0.0
      %8489 = vmatprep.subr.mxu0 0.0
      %8490 = vmatpush1.msra.mxu0 0.0
      %8491 = vmatprep.subr.mxu0 0.0
      %8492 = vmatpush1.msra.mxu0 0.0
      %8493 = vmatprep.subr.mxu0 0.0
      %8494 = vmatpush1.msra.mxu0 0.0
      %8495 = vmatprep.subr.mxu0 0.0
      %8496 = vmatpush1.msra.mxu0 0.0
      %8497 = vmatprep.subr.mxu0 0.0
      %8498 = vmatpush1.msra.mxu0 0.0
      %8499 = vmatprep.subr.mxu0 0.0
      %8500 = vmatpush1.msra.mxu0 0.0
      %8501 = vmatprep.subr.mxu0 0.0
      %8502 = vmatpush1.msra.mxu0 0.0
      %8503 = vmatprep.subr.mxu0 0.0
      %8504 = vmatpush1.msra.mxu0 0.0
      %8505 = vmatprep.subr.mxu0 0.0
      %8506 = vmatpush1.msra.mxu0 0.0
      %8507 = vmatprep.subr.mxu0 0.0
      %8508 = vmatpush1.msra.mxu0 0.0
      %8509 = vmatprep.subr.mxu0 0.0
      %8510 = vmatpush1.msra.mxu0 0.0
      %8511 = vmatprep.subr.mxu0 0.0
      %8512 = vmatpush1.msra.mxu0 0.0
      %8513 = vmatprep.subr.mxu0 0.0
      %8514 = vmatpush1.msra.mxu0 0.0
      %8515 = vmatprep.mubr.f32.mxu0 0.0
      %8516 = vmatmul.mubr.f32.gmra.mrb[0].mxu0 %v8449
      %v8517 = vpop.f32.mrb[0].mxu0
      %v8518 = vadd.f32 0.0, %v8517
      %v8519 = vpop.f32.mrb[0].mxu0
      %8520 = vdwg.mxu0
      %8521 = vrot.lane.b32.xlu0 %v1207, 120
      %v8522 = vpop.permute.xlu0 %8521
      %v8525 = vsel %vm1459, %v7940, 0
      %8527 = vmatprep.subr.mxu0 0.0
      %8528 = vmatpush1.msra.mxu0 %v8522
      %8529 = vmatprep.subr.mxu0 0.0
      %8530 = vmatpush1.msra.mxu0 0.0
      %8531 = vmatprep.subr.mxu0 0.0
      %8532 = vmatpush1.msra.mxu0 0.0
      %8533 = vmatprep.subr.mxu0 0.0
      %8534 = vmatpush1.msra.mxu0 0.0
      %8535 = vmatprep.subr.mxu0 0.0
      %8536 = vmatpush1.msra.mxu0 0.0
      %8537 = vmatprep.subr.mxu0 0.0
      %8538 = vmatpush1.msra.mxu0 0.0
      %8539 = vmatprep.subr.mxu0 0.0
      %8540 = vmatpush1.msra.mxu0 0.0
      %8541 = vmatprep.subr.mxu0 0.0
      %8542 = vmatpush1.msra.mxu0 0.0
      %8543 = vmatprep.subr.mxu0 0.0
      %8544 = vmatpush1.msra.mxu0 0.0
      %8545 = vmatprep.subr.mxu0 0.0
      %8546 = vmatpush1.msra.mxu0 0.0
      %8547 = vmatprep.subr.mxu0 0.0
      %8548 = vmatpush1.msra.mxu0 0.0
      %8549 = vmatprep.subr.mxu0 0.0
      %8550 = vmatpush1.msra.mxu0 0.0
      %8551 = vmatprep.subr.mxu0 0.0
      %8552 = vmatpush1.msra.mxu0 0.0
      %8553 = vmatprep.subr.mxu0 0.0
      %8554 = vmatpush1.msra.mxu0 0.0
      %8555 = vmatprep.subr.mxu0 0.0
      %8556 = vmatpush1.msra.mxu0 0.0
      %8557 = vmatprep.subr.mxu0 0.0
      %8558 = vmatpush1.msra.mxu0 0.0
      %8559 = vmatprep.subr.mxu0 0.0
      %8560 = vmatpush1.msra.mxu0 0.0
      %8561 = vmatprep.subr.mxu0 0.0
      %8562 = vmatpush1.msra.mxu0 0.0
      %8563 = vmatprep.subr.mxu0 0.0
      %8564 = vmatpush1.msra.mxu0 0.0
      %8565 = vmatprep.subr.mxu0 0.0
      %8566 = vmatpush1.msra.mxu0 0.0
      %8567 = vmatprep.subr.mxu0 0.0
      %8568 = vmatpush1.msra.mxu0 0.0
      %8569 = vmatprep.subr.mxu0 0.0
      %8570 = vmatpush1.msra.mxu0 0.0
      %8571 = vmatprep.subr.mxu0 0.0
      %8572 = vmatpush1.msra.mxu0 0.0
      %8573 = vmatprep.subr.mxu0 0.0
      %8574 = vmatpush1.msra.mxu0 0.0
      %8575 = vmatprep.subr.mxu0 0.0
      %8576 = vmatpush1.msra.mxu0 0.0
      %8577 = vmatprep.subr.mxu0 0.0
      %8578 = vmatpush1.msra.mxu0 0.0
      %8579 = vmatprep.subr.mxu0 0.0
      %8580 = vmatpush1.msra.mxu0 0.0
      %8581 = vmatprep.subr.mxu0 0.0
      %8582 = vmatpush1.msra.mxu0 0.0
      %8583 = vmatprep.subr.mxu0 0.0
      %8584 = vmatpush1.msra.mxu0 0.0
      %8585 = vmatprep.subr.mxu0 0.0
      %8586 = vmatpush1.msra.mxu0 0.0
      %8587 = vmatprep.subr.mxu0 0.0
      %8588 = vmatpush1.msra.mxu0 0.0
      %8589 = vmatprep.subr.mxu0 0.0
      %8590 = vmatpush1.msra.mxu0 0.0
      %8591 = vmatprep.mubr.f32.mxu0 0.0
      %8592 = vmatmul.mubr.f32.gmra.mrb[0].mxu0 %v8525
      %v8593 = vpop.f32.mrb[0].mxu0
      %v8594 = vadd.f32 0.0, %v8593
      %v8595 = vpop.f32.mrb[0].mxu0
      %8596 = vdwg.mxu0
      %8597 = vrot.lane.b32.xlu0 %v1212, 120
      %v8598 = vpop.permute.xlu0 %8597
      %v8601 = vsel %vm1459, %v7942, 0
      %8603 = vmatprep.subr.mxu0 0.0
      %8604 = vmatpush1.msra.mxu0 %v8598
      %8605 = vmatprep.subr.mxu0 0.0
      %8606 = vmatpush1.msra.mxu0 0.0
      %8607 = vmatprep.subr.mxu0 0.0
      %8608 = vmatpush1.msra.mxu0 0.0
      %8609 = vmatprep.subr.mxu0 0.0
      %8610 = vmatpush1.msra.mxu0 0.0
      %8611 = vmatprep.subr.mxu0 0.0
      %8612 = vmatpush1.msra.mxu0 0.0
      %8613 = vmatprep.subr.mxu0 0.0
      %8614 = vmatpush1.msra.mxu0 0.0
      %8615 = vmatprep.subr.mxu0 0.0
      %8616 = vmatpush1.msra.mxu0 0.0
      %8617 = vmatprep.subr.mxu0 0.0
      %8618 = vmatpush1.msra.mxu0 0.0
      %8619 = vmatprep.subr.mxu0 0.0
      %8620 = vmatpush1.msra.mxu0 0.0
      %8621 = vmatprep.subr.mxu0 0.0
      %8622 = vmatpush1.msra.mxu0 0.0
      %8623 = vmatprep.subr.mxu0 0.0
      %8624 = vmatpush1.msra.mxu0 0.0
      %8625 = vmatprep.subr.mxu0 0.0
      %8626 = vmatpush1.msra.mxu0 0.0
      %8627 = vmatprep.subr.mxu0 0.0
      %8628 = vmatpush1.msra.mxu0 0.0
      %8629 = vmatprep.subr.mxu0 0.0
      %8630 = vmatpush1.msra.mxu0 0.0
      %8631 = vmatprep.subr.mxu0 0.0
      %8632 = vmatpush1.msra.mxu0 0.0
      %8633 = vmatprep.subr.mxu0 0.0
      %8634 = vmatpush1.msra.mxu0 0.0
      %8635 = vmatprep.subr.mxu0 0.0
      %8636 = vmatpush1.msra.mxu0 0.0
      %8637 = vmatprep.subr.mxu0 0.0
      %8638 = vmatpush1.msra.mxu0 0.0
      %8639 = vmatprep.subr.mxu0 0.0
      %8640 = vmatpush1.msra.mxu0 0.0
      %8641 = vmatprep.subr.mxu0 0.0
      %8642 = vmatpush1.msra.mxu0 0.0
      %8643 = vmatprep.subr.mxu0 0.0
      %8644 = vmatpush1.msra.mxu0 0.0
      %8645 = vmatprep.subr.mxu0 0.0
      %8646 = vmatpush1.msra.mxu0 0.0
      %8647 = vmatprep.subr.mxu0 0.0
      %8648 = vmatpush1.msra.mxu0 0.0
      %8649 = vmatprep.subr.mxu0 0.0
      %8650 = vmatpush1.msra.mxu0 0.0
      %8651 = vmatprep.subr.mxu0 0.0
      %8652 = vmatpush1.msra.mxu0 0.0
      %8653 = vmatprep.subr.mxu0 0.0
      %8654 = vmatpush1.msra.mxu0 0.0
      %8655 = vmatprep.subr.mxu0 0.0
      %8656 = vmatpush1.msra.mxu0 0.0
      %8657 = vmatprep.subr.mxu0 0.0
      %8658 = vmatpush1.msra.mxu0 0.0
      %8659 = vmatprep.subr.mxu0 0.0
      %8660 = vmatpush1.msra.mxu0 0.0
      %8661 = vmatprep.subr.mxu0 0.0
      %8662 = vmatpush1.msra.mxu0 0.0
      %8663 = vmatprep.subr.mxu0 0.0
      %8664 = vmatpush1.msra.mxu0 0.0
      %8665 = vmatprep.subr.mxu0 0.0
      %8666 = vmatpush1.msra.mxu0 0.0
      %8667 = vmatprep.mubr.f32.mxu0 0.0
      %8668 = vmatmul.mubr.f32.gmra.mrb[0].mxu0 %v8601
      %v8669 = vpop.f32.mrb[0].mxu0
      %v8670 = vadd.f32 0.0, %v8669
      %v8671 = vpop.f32.mrb[0].mxu0
      %8672 = vdwg.mxu0
      %8673 = vrot.lane.b32.xlu0 %v1217, 120
      %v8674 = vpop.permute.xlu0 %8673
      %v8677 = vsel %vm1459, %v7944, 0
      %8679 = vmatprep.subr.mxu0 0.0
      %8680 = vmatpush1.msra.mxu0 %v8674
      %8681 = vmatprep.subr.mxu0 0.0
      %8682 = vmatpush1.msra.mxu0 0.0
      %8683 = vmatprep.subr.mxu0 0.0
      %8684 = vmatpush1.msra.mxu0 0.0
      %8685 = vmatprep.subr.mxu0 0.0
      %8686 = vmatpush1.msra.mxu0 0.0
      %8687 = vmatprep.subr.mxu0 0.0
      %8688 = vmatpush1.msra.mxu0 0.0
      %8689 = vmatprep.subr.mxu0 0.0
      %8690 = vmatpush1.msra.mxu0 0.0
      %8691 = vmatprep.subr.mxu0 0.0
      %8692 = vmatpush1.msra.mxu0 0.0
      %8693 = vmatprep.subr.mxu0 0.0
      %8694 = vmatpush1.msra.mxu0 0.0
      %8695 = vmatprep.subr.mxu0 0.0
      %8696 = vmatpush1.msra.mxu0 0.0
      %8697 = vmatprep.subr.mxu0 0.0
      %8698 = vmatpush1.msra.mxu0 0.0
      %8699 = vmatprep.subr.mxu0 0.0
      %8700 = vmatpush1.msra.mxu0 0.0
      %8701 = vmatprep.subr.mxu0 0.0
      %8702 = vmatpush1.msra.mxu0 0.0
      %8703 = vmatprep.subr.mxu0 0.0
      %8704 = vmatpush1.msra.mxu0 0.0
      %8705 = vmatprep.subr.mxu0 0.0
      %8706 = vmatpush1.msra.mxu0 0.0
      %8707 = vmatprep.subr.mxu0 0.0
      %8708 = vmatpush1.msra.mxu0 0.0
      %8709 = vmatprep.subr.mxu0 0.0
      %8710 = vmatpush1.msra.mxu0 0.0
      %8711 = vmatprep.subr.mxu0 0.0
      %8712 = vmatpush1.msra.mxu0 0.0
      %8713 = vmatprep.subr.mxu0 0.0
      %8714 = vmatpush1.msra.mxu0 0.0
      %8715 = vmatprep.subr.mxu0 0.0
      %8716 = vmatpush1.msra.mxu0 0.0
      %8717 = vmatprep.subr.mxu0 0.0
      %8718 = vmatpush1.msra.mxu0 0.0
      %8719 = vmatprep.subr.mxu0 0.0
      %8720 = vmatpush1.msra.mxu0 0.0
      %8721 = vmatprep.subr.mxu0 0.0
      %8722 = vmatpush1.msra.mxu0 0.0
      %8723 = vmatprep.subr.mxu0 0.0
      %8724 = vmatpush1.msra.mxu0 0.0
      %8725 = vmatprep.subr.mxu0 0.0
      %8726 = vmatpush1.msra.mxu0 0.0
      %8727 = vmatprep.subr.mxu0 0.0
      %8728 = vmatpush1.msra.mxu0 0.0
      %8729 = vmatprep.subr.mxu0 0.0
      %8730 = vmatpush1.msra.mxu0 0.0
      %8731 = vmatprep.subr.mxu0 0.0
      %8732 = vmatpush1.msra.mxu0 0.0
      %8733 = vmatprep.subr.mxu0 0.0
      %8734 = vmatpush1.msra.mxu0 0.0
      %8735 = vmatprep.subr.mxu0 0.0
      %8736 = vmatpush1.msra.mxu0 0.0
      %8737 = vmatprep.subr.mxu0 0.0
      %8738 = vmatpush1.msra.mxu0 0.0
      %8739 = vmatprep.subr.mxu0 0.0
      %8740 = vmatpush1.msra.mxu0 0.0
      %8741 = vmatprep.subr.mxu0 0.0
      %8742 = vmatpush1.msra.mxu0 0.0
      %8743 = vmatprep.mubr.f32.mxu0 0.0
      %8744 = vmatmul.mubr.f32.gmra.mrb[0].mxu0 %v8677
      %v8745 = vpop.f32.mrb[0].mxu0
      %v8746 = vadd.f32 0.0, %v8745
      %v8747 = vpop.f32.mrb[0].mxu0
      %8748 = vdwg.mxu0
      %8749 = vrot.lane.b32.xlu0 %v1222, 120
      %v8750 = vpop.permute.xlu0 %8749
      %v8753 = vsel %vm1459, %v7946, 0
      %8755 = vmatprep.subr.mxu0 0.0
      %8756 = vmatpush1.msra.mxu0 %v8750
      %8757 = vmatprep.subr.mxu0 0.0
      %8758 = vmatpush1.msra.mxu0 0.0
      %8759 = vmatprep.subr.mxu0 0.0
      %8760 = vmatpush1.msra.mxu0 0.0
      %8761 = vmatprep.subr.mxu0 0.0
      %8762 = vmatpush1.msra.mxu0 0.0
      %8763 = vmatprep.subr.mxu0 0.0
      %8764 = vmatpush1.msra.mxu0 0.0
      %8765 = vmatprep.subr.mxu0 0.0
      %8766 = vmatpush1.msra.mxu0 0.0
      %8767 = vmatprep.subr.mxu0 0.0
      %8768 = vmatpush1.msra.mxu0 0.0
      %8769 = vmatprep.subr.mxu0 0.0
      %8770 = vmatpush1.msra.mxu0 0.0
      %8771 = vmatprep.subr.mxu0 0.0
      %8772 = vmatpush1.msra.mxu0 0.0
      %8773 = vmatprep.subr.mxu0 0.0
      %8774 = vmatpush1.msra.mxu0 0.0
      %8775 = vmatprep.subr.mxu0 0.0
      %8776 = vmatpush1.msra.mxu0 0.0
      %8777 = vmatprep.subr.mxu0 0.0
      %8778 = vmatpush1.msra.mxu0 0.0
      %8779 = vmatprep.subr.mxu0 0.0
      %8780 = vmatpush1.msra.mxu0 0.0
      %8781 = vmatprep.subr.mxu0 0.0
      %8782 = vmatpush1.msra.mxu0 0.0
      %8783 = vmatprep.subr.mxu0 0.0
      %8784 = vmatpush1.msra.mxu0 0.0
      %8785 = vmatprep.subr.mxu0 0.0
      %8786 = vmatpush1.msra.mxu0 0.0
      %8787 = vmatprep.subr.mxu0 0.0
      %8788 = vmatpush1.msra.mxu0 0.0
      %8789 = vmatprep.subr.mxu0 0.0
      %8790 = vmatpush1.msra.mxu0 0.0
      %8791 = vmatprep.subr.mxu0 0.0
      %8792 = vmatpush1.msra.mxu0 0.0
      %8793 = vmatprep.subr.mxu0 0.0
      %8794 = vmatpush1.msra.mxu0 0.0
      %8795 = vmatprep.subr.mxu0 0.0
      %8796 = vmatpush1.msra.mxu0 0.0
      %8797 = vmatprep.subr.mxu0 0.0
      %8798 = vmatpush1.msra.mxu0 0.0
      %8799 = vmatprep.subr.mxu0 0.0
      %8800 = vmatpush1.msra.mxu0 0.0
      %8801 = vmatprep.subr.mxu0 0.0
      %8802 = vmatpush1.msra.mxu0 0.0
      %8803 = vmatprep.subr.mxu0 0.0
      %8804 = vmatpush1.msra.mxu0 0.0
      %8805 = vmatprep.subr.mxu0 0.0
      %8806 = vmatpush1.msra.mxu0 0.0
      %8807 = vmatprep.subr.mxu0 0.0
      %8808 = vmatpush1.msra.mxu0 0.0
      %8809 = vmatprep.subr.mxu0 0.0
      %8810 = vmatpush1.msra.mxu0 0.0
      %8811 = vmatprep.subr.mxu0 0.0
      %8812 = vmatpush1.msra.mxu0 0.0
      %8813 = vmatprep.subr.mxu0 0.0
      %8814 = vmatpush1.msra.mxu0 0.0
      %8815 = vmatprep.subr.mxu0 0.0
      %8816 = vmatpush1.msra.mxu0 0.0
      %8817 = vmatprep.subr.mxu0 0.0
      %8818 = vmatpush1.msra.mxu0 0.0
      %8819 = vmatprep.mubr.f32.mxu0 0.0
      %8820 = vmatmul.mubr.f32.gmra.mrb[0].mxu0 %v8753
      %v8821 = vpop.f32.mrb[0].mxu0
      %v8822 = vadd.f32 0.0, %v8821
      %v8823 = vpop.f32.mrb[0].mxu0
      %8824 = vdwg.mxu0
      %8825 = vrot.lane.b32.xlu0 %v1227, 120
      %v8826 = vpop.permute.xlu0 %8825
      %v8829 = vsel %vm1459, %v7948, 0
      %8831 = vmatprep.subr.mxu0 0.0
      %8832 = vmatpush1.msra.mxu0 %v8826
      %8833 = vmatprep.subr.mxu0 0.0
      %8834 = vmatpush1.msra.mxu0 0.0
      %8835 = vmatprep.subr.mxu0 0.0
      %8836 = vmatpush1.msra.mxu0 0.0
      %8837 = vmatprep.subr.mxu0 0.0
      %8838 = vmatpush1.msra.mxu0 0.0
      %8839 = vmatprep.subr.mxu0 0.0
      %8840 = vmatpush1.msra.mxu0 0.0
      %8841 = vmatprep.subr.mxu0 0.0
      %8842 = vmatpush1.msra.mxu0 0.0
      %8843 = vmatprep.subr.mxu0 0.0
      %8844 = vmatpush1.msra.mxu0 0.0
      %8845 = vmatprep.subr.mxu0 0.0
      %8846 = vmatpush1.msra.mxu0 0.0
      %8847 = vmatprep.subr.mxu0 0.0
      %8848 = vmatpush1.msra.mxu0 0.0
      %8849 = vmatprep.subr.mxu0 0.0
      %8850 = vmatpush1.msra.mxu0 0.0
      %8851 = vmatprep.subr.mxu0 0.0
      %8852 = vmatpush1.msra.mxu0 0.0
      %8853 = vmatprep.subr.mxu0 0.0
      %8854 = vmatpush1.msra.mxu0 0.0
      %8855 = vmatprep.subr.mxu0 0.0
      %8856 = vmatpush1.msra.mxu0 0.0
      %8857 = vmatprep.subr.mxu0 0.0
      %8858 = vmatpush1.msra.mxu0 0.0
      %8859 = vmatprep.subr.mxu0 0.0
      %8860 = vmatpush1.msra.mxu0 0.0
      %8861 = vmatprep.subr.mxu0 0.0
      %8862 = vmatpush1.msra.mxu0 0.0
      %8863 = vmatprep.subr.mxu0 0.0
      %8864 = vmatpush1.msra.mxu0 0.0
      %8865 = vmatprep.subr.mxu0 0.0
      %8866 = vmatpush1.msra.mxu0 0.0
      %8867 = vmatprep.subr.mxu0 0.0
      %8868 = vmatpush1.msra.mxu0 0.0
      %8869 = vmatprep.subr.mxu0 0.0
      %8870 = vmatpush1.msra.mxu0 0.0
      %8871 = vmatprep.subr.mxu0 0.0
      %8872 = vmatpush1.msra.mxu0 0.0
      %8873 = vmatprep.subr.mxu0 0.0
      %8874 = vmatpush1.msra.mxu0 0.0
      %8875 = vmatprep.subr.mxu0 0.0
      %8876 = vmatpush1.msra.mxu0 0.0
      %8877 = vmatprep.subr.mxu0 0.0
      %8878 = vmatpush1.msra.mxu0 0.0
      %8879 = vmatprep.subr.mxu0 0.0
      %8880 = vmatpush1.msra.mxu0 0.0
      %8881 = vmatprep.subr.mxu0 0.0
      %8882 = vmatpush1.msra.mxu0 0.0
      %8883 = vmatprep.subr.mxu0 0.0
      %8884 = vmatpush1.msra.mxu0 0.0
      %8885 = vmatprep.subr.mxu0 0.0
      %8886 = vmatpush1.msra.mxu0 0.0
      %8887 = vmatprep.subr.mxu0 0.0
      %8888 = vmatpush1.msra.mxu0 0.0
      %8889 = vmatprep.subr.mxu0 0.0
      %8890 = vmatpush1.msra.mxu0 0.0
      %8891 = vmatprep.subr.mxu0 0.0
      %8892 = vmatpush1.msra.mxu0 0.0
      %8893 = vmatprep.subr.mxu0 0.0
      %8894 = vmatpush1.msra.mxu0 0.0
      %8895 = vmatprep.mubr.f32.mxu0 0.0
      %8896 = vmatmul.mubr.f32.gmra.mrb[0].mxu0 %v8829
      %v8897 = vpop.f32.mrb[0].mxu0
      %v8898 = vadd.f32 0.0, %v8897
      %v8899 = vpop.f32.mrb[0].mxu0
      %8900 = vdwg.mxu0
      %8901 = vrot.lane.b32.xlu0 %v1232, 120
      %v8902 = vpop.permute.xlu0 %8901
      %v8905 = vsel %vm1459, %v7950, 0
      %8907 = vmatprep.subr.mxu0 0.0
      %8908 = vmatpush1.msra.mxu0 %v8902
      %8909 = vmatprep.subr.mxu0 0.0
      %8910 = vmatpush1.msra.mxu0 0.0
      %8911 = vmatprep.subr.mxu0 0.0
      %8912 = vmatpush1.msra.mxu0 0.0
      %8913 = vmatprep.subr.mxu0 0.0
      %8914 = vmatpush1.msra.mxu0 0.0
      %8915 = vmatprep.subr.mxu0 0.0
      %8916 = vmatpush1.msra.mxu0 0.0
      %8917 = vmatprep.subr.mxu0 0.0
      %8918 = vmatpush1.msra.mxu0 0.0
      %8919 = vmatprep.subr.mxu0 0.0
      %8920 = vmatpush1.msra.mxu0 0.0
      %8921 = vmatprep.subr.mxu0 0.0
      %8922 = vmatpush1.msra.mxu0 0.0
      %8923 = vmatprep.subr.mxu0 0.0
      %8924 = vmatpush1.msra.mxu0 0.0
      %8925 = vmatprep.subr.mxu0 0.0
      %8926 = vmatpush1.msra.mxu0 0.0
      %8927 = vmatprep.subr.mxu0 0.0
      %8928 = vmatpush1.msra.mxu0 0.0
      %8929 = vmatprep.subr.mxu0 0.0
      %8930 = vmatpush1.msra.mxu0 0.0
      %8931 = vmatprep.subr.mxu0 0.0
      %8932 = vmatpush1.msra.mxu0 0.0
      %8933 = vmatprep.subr.mxu0 0.0
      %8934 = vmatpush1.msra.mxu0 0.0
      %8935 = vmatprep.subr.mxu0 0.0
      %8936 = vmatpush1.msra.mxu0 0.0
      %8937 = vmatprep.subr.mxu0 0.0
      %8938 = vmatpush1.msra.mxu0 0.0
      %8939 = vmatprep.subr.mxu0 0.0
      %8940 = vmatpush1.msra.mxu0 0.0
      %8941 = vmatprep.subr.mxu0 0.0
      %8942 = vmatpush1.msra.mxu0 0.0
      %8943 = vmatprep.subr.mxu0 0.0
      %8944 = vmatpush1.msra.mxu0 0.0
      %8945 = vmatprep.subr.mxu0 0.0
      %8946 = vmatpush1.msra.mxu0 0.0
      %8947 = vmatprep.subr.mxu0 0.0
      %8948 = vmatpush1.msra.mxu0 0.0
      %8949 = vmatprep.subr.mxu0 0.0
      %8950 = vmatpush1.msra.mxu0 0.0
      %8951 = vmatprep.subr.mxu0 0.0
      %8952 = vmatpush1.msra.mxu0 0.0
      %8953 = vmatprep.subr.mxu0 0.0
      %8954 = vmatpush1.msra.mxu0 0.0
      %8955 = vmatprep.subr.mxu0 0.0
      %8956 = vmatpush1.msra.mxu0 0.0
      %8957 = vmatprep.subr.mxu0 0.0
      %8958 = vmatpush1.msra.mxu0 0.0
      %8959 = vmatprep.subr.mxu0 0.0
      %8960 = vmatpush1.msra.mxu0 0.0
      %8961 = vmatprep.subr.mxu0 0.0
      %8962 = vmatpush1.msra.mxu0 0.0
      %8963 = vmatprep.subr.mxu0 0.0
      %8964 = vmatpush1.msra.mxu0 0.0
      %8965 = vmatprep.subr.mxu0 0.0
      %8966 = vmatpush1.msra.mxu0 0.0
      %8967 = vmatprep.subr.mxu0 0.0
      %8968 = vmatpush1.msra.mxu0 0.0
      %8969 = vmatprep.subr.mxu0 0.0
      %8970 = vmatpush1.msra.mxu0 0.0
      %8971 = vmatprep.mubr.f32.mxu0 0.0
      %8972 = vmatmul.mubr.f32.gmra.mrb[0].mxu0 %v8905
      %v8973 = vpop.f32.mrb[0].mxu0
      %v8974 = vadd.f32 0.0, %v8973
      %v8975 = vpop.f32.mrb[0].mxu0
      %8976 = vdwg.mxu0
      %8977 = vrot.lane.b32.xlu0 %v1237, 120
      %v8978 = vpop.permute.xlu0 %8977
      %v8981 = vsel %vm1459, %v7952, 0
      %8983 = vmatprep.subr.mxu0 0.0
      %8984 = vmatpush1.msra.mxu0 %v8978
      %8985 = vmatprep.subr.mxu0 0.0
      %8986 = vmatpush1.msra.mxu0 0.0
      %8987 = vmatprep.subr.mxu0 0.0
      %8988 = vmatpush1.msra.mxu0 0.0
      %8989 = vmatprep.subr.mxu0 0.0
      %8990 = vmatpush1.msra.mxu0 0.0
      %8991 = vmatprep.subr.mxu0 0.0
      %8992 = vmatpush1.msra.mxu0 0.0
      %8993 = vmatprep.subr.mxu0 0.0
      %8994 = vmatpush1.msra.mxu0 0.0
      %8995 = vmatprep.subr.mxu0 0.0
      %8996 = vmatpush1.msra.mxu0 0.0
      %8997 = vmatprep.subr.mxu0 0.0
      %8998 = vmatpush1.msra.mxu0 0.0
      %8999 = vmatprep.subr.mxu0 0.0
      %9000 = vmatpush1.msra.mxu0 0.0
      %9001 = vmatprep.subr.mxu0 0.0
      %9002 = vmatpush1.msra.mxu0 0.0
      %9003 = vmatprep.subr.mxu0 0.0
      %9004 = vmatpush1.msra.mxu0 0.0
      %9005 = vmatprep.subr.mxu0 0.0
      %9006 = vmatpush1.msra.mxu0 0.0
      %9007 = vmatprep.subr.mxu0 0.0
      %9008 = vmatpush1.msra.mxu0 0.0
      %9009 = vmatprep.subr.mxu0 0.0
      %9010 = vmatpush1.msra.mxu0 0.0
      %9011 = vmatprep.subr.mxu0 0.0
      %9012 = vmatpush1.msra.mxu0 0.0
      %9013 = vmatprep.subr.mxu0 0.0
      %9014 = vmatpush1.msra.mxu0 0.0
      %9015 = vmatprep.subr.mxu0 0.0
      %9016 = vmatpush1.msra.mxu0 0.0
      %9017 = vmatprep.subr.mxu0 0.0
      %9018 = vmatpush1.msra.mxu0 0.0
      %9019 = vmatprep.subr.mxu0 0.0
      %9020 = vmatpush1.msra.mxu0 0.0
      %9021 = vmatprep.subr.mxu0 0.0
      %9022 = vmatpush1.msra.mxu0 0.0
      %9023 = vmatprep.subr.mxu0 0.0
      %9024 = vmatpush1.msra.mxu0 0.0
      %9025 = vmatprep.subr.mxu0 0.0
      %9026 = vmatpush1.msra.mxu0 0.0
      %9027 = vmatprep.subr.mxu0 0.0
      %9028 = vmatpush1.msra.mxu0 0.0
      %9029 = vmatprep.subr.mxu0 0.0
      %9030 = vmatpush1.msra.mxu0 0.0
      %9031 = vmatprep.subr.mxu0 0.0
      %9032 = vmatpush1.msra.mxu0 0.0
      %9033 = vmatprep.subr.mxu0 0.0
      %9034 = vmatpush1.msra.mxu0 0.0
      %9035 = vmatprep.subr.mxu0 0.0
      %9036 = vmatpush1.msra.mxu0 0.0
      %9037 = vmatprep.subr.mxu0 0.0
      %9038 = vmatpush1.msra.mxu0 0.0
      %9039 = vmatprep.subr.mxu0 0.0
      %9040 = vmatpush1.msra.mxu0 0.0
      %9041 = vmatprep.subr.mxu0 0.0
      %9042 = vmatpush1.msra.mxu0 0.0
      %9043 = vmatprep.subr.mxu0 0.0
      %9044 = vmatpush1.msra.mxu0 0.0
      %9045 = vmatprep.subr.mxu0 0.0
      %9046 = vmatpush1.msra.mxu0 0.0
      %9047 = vmatprep.mubr.f32.mxu0 0.0
      %9048 = vmatmul.mubr.f32.gmra.mrb[0].mxu0 %v8981
      %v9049 = vpop.f32.mrb[0].mxu0
      %v9050 = vadd.f32 0.0, %v9049
      %v9051 = vpop.f32.mrb[0].mxu0
      %9052 = vdwg.mxu0
      %9053 = vrot.lane.b32.xlu0 %v1242, 120
      %v9054 = vpop.permute.xlu0 %9053
      %v9057 = vsel %vm1459, %v7954, 0
      %9059 = vmatprep.subr.mxu0 0.0
      %9060 = vmatpush1.msra.mxu0 %v9054
      %9061 = vmatprep.subr.mxu0 0.0
      %9062 = vmatpush1.msra.mxu0 0.0
      %9063 = vmatprep.subr.mxu0 0.0
      %9064 = vmatpush1.msra.mxu0 0.0
      %9065 = vmatprep.subr.mxu0 0.0
      %9066 = vmatpush1.msra.mxu0 0.0
      %9067 = vmatprep.subr.mxu0 0.0
      %9068 = vmatpush1.msra.mxu0 0.0
      %9069 = vmatprep.subr.mxu0 0.0
      %9070 = vmatpush1.msra.mxu0 0.0
      %9071 = vmatprep.subr.mxu0 0.0
      %9072 = vmatpush1.msra.mxu0 0.0
      %9073 = vmatprep.subr.mxu0 0.0
      %9074 = vmatpush1.msra.mxu0 0.0
      %9075 = vmatprep.subr.mxu0 0.0
      %9076 = vmatpush1.msra.mxu0 0.0
      %9077 = vmatprep.subr.mxu0 0.0
      %9078 = vmatpush1.msra.mxu0 0.0
      %9079 = vmatprep.subr.mxu0 0.0
      %9080 = vmatpush1.msra.mxu0 0.0
      %9081 = vmatprep.subr.mxu0 0.0
      %9082 = vmatpush1.msra.mxu0 0.0
      %9083 = vmatprep.subr.mxu0 0.0
      %9084 = vmatpush1.msra.mxu0 0.0
      %9085 = vmatprep.subr.mxu0 0.0
      %9086 = vmatpush1.msra.mxu0 0.0
      %9087 = vmatprep.subr.mxu0 0.0
      %9088 = vmatpush1.msra.mxu0 0.0
      %9089 = vmatprep.subr.mxu0 0.0
      %9090 = vmatpush1.msra.mxu0 0.0
      %9091 = vmatprep.subr.mxu0 0.0
      %9092 = vmatpush1.msra.mxu0 0.0
      %9093 = vmatprep.subr.mxu0 0.0
      %9094 = vmatpush1.msra.mxu0 0.0
      %9095 = vmatprep.subr.mxu0 0.0
      %9096 = vmatpush1.msra.mxu0 0.0
      %9097 = vmatprep.subr.mxu0 0.0
      %9098 = vmatpush1.msra.mxu0 0.0
      %9099 = vmatprep.subr.mxu0 0.0
      %9100 = vmatpush1.msra.mxu0 0.0
      %9101 = vmatprep.subr.mxu0 0.0
      %9102 = vmatpush1.msra.mxu0 0.0
      %9103 = vmatprep.subr.mxu0 0.0
      %9104 = vmatpush1.msra.mxu0 0.0
      %9105 = vmatprep.subr.mxu0 0.0
      %9106 = vmatpush1.msra.mxu0 0.0
      %9107 = vmatprep.subr.mxu0 0.0
      %9108 = vmatpush1.msra.mxu0 0.0
      %9109 = vmatprep.subr.mxu0 0.0
      %9110 = vmatpush1.msra.mxu0 0.0
      %9111 = vmatprep.subr.mxu0 0.0
      %9112 = vmatpush1.msra.mxu0 0.0
      %9113 = vmatprep.subr.mxu0 0.0
      %9114 = vmatpush1.msra.mxu0 0.0
      %9115 = vmatprep.subr.mxu0 0.0
      %9116 = vmatpush1.msra.mxu0 0.0
      %9117 = vmatprep.subr.mxu0 0.0
      %9118 = vmatpush1.msra.mxu0 0.0
      %9119 = vmatprep.subr.mxu0 0.0
      %9120 = vmatpush1.msra.mxu0 0.0
      %9121 = vmatprep.subr.mxu0 0.0
      %9122 = vmatpush1.msra.mxu0 0.0
      %9123 = vmatprep.mubr.f32.mxu0 0.0
      %9124 = vmatmul.mubr.f32.gmra.mrb[0].mxu0 %v9057
      %v9125 = vpop.f32.mrb[0].mxu0
      %v9126 = vadd.f32 0.0, %v9125
      %v9127 = vpop.f32.mrb[0].mxu0
      %9128 = vdwg.mxu0
      %9129 = vrot.lane.b32.xlu0 %v1247, 120
      %v9130 = vpop.permute.xlu0 %9129
      %v9133 = vsel %vm1459, %v7956, 0
      %9135 = vmatprep.subr.mxu0 0.0
      %9136 = vmatpush1.msra.mxu0 %v9130
      %9137 = vmatprep.subr.mxu0 0.0
      %9138 = vmatpush1.msra.mxu0 0.0
      %9139 = vmatprep.subr.mxu0 0.0
      %9140 = vmatpush1.msra.mxu0 0.0
      %9141 = vmatprep.subr.mxu0 0.0
      %9142 = vmatpush1.msra.mxu0 0.0
      %9143 = vmatprep.subr.mxu0 0.0
      %9144 = vmatpush1.msra.mxu0 0.0
      %9145 = vmatprep.subr.mxu0 0.0
      %9146 = vmatpush1.msra.mxu0 0.0
      %9147 = vmatprep.subr.mxu0 0.0
      %9148 = vmatpush1.msra.mxu0 0.0
      %9149 = vmatprep.subr.mxu0 0.0
      %9150 = vmatpush1.msra.mxu0 0.0
      %9151 = vmatprep.subr.mxu0 0.0
      %9152 = vmatpush1.msra.mxu0 0.0
      %9153 = vmatprep.subr.mxu0 0.0
      %9154 = vmatpush1.msra.mxu0 0.0
      %9155 = vmatprep.subr.mxu0 0.0
      %9156 = vmatpush1.msra.mxu0 0.0
      %9157 = vmatprep.subr.mxu0 0.0
      %9158 = vmatpush1.msra.mxu0 0.0
      %9159 = vmatprep.subr.mxu0 0.0
      %9160 = vmatpush1.msra.mxu0 0.0
      %9161 = vmatprep.subr.mxu0 0.0
      %9162 = vmatpush1.msra.mxu0 0.0
      %9163 = vmatprep.subr.mxu0 0.0
      %9164 = vmatpush1.msra.mxu0 0.0
      %9165 = vmatprep.subr.mxu0 0.0
      %9166 = vmatpush1.msra.mxu0 0.0
      %9167 = vmatprep.subr.mxu0 0.0
      %9168 = vmatpush1.msra.mxu0 0.0
      %9169 = vmatprep.subr.mxu0 0.0
      %9170 = vmatpush1.msra.mxu0 0.0
      %9171 = vmatprep.subr.mxu0 0.0
      %9172 = vmatpush1.msra.mxu0 0.0
      %9173 = vmatprep.subr.mxu0 0.0
      %9174 = vmatpush1.msra.mxu0 0.0
      %9175 = vmatprep.subr.mxu0 0.0
      %9176 = vmatpush1.msra.mxu0 0.0
      %9177 = vmatprep.subr.mxu0 0.0
      %9178 = vmatpush1.msra.mxu0 0.0
      %9179 = vmatprep.subr.mxu0 0.0
      %9180 = vmatpush1.msra.mxu0 0.0
      %9181 = vmatprep.subr.mxu0 0.0
      %9182 = vmatpush1.msra.mxu0 0.0
      %9183 = vmatprep.subr.mxu0 0.0
      %9184 = vmatpush1.msra.mxu0 0.0
      %9185 = vmatprep.subr.mxu0 0.0
      %9186 = vmatpush1.msra.mxu0 0.0
      %9187 = vmatprep.subr.mxu0 0.0
      %9188 = vmatpush1.msra.mxu0 0.0
      %9189 = vmatprep.subr.mxu0 0.0
      %9190 = vmatpush1.msra.mxu0 0.0
      %9191 = vmatprep.subr.mxu0 0.0
      %9192 = vmatpush1.msra.mxu0 0.0
      %9193 = vmatprep.subr.mxu0 0.0
      %9194 = vmatpush1.msra.mxu0 0.0
      %9195 = vmatprep.subr.mxu0 0.0
      %9196 = vmatpush1.msra.mxu0 0.0
      %9197 = vmatprep.subr.mxu0 0.0
      %9198 = vmatpush1.msra.mxu0 0.0
      %9199 = vmatprep.mubr.f32.mxu0 0.0
      %9200 = vmatmul.mubr.f32.gmra.mrb[0].mxu0 %v9133
      %v9201 = vpop.f32.mrb[0].mxu0
      %v9202 = vadd.f32 0.0, %v9201
      %v9203 = vpop.f32.mrb[0].mxu0
      %9204 = vdwg.mxu0
      %9205 = vrot.lane.b32.xlu0 %v1252, 120
      %v9206 = vpop.permute.xlu0 %9205
      %v9209 = vsel %vm1459, %v7958, 0
      %9211 = vmatprep.subr.mxu0 0.0
      %9212 = vmatpush1.msra.mxu0 %v9206
      %9213 = vmatprep.subr.mxu0 0.0
      %9214 = vmatpush1.msra.mxu0 0.0
      %9215 = vmatprep.subr.mxu0 0.0
      %9216 = vmatpush1.msra.mxu0 0.0
      %9217 = vmatprep.subr.mxu0 0.0
      %9218 = vmatpush1.msra.mxu0 0.0
      %9219 = vmatprep.subr.mxu0 0.0
      %9220 = vmatpush1.msra.mxu0 0.0
      %9221 = vmatprep.subr.mxu0 0.0
      %9222 = vmatpush1.msra.mxu0 0.0
      %9223 = vmatprep.subr.mxu0 0.0
      %9224 = vmatpush1.msra.mxu0 0.0
      %9225 = vmatprep.subr.mxu0 0.0
      %9226 = vmatpush1.msra.mxu0 0.0
      %9227 = vmatprep.subr.mxu0 0.0
      %9228 = vmatpush1.msra.mxu0 0.0
      %9229 = vmatprep.subr.mxu0 0.0
      %9230 = vmatpush1.msra.mxu0 0.0
      %9231 = vmatprep.subr.mxu0 0.0
      %9232 = vmatpush1.msra.mxu0 0.0
      %9233 = vmatprep.subr.mxu0 0.0
      %9234 = vmatpush1.msra.mxu0 0.0
      %9235 = vmatprep.subr.mxu0 0.0
      %9236 = vmatpush1.msra.mxu0 0.0
      %9237 = vmatprep.subr.mxu0 0.0
      %9238 = vmatpush1.msra.mxu0 0.0
      %9239 = vmatprep.subr.mxu0 0.0
      %9240 = vmatpush1.msra.mxu0 0.0
      %9241 = vmatprep.subr.mxu0 0.0
      %9242 = vmatpush1.msra.mxu0 0.0
      %9243 = vmatprep.subr.mxu0 0.0
      %9244 = vmatpush1.msra.mxu0 0.0
      %9245 = vmatprep.subr.mxu0 0.0
      %9246 = vmatpush1.msra.mxu0 0.0
      %9247 = vmatprep.subr.mxu0 0.0
      %9248 = vmatpush1.msra.mxu0 0.0
      %9249 = vmatprep.subr.mxu0 0.0
      %9250 = vmatpush1.msra.mxu0 0.0
      %9251 = vmatprep.subr.mxu0 0.0
      %9252 = vmatpush1.msra.mxu0 0.0
      %9253 = vmatprep.subr.mxu0 0.0
      %9254 = vmatpush1.msra.mxu0 0.0
      %9255 = vmatprep.subr.mxu0 0.0
      %9256 = vmatpush1.msra.mxu0 0.0
      %9257 = vmatprep.subr.mxu0 0.0
      %9258 = vmatpush1.msra.mxu0 0.0
      %9259 = vmatprep.subr.mxu0 0.0
      %9260 = vmatpush1.msra.mxu0 0.0
      %9261 = vmatprep.subr.mxu0 0.0
      %9262 = vmatpush1.msra.mxu0 0.0
      %9263 = vmatprep.subr.mxu0 0.0
      %9264 = vmatpush1.msra.mxu0 0.0
      %9265 = vmatprep.subr.mxu0 0.0
      %9266 = vmatpush1.msra.mxu0 0.0
      %9267 = vmatprep.subr.mxu0 0.0
      %9268 = vmatpush1.msra.mxu0 0.0
      %9269 = vmatprep.subr.mxu0 0.0
      %9270 = vmatpush1.msra.mxu0 0.0
      %9271 = vmatprep.subr.mxu0 0.0
      %9272 = vmatpush1.msra.mxu0 0.0
      %9273 = vmatprep.subr.mxu0 0.0
      %9274 = vmatpush1.msra.mxu0 0.0
      %9275 = vmatprep.mubr.f32.mxu0 0.0
      %9276 = vmatmul.mubr.f32.gmra.mrb[0].mxu0 %v9209
      %v9277 = vpop.f32.mrb[0].mxu0
      %v9278 = vadd.f32 0.0, %v9277
      %v9279 = vpop.f32.mrb[0].mxu0
      %9280 = vdwg.mxu0
      %9281 = vrot.lane.b32.xlu0 %v1257, 120
      %v9282 = vpop.permute.xlu0 %9281
      %v9285 = vsel %vm1459, %v7960, 0
      %9287 = vmatprep.subr.mxu0 0.0
      %9288 = vmatpush1.msra.mxu0 %v9282
      %9289 = vmatprep.subr.mxu0 0.0
      %9290 = vmatpush1.msra.mxu0 0.0
      %9291 = vmatprep.subr.mxu0 0.0
      %9292 = vmatpush1.msra.mxu0 0.0
      %9293 = vmatprep.subr.mxu0 0.0
      %9294 = vmatpush1.msra.mxu0 0.0
      %9295 = vmatprep.subr.mxu0 0.0
      %9296 = vmatpush1.msra.mxu0 0.0
      %9297 = vmatprep.subr.mxu0 0.0
      %9298 = vmatpush1.msra.mxu0 0.0
      %9299 = vmatprep.subr.mxu0 0.0
      %9300 = vmatpush1.msra.mxu0 0.0
      %9301 = vmatprep.subr.mxu0 0.0
      %9302 = vmatpush1.msra.mxu0 0.0
      %9303 = vmatprep.subr.mxu0 0.0
      %9304 = vmatpush1.msra.mxu0 0.0
      %9305 = vmatprep.subr.mxu0 0.0
      %9306 = vmatpush1.msra.mxu0 0.0
      %9307 = vmatprep.subr.mxu0 0.0
      %9308 = vmatpush1.msra.mxu0 0.0
      %9309 = vmatprep.subr.mxu0 0.0
      %9310 = vmatpush1.msra.mxu0 0.0
      %9311 = vmatprep.subr.mxu0 0.0
      %9312 = vmatpush1.msra.mxu0 0.0
      %9313 = vmatprep.subr.mxu0 0.0
      %9314 = vmatpush1.msra.mxu0 0.0
      %9315 = vmatprep.subr.mxu0 0.0
      %9316 = vmatpush1.msra.mxu0 0.0
      %9317 = vmatprep.subr.mxu0 0.0
      %9318 = vmatpush1.msra.mxu0 0.0
      %9319 = vmatprep.subr.mxu0 0.0
      %9320 = vmatpush1.msra.mxu0 0.0
      %9321 = vmatprep.subr.mxu0 0.0
      %9322 = vmatpush1.msra.mxu0 0.0
      %9323 = vmatprep.subr.mxu0 0.0
      %9324 = vmatpush1.msra.mxu0 0.0
      %9325 = vmatprep.subr.mxu0 0.0
      %9326 = vmatpush1.msra.mxu0 0.0
      %9327 = vmatprep.subr.mxu0 0.0
      %9328 = vmatpush1.msra.mxu0 0.0
      %9329 = vmatprep.subr.mxu0 0.0
      %9330 = vmatpush1.msra.mxu0 0.0
      %9331 = vmatprep.subr.mxu0 0.0
      %9332 = vmatpush1.msra.mxu0 0.0
      %9333 = vmatprep.subr.mxu0 0.0
      %9334 = vmatpush1.msra.mxu0 0.0
      %9335 = vmatprep.subr.mxu0 0.0
      %9336 = vmatpush1.msra.mxu0 0.0
      %9337 = vmatprep.subr.mxu0 0.0
      %9338 = vmatpush1.msra.mxu0 0.0
      %9339 = vmatprep.subr.mxu0 0.0
      %9340 = vmatpush1.msra.mxu0 0.0
      %9341 = vmatprep.subr.mxu0 0.0
      %9342 = vmatpush1.msra.mxu0 0.0
      %9343 = vmatprep.subr.mxu0 0.0
      %9344 = vmatpush1.msra.mxu0 0.0
      %9345 = vmatprep.subr.mxu0 0.0
      %9346 = vmatpush1.msra.mxu0 0.0
      %9347 = vmatprep.subr.mxu0 0.0
      %9348 = vmatpush1.msra.mxu0 0.0
      %9349 = vmatprep.subr.mxu0 0.0
      %9350 = vmatpush1.msra.mxu0 0.0
      %9351 = vmatprep.mubr.f32.mxu0 0.0
      %9352 = vmatmul.mubr.f32.gmra.mrb[0].mxu0 %v9285
      %v9353 = vpop.f32.mrb[0].mxu0
      %v9354 = vadd.f32 0.0, %v9353
      %v9355 = vpop.f32.mrb[0].mxu0
      %9356 = vdwg.mxu0
      %9357 = vrot.lane.b32.xlu0 %v1262, 120
      %v9358 = vpop.permute.xlu0 %9357
      %v9361 = vsel %vm1459, %v7962, 0
      %9363 = vmatprep.subr.mxu0 0.0
      %9364 = vmatpush1.msra.mxu0 %v9358
      %9365 = vmatprep.subr.mxu0 0.0
      %9366 = vmatpush1.msra.mxu0 0.0
      %9367 = vmatprep.subr.mxu0 0.0
      %9368 = vmatpush1.msra.mxu0 0.0
      %9369 = vmatprep.subr.mxu0 0.0
      %9370 = vmatpush1.msra.mxu0 0.0
      %9371 = vmatprep.subr.mxu0 0.0
      %9372 = vmatpush1.msra.mxu0 0.0
      %9373 = vmatprep.subr.mxu0 0.0
      %9374 = vmatpush1.msra.mxu0 0.0
      %9375 = vmatprep.subr.mxu0 0.0
      %9376 = vmatpush1.msra.mxu0 0.0
      %9377 = vmatprep.subr.mxu0 0.0
      %9378 = vmatpush1.msra.mxu0 0.0
      %9379 = vmatprep.subr.mxu0 0.0
      %9380 = vmatpush1.msra.mxu0 0.0
      %9381 = vmatprep.subr.mxu0 0.0
      %9382 = vmatpush1.msra.mxu0 0.0
      %9383 = vmatprep.subr.mxu0 0.0
      %9384 = vmatpush1.msra.mxu0 0.0
      %9385 = vmatprep.subr.mxu0 0.0
      %9386 = vmatpush1.msra.mxu0 0.0
      %9387 = vmatprep.subr.mxu0 0.0
      %9388 = vmatpush1.msra.mxu0 0.0
      %9389 = vmatprep.subr.mxu0 0.0
      %9390 = vmatpush1.msra.mxu0 0.0
      %9391 = vmatprep.subr.mxu0 0.0
      %9392 = vmatpush1.msra.mxu0 0.0
      %9393 = vmatprep.subr.mxu0 0.0
      %9394 = vmatpush1.msra.mxu0 0.0
      %9395 = vmatprep.subr.mxu0 0.0
      %9396 = vmatpush1.msra.mxu0 0.0
      %9397 = vmatprep.subr.mxu0 0.0
      %9398 = vmatpush1.msra.mxu0 0.0
      %9399 = vmatprep.subr.mxu0 0.0
      %9400 = vmatpush1.msra.mxu0 0.0
      %9401 = vmatprep.subr.mxu0 0.0
      %9402 = vmatpush1.msra.mxu0 0.0
      %9403 = vmatprep.subr.mxu0 0.0
      %9404 = vmatpush1.msra.mxu0 0.0
      %9405 = vmatprep.subr.mxu0 0.0
      %9406 = vmatpush1.msra.mxu0 0.0
      %9407 = vmatprep.subr.mxu0 0.0
      %9408 = vmatpush1.msra.mxu0 0.0
      %9409 = vmatprep.subr.mxu0 0.0
      %9410 = vmatpush1.msra.mxu0 0.0
      %9411 = vmatprep.subr.mxu0 0.0
      %9412 = vmatpush1.msra.mxu0 0.0
      %9413 = vmatprep.subr.mxu0 0.0
      %9414 = vmatpush1.msra.mxu0 0.0
      %9415 = vmatprep.subr.mxu0 0.0
      %9416 = vmatpush1.msra.mxu0 0.0
      %9417 = vmatprep.subr.mxu0 0.0
      %9418 = vmatpush1.msra.mxu0 0.0
      %9419 = vmatprep.subr.mxu0 0.0
      %9420 = vmatpush1.msra.mxu0 0.0
      %9421 = vmatprep.subr.mxu0 0.0
      %9422 = vmatpush1.msra.mxu0 0.0
      %9423 = vmatprep.subr.mxu0 0.0
      %9424 = vmatpush1.msra.mxu0 0.0
      %9425 = vmatprep.subr.mxu0 0.0
      %9426 = vmatpush1.msra.mxu0 0.0
      %9427 = vmatprep.mubr.f32.mxu0 0.0
      %9428 = vmatmul.mubr.f32.gmra.mrb[0].mxu0 %v9361
      %v9429 = vpop.f32.mrb[0].mxu0
      %v9430 = vadd.f32 0.0, %v9429
      %v9431 = vpop.f32.mrb[0].mxu0
      %9432 = vdwg.mxu0
      %9433 = vrot.lane.b32.xlu0 %v1267, 120
      %v9434 = vpop.permute.xlu0 %9433
      %v9437 = vsel %vm1459, %v7964, 0
      %9439 = vmatprep.subr.mxu0 0.0
      %9440 = vmatpush1.msra.mxu0 %v9434
      %9441 = vmatprep.subr.mxu0 0.0
      %9442 = vmatpush1.msra.mxu0 0.0
      %9443 = vmatprep.subr.mxu0 0.0
      %9444 = vmatpush1.msra.mxu0 0.0
      %9445 = vmatprep.subr.mxu0 0.0
      %9446 = vmatpush1.msra.mxu0 0.0
      %9447 = vmatprep.subr.mxu0 0.0
      %9448 = vmatpush1.msra.mxu0 0.0
      %9449 = vmatprep.subr.mxu0 0.0
      %9450 = vmatpush1.msra.mxu0 0.0
      %9451 = vmatprep.subr.mxu0 0.0
      %9452 = vmatpush1.msra.mxu0 0.0
      %9453 = vmatprep.subr.mxu0 0.0
      %9454 = vmatpush1.msra.mxu0 0.0
      %9455 = vmatprep.subr.mxu0 0.0
      %9456 = vmatpush1.msra.mxu0 0.0
      %9457 = vmatprep.subr.mxu0 0.0
      %9458 = vmatpush1.msra.mxu0 0.0
      %9459 = vmatprep.subr.mxu0 0.0
      %9460 = vmatpush1.msra.mxu0 0.0
      %9461 = vmatprep.subr.mxu0 0.0
      %9462 = vmatpush1.msra.mxu0 0.0
      %9463 = vmatprep.subr.mxu0 0.0
      %9464 = vmatpush1.msra.mxu0 0.0
      %9465 = vmatprep.subr.mxu0 0.0
      %9466 = vmatpush1.msra.mxu0 0.0
      %9467 = vmatprep.subr.mxu0 0.0
      %9468 = vmatpush1.msra.mxu0 0.0
      %9469 = vmatprep.subr.mxu0 0.0
      %9470 = vmatpush1.msra.mxu0 0.0
      %9471 = vmatprep.subr.mxu0 0.0
      %9472 = vmatpush1.msra.mxu0 0.0
      %9473 = vmatprep.subr.mxu0 0.0
      %9474 = vmatpush1.msra.mxu0 0.0
      %9475 = vmatprep.subr.mxu0 0.0
      %9476 = vmatpush1.msra.mxu0 0.0
      %9477 = vmatprep.subr.mxu0 0.0
      %9478 = vmatpush1.msra.mxu0 0.0
      %9479 = vmatprep.subr.mxu0 0.0
      %9480 = vmatpush1.msra.mxu0 0.0
      %9481 = vmatprep.subr.mxu0 0.0
      %9482 = vmatpush1.msra.mxu0 0.0
      %9483 = vmatprep.subr.mxu0 0.0
      %9484 = vmatpush1.msra.mxu0 0.0
      %9485 = vmatprep.subr.mxu0 0.0
      %9486 = vmatpush1.msra.mxu0 0.0
      %9487 = vmatprep.subr.mxu0 0.0
      %9488 = vmatpush1.msra.mxu0 0.0
      %9489 = vmatprep.subr.mxu0 0.0
      %9490 = vmatpush1.msra.mxu0 0.0
      %9491 = vmatprep.subr.mxu0 0.0
      %9492 = vmatpush1.msra.mxu0 0.0
      %9493 = vmatprep.subr.mxu0 0.0
      %9494 = vmatpush1.msra.mxu0 0.0
      %9495 = vmatprep.subr.mxu0 0.0
      %9496 = vmatpush1.msra.mxu0 0.0
      %9497 = vmatprep.subr.mxu0 0.0
      %9498 = vmatpush1.msra.mxu0 0.0
      %9499 = vmatprep.subr.mxu0 0.0
      %9500 = vmatpush1.msra.mxu0 0.0
      %9501 = vmatprep.subr.mxu0 0.0
      %9502 = vmatpush1.msra.mxu0 0.0
      %9503 = vmatprep.mubr.f32.mxu0 0.0
      %9504 = vmatmul.mubr.f32.gmra.mrb[0].mxu0 %v9437
      %v9505 = vpop.f32.mrb[0].mxu0
      %v9506 = vadd.f32 0.0, %v9505
      %v9507 = vpop.f32.mrb[0].mxu0
      %9508 = vdwg.mxu0
      %9509 = vrot.lane.b32.xlu0 %v1272, 120
      %v9510 = vpop.permute.xlu0 %9509
      %v9513 = vsel %vm1459, %v7966, 0
      %9515 = vmatprep.subr.mxu0 0.0
      %9516 = vmatpush1.msra.mxu0 %v9510
      %9517 = vmatprep.subr.mxu0 0.0
      %9518 = vmatpush1.msra.mxu0 0.0
      %9519 = vmatprep.subr.mxu0 0.0
      %9520 = vmatpush1.msra.mxu0 0.0
      %9521 = vmatprep.subr.mxu0 0.0
      %9522 = vmatpush1.msra.mxu0 0.0
      %9523 = vmatprep.subr.mxu0 0.0
      %9524 = vmatpush1.msra.mxu0 0.0
      %9525 = vmatprep.subr.mxu0 0.0
      %9526 = vmatpush1.msra.mxu0 0.0
      %9527 = vmatprep.subr.mxu0 0.0
      %9528 = vmatpush1.msra.mxu0 0.0
      %9529 = vmatprep.subr.mxu0 0.0
      %9530 = vmatpush1.msra.mxu0 0.0
      %9531 = vmatprep.subr.mxu0 0.0
      %9532 = vmatpush1.msra.mxu0 0.0
      %9533 = vmatprep.subr.mxu0 0.0
      %9534 = vmatpush1.msra.mxu0 0.0
      %9535 = vmatprep.subr.mxu0 0.0
      %9536 = vmatpush1.msra.mxu0 0.0
      %9537 = vmatprep.subr.mxu0 0.0
      %9538 = vmatpush1.msra.mxu0 0.0
      %9539 = vmatprep.subr.mxu0 0.0
      %9540 = vmatpush1.msra.mxu0 0.0
      %9541 = vmatprep.subr.mxu0 0.0
      %9542 = vmatpush1.msra.mxu0 0.0
      %9543 = vmatprep.subr.mxu0 0.0
      %9544 = vmatpush1.msra.mxu0 0.0
      %9545 = vmatprep.subr.mxu0 0.0
      %9546 = vmatpush1.msra.mxu0 0.0
      %9547 = vmatprep.subr.mxu0 0.0
      %9548 = vmatpush1.msra.mxu0 0.0
      %9549 = vmatprep.subr.mxu0 0.0
      %9550 = vmatpush1.msra.mxu0 0.0
      %9551 = vmatprep.subr.mxu0 0.0
      %9552 = vmatpush1.msra.mxu0 0.0
      %9553 = vmatprep.subr.mxu0 0.0
      %9554 = vmatpush1.msra.mxu0 0.0
      %9555 = vmatprep.subr.mxu0 0.0
      %9556 = vmatpush1.msra.mxu0 0.0
      %9557 = vmatprep.subr.mxu0 0.0
      %9558 = vmatpush1.msra.mxu0 0.0
      %9559 = vmatprep.subr.mxu0 0.0
      %9560 = vmatpush1.msra.mxu0 0.0
      %9561 = vmatprep.subr.mxu0 0.0
      %9562 = vmatpush1.msra.mxu0 0.0
      %9563 = vmatprep.subr.mxu0 0.0
      %9564 = vmatpush1.msra.mxu0 0.0
      %9565 = vmatprep.subr.mxu0 0.0
      %9566 = vmatpush1.msra.mxu0 0.0
      %9567 = vmatprep.subr.mxu0 0.0
      %9568 = vmatpush1.msra.mxu0 0.0
      %9569 = vmatprep.subr.mxu0 0.0
      %9570 = vmatpush1.msra.mxu0 0.0
      %9571 = vmatprep.subr.mxu0 0.0
      %9572 = vmatpush1.msra.mxu0 0.0
      %9573 = vmatprep.subr.mxu0 0.0
      %9574 = vmatpush1.msra.mxu0 0.0
      %9575 = vmatprep.subr.mxu0 0.0
      %9576 = vmatpush1.msra.mxu0 0.0
      %9577 = vmatprep.subr.mxu0 0.0
      %9578 = vmatpush1.msra.mxu0 0.0
      %9579 = vmatprep.mubr.f32.mxu0 0.0
      %9580 = vmatmul.mubr.f32.gmra.mrb[0].mxu0 %v9513
      %v9581 = vpop.f32.mrb[0].mxu0
      %v9582 = vadd.f32 0.0, %v9581
      %v9583 = vpop.f32.mrb[0].mxu0
      %9584 = vdwg.mxu0
      %9585 = vrot.lane.b32.xlu0 %v1277, 120
      %v9586 = vpop.permute.xlu0 %9585
      %v9589 = vsel %vm1459, %v7968, 0
      %9591 = vmatprep.subr.mxu0 0.0
      %9592 = vmatpush1.msra.mxu0 %v9586
      %9593 = vmatprep.subr.mxu0 0.0
      %9594 = vmatpush1.msra.mxu0 0.0
      %9595 = vmatprep.subr.mxu0 0.0
      %9596 = vmatpush1.msra.mxu0 0.0
      %9597 = vmatprep.subr.mxu0 0.0
      %9598 = vmatpush1.msra.mxu0 0.0
      %9599 = vmatprep.subr.mxu0 0.0
      %9600 = vmatpush1.msra.mxu0 0.0
      %9601 = vmatprep.subr.mxu0 0.0
      %9602 = vmatpush1.msra.mxu0 0.0
      %9603 = vmatprep.subr.mxu0 0.0
      %9604 = vmatpush1.msra.mxu0 0.0
      %9605 = vmatprep.subr.mxu0 0.0
      %9606 = vmatpush1.msra.mxu0 0.0
      %9607 = vmatprep.subr.mxu0 0.0
      %9608 = vmatpush1.msra.mxu0 0.0
      %9609 = vmatprep.subr.mxu0 0.0
      %9610 = vmatpush1.msra.mxu0 0.0
      %9611 = vmatprep.subr.mxu0 0.0
      %9612 = vmatpush1.msra.mxu0 0.0
      %9613 = vmatprep.subr.mxu0 0.0
      %9614 = vmatpush1.msra.mxu0 0.0
      %9615 = vmatprep.subr.mxu0 0.0
      %9616 = vmatpush1.msra.mxu0 0.0
      %9617 = vmatprep.subr.mxu0 0.0
      %9618 = vmatpush1.msra.mxu0 0.0
      %9619 = vmatprep.subr.mxu0 0.0
      %9620 = vmatpush1.msra.mxu0 0.0
      %9621 = vmatprep.subr.mxu0 0.0
      %9622 = vmatpush1.msra.mxu0 0.0
      %9623 = vmatprep.subr.mxu0 0.0
      %9624 = vmatpush1.msra.mxu0 0.0
      %9625 = vmatprep.subr.mxu0 0.0
      %9626 = vmatpush1.msra.mxu0 0.0
      %9627 = vmatprep.subr.mxu0 0.0
      %9628 = vmatpush1.msra.mxu0 0.0
      %9629 = vmatprep.subr.mxu0 0.0
      %9630 = vmatpush1.msra.mxu0 0.0
      %9631 = vmatprep.subr.mxu0 0.0
      %9632 = vmatpush1.msra.mxu0 0.0
      %9633 = vmatprep.subr.mxu0 0.0
      %9634 = vmatpush1.msra.mxu0 0.0
      %9635 = vmatprep.subr.mxu0 0.0
      %9636 = vmatpush1.msra.mxu0 0.0
      %9637 = vmatprep.subr.mxu0 0.0
      %9638 = vmatpush1.msra.mxu0 0.0
      %9639 = vmatprep.subr.mxu0 0.0
      %9640 = vmatpush1.msra.mxu0 0.0
      %9641 = vmatprep.subr.mxu0 0.0
      %9642 = vmatpush1.msra.mxu0 0.0
      %9643 = vmatprep.subr.mxu0 0.0
      %9644 = vmatpush1.msra.mxu0 0.0
      %9645 = vmatprep.subr.mxu0 0.0
      %9646 = vmatpush1.msra.mxu0 0.0
      %9647 = vmatprep.subr.mxu0 0.0
      %9648 = vmatpush1.msra.mxu0 0.0
      %9649 = vmatprep.subr.mxu0 0.0
      %9650 = vmatpush1.msra.mxu0 0.0
      %9651 = vmatprep.subr.mxu0 0.0
      %9652 = vmatpush1.msra.mxu0 0.0
      %9653 = vmatprep.subr.mxu0 0.0
      %9654 = vmatpush1.msra.mxu0 0.0
      %9655 = vmatprep.mubr.f32.mxu0 0.0
      %9656 = vmatmul.mubr.f32.gmra.mrb[0].mxu0 %v9589
      %v9657 = vpop.f32.mrb[0].mxu0
      %v9658 = vadd.f32 0.0, %v9657
      %v9659 = vpop.f32.mrb[0].mxu0
      %9660 = vdwg.mxu0
      %9661 = vrot.lane.b32.xlu0 %v1282, 120
      %v9662 = vpop.permute.xlu0 %9661
      %v9665 = vsel %vm1459, %v7970, 0
      %9667 = vmatprep.subr.mxu0 0.0
      %9668 = vmatpush1.msra.mxu0 %v9662
      %9669 = vmatprep.subr.mxu0 0.0
      %9670 = vmatpush1.msra.mxu0 0.0
      %9671 = vmatprep.subr.mxu0 0.0
      %9672 = vmatpush1.msra.mxu0 0.0
      %9673 = vmatprep.subr.mxu0 0.0
      %9674 = vmatpush1.msra.mxu0 0.0
      %9675 = vmatprep.subr.mxu0 0.0
      %9676 = vmatpush1.msra.mxu0 0.0
      %9677 = vmatprep.subr.mxu0 0.0
      %9678 = vmatpush1.msra.mxu0 0.0
      %9679 = vmatprep.subr.mxu0 0.0
      %9680 = vmatpush1.msra.mxu0 0.0
      %9681 = vmatprep.subr.mxu0 0.0
      %9682 = vmatpush1.msra.mxu0 0.0
      %9683 = vmatprep.subr.mxu0 0.0
      %9684 = vmatpush1.msra.mxu0 0.0
      %9685 = vmatprep.subr.mxu0 0.0
      %9686 = vmatpush1.msra.mxu0 0.0
      %9687 = vmatprep.subr.mxu0 0.0
      %9688 = vmatpush1.msra.mxu0 0.0
      %9689 = vmatprep.subr.mxu0 0.0
      %9690 = vmatpush1.msra.mxu0 0.0
      %9691 = vmatprep.subr.mxu0 0.0
      %9692 = vmatpush1.msra.mxu0 0.0
      %9693 = vmatprep.subr.mxu0 0.0
      %9694 = vmatpush1.msra.mxu0 0.0
      %9695 = vmatprep.subr.mxu0 0.0
      %9696 = vmatpush1.msra.mxu0 0.0
      %9697 = vmatprep.subr.mxu0 0.0
      %9698 = vmatpush1.msra.mxu0 0.0
      %9699 = vmatprep.subr.mxu0 0.0
      %9700 = vmatpush1.msra.mxu0 0.0
      %9701 = vmatprep.subr.mxu0 0.0
      %9702 = vmatpush1.msra.mxu0 0.0
      %9703 = vmatprep.subr.mxu0 0.0
      %9704 = vmatpush1.msra.mxu0 0.0
      %9705 = vmatprep.subr.mxu0 0.0
      %9706 = vmatpush1.msra.mxu0 0.0
      %9707 = vmatprep.subr.mxu0 0.0
      %9708 = vmatpush1.msra.mxu0 0.0
      %9709 = vmatprep.subr.mxu0 0.0
      %9710 = vmatpush1.msra.mxu0 0.0
      %9711 = vmatprep.subr.mxu0 0.0
      %9712 = vmatpush1.msra.mxu0 0.0
      %9713 = vmatprep.subr.mxu0 0.0
      %9714 = vmatpush1.msra.mxu0 0.0
      %9715 = vmatprep.subr.mxu0 0.0
      %9716 = vmatpush1.msra.mxu0 0.0
      %9717 = vmatprep.subr.mxu0 0.0
      %9718 = vmatpush1.msra.mxu0 0.0
      %9719 = vmatprep.subr.mxu0 0.0
      %9720 = vmatpush1.msra.mxu0 0.0
      %9721 = vmatprep.subr.mxu0 0.0
      %9722 = vmatpush1.msra.mxu0 0.0
      %9723 = vmatprep.subr.mxu0 0.0
      %9724 = vmatpush1.msra.mxu0 0.0
      %9725 = vmatprep.subr.mxu0 0.0
      %9726 = vmatpush1.msra.mxu0 0.0
      %9727 = vmatprep.subr.mxu0 0.0
      %9728 = vmatpush1.msra.mxu0 0.0
      %9729 = vmatprep.subr.mxu0 0.0
      %9730 = vmatpush1.msra.mxu0 0.0
      %9731 = vmatprep.mubr.f32.mxu0 0.0
      %9732 = vmatmul.mubr.f32.gmra.mrb[0].mxu0 %v9665
      %v9733 = vpop.f32.mrb[0].mxu0
      %v9734 = vadd.f32 0.0, %v9733
      %v9735 = vpop.f32.mrb[0].mxu0
      %9736 = vdwg.mxu0
      %9737 = vrot.lane.b32.xlu0 %v1287, 120
      %v9738 = vpop.permute.xlu0 %9737
      %v9741 = vsel %vm1459, %v7972, 0
      %9743 = vmatprep.subr.mxu0 0.0
      %9744 = vmatpush1.msra.mxu0 %v9738
      %9745 = vmatprep.subr.mxu0 0.0
      %9746 = vmatpush1.msra.mxu0 0.0
      %9747 = vmatprep.subr.mxu0 0.0
      %9748 = vmatpush1.msra.mxu0 0.0
      %9749 = vmatprep.subr.mxu0 0.0
      %9750 = vmatpush1.msra.mxu0 0.0
      %9751 = vmatprep.subr.mxu0 0.0
      %9752 = vmatpush1.msra.mxu0 0.0
      %9753 = vmatprep.subr.mxu0 0.0
      %9754 = vmatpush1.msra.mxu0 0.0
      %9755 = vmatprep.subr.mxu0 0.0
      %9756 = vmatpush1.msra.mxu0 0.0
      %9757 = vmatprep.subr.mxu0 0.0
      %9758 = vmatpush1.msra.mxu0 0.0
      %9759 = vmatprep.subr.mxu0 0.0
      %9760 = vmatpush1.msra.mxu0 0.0
      %9761 = vmatprep.subr.mxu0 0.0
      %9762 = vmatpush1.msra.mxu0 0.0
      %9763 = vmatprep.subr.mxu0 0.0
      %9764 = vmatpush1.msra.mxu0 0.0
      %9765 = vmatprep.subr.mxu0 0.0
      %9766 = vmatpush1.msra.mxu0 0.0
      %9767 = vmatprep.subr.mxu0 0.0
      %9768 = vmatpush1.msra.mxu0 0.0
      %9769 = vmatprep.subr.mxu0 0.0
      %9770 = vmatpush1.msra.mxu0 0.0
      %9771 = vmatprep.subr.mxu0 0.0
      %9772 = vmatpush1.msra.mxu0 0.0
      %9773 = vmatprep.subr.mxu0 0.0
      %9774 = vmatpush1.msra.mxu0 0.0
      %9775 = vmatprep.subr.mxu0 0.0
      %9776 = vmatpush1.msra.mxu0 0.0
      %9777 = vmatprep.subr.mxu0 0.0
      %9778 = vmatpush1.msra.mxu0 0.0
      %9779 = vmatprep.subr.mxu0 0.0
      %9780 = vmatpush1.msra.mxu0 0.0
      %9781 = vmatprep.subr.mxu0 0.0
      %9782 = vmatpush1.msra.mxu0 0.0
      %9783 = vmatprep.subr.mxu0 0.0
      %9784 = vmatpush1.msra.mxu0 0.0
      %9785 = vmatprep.subr.mxu0 0.0
      %9786 = vmatpush1.msra.mxu0 0.0
      %9787 = vmatprep.subr.mxu0 0.0
      %9788 = vmatpush1.msra.mxu0 0.0
      %9789 = vmatprep.subr.mxu0 0.0
      %9790 = vmatpush1.msra.mxu0 0.0
      %9791 = vmatprep.subr.mxu0 0.0
      %9792 = vmatpush1.msra.mxu0 0.0
      %9793 = vmatprep.subr.mxu0 0.0
      %9794 = vmatpush1.msra.mxu0 0.0
      %9795 = vmatprep.subr.mxu0 0.0
      %9796 = vmatpush1.msra.mxu0 0.0
      %9797 = vmatprep.subr.mxu0 0.0
      %9798 = vmatpush1.msra.mxu0 0.0
      %9799 = vmatprep.subr.mxu0 0.0
      %9800 = vmatpush1.msra.mxu0 0.0
      %9801 = vmatprep.subr.mxu0 0.0
      %9802 = vmatpush1.msra.mxu0 0.0
      %9803 = vmatprep.subr.mxu0 0.0
      %9804 = vmatpush1.msra.mxu0 0.0
      %9805 = vmatprep.subr.mxu0 0.0
      %9806 = vmatpush1.msra.mxu0 0.0
      %9807 = vmatprep.mubr.f32.mxu0 0.0
      %9808 = vmatmul.mubr.f32.gmra.mrb[0].mxu0 %v9741
      %v9809 = vpop.f32.mrb[0].mxu0
      %v9810 = vadd.f32 0.0, %v9809
      %v9811 = vpop.f32.mrb[0].mxu0
      %9812 = vdwg.mxu0
      %9813 = vrot.lane.b32.xlu0 %v1292, 120
      %v9814 = vpop.permute.xlu0 %9813
      %v9817 = vsel %vm1459, %v7974, 0
      %9819 = vmatprep.subr.mxu0 0.0
      %9820 = vmatpush1.msra.mxu0 %v9814
      %9821 = vmatprep.subr.mxu0 0.0
      %9822 = vmatpush1.msra.mxu0 0.0
      %9823 = vmatprep.subr.mxu0 0.0
      %9824 = vmatpush1.msra.mxu0 0.0
      %9825 = vmatprep.subr.mxu0 0.0
      %9826 = vmatpush1.msra.mxu0 0.0
      %9827 = vmatprep.subr.mxu0 0.0
      %9828 = vmatpush1.msra.mxu0 0.0
      %9829 = vmatprep.subr.mxu0 0.0
      %9830 = vmatpush1.msra.mxu0 0.0
      %9831 = vmatprep.subr.mxu0 0.0
      %9832 = vmatpush1.msra.mxu0 0.0
      %9833 = vmatprep.subr.mxu0 0.0
      %9834 = vmatpush1.msra.mxu0 0.0
      %9835 = vmatprep.subr.mxu0 0.0
      %9836 = vmatpush1.msra.mxu0 0.0
      %9837 = vmatprep.subr.mxu0 0.0
      %9838 = vmatpush1.msra.mxu0 0.0
      %9839 = vmatprep.subr.mxu0 0.0
      %9840 = vmatpush1.msra.mxu0 0.0
      %9841 = vmatprep.subr.mxu0 0.0
      %9842 = vmatpush1.msra.mxu0 0.0
      %9843 = vmatprep.subr.mxu0 0.0
      %9844 = vmatpush1.msra.mxu0 0.0
      %9845 = vmatprep.subr.mxu0 0.0
      %9846 = vmatpush1.msra.mxu0 0.0
      %9847 = vmatprep.subr.mxu0 0.0
      %9848 = vmatpush1.msra.mxu0 0.0
      %9849 = vmatprep.subr.mxu0 0.0
      %9850 = vmatpush1.msra.mxu0 0.0
      %9851 = vmatprep.subr.mxu0 0.0
      %9852 = vmatpush1.msra.mxu0 0.0
      %9853 = vmatprep.subr.mxu0 0.0
      %9854 = vmatpush1.msra.mxu0 0.0
      %9855 = vmatprep.subr.mxu0 0.0
      %9856 = vmatpush1.msra.mxu0 0.0
      %9857 = vmatprep.subr.mxu0 0.0
      %9858 = vmatpush1.msra.mxu0 0.0
      %9859 = vmatprep.subr.mxu0 0.0
      %9860 = vmatpush1.msra.mxu0 0.0
      %9861 = vmatprep.subr.mxu0 0.0
      %9862 = vmatpush1.msra.mxu0 0.0
      %9863 = vmatprep.subr.mxu0 0.0
      %9864 = vmatpush1.msra.mxu0 0.0
      %9865 = vmatprep.subr.mxu0 0.0
      %9866 = vmatpush1.msra.mxu0 0.0
      %9867 = vmatprep.subr.mxu0 0.0
      %9868 = vmatpush1.msra.mxu0 0.0
      %9869 = vmatprep.subr.mxu0 0.0
      %9870 = vmatpush1.msra.mxu0 0.0
      %9871 = vmatprep.subr.mxu0 0.0
      %9872 = vmatpush1.msra.mxu0 0.0
      %9873 = vmatprep.subr.mxu0 0.0
      %9874 = vmatpush1.msra.mxu0 0.0
      %9875 = vmatprep.subr.mxu0 0.0
      %9876 = vmatpush1.msra.mxu0 0.0
      %9877 = vmatprep.subr.mxu0 0.0
      %9878 = vmatpush1.msra.mxu0 0.0
      %9879 = vmatprep.subr.mxu0 0.0
      %9880 = vmatpush1.msra.mxu0 0.0
      %9881 = vmatprep.subr.mxu0 0.0
      %9882 = vmatpush1.msra.mxu0 0.0
      %9883 = vmatprep.mubr.f32.mxu0 0.0
      %9884 = vmatmul.mubr.f32.gmra.mrb[0].mxu0 %v9817
      %v9885 = vpop.f32.mrb[0].mxu0
      %v9886 = vadd.f32 0.0, %v9885
      %v9887 = vpop.f32.mrb[0].mxu0
      %9888 = vdwg.mxu0
      %9889 = vrot.lane.b32.xlu0 %v1297, 120
      %v9890 = vpop.permute.xlu0 %9889
      %v9893 = vsel %vm1459, %v7976, 0
      %9895 = vmatprep.subr.mxu0 0.0
      %9896 = vmatpush1.msra.mxu0 %v9890
      %9897 = vmatprep.subr.mxu0 0.0
      %9898 = vmatpush1.msra.mxu0 0.0
      %9899 = vmatprep.subr.mxu0 0.0
      %9900 = vmatpush1.msra.mxu0 0.0
      %9901 = vmatprep.subr.mxu0 0.0
      %9902 = vmatpush1.msra.mxu0 0.0
      %9903 = vmatprep.subr.mxu0 0.0
      %9904 = vmatpush1.msra.mxu0 0.0
      %9905 = vmatprep.subr.mxu0 0.0
      %9906 = vmatpush1.msra.mxu0 0.0
      %9907 = vmatprep.subr.mxu0 0.0
      %9908 = vmatpush1.msra.mxu0 0.0
      %9909 = vmatprep.subr.mxu0 0.0
      %9910 = vmatpush1.msra.mxu0 0.0
      %9911 = vmatprep.subr.mxu0 0.0
      %9912 = vmatpush1.msra.mxu0 0.0
      %9913 = vmatprep.subr.mxu0 0.0
      %9914 = vmatpush1.msra.mxu0 0.0
      %9915 = vmatprep.subr.mxu0 0.0
      %9916 = vmatpush1.msra.mxu0 0.0
      %9917 = vmatprep.subr.mxu0 0.0
      %9918 = vmatpush1.msra.mxu0 0.0
      %9919 = vmatprep.subr.mxu0 0.0
      %9920 = vmatpush1.msra.mxu0 0.0
      %9921 = vmatprep.subr.mxu0 0.0
      %9922 = vmatpush1.msra.mxu0 0.0
      %9923 = vmatprep.subr.mxu0 0.0
      %9924 = vmatpush1.msra.mxu0 0.0
      %9925 = vmatprep.subr.mxu0 0.0
      %9926 = vmatpush1.msra.mxu0 0.0
      %9927 = vmatprep.subr.mxu0 0.0
      %9928 = vmatpush1.msra.mxu0 0.0
      %9929 = vmatprep.subr.mxu0 0.0
      %9930 = vmatpush1.msra.mxu0 0.0
      %9931 = vmatprep.subr.mxu0 0.0
      %9932 = vmatpush1.msra.mxu0 0.0
      %9933 = vmatprep.subr.mxu0 0.0
      %9934 = vmatpush1.msra.mxu0 0.0
      %9935 = vmatprep.subr.mxu0 0.0
      %9936 = vmatpush1.msra.mxu0 0.0
      %9937 = vmatprep.subr.mxu0 0.0
      %9938 = vmatpush1.msra.mxu0 0.0
      %9939 = vmatprep.subr.mxu0 0.0
      %9940 = vmatpush1.msra.mxu0 0.0
      %9941 = vmatprep.subr.mxu0 0.0
      %9942 = vmatpush1.msra.mxu0 0.0
      %9943 = vmatprep.subr.mxu0 0.0
      %9944 = vmatpush1.msra.mxu0 0.0
      %9945 = vmatprep.subr.mxu0 0.0
      %9946 = vmatpush1.msra.mxu0 0.0
      %9947 = vmatprep.subr.mxu0 0.0
      %9948 = vmatpush1.msra.mxu0 0.0
      %9949 = vmatprep.subr.mxu0 0.0
      %9950 = vmatpush1.msra.mxu0 0.0
      %9951 = vmatprep.subr.mxu0 0.0
      %9952 = vmatpush1.msra.mxu0 0.0
      %9953 = vmatprep.subr.mxu0 0.0
      %9954 = vmatpush1.msra.mxu0 0.0
      %9955 = vmatprep.subr.mxu0 0.0
      %9956 = vmatpush1.msra.mxu0 0.0
      %9957 = vmatprep.subr.mxu0 0.0
      %9958 = vmatpush1.msra.mxu0 0.0
      %9959 = vmatprep.mubr.f32.mxu0 0.0
      %9960 = vmatmul.mubr.f32.gmra.mrb[0].mxu0 %v9893
      %v9961 = vpop.f32.mrb[0].mxu0
      %v9962 = vadd.f32 0.0, %v9961
      %v9963 = vpop.f32.mrb[0].mxu0
      %9964 = vdwg.mxu0
      %9965 = vrot.lane.b32.xlu0 %v1302, 120
      %v9966 = vpop.permute.xlu0 %9965
      %v9969 = vsel %vm1459, %v7978, 0
      %9971 = vmatprep.subr.mxu0 0.0
      %9972 = vmatpush1.msra.mxu0 %v9966
      %9973 = vmatprep.subr.mxu0 0.0
      %9974 = vmatpush1.msra.mxu0 0.0
      %9975 = vmatprep.subr.mxu0 0.0
      %9976 = vmatpush1.msra.mxu0 0.0
      %9977 = vmatprep.subr.mxu0 0.0
      %9978 = vmatpush1.msra.mxu0 0.0
      %9979 = vmatprep.subr.mxu0 0.0
      %9980 = vmatpush1.msra.mxu0 0.0
      %9981 = vmatprep.subr.mxu0 0.0
      %9982 = vmatpush1.msra.mxu0 0.0
      %9983 = vmatprep.subr.mxu0 0.0
      %9984 = vmatpush1.msra.mxu0 0.0
      %9985 = vmatprep.subr.mxu0 0.0
      %9986 = vmatpush1.msra.mxu0 0.0
      %9987 = vmatprep.subr.mxu0 0.0
      %9988 = vmatpush1.msra.mxu0 0.0
      %9989 = vmatprep.subr.mxu0 0.0
      %9990 = vmatpush1.msra.mxu0 0.0
      %9991 = vmatprep.subr.mxu0 0.0
      %9992 = vmatpush1.msra.mxu0 0.0
      %9993 = vmatprep.subr.mxu0 0.0
      %9994 = vmatpush1.msra.mxu0 0.0
      %9995 = vmatprep.subr.mxu0 0.0
      %9996 = vmatpush1.msra.mxu0 0.0
      %9997 = vmatprep.subr.mxu0 0.0
      %9998 = vmatpush1.msra.mxu0 0.0
      %9999 = vmatprep.subr.mxu0 0.0
      %10000 = vmatpush1.msra.mxu0 0.0
      %10001 = vmatprep.subr.mxu0 0.0
      %10002 = vmatpush1.msra.mxu0 0.0
      %10003 = vmatprep.subr.mxu0 0.0
      %10004 = vmatpush1.msra.mxu0 0.0
      %10005 = vmatprep.subr.mxu0 0.0
      %10006 = vmatpush1.msra.mxu0 0.0
      %10007 = vmatprep.subr.mxu0 0.0
      %10008 = vmatpush1.msra.mxu0 0.0
      %10009 = vmatprep.subr.mxu0 0.0
      %10010 = vmatpush1.msra.mxu0 0.0
      %10011 = vmatprep.subr.mxu0 0.0
      %10012 = vmatpush1.msra.mxu0 0.0
      %10013 = vmatprep.subr.mxu0 0.0
      %10014 = vmatpush1.msra.mxu0 0.0
      %10015 = vmatprep.subr.mxu0 0.0
      %10016 = vmatpush1.msra.mxu0 0.0
      %10017 = vmatprep.subr.mxu0 0.0
      %10018 = vmatpush1.msra.mxu0 0.0
      %10019 = vmatprep.subr.mxu0 0.0
      %10020 = vmatpush1.msra.mxu0 0.0
      %10021 = vmatprep.subr.mxu0 0.0
      %10022 = vmatpush1.msra.mxu0 0.0
      %10023 = vmatprep.subr.mxu0 0.0
      %10024 = vmatpush1.msra.mxu0 0.0
      %10025 = vmatprep.subr.mxu0 0.0
      %10026 = vmatpush1.msra.mxu0 0.0
      %10027 = vmatprep.subr.mxu0 0.0
      %10028 = vmatpush1.msra.mxu0 0.0
      %10029 = vmatprep.subr.mxu0 0.0
      %10030 = vmatpush1.msra.mxu0 0.0
      %10031 = vmatprep.subr.mxu0 0.0
      %10032 = vmatpush1.msra.mxu0 0.0
      %10033 = vmatprep.subr.mxu0 0.0
      %10034 = vmatpush1.msra.mxu0 0.0
      %10035 = vmatprep.mubr.f32.mxu0 0.0
      %10036 = vmatmul.mubr.f32.gmra.mrb[0].mxu0 %v9969
      %v10037 = vpop.f32.mrb[0].mxu0
      %v10038 = vadd.f32 0.0, %v10037
      %v10039 = vpop.f32.mrb[0].mxu0
      %10040 = vdwg.mxu0
      %10041 = vrot.lane.b32.xlu0 %v1307, 120
      %v10042 = vpop.permute.xlu0 %10041
      %v10045 = vsel %vm1459, %v7980, 0
      %10047 = vmatprep.subr.mxu0 0.0
      %10048 = vmatpush1.msra.mxu0 %v10042
      %10049 = vmatprep.subr.mxu0 0.0
      %10050 = vmatpush1.msra.mxu0 0.0
      %10051 = vmatprep.subr.mxu0 0.0
      %10052 = vmatpush1.msra.mxu0 0.0
      %10053 = vmatprep.subr.mxu0 0.0
      %10054 = vmatpush1.msra.mxu0 0.0
      %10055 = vmatprep.subr.mxu0 0.0
      %10056 = vmatpush1.msra.mxu0 0.0
      %10057 = vmatprep.subr.mxu0 0.0
      %10058 = vmatpush1.msra.mxu0 0.0
      %10059 = vmatprep.subr.mxu0 0.0
      %10060 = vmatpush1.msra.mxu0 0.0
      %10061 = vmatprep.subr.mxu0 0.0
      %10062 = vmatpush1.msra.mxu0 0.0
      %10063 = vmatprep.subr.mxu0 0.0
      %10064 = vmatpush1.msra.mxu0 0.0
      %10065 = vmatprep.subr.mxu0 0.0
      %10066 = vmatpush1.msra.mxu0 0.0
      %10067 = vmatprep.subr.mxu0 0.0
      %10068 = vmatpush1.msra.mxu0 0.0
      %10069 = vmatprep.subr.mxu0 0.0
      %10070 = vmatpush1.msra.mxu0 0.0
      %10071 = vmatprep.subr.mxu0 0.0
      %10072 = vmatpush1.msra.mxu0 0.0
      %10073 = vmatprep.subr.mxu0 0.0
      %10074 = vmatpush1.msra.mxu0 0.0
      %10075 = vmatprep.subr.mxu0 0.0
      %10076 = vmatpush1.msra.mxu0 0.0
      %10077 = vmatprep.subr.mxu0 0.0
      %10078 = vmatpush1.msra.mxu0 0.0
      %10079 = vmatprep.subr.mxu0 0.0
      %10080 = vmatpush1.msra.mxu0 0.0
      %10081 = vmatprep.subr.mxu0 0.0
      %10082 = vmatpush1.msra.mxu0 0.0
      %10083 = vmatprep.subr.mxu0 0.0
      %10084 = vmatpush1.msra.mxu0 0.0
      %10085 = vmatprep.subr.mxu0 0.0
      %10086 = vmatpush1.msra.mxu0 0.0
      %10087 = vmatprep.subr.mxu0 0.0
      %10088 = vmatpush1.msra.mxu0 0.0
      %10089 = vmatprep.subr.mxu0 0.0
      %10090 = vmatpush1.msra.mxu0 0.0
      %10091 = vmatprep.subr.mxu0 0.0
      %10092 = vmatpush1.msra.mxu0 0.0
      %10093 = vmatprep.subr.mxu0 0.0
      %10094 = vmatpush1.msra.mxu0 0.0
      %10095 = vmatprep.subr.mxu0 0.0
      %10096 = vmatpush1.msra.mxu0 0.0
      %10097 = vmatprep.subr.mxu0 0.0
      %10098 = vmatpush1.msra.mxu0 0.0
      %10099 = vmatprep.subr.mxu0 0.0
      %10100 = vmatpush1.msra.mxu0 0.0
      %10101 = vmatprep.subr.mxu0 0.0
      %10102 = vmatpush1.msra.mxu0 0.0
      %10103 = vmatprep.subr.mxu0 0.0
      %10104 = vmatpush1.msra.mxu0 0.0
      %10105 = vmatprep.subr.mxu0 0.0
      %10106 = vmatpush1.msra.mxu0 0.0
      %10107 = vmatprep.subr.mxu0 0.0
      %10108 = vmatpush1.msra.mxu0 0.0
      %10109 = vmatprep.subr.mxu0 0.0
      %10110 = vmatpush1.msra.mxu0 0.0
      %10111 = vmatprep.mubr.f32.mxu0 0.0
      %10112 = vmatmul.mubr.f32.gmra.mrb[0].mxu0 %v10045
      %v10113 = vpop.f32.mrb[0].mxu0
      %v10114 = vadd.f32 0.0, %v10113
      %v10115 = vpop.f32.mrb[0].mxu0
      %10116 = vdwg.mxu0
      %10117 = vrot.lane.b32.xlu0 %v1312, 120
      %v10118 = vpop.permute.xlu0 %10117
      %v10121 = vsel %vm1459, %v7982, 0
      %10123 = vmatprep.subr.mxu0 0.0
      %10124 = vmatpush1.msra.mxu0 %v10118
      %10125 = vmatprep.subr.mxu0 0.0
      %10126 = vmatpush1.msra.mxu0 0.0
      %10127 = vmatprep.subr.mxu0 0.0
      %10128 = vmatpush1.msra.mxu0 0.0
      %10129 = vmatprep.subr.mxu0 0.0
      %10130 = vmatpush1.msra.mxu0 0.0
      %10131 = vmatprep.subr.mxu0 0.0
      %10132 = vmatpush1.msra.mxu0 0.0
      %10133 = vmatprep.subr.mxu0 0.0
      %10134 = vmatpush1.msra.mxu0 0.0
      %10135 = vmatprep.subr.mxu0 0.0
      %10136 = vmatpush1.msra.mxu0 0.0
      %10137 = vmatprep.subr.mxu0 0.0
      %10138 = vmatpush1.msra.mxu0 0.0
      %10139 = vmatprep.subr.mxu0 0.0
      %10140 = vmatpush1.msra.mxu0 0.0
      %10141 = vmatprep.subr.mxu0 0.0
      %10142 = vmatpush1.msra.mxu0 0.0
      %10143 = vmatprep.subr.mxu0 0.0
      %10144 = vmatpush1.msra.mxu0 0.0
      %10145 = vmatprep.subr.mxu0 0.0
      %10146 = vmatpush1.msra.mxu0 0.0
      %10147 = vmatprep.subr.mxu0 0.0
      %10148 = vmatpush1.msra.mxu0 0.0
      %10149 = vmatprep.subr.mxu0 0.0
      %10150 = vmatpush1.msra.mxu0 0.0
      %10151 = vmatprep.subr.mxu0 0.0
      %10152 = vmatpush1.msra.mxu0 0.0
      %10153 = vmatprep.subr.mxu0 0.0
      %10154 = vmatpush1.msra.mxu0 0.0
      %10155 = vmatprep.subr.mxu0 0.0
      %10156 = vmatpush1.msra.mxu0 0.0
      %10157 = vmatprep.subr.mxu0 0.0
      %10158 = vmatpush1.msra.mxu0 0.0
      %10159 = vmatprep.subr.mxu0 0.0
      %10160 = vmatpush1.msra.mxu0 0.0
      %10161 = vmatprep.subr.mxu0 0.0
      %10162 = vmatpush1.msra.mxu0 0.0
      %10163 = vmatprep.subr.mxu0 0.0
      %10164 = vmatpush1.msra.mxu0 0.0
      %10165 = vmatprep.subr.mxu0 0.0
      %10166 = vmatpush1.msra.mxu0 0.0
      %10167 = vmatprep.subr.mxu0 0.0
      %10168 = vmatpush1.msra.mxu0 0.0
      %10169 = vmatprep.subr.mxu0 0.0
      %10170 = vmatpush1.msra.mxu0 0.0
      %10171 = vmatprep.subr.mxu0 0.0
      %10172 = vmatpush1.msra.mxu0 0.0
      %10173 = vmatprep.subr.mxu0 0.0
      %10174 = vmatpush1.msra.mxu0 0.0
      %10175 = vmatprep.subr.mxu0 0.0
      %10176 = vmatpush1.msra.mxu0 0.0
      %10177 = vmatprep.subr.mxu0 0.0
      %10178 = vmatpush1.msra.mxu0 0.0
      %10179 = vmatprep.subr.mxu0 0.0
      %10180 = vmatpush1.msra.mxu0 0.0
      %10181 = vmatprep.subr.mxu0 0.0
      %10182 = vmatpush1.msra.mxu0 0.0
      %10183 = vmatprep.subr.mxu0 0.0
      %10184 = vmatpush1.msra.mxu0 0.0
      %10185 = vmatprep.subr.mxu0 0.0
      %10186 = vmatpush1.msra.mxu0 0.0
      %10187 = vmatprep.mubr.f32.mxu0 0.0
      %10188 = vmatmul.mubr.f32.gmra.mrb[0].mxu0 %v10121
      %v10189 = vpop.f32.mrb[0].mxu0
      %v10190 = vadd.f32 0.0, %v10189
      %v10191 = vpop.f32.mrb[0].mxu0
      %10192 = vdwg.mxu0
      %10193 = vrot.lane.b32.xlu0 %v1317, 120
      %v10194 = vpop.permute.xlu0 %10193
      %v10197 = vsel %vm1459, %v7984, 0
      %10199 = vmatprep.subr.mxu0 0.0
      %10200 = vmatpush1.msra.mxu0 %v10194
      %10201 = vmatprep.subr.mxu0 0.0
      %10202 = vmatpush1.msra.mxu0 0.0
      %10203 = vmatprep.subr.mxu0 0.0
      %10204 = vmatpush1.msra.mxu0 0.0
      %10205 = vmatprep.subr.mxu0 0.0
      %10206 = vmatpush1.msra.mxu0 0.0
      %10207 = vmatprep.subr.mxu0 0.0
      %10208 = vmatpush1.msra.mxu0 0.0
      %10209 = vmatprep.subr.mxu0 0.0
      %10210 = vmatpush1.msra.mxu0 0.0
      %10211 = vmatprep.subr.mxu0 0.0
      %10212 = vmatpush1.msra.mxu0 0.0
      %10213 = vmatprep.subr.mxu0 0.0
      %10214 = vmatpush1.msra.mxu0 0.0
      %10215 = vmatprep.subr.mxu0 0.0
      %10216 = vmatpush1.msra.mxu0 0.0
      %10217 = vmatprep.subr.mxu0 0.0
      %10218 = vmatpush1.msra.mxu0 0.0
      %10219 = vmatprep.subr.mxu0 0.0
      %10220 = vmatpush1.msra.mxu0 0.0
      %10221 = vmatprep.subr.mxu0 0.0
      %10222 = vmatpush1.msra.mxu0 0.0
      %10223 = vmatprep.subr.mxu0 0.0
      %10224 = vmatpush1.msra.mxu0 0.0
      %10225 = vmatprep.subr.mxu0 0.0
      %10226 = vmatpush1.msra.mxu0 0.0
      %10227 = vmatprep.subr.mxu0 0.0
      %10228 = vmatpush1.msra.mxu0 0.0
      %10229 = vmatprep.subr.mxu0 0.0
      %10230 = vmatpush1.msra.mxu0 0.0
      %10231 = vmatprep.subr.mxu0 0.0
      %10232 = vmatpush1.msra.mxu0 0.0
      %10233 = vmatprep.subr.mxu0 0.0
      %10234 = vmatpush1.msra.mxu0 0.0
      %10235 = vmatprep.subr.mxu0 0.0
      %10236 = vmatpush1.msra.mxu0 0.0
      %10237 = vmatprep.subr.mxu0 0.0
      %10238 = vmatpush1.msra.mxu0 0.0
      %10239 = vmatprep.subr.mxu0 0.0
      %10240 = vmatpush1.msra.mxu0 0.0
      %10241 = vmatprep.subr.mxu0 0.0
      %10242 = vmatpush1.msra.mxu0 0.0
      %10243 = vmatprep.subr.mxu0 0.0
      %10244 = vmatpush1.msra.mxu0 0.0
      %10245 = vmatprep.subr.mxu0 0.0
      %10246 = vmatpush1.msra.mxu0 0.0
      %10247 = vmatprep.subr.mxu0 0.0
      %10248 = vmatpush1.msra.mxu0 0.0
      %10249 = vmatprep.subr.mxu0 0.0
      %10250 = vmatpush1.msra.mxu0 0.0
      %10251 = vmatprep.subr.mxu0 0.0
      %10252 = vmatpush1.msra.mxu0 0.0
      %10253 = vmatprep.subr.mxu0 0.0
      %10254 = vmatpush1.msra.mxu0 0.0
      %10255 = vmatprep.subr.mxu0 0.0
      %10256 = vmatpush1.msra.mxu0 0.0
      %10257 = vmatprep.subr.mxu0 0.0
      %10258 = vmatpush1.msra.mxu0 0.0
      %10259 = vmatprep.subr.mxu0 0.0
      %10260 = vmatpush1.msra.mxu0 0.0
      %10261 = vmatprep.subr.mxu0 0.0
      %10262 = vmatpush1.msra.mxu0 0.0
      %10263 = vmatprep.mubr.f32.mxu0 0.0
      %10264 = vmatmul.mubr.f32.gmra.mrb[0].mxu0 %v10197
      %v10265 = vpop.f32.mrb[0].mxu0
      %v10266 = vadd.f32 0.0, %v10265
      %v10267 = vpop.f32.mrb[0].mxu0
      %10268 = vdwg.mxu0
      %10269 = vrot.lane.b32.xlu0 %v1322, 120
      %v10270 = vpop.permute.xlu0 %10269
      %v10273 = vsel %vm1459, %v7986, 0
      %10275 = vmatprep.subr.mxu0 0.0
      %10276 = vmatpush1.msra.mxu0 %v10270
      %10277 = vmatprep.subr.mxu0 0.0
      %10278 = vmatpush1.msra.mxu0 0.0
      %10279 = vmatprep.subr.mxu0 0.0
      %10280 = vmatpush1.msra.mxu0 0.0
      %10281 = vmatprep.subr.mxu0 0.0
      %10282 = vmatpush1.msra.mxu0 0.0
      %10283 = vmatprep.subr.mxu0 0.0
      %10284 = vmatpush1.msra.mxu0 0.0
      %10285 = vmatprep.subr.mxu0 0.0
      %10286 = vmatpush1.msra.mxu0 0.0
      %10287 = vmatprep.subr.mxu0 0.0
      %10288 = vmatpush1.msra.mxu0 0.0
      %10289 = vmatprep.subr.mxu0 0.0
      %10290 = vmatpush1.msra.mxu0 0.0
      %10291 = vmatprep.subr.mxu0 0.0
      %10292 = vmatpush1.msra.mxu0 0.0
      %10293 = vmatprep.subr.mxu0 0.0
      %10294 = vmatpush1.msra.mxu0 0.0
      %10295 = vmatprep.subr.mxu0 0.0
      %10296 = vmatpush1.msra.mxu0 0.0
      %10297 = vmatprep.subr.mxu0 0.0
      %10298 = vmatpush1.msra.mxu0 0.0
      %10299 = vmatprep.subr.mxu0 0.0
      %10300 = vmatpush1.msra.mxu0 0.0
      %10301 = vmatprep.subr.mxu0 0.0
      %10302 = vmatpush1.msra.mxu0 0.0
      %10303 = vmatprep.subr.mxu0 0.0
      %10304 = vmatpush1.msra.mxu0 0.0
      %10305 = vmatprep.subr.mxu0 0.0
      %10306 = vmatpush1.msra.mxu0 0.0
      %10307 = vmatprep.subr.mxu0 0.0
      %10308 = vmatpush1.msra.mxu0 0.0
      %10309 = vmatprep.subr.mxu0 0.0
      %10310 = vmatpush1.msra.mxu0 0.0
      %10311 = vmatprep.subr.mxu0 0.0
      %10312 = vmatpush1.msra.mxu0 0.0
      %10313 = vmatprep.subr.mxu0 0.0
      %10314 = vmatpush1.msra.mxu0 0.0
      %10315 = vmatprep.subr.mxu0 0.0
      %10316 = vmatpush1.msra.mxu0 0.0
      %10317 = vmatprep.subr.mxu0 0.0
      %10318 = vmatpush1.msra.mxu0 0.0
      %10319 = vmatprep.subr.mxu0 0.0
      %10320 = vmatpush1.msra.mxu0 0.0
      %10321 = vmatprep.subr.mxu0 0.0
      %10322 = vmatpush1.msra.mxu0 0.0
      %10323 = vmatprep.subr.mxu0 0.0
      %10324 = vmatpush1.msra.mxu0 0.0
      %10325 = vmatprep.subr.mxu0 0.0
      %10326 = vmatpush1.msra.mxu0 0.0
      %10327 = vmatprep.subr.mxu0 0.0
      %10328 = vmatpush1.msra.mxu0 0.0
      %10329 = vmatprep.subr.mxu0 0.0
      %10330 = vmatpush1.msra.mxu0 0.0
      %10331 = vmatprep.subr.mxu0 0.0
      %10332 = vmatpush1.msra.mxu0 0.0
      %10333 = vmatprep.subr.mxu0 0.0
      %10334 = vmatpush1.msra.mxu0 0.0
      %10335 = vmatprep.subr.mxu0 0.0
      %10336 = vmatpush1.msra.mxu0 0.0
      %10337 = vmatprep.subr.mxu0 0.0
      %10338 = vmatpush1.msra.mxu0 0.0
      %10339 = vmatprep.mubr.f32.mxu0 0.0
      %10340 = vmatmul.mubr.f32.gmra.mrb[0].mxu0 %v10273
      %v10341 = vpop.f32.mrb[0].mxu0
      %v10342 = vadd.f32 0.0, %v10341
      %v10343 = vpop.f32.mrb[0].mxu0
      %10344 = vdwg.mxu0
      %10345 = vrot.lane.b32.xlu0 %v1327, 120
      %v10346 = vpop.permute.xlu0 %10345
      %v10349 = vsel %vm1459, %v7988, 0
      %10351 = vmatprep.subr.mxu0 0.0
      %10352 = vmatpush1.msra.mxu0 %v10346
      %10353 = vmatprep.subr.mxu0 0.0
      %10354 = vmatpush1.msra.mxu0 0.0
      %10355 = vmatprep.subr.mxu0 0.0
      %10356 = vmatpush1.msra.mxu0 0.0
      %10357 = vmatprep.subr.mxu0 0.0
      %10358 = vmatpush1.msra.mxu0 0.0
      %10359 = vmatprep.subr.mxu0 0.0
      %10360 = vmatpush1.msra.mxu0 0.0
      %10361 = vmatprep.subr.mxu0 0.0
      %10362 = vmatpush1.msra.mxu0 0.0
      %10363 = vmatprep.subr.mxu0 0.0
      %10364 = vmatpush1.msra.mxu0 0.0
      %10365 = vmatprep.subr.mxu0 0.0
      %10366 = vmatpush1.msra.mxu0 0.0
      %10367 = vmatprep.subr.mxu0 0.0
      %10368 = vmatpush1.msra.mxu0 0.0
      %10369 = vmatprep.subr.mxu0 0.0
      %10370 = vmatpush1.msra.mxu0 0.0
      %10371 = vmatprep.subr.mxu0 0.0
      %10372 = vmatpush1.msra.mxu0 0.0
      %10373 = vmatprep.subr.mxu0 0.0
      %10374 = vmatpush1.msra.mxu0 0.0
      %10375 = vmatprep.subr.mxu0 0.0
      %10376 = vmatpush1.msra.mxu0 0.0
      %10377 = vmatprep.subr.mxu0 0.0
      %10378 = vmatpush1.msra.mxu0 0.0
      %10379 = vmatprep.subr.mxu0 0.0
      %10380 = vmatpush1.msra.mxu0 0.0
      %10381 = vmatprep.subr.mxu0 0.0
      %10382 = vmatpush1.msra.mxu0 0.0
      %10383 = vmatprep.subr.mxu0 0.0
      %10384 = vmatpush1.msra.mxu0 0.0
      %10385 = vmatprep.subr.mxu0 0.0
      %10386 = vmatpush1.msra.mxu0 0.0
      %10387 = vmatprep.subr.mxu0 0.0
      %10388 = vmatpush1.msra.mxu0 0.0
      %10389 = vmatprep.subr.mxu0 0.0
      %10390 = vmatpush1.msra.mxu0 0.0
      %10391 = vmatprep.subr.mxu0 0.0
      %10392 = vmatpush1.msra.mxu0 0.0
      %10393 = vmatprep.subr.mxu0 0.0
      %10394 = vmatpush1.msra.mxu0 0.0
      %10395 = vmatprep.subr.mxu0 0.0
      %10396 = vmatpush1.msra.mxu0 0.0
      %10397 = vmatprep.subr.mxu0 0.0
      %10398 = vmatpush1.msra.mxu0 0.0
      %10399 = vmatprep.subr.mxu0 0.0
      %10400 = vmatpush1.msra.mxu0 0.0
      %10401 = vmatprep.subr.mxu0 0.0
      %10402 = vmatpush1.msra.mxu0 0.0
      %10403 = vmatprep.subr.mxu0 0.0
      %10404 = vmatpush1.msra.mxu0 0.0
      %10405 = vmatprep.subr.mxu0 0.0
      %10406 = vmatpush1.msra.mxu0 0.0
      %10407 = vmatprep.subr.mxu0 0.0
      %10408 = vmatpush1.msra.mxu0 0.0
      %10409 = vmatprep.subr.mxu0 0.0
      %10410 = vmatpush1.msra.mxu0 0.0
      %10411 = vmatprep.subr.mxu0 0.0
      %10412 = vmatpush1.msra.mxu0 0.0
      %10413 = vmatprep.subr.mxu0 0.0
      %10414 = vmatpush1.msra.mxu0 0.0
      %10415 = vmatprep.mubr.f32.mxu0 0.0
      %10416 = vmatmul.mubr.f32.gmra.mrb[0].mxu0 %v10349
      %v10417 = vpop.f32.mrb[0].mxu0
      %v10418 = vadd.f32 0.0, %v10417
      %v10419 = vpop.f32.mrb[0].mxu0
      %10420 = vdwg.mxu0
      %v10422 = vunpack.c.l.s4 1983009808
      %v10423 = vunpack.c.0.s8 %v10422
      %v10424 = vlaneseq
      %v10425 = vshrl.u32 %v10424, 7
      %v10426 = vsub.s32 %v10423, %v10425
      %v10427 = vrot.slane %v8062, %v10426
      %v10428 = vcombine.high %v10427, 0.0
      %v10430 = vunpack.c.l.s4 1934713408
      %v10431 = vunpack.c.0.s8 %v10430
      %v10432 = vlaneseq
      %v10433 = vshrl.u32 %v10432, 7
      %v10434 = vsub.s32 %v10431, %v10433
      %v10435 = vrot.slane %v10427, %v10434
      %v10437 = vunpack.c.l.s4 1934713408
      %v10438 = vunpack.c.0.s8 %v10437
      %v10439 = vlaneseq
      %v10440 = vshrl.u32 %v10439, 7
      %v10441 = vsub.s32 %v10438, %v10440
      %v10442 = vrot.slane %v10428, %v10441
      %v10443 = vcombine.high %v10435, 0.0
      %v10444 = vcombine.high %v10442, 0.0
      %v10446 = vunpack.c.l.s4 1983009808
      %v10447 = vunpack.c.0.s8 %v10446
      %v10448 = vlaneseq
      %v10449 = vshrl.u32 %v10448, 7
      %v10450 = vsub.s32 %v10447, %v10449
      %v10451 = vrot.slane %v8138, %v10450
      %v10452 = vcombine.high %v10451, 0.0
      %v10454 = vunpack.c.l.s4 1934713408
      %v10455 = vunpack.c.0.s8 %v10454
      %v10456 = vlaneseq
      %v10457 = vshrl.u32 %v10456, 7
      %v10458 = vsub.s32 %v10455, %v10457
      %v10459 = vrot.slane %v10451, %v10458
      %v10461 = vunpack.c.l.s4 1934713408
      %v10462 = vunpack.c.0.s8 %v10461
      %v10463 = vlaneseq
      %v10464 = vshrl.u32 %v10463, 7
      %v10465 = vsub.s32 %v10462, %v10464
      %v10466 = vrot.slane %v10452, %v10465
      %v10467 = vcombine.high %v10459, 0.0
      %v10468 = vcombine.high %v10466, 0.0
      %v10470 = vunpack.c.l.s4 1983009808
      %v10471 = vunpack.c.0.s8 %v10470
      %v10472 = vlaneseq
      %v10473 = vshrl.u32 %v10472, 7
      %v10474 = vsub.s32 %v10471, %v10473
      %v10475 = vrot.slane %v8214, %v10474
      %v10476 = vcombine.high %v10475, 0.0
      %v10478 = vunpack.c.l.s4 1934713408
      %v10479 = vunpack.c.0.s8 %v10478
      %v10480 = vlaneseq
      %v10481 = vshrl.u32 %v10480, 7
      %v10482 = vsub.s32 %v10479, %v10481
      %v10483 = vrot.slane %v10475, %v10482
      %v10485 = vunpack.c.l.s4 1934713408
      %v10486 = vunpack.c.0.s8 %v10485
      %v10487 = vlaneseq
      %v10488 = vshrl.u32 %v10487, 7
      %v10489 = vsub.s32 %v10486, %v10488
      %v10490 = vrot.slane %v10476, %v10489
      %v10491 = vcombine.high %v10483, 0.0
      %v10492 = vcombine.high %v10490, 0.0
      %v10494 = vunpack.c.l.s4 1983009808
      %v10495 = vunpack.c.0.s8 %v10494
      %v10496 = vlaneseq
      %v10497 = vshrl.u32 %v10496, 7
      %v10498 = vsub.s32 %v10495, %v10497
      %v10499 = vrot.slane %v8290, %v10498
      %v10500 = vcombine.high %v10499, 0.0
      %v10502 = vunpack.c.l.s4 1934713408
      %v10503 = vunpack.c.0.s8 %v10502
      %v10504 = vlaneseq
      %v10505 = vshrl.u32 %v10504, 7
      %v10506 = vsub.s32 %v10503, %v10505
      %v10507 = vrot.slane %v10499, %v10506
      %v10509 = vunpack.c.l.s4 1934713408
      %v10510 = vunpack.c.0.s8 %v10509
      %v10511 = vlaneseq
      %v10512 = vshrl.u32 %v10511, 7
      %v10513 = vsub.s32 %v10510, %v10512
      %v10514 = vrot.slane %v10500, %v10513
      %v10515 = vcombine.high %v10507, 0.0
      %v10516 = vcombine.high %v10514, 0.0
      %v10518 = vunpack.c.l.s4 1983009808
      %v10519 = vunpack.c.0.s8 %v10518
      %v10520 = vlaneseq
      %v10521 = vshrl.u32 %v10520, 7
      %v10522 = vsub.s32 %v10519, %v10521
      %v10523 = vrot.slane %v8366, %v10522
      %v10524 = vcombine.high %v10523, 0.0
      %v10526 = vunpack.c.l.s4 1934713408
      %v10527 = vunpack.c.0.s8 %v10526
      %v10528 = vlaneseq
      %v10529 = vshrl.u32 %v10528, 7
      %v10530 = vsub.s32 %v10527, %v10529
      %v10531 = vrot.slane %v10523, %v10530
      %v10533 = vunpack.c.l.s4 1934713408
      %v10534 = vunpack.c.0.s8 %v10533
      %v10535 = vlaneseq
      %v10536 = vshrl.u32 %v10535, 7
      %v10537 = vsub.s32 %v10534, %v10536
      %v10538 = vrot.slane %v10524, %v10537
      %v10539 = vcombine.high %v10531, 0.0
      %v10540 = vcombine.high %v10538, 0.0
      %v10542 = vunpack.c.l.s4 1983009808
      %v10543 = vunpack.c.0.s8 %v10542
      %v10544 = vlaneseq
      %v10545 = vshrl.u32 %v10544, 7
      %v10546 = vsub.s32 %v10543, %v10545
      %v10547 = vrot.slane %v8442, %v10546
      %v10548 = vcombine.high %v10547, 0.0
      %v10550 = vunpack.c.l.s4 1934713408
      %v10551 = vunpack.c.0.s8 %v10550
      %v10552 = vlaneseq
      %v10553 = vshrl.u32 %v10552, 7
      %v10554 = vsub.s32 %v10551, %v10553
      %v10555 = vrot.slane %v10547, %v10554
      %v10557 = vunpack.c.l.s4 1934713408
      %v10558 = vunpack.c.0.s8 %v10557
      %v10559 = vlaneseq
      %v10560 = vshrl.u32 %v10559, 7
      %v10561 = vsub.s32 %v10558, %v10560
      %v10562 = vrot.slane %v10548, %v10561
      %v10563 = vcombine.high %v10555, 0.0
      %v10564 = vcombine.high %v10562, 0.0
      %v10566 = vunpack.c.l.s4 1983009808
      %v10567 = vunpack.c.0.s8 %v10566
      %v10568 = vlaneseq
      %v10569 = vshrl.u32 %v10568, 7
      %v10570 = vsub.s32 %v10567, %v10569
      %v10571 = vrot.slane %v8518, %v10570
      %v10572 = vcombine.high %v10571, 0.0
      %v10574 = vunpack.c.l.s4 1934713408
      %v10575 = vunpack.c.0.s8 %v10574
      %v10576 = vlaneseq
      %v10577 = vshrl.u32 %v10576, 7
      %v10578 = vsub.s32 %v10575, %v10577
      %v10579 = vrot.slane %v10571, %v10578
      %v10581 = vunpack.c.l.s4 1934713408
      %v10582 = vunpack.c.0.s8 %v10581
      %v10583 = vlaneseq
      %v10584 = vshrl.u32 %v10583, 7
      %v10585 = vsub.s32 %v10582, %v10584
      %v10586 = vrot.slane %v10572, %v10585
      %v10587 = vcombine.high %v10579, 0.0
      %v10588 = vcombine.high %v10586, 0.0
      %v10590 = vunpack.c.l.s4 1983009808
      %v10591 = vunpack.c.0.s8 %v10590
      %v10592 = vlaneseq
      %v10593 = vshrl.u32 %v10592, 7
      %v10594 = vsub.s32 %v10591, %v10593
      %v10595 = vrot.slane %v8594, %v10594
      %v10596 = vcombine.high %v10595, 0.0
      %v10598 = vunpack.c.l.s4 1934713408
      %v10599 = vunpack.c.0.s8 %v10598
      %v10600 = vlaneseq
      %v10601 = vshrl.u32 %v10600, 7
      %v10602 = vsub.s32 %v10599, %v10601
      %v10603 = vrot.slane %v10595, %v10602
      %v10605 = vunpack.c.l.s4 1934713408
      %v10606 = vunpack.c.0.s8 %v10605
      %v10607 = vlaneseq
      %v10608 = vshrl.u32 %v10607, 7
      %v10609 = vsub.s32 %v10606, %v10608
      %v10610 = vrot.slane %v10596, %v10609
      %v10611 = vcombine.high %v10603, 0.0
      %v10612 = vcombine.high %v10610, 0.0
      %v10614 = vunpack.c.l.s4 1983009808
      %v10615 = vunpack.c.0.s8 %v10614
      %v10616 = vlaneseq
      %v10617 = vshrl.u32 %v10616, 7
      %v10618 = vsub.s32 %v10615, %v10617
      %v10619 = vrot.slane %v8670, %v10618
      %v10620 = vcombine.high %v10619, 0.0
      %v10622 = vunpack.c.l.s4 1934713408
      %v10623 = vunpack.c.0.s8 %v10622
      %v10624 = vlaneseq
      %v10625 = vshrl.u32 %v10624, 7
      %v10626 = vsub.s32 %v10623, %v10625
      %v10627 = vrot.slane %v10619, %v10626
      %v10629 = vunpack.c.l.s4 1934713408
      %v10630 = vunpack.c.0.s8 %v10629
      %v10631 = vlaneseq
      %v10632 = vshrl.u32 %v10631, 7
      %v10633 = vsub.s32 %v10630, %v10632
      %v10634 = vrot.slane %v10620, %v10633
      %v10635 = vcombine.high %v10627, 0.0
      %v10636 = vcombine.high %v10634, 0.0
      %v10638 = vunpack.c.l.s4 1983009808
      %v10639 = vunpack.c.0.s8 %v10638
      %v10640 = vlaneseq
      %v10641 = vshrl.u32 %v10640, 7
      %v10642 = vsub.s32 %v10639, %v10641
      %v10643 = vrot.slane %v8746, %v10642
      %v10644 = vcombine.high %v10643, 0.0
      %v10646 = vunpack.c.l.s4 1934713408
      %v10647 = vunpack.c.0.s8 %v10646
      %v10648 = vlaneseq
      %v10649 = vshrl.u32 %v10648, 7
      %v10650 = vsub.s32 %v10647, %v10649
      %v10651 = vrot.slane %v10643, %v10650
      %v10653 = vunpack.c.l.s4 1934713408
      %v10654 = vunpack.c.0.s8 %v10653
      %v10655 = vlaneseq
      %v10656 = vshrl.u32 %v10655, 7
      %v10657 = vsub.s32 %v10654, %v10656
      %v10658 = vrot.slane %v10644, %v10657
      %v10659 = vcombine.high %v10651, 0.0
      %v10660 = vcombine.high %v10658, 0.0
      %v10662 = vunpack.c.l.s4 1983009808
      %v10663 = vunpack.c.0.s8 %v10662
      %v10664 = vlaneseq
      %v10665 = vshrl.u32 %v10664, 7
      %v10666 = vsub.s32 %v10663, %v10665
      %v10667 = vrot.slane %v8822, %v10666
      %v10668 = vcombine.high %v10667, 0.0
      %v10670 = vunpack.c.l.s4 1934713408
      %v10671 = vunpack.c.0.s8 %v10670
      %v10672 = vlaneseq
      %v10673 = vshrl.u32 %v10672, 7
      %v10674 = vsub.s32 %v10671, %v10673
      %v10675 = vrot.slane %v10667, %v10674
      %v10677 = vunpack.c.l.s4 1934713408
      %v10678 = vunpack.c.0.s8 %v10677
      %v10679 = vlaneseq
      %v10680 = vshrl.u32 %v10679, 7
      %v10681 = vsub.s32 %v10678, %v10680
      %v10682 = vrot.slane %v10668, %v10681
      %v10683 = vcombine.high %v10675, 0.0
      %v10684 = vcombine.high %v10682, 0.0
      %v10686 = vunpack.c.l.s4 1983009808
      %v10687 = vunpack.c.0.s8 %v10686
      %v10688 = vlaneseq
      %v10689 = vshrl.u32 %v10688, 7
      %v10690 = vsub.s32 %v10687, %v10689
      %v10691 = vrot.slane %v8898, %v10690
      %v10692 = vcombine.high %v10691, 0.0
      %v10694 = vunpack.c.l.s4 1934713408
      %v10695 = vunpack.c.0.s8 %v10694
      %v10696 = vlaneseq
      %v10697 = vshrl.u32 %v10696, 7
      %v10698 = vsub.s32 %v10695, %v10697
      %v10699 = vrot.slane %v10691, %v10698
      %v10701 = vunpack.c.l.s4 1934713408
      %v10702 = vunpack.c.0.s8 %v10701
      %v10703 = vlaneseq
      %v10704 = vshrl.u32 %v10703, 7
      %v10705 = vsub.s32 %v10702, %v10704
      %v10706 = vrot.slane %v10692, %v10705
      %v10707 = vcombine.high %v10699, 0.0
      %v10708 = vcombine.high %v10706, 0.0
      %v10710 = vunpack.c.l.s4 1983009808
      %v10711 = vunpack.c.0.s8 %v10710
      %v10712 = vlaneseq
      %v10713 = vshrl.u32 %v10712, 7
      %v10714 = vsub.s32 %v10711, %v10713
      %v10715 = vrot.slane %v8974, %v10714
      %v10716 = vcombine.high %v10715, 0.0
      %v10718 = vunpack.c.l.s4 1934713408
      %v10719 = vunpack.c.0.s8 %v10718
      %v10720 = vlaneseq
      %v10721 = vshrl.u32 %v10720, 7
      %v10722 = vsub.s32 %v10719, %v10721
      %v10723 = vrot.slane %v10715, %v10722
      %v10725 = vunpack.c.l.s4 1934713408
      %v10726 = vunpack.c.0.s8 %v10725
      %v10727 = vlaneseq
      %v10728 = vshrl.u32 %v10727, 7
      %v10729 = vsub.s32 %v10726, %v10728
      %v10730 = vrot.slane %v10716, %v10729
      %v10731 = vcombine.high %v10723, 0.0
      %v10732 = vcombine.high %v10730, 0.0
      %v10734 = vunpack.c.l.s4 1983009808
      %v10735 = vunpack.c.0.s8 %v10734
      %v10736 = vlaneseq
      %v10737 = vshrl.u32 %v10736, 7
      %v10738 = vsub.s32 %v10735, %v10737
      %v10739 = vrot.slane %v9050, %v10738
      %v10740 = vcombine.high %v10739, 0.0
      %v10742 = vunpack.c.l.s4 1934713408
      %v10743 = vunpack.c.0.s8 %v10742
      %v10744 = vlaneseq
      %v10745 = vshrl.u32 %v10744, 7
      %v10746 = vsub.s32 %v10743, %v10745
      %v10747 = vrot.slane %v10739, %v10746
      %v10749 = vunpack.c.l.s4 1934713408
      %v10750 = vunpack.c.0.s8 %v10749
      %v10751 = vlaneseq
      %v10752 = vshrl.u32 %v10751, 7
      %v10753 = vsub.s32 %v10750, %v10752
      %v10754 = vrot.slane %v10740, %v10753
      %v10755 = vcombine.high %v10747, 0.0
      %v10756 = vcombine.high %v10754, 0.0
      %v10758 = vunpack.c.l.s4 1983009808
      %v10759 = vunpack.c.0.s8 %v10758
      %v10760 = vlaneseq
      %v10761 = vshrl.u32 %v10760, 7
      %v10762 = vsub.s32 %v10759, %v10761
      %v10763 = vrot.slane %v9126, %v10762
      %v10764 = vcombine.high %v10763, 0.0
      %v10766 = vunpack.c.l.s4 1934713408
      %v10767 = vunpack.c.0.s8 %v10766
      %v10768 = vlaneseq
      %v10769 = vshrl.u32 %v10768, 7
      %v10770 = vsub.s32 %v10767, %v10769
      %v10771 = vrot.slane %v10763, %v10770
      %v10773 = vunpack.c.l.s4 1934713408
      %v10774 = vunpack.c.0.s8 %v10773
      %v10775 = vlaneseq
      %v10776 = vshrl.u32 %v10775, 7
      %v10777 = vsub.s32 %v10774, %v10776
      %v10778 = vrot.slane %v10764, %v10777
      %v10779 = vcombine.high %v10771, 0.0
      %v10780 = vcombine.high %v10778, 0.0
      %v10782 = vunpack.c.l.s4 1983009808
      %v10783 = vunpack.c.0.s8 %v10782
      %v10784 = vlaneseq
      %v10785 = vshrl.u32 %v10784, 7
      %v10786 = vsub.s32 %v10783, %v10785
      %v10787 = vrot.slane %v9202, %v10786
      %v10788 = vcombine.high %v10787, 0.0
      %v10790 = vunpack.c.l.s4 1934713408
      %v10791 = vunpack.c.0.s8 %v10790
      %v10792 = vlaneseq
      %v10793 = vshrl.u32 %v10792, 7
      %v10794 = vsub.s32 %v10791, %v10793
      %v10795 = vrot.slane %v10787, %v10794
      %v10797 = vunpack.c.l.s4 1934713408
      %v10798 = vunpack.c.0.s8 %v10797
      %v10799 = vlaneseq
      %v10800 = vshrl.u32 %v10799, 7
      %v10801 = vsub.s32 %v10798, %v10800
      %v10802 = vrot.slane %v10788, %v10801
      %v10803 = vcombine.high %v10795, 0.0
      %v10804 = vcombine.high %v10802, 0.0
      %v10806 = vunpack.c.l.s4 1983009808
      %v10807 = vunpack.c.0.s8 %v10806
      %v10808 = vlaneseq
      %v10809 = vshrl.u32 %v10808, 7
      %v10810 = vsub.s32 %v10807, %v10809
      %v10811 = vrot.slane %v9278, %v10810
      %v10812 = vcombine.high %v10811, 0.0
      %v10814 = vunpack.c.l.s4 1934713408
      %v10815 = vunpack.c.0.s8 %v10814
      %v10816 = vlaneseq
      %v10817 = vshrl.u32 %v10816, 7
      %v10818 = vsub.s32 %v10815, %v10817
      %v10819 = vrot.slane %v10811, %v10818
      %v10821 = vunpack.c.l.s4 1934713408
      %v10822 = vunpack.c.0.s8 %v10821
      %v10823 = vlaneseq
      %v10824 = vshrl.u32 %v10823, 7
      %v10825 = vsub.s32 %v10822, %v10824
      %v10826 = vrot.slane %v10812, %v10825
      %v10827 = vcombine.high %v10819, 0.0
      %v10828 = vcombine.high %v10826, 0.0
      %v10830 = vunpack.c.l.s4 1983009808
      %v10831 = vunpack.c.0.s8 %v10830
      %v10832 = vlaneseq
      %v10833 = vshrl.u32 %v10832, 7
      %v10834 = vsub.s32 %v10831, %v10833
      %v10835 = vrot.slane %v9354, %v10834
      %v10836 = vcombine.high %v10835, 0.0
      %v10838 = vunpack.c.l.s4 1934713408
      %v10839 = vunpack.c.0.s8 %v10838
      %v10840 = vlaneseq
      %v10841 = vshrl.u32 %v10840, 7
      %v10842 = vsub.s32 %v10839, %v10841
      %v10843 = vrot.slane %v10835, %v10842
      %v10845 = vunpack.c.l.s4 1934713408
      %v10846 = vunpack.c.0.s8 %v10845
      %v10847 = vlaneseq
      %v10848 = vshrl.u32 %v10847, 7
      %v10849 = vsub.s32 %v10846, %v10848
      %v10850 = vrot.slane %v10836, %v10849
      %v10851 = vcombine.high %v10843, 0.0
      %v10852 = vcombine.high %v10850, 0.0
      %v10854 = vunpack.c.l.s4 1983009808
      %v10855 = vunpack.c.0.s8 %v10854
      %v10856 = vlaneseq
      %v10857 = vshrl.u32 %v10856, 7
      %v10858 = vsub.s32 %v10855, %v10857
      %v10859 = vrot.slane %v9430, %v10858
      %v10860 = vcombine.high %v10859, 0.0
      %v10862 = vunpack.c.l.s4 1934713408
      %v10863 = vunpack.c.0.s8 %v10862
      %v10864 = vlaneseq
      %v10865 = vshrl.u32 %v10864, 7
      %v10866 = vsub.s32 %v10863, %v10865
      %v10867 = vrot.slane %v10859, %v10866
      %v10869 = vunpack.c.l.s4 1934713408
      %v10870 = vunpack.c.0.s8 %v10869
      %v10871 = vlaneseq
      %v10872 = vshrl.u32 %v10871, 7
      %v10873 = vsub.s32 %v10870, %v10872
      %v10874 = vrot.slane %v10860, %v10873
      %v10875 = vcombine.high %v10867, 0.0
      %v10876 = vcombine.high %v10874, 0.0
      %v10878 = vunpack.c.l.s4 1983009808
      %v10879 = vunpack.c.0.s8 %v10878
      %v10880 = vlaneseq
      %v10881 = vshrl.u32 %v10880, 7
      %v10882 = vsub.s32 %v10879, %v10881
      %v10883 = vrot.slane %v9506, %v10882
      %v10884 = vcombine.high %v10883, 0.0
      %v10886 = vunpack.c.l.s4 1934713408
      %v10887 = vunpack.c.0.s8 %v10886
      %v10888 = vlaneseq
      %v10889 = vshrl.u32 %v10888, 7
      %v10890 = vsub.s32 %v10887, %v10889
      %v10891 = vrot.slane %v10883, %v10890
      %v10893 = vunpack.c.l.s4 1934713408
      %v10894 = vunpack.c.0.s8 %v10893
      %v10895 = vlaneseq
      %v10896 = vshrl.u32 %v10895, 7
      %v10897 = vsub.s32 %v10894, %v10896
      %v10898 = vrot.slane %v10884, %v10897
      %v10899 = vcombine.high %v10891, 0.0
      %v10900 = vcombine.high %v10898, 0.0
      %v10902 = vunpack.c.l.s4 1983009808
      %v10903 = vunpack.c.0.s8 %v10902
      %v10904 = vlaneseq
      %v10905 = vshrl.u32 %v10904, 7
      %v10906 = vsub.s32 %v10903, %v10905
      %v10907 = vrot.slane %v9582, %v10906
      %v10908 = vcombine.high %v10907, 0.0
      %v10910 = vunpack.c.l.s4 1934713408
      %v10911 = vunpack.c.0.s8 %v10910
      %v10912 = vlaneseq
      %v10913 = vshrl.u32 %v10912, 7
      %v10914 = vsub.s32 %v10911, %v10913
      %v10915 = vrot.slane %v10907, %v10914
      %v10917 = vunpack.c.l.s4 1934713408
      %v10918 = vunpack.c.0.s8 %v10917
      %v10919 = vlaneseq
      %v10920 = vshrl.u32 %v10919, 7
      %v10921 = vsub.s32 %v10918, %v10920
      %v10922 = vrot.slane %v10908, %v10921
      %v10923 = vcombine.high %v10915, 0.0
      %v10924 = vcombine.high %v10922, 0.0
      %v10926 = vunpack.c.l.s4 1983009808
      %v10927 = vunpack.c.0.s8 %v10926
      %v10928 = vlaneseq
      %v10929 = vshrl.u32 %v10928, 7
      %v10930 = vsub.s32 %v10927, %v10929
      %v10931 = vrot.slane %v9658, %v10930
      %v10932 = vcombine.high %v10931, 0.0
      %v10934 = vunpack.c.l.s4 1934713408
      %v10935 = vunpack.c.0.s8 %v10934
      %v10936 = vlaneseq
      %v10937 = vshrl.u32 %v10936, 7
      %v10938 = vsub.s32 %v10935, %v10937
      %v10939 = vrot.slane %v10931, %v10938
      %v10941 = vunpack.c.l.s4 1934713408
      %v10942 = vunpack.c.0.s8 %v10941
      %v10943 = vlaneseq
      %v10944 = vshrl.u32 %v10943, 7
      %v10945 = vsub.s32 %v10942, %v10944
      %v10946 = vrot.slane %v10932, %v10945
      %v10947 = vcombine.high %v10939, 0.0
      %v10948 = vcombine.high %v10946, 0.0
      %v10950 = vunpack.c.l.s4 1983009808
      %v10951 = vunpack.c.0.s8 %v10950
      %v10952 = vlaneseq
      %v10953 = vshrl.u32 %v10952, 7
      %v10954 = vsub.s32 %v10951, %v10953
      %v10955 = vrot.slane %v9734, %v10954
      %v10956 = vcombine.high %v10955, 0.0
      %v10958 = vunpack.c.l.s4 1934713408
      %v10959 = vunpack.c.0.s8 %v10958
      %v10960 = vlaneseq
      %v10961 = vshrl.u32 %v10960, 7
      %v10962 = vsub.s32 %v10959, %v10961
      %v10963 = vrot.slane %v10955, %v10962
      %v10965 = vunpack.c.l.s4 1934713408
      %v10966 = vunpack.c.0.s8 %v10965
      %v10967 = vlaneseq
      %v10968 = vshrl.u32 %v10967, 7
      %v10969 = vsub.s32 %v10966, %v10968
      %v10970 = vrot.slane %v10956, %v10969
      %v10971 = vcombine.high %v10963, 0.0
      %v10972 = vcombine.high %v10970, 0.0
      %v10974 = vunpack.c.l.s4 1983009808
      %v10975 = vunpack.c.0.s8 %v10974
      %v10976 = vlaneseq
      %v10977 = vshrl.u32 %v10976, 7
      %v10978 = vsub.s32 %v10975, %v10977
      %v10979 = vrot.slane %v9810, %v10978
      %v10980 = vcombine.high %v10979, 0.0
      %v10982 = vunpack.c.l.s4 1934713408
      %v10983 = vunpack.c.0.s8 %v10982
      %v10984 = vlaneseq
      %v10985 = vshrl.u32 %v10984, 7
      %v10986 = vsub.s32 %v10983, %v10985
      %v10987 = vrot.slane %v10979, %v10986
      %v10989 = vunpack.c.l.s4 1934713408
      %v10990 = vunpack.c.0.s8 %v10989
      %v10991 = vlaneseq
      %v10992 = vshrl.u32 %v10991, 7
      %v10993 = vsub.s32 %v10990, %v10992
      %v10994 = vrot.slane %v10980, %v10993
      %v10995 = vcombine.high %v10987, 0.0
      %v10996 = vcombine.high %v10994, 0.0
      %v10998 = vunpack.c.l.s4 1983009808
      %v10999 = vunpack.c.0.s8 %v10998
      %v11000 = vlaneseq
      %v11001 = vshrl.u32 %v11000, 7
      %v11002 = vsub.s32 %v10999, %v11001
      %v11003 = vrot.slane %v9886, %v11002
      %v11004 = vcombine.high %v11003, 0.0
      %v11006 = vunpack.c.l.s4 1934713408
      %v11007 = vunpack.c.0.s8 %v11006
      %v11008 = vlaneseq
      %v11009 = vshrl.u32 %v11008, 7
      %v11010 = vsub.s32 %v11007, %v11009
      %v11011 = vrot.slane %v11003, %v11010
      %v11013 = vunpack.c.l.s4 1934713408
      %v11014 = vunpack.c.0.s8 %v11013
      %v11015 = vlaneseq
      %v11016 = vshrl.u32 %v11015, 7
      %v11017 = vsub.s32 %v11014, %v11016
      %v11018 = vrot.slane %v11004, %v11017
      %v11019 = vcombine.high %v11011, 0.0
      %v11020 = vcombine.high %v11018, 0.0
      %v11022 = vunpack.c.l.s4 1983009808
      %v11023 = vunpack.c.0.s8 %v11022
      %v11024 = vlaneseq
      %v11025 = vshrl.u32 %v11024, 7
      %v11026 = vsub.s32 %v11023, %v11025
      %v11027 = vrot.slane %v9962, %v11026
      %v11028 = vcombine.high %v11027, 0.0
      %v11030 = vunpack.c.l.s4 1934713408
      %v11031 = vunpack.c.0.s8 %v11030
      %v11032 = vlaneseq
      %v11033 = vshrl.u32 %v11032, 7
      %v11034 = vsub.s32 %v11031, %v11033
      %v11035 = vrot.slane %v11027, %v11034
      %v11037 = vunpack.c.l.s4 1934713408
      %v11038 = vunpack.c.0.s8 %v11037
      %v11039 = vlaneseq
      %v11040 = vshrl.u32 %v11039, 7
      %v11041 = vsub.s32 %v11038, %v11040
      %v11042 = vrot.slane %v11028, %v11041
      %v11043 = vcombine.high %v11035, 0.0
      %v11044 = vcombine.high %v11042, 0.0
      %v11046 = vunpack.c.l.s4 1983009808
      %v11047 = vunpack.c.0.s8 %v11046
      %v11048 = vlaneseq
      %v11049 = vshrl.u32 %v11048, 7
      %v11050 = vsub.s32 %v11047, %v11049
      %v11051 = vrot.slane %v10038, %v11050
      %v11052 = vcombine.high %v11051, 0.0
      %v11054 = vunpack.c.l.s4 1934713408
      %v11055 = vunpack.c.0.s8 %v11054
      %v11056 = vlaneseq
      %v11057 = vshrl.u32 %v11056, 7
      %v11058 = vsub.s32 %v11055, %v11057
      %v11059 = vrot.slane %v11051, %v11058
      %v11061 = vunpack.c.l.s4 1934713408
      %v11062 = vunpack.c.0.s8 %v11061
      %v11063 = vlaneseq
      %v11064 = vshrl.u32 %v11063, 7
      %v11065 = vsub.s32 %v11062, %v11064
      %v11066 = vrot.slane %v11052, %v11065
      %v11067 = vcombine.high %v11059, 0.0
      %v11068 = vcombine.high %v11066, 0.0
      %v11070 = vunpack.c.l.s4 1983009808
      %v11071 = vunpack.c.0.s8 %v11070
      %v11072 = vlaneseq
      %v11073 = vshrl.u32 %v11072, 7
      %v11074 = vsub.s32 %v11071, %v11073
      %v11075 = vrot.slane %v10114, %v11074
      %v11076 = vcombine.high %v11075, 0.0
      %v11078 = vunpack.c.l.s4 1934713408
      %v11079 = vunpack.c.0.s8 %v11078
      %v11080 = vlaneseq
      %v11081 = vshrl.u32 %v11080, 7
      %v11082 = vsub.s32 %v11079, %v11081
      %v11083 = vrot.slane %v11075, %v11082
      %v11085 = vunpack.c.l.s4 1934713408
      %v11086 = vunpack.c.0.s8 %v11085
      %v11087 = vlaneseq
      %v11088 = vshrl.u32 %v11087, 7
      %v11089 = vsub.s32 %v11086, %v11088
      %v11090 = vrot.slane %v11076, %v11089
      %v11091 = vcombine.high %v11083, 0.0
      %v11092 = vcombine.high %v11090, 0.0
      %v11094 = vunpack.c.l.s4 1983009808
      %v11095 = vunpack.c.0.s8 %v11094
      %v11096 = vlaneseq
      %v11097 = vshrl.u32 %v11096, 7
      %v11098 = vsub.s32 %v11095, %v11097
      %v11099 = vrot.slane %v10190, %v11098
      %v11100 = vcombine.high %v11099, 0.0
      %v11102 = vunpack.c.l.s4 1934713408
      %v11103 = vunpack.c.0.s8 %v11102
      %v11104 = vlaneseq
      %v11105 = vshrl.u32 %v11104, 7
      %v11106 = vsub.s32 %v11103, %v11105
      %v11107 = vrot.slane %v11099, %v11106
      %v11109 = vunpack.c.l.s4 1934713408
      %v11110 = vunpack.c.0.s8 %v11109
      %v11111 = vlaneseq
      %v11112 = vshrl.u32 %v11111, 7
      %v11113 = vsub.s32 %v11110, %v11112
      %v11114 = vrot.slane %v11100, %v11113
      %v11115 = vcombine.high %v11107, 0.0
      %v11116 = vcombine.high %v11114, 0.0
      %v11118 = vunpack.c.l.s4 1983009808
      %v11119 = vunpack.c.0.s8 %v11118
      %v11120 = vlaneseq
      %v11121 = vshrl.u32 %v11120, 7
      %v11122 = vsub.s32 %v11119, %v11121
      %v11123 = vrot.slane %v10266, %v11122
      %v11124 = vcombine.high %v11123, 0.0
      %v11126 = vunpack.c.l.s4 1934713408
      %v11127 = vunpack.c.0.s8 %v11126
      %v11128 = vlaneseq
      %v11129 = vshrl.u32 %v11128, 7
      %v11130 = vsub.s32 %v11127, %v11129
      %v11131 = vrot.slane %v11123, %v11130
      %v11133 = vunpack.c.l.s4 1934713408
      %v11134 = vunpack.c.0.s8 %v11133
      %v11135 = vlaneseq
      %v11136 = vshrl.u32 %v11135, 7
      %v11137 = vsub.s32 %v11134, %v11136
      %v11138 = vrot.slane %v11124, %v11137
      %v11139 = vcombine.high %v11131, 0.0
      %v11140 = vcombine.high %v11138, 0.0
      %v11142 = vunpack.c.l.s4 1983009808
      %v11143 = vunpack.c.0.s8 %v11142
      %v11144 = vlaneseq
      %v11145 = vshrl.u32 %v11144, 7
      %v11146 = vsub.s32 %v11143, %v11145
      %v11147 = vrot.slane %v10342, %v11146
      %v11148 = vcombine.high %v11147, 0.0
      %v11150 = vunpack.c.l.s4 1934713408
      %v11151 = vunpack.c.0.s8 %v11150
      %v11152 = vlaneseq
      %v11153 = vshrl.u32 %v11152, 7
      %v11154 = vsub.s32 %v11151, %v11153
      %v11155 = vrot.slane %v11147, %v11154
      %v11157 = vunpack.c.l.s4 1934713408
      %v11158 = vunpack.c.0.s8 %v11157
      %v11159 = vlaneseq
      %v11160 = vshrl.u32 %v11159, 7
      %v11161 = vsub.s32 %v11158, %v11160
      %v11162 = vrot.slane %v11148, %v11161
      %v11163 = vcombine.high %v11155, 0.0
      %v11164 = vcombine.high %v11162, 0.0
      %v11166 = vunpack.c.l.s4 1983009808
      %v11167 = vunpack.c.0.s8 %v11166
      %v11168 = vlaneseq
      %v11169 = vshrl.u32 %v11168, 7
      %v11170 = vsub.s32 %v11167, %v11169
      %v11171 = vrot.slane %v10418, %v11170
      %v11172 = vcombine.high %v11171, 0.0
      %v11174 = vunpack.c.l.s4 1934713408
      %v11175 = vunpack.c.0.s8 %v11174
      %v11176 = vlaneseq
      %v11177 = vshrl.u32 %v11176, 7
      %v11178 = vsub.s32 %v11175, %v11177
      %v11179 = vrot.slane %v11171, %v11178
      %v11181 = vunpack.c.l.s4 1934713408
      %v11182 = vunpack.c.0.s8 %v11181
      %v11183 = vlaneseq
      %v11184 = vshrl.u32 %v11183, 7
      %v11185 = vsub.s32 %v11182, %v11184
      %v11186 = vrot.slane %v11172, %v11185
      %v11187 = vcombine.high %v11179, 0.0
      %v11188 = vcombine.high %v11186, 0.0
      %11221 = vrot.lane.b32.xlu0 %v10443, 8
      %v11222 = vpop.permute.xlu0 %11221
      %11223 = vrot.lane.b32.xlu0 %v10467, 8
      %v11224 = vpop.permute.xlu0 %11223
      %11225 = vrot.lane.b32.xlu0 %v10491, 8
      %v11226 = vpop.permute.xlu0 %11225
      %11227 = vrot.lane.b32.xlu0 %v10515, 8
      %v11228 = vpop.permute.xlu0 %11227
      %11229 = vrot.lane.b32.xlu0 %v10539, 8
      %v11230 = vpop.permute.xlu0 %11229
      %11231 = vrot.lane.b32.xlu0 %v10563, 8
      %v11232 = vpop.permute.xlu0 %11231
      %11233 = vrot.lane.b32.xlu0 %v10587, 8
      %v11234 = vpop.permute.xlu0 %11233
      %11235 = vrot.lane.b32.xlu0 %v10611, 8
      %v11236 = vpop.permute.xlu0 %11235
      %11237 = vrot.lane.b32.xlu0 %v10635, 8
      %v11238 = vpop.permute.xlu0 %11237
      %11239 = vrot.lane.b32.xlu0 %v10659, 8
      %v11240 = vpop.permute.xlu0 %11239
      %11241 = vrot.lane.b32.xlu0 %v10683, 8
      %v11242 = vpop.permute.xlu0 %11241
      %11243 = vrot.lane.b32.xlu0 %v10707, 8
      %v11244 = vpop.permute.xlu0 %11243
      %11245 = vrot.lane.b32.xlu0 %v10731, 8
      %v11246 = vpop.permute.xlu0 %11245
      %11247 = vrot.lane.b32.xlu0 %v10755, 8
      %v11248 = vpop.permute.xlu0 %11247
      %11249 = vrot.lane.b32.xlu0 %v10779, 8
      %v11250 = vpop.permute.xlu0 %11249
      %11251 = vrot.lane.b32.xlu0 %v10803, 8
      %v11252 = vpop.permute.xlu0 %11251
      %11253 = vrot.lane.b32.xlu0 %v10827, 8
      %v11254 = vpop.permute.xlu0 %11253
      %11255 = vrot.lane.b32.xlu0 %v10851, 8
      %v11256 = vpop.permute.xlu0 %11255
      %11257 = vrot.lane.b32.xlu0 %v10875, 8
      %v11258 = vpop.permute.xlu0 %11257
      %11259 = vrot.lane.b32.xlu0 %v10899, 8
      %v11260 = vpop.permute.xlu0 %11259
      %11261 = vrot.lane.b32.xlu0 %v10923, 8
      %v11262 = vpop.permute.xlu0 %11261
      %11263 = vrot.lane.b32.xlu0 %v10947, 8
      %v11264 = vpop.permute.xlu0 %11263
      %11265 = vrot.lane.b32.xlu0 %v10971, 8
      %v11266 = vpop.permute.xlu0 %11265
      %11267 = vrot.lane.b32.xlu0 %v10995, 8
      %v11268 = vpop.permute.xlu0 %11267
      %11269 = vrot.lane.b32.xlu0 %v11019, 8
      %v11270 = vpop.permute.xlu0 %11269
      %11271 = vrot.lane.b32.xlu0 %v11043, 8
      %v11272 = vpop.permute.xlu0 %11271
      %11273 = vrot.lane.b32.xlu0 %v11067, 8
      %v11274 = vpop.permute.xlu0 %11273
      %11275 = vrot.lane.b32.xlu0 %v11091, 8
      %v11276 = vpop.permute.xlu0 %11275
      %11277 = vrot.lane.b32.xlu0 %v11115, 8
      %v11278 = vpop.permute.xlu0 %11277
      %11279 = vrot.lane.b32.xlu0 %v11139, 8
      %v11280 = vpop.permute.xlu0 %11279
      %11281 = vrot.lane.b32.xlu0 %v11163, 8
      %v11282 = vpop.permute.xlu0 %11281
      %11283 = vrot.lane.b32.xlu0 %v11187, 8
      %v11284 = vpop.permute.xlu0 %11283
      %11349 = vrot.lane.b32.xlu0 %v10442, 16
      %v11350 = vpop.permute.xlu0 %11349
      %11351 = vrot.lane.b32.xlu0 %v10466, 16
      %v11352 = vpop.permute.xlu0 %11351
      %11353 = vrot.lane.b32.xlu0 %v10490, 16
      %v11354 = vpop.permute.xlu0 %11353
      %11355 = vrot.lane.b32.xlu0 %v10514, 16
      %v11356 = vpop.permute.xlu0 %11355
      %11357 = vrot.lane.b32.xlu0 %v10538, 16
      %v11358 = vpop.permute.xlu0 %11357
      %11359 = vrot.lane.b32.xlu0 %v10562, 16
      %v11360 = vpop.permute.xlu0 %11359
      %11361 = vrot.lane.b32.xlu0 %v10586, 16
      %v11362 = vpop.permute.xlu0 %11361
      %11363 = vrot.lane.b32.xlu0 %v10610, 16
      %v11364 = vpop.permute.xlu0 %11363
      %11365 = vrot.lane.b32.xlu0 %v10634, 16
      %v11366 = vpop.permute.xlu0 %11365
      %11367 = vrot.lane.b32.xlu0 %v10658, 16
      %v11368 = vpop.permute.xlu0 %11367
      %11369 = vrot.lane.b32.xlu0 %v10682, 16
      %v11370 = vpop.permute.xlu0 %11369
      %11371 = vrot.lane.b32.xlu0 %v10706, 16
      %v11372 = vpop.permute.xlu0 %11371
      %11373 = vrot.lane.b32.xlu0 %v10730, 16
      %v11374 = vpop.permute.xlu0 %11373
      %11375 = vrot.lane.b32.xlu0 %v10754, 16
      %v11376 = vpop.permute.xlu0 %11375
      %11377 = vrot.lane.b32.xlu0 %v10778, 16
      %v11378 = vpop.permute.xlu0 %11377
      %11379 = vrot.lane.b32.xlu0 %v10802, 16
      %v11380 = vpop.permute.xlu0 %11379
      %11381 = vrot.lane.b32.xlu0 %v10826, 16
      %v11382 = vpop.permute.xlu0 %11381
      %11383 = vrot.lane.b32.xlu0 %v10850, 16
      %v11384 = vpop.permute.xlu0 %11383
      %11385 = vrot.lane.b32.xlu0 %v10874, 16
      %v11386 = vpop.permute.xlu0 %11385
      %11387 = vrot.lane.b32.xlu0 %v10898, 16
      %v11388 = vpop.permute.xlu0 %11387
      %11389 = vrot.lane.b32.xlu0 %v10922, 16
      %v11390 = vpop.permute.xlu0 %11389
      %11391 = vrot.lane.b32.xlu0 %v10946, 16
      %v11392 = vpop.permute.xlu0 %11391
      %11393 = vrot.lane.b32.xlu0 %v10970, 16
      %v11394 = vpop.permute.xlu0 %11393
      %11395 = vrot.lane.b32.xlu0 %v10994, 16
      %v11396 = vpop.permute.xlu0 %11395
      %11397 = vrot.lane.b32.xlu0 %v11018, 16
      %v11398 = vpop.permute.xlu0 %11397
      %11399 = vrot.lane.b32.xlu0 %v11042, 16
      %v11400 = vpop.permute.xlu0 %11399
      %11401 = vrot.lane.b32.xlu0 %v11066, 16
      %v11402 = vpop.permute.xlu0 %11401
      %11403 = vrot.lane.b32.xlu0 %v11090, 16
      %v11404 = vpop.permute.xlu0 %11403
      %11405 = vrot.lane.b32.xlu0 %v11114, 16
      %v11406 = vpop.permute.xlu0 %11405
      %11407 = vrot.lane.b32.xlu0 %v11138, 16
      %v11408 = vpop.permute.xlu0 %11407
      %11409 = vrot.lane.b32.xlu0 %v11162, 16
      %v11410 = vpop.permute.xlu0 %11409
      %11411 = vrot.lane.b32.xlu0 %v11186, 16
      %v11412 = vpop.permute.xlu0 %11411
      %11477 = vrot.lane.b32.xlu0 %v10444, 24
      %v11478 = vpop.permute.xlu0 %11477
      %11479 = vrot.lane.b32.xlu0 %v10468, 24
      %v11480 = vpop.permute.xlu0 %11479
      %11481 = vrot.lane.b32.xlu0 %v10492, 24
      %v11482 = vpop.permute.xlu0 %11481
      %11483 = vrot.lane.b32.xlu0 %v10516, 24
      %v11484 = vpop.permute.xlu0 %11483
      %11485 = vrot.lane.b32.xlu0 %v10540, 24
      %v11486 = vpop.permute.xlu0 %11485
      %11487 = vrot.lane.b32.xlu0 %v10564, 24
      %v11488 = vpop.permute.xlu0 %11487
      %11489 = vrot.lane.b32.xlu0 %v10588, 24
      %v11490 = vpop.permute.xlu0 %11489
      %11491 = vrot.lane.b32.xlu0 %v10612, 24
      %v11492 = vpop.permute.xlu0 %11491
      %11493 = vrot.lane.b32.xlu0 %v10636, 24
      %v11494 = vpop.permute.xlu0 %11493
      %11495 = vrot.lane.b32.xlu0 %v10660, 24
      %v11496 = vpop.permute.xlu0 %11495
      %11497 = vrot.lane.b32.xlu0 %v10684, 24
      %v11498 = vpop.permute.xlu0 %11497
      %11499 = vrot.lane.b32.xlu0 %v10708, 24
      %v11500 = vpop.permute.xlu0 %11499
      %11501 = vrot.lane.b32.xlu0 %v10732, 24
      %v11502 = vpop.permute.xlu0 %11501
      %11503 = vrot.lane.b32.xlu0 %v10756, 24
      %v11504 = vpop.permute.xlu0 %11503
      %11505 = vrot.lane.b32.xlu0 %v10780, 24
      %v11506 = vpop.permute.xlu0 %11505
      %11507 = vrot.lane.b32.xlu0 %v10804, 24
      %v11508 = vpop.permute.xlu0 %11507
      %11509 = vrot.lane.b32.xlu0 %v10828, 24
      %v11510 = vpop.permute.xlu0 %11509
      %11511 = vrot.lane.b32.xlu0 %v10852, 24
      %v11512 = vpop.permute.xlu0 %11511
      %11513 = vrot.lane.b32.xlu0 %v10876, 24
      %v11514 = vpop.permute.xlu0 %11513
      %11515 = vrot.lane.b32.xlu0 %v10900, 24
      %v11516 = vpop.permute.xlu0 %11515
      %11517 = vrot.lane.b32.xlu0 %v10924, 24
      %v11518 = vpop.permute.xlu0 %11517
      %11519 = vrot.lane.b32.xlu0 %v10948, 24
      %v11520 = vpop.permute.xlu0 %11519
      %11521 = vrot.lane.b32.xlu0 %v10972, 24
      %v11522 = vpop.permute.xlu0 %11521
      %11523 = vrot.lane.b32.xlu0 %v10996, 24
      %v11524 = vpop.permute.xlu0 %11523
      %11525 = vrot.lane.b32.xlu0 %v11020, 24
      %v11526 = vpop.permute.xlu0 %11525
      %11527 = vrot.lane.b32.xlu0 %v11044, 24
      %v11528 = vpop.permute.xlu0 %11527
      %11529 = vrot.lane.b32.xlu0 %v11068, 24
      %v11530 = vpop.permute.xlu0 %11529
      %11531 = vrot.lane.b32.xlu0 %v11092, 24
      %v11532 = vpop.permute.xlu0 %11531
      %11533 = vrot.lane.b32.xlu0 %v11116, 24
      %v11534 = vpop.permute.xlu0 %11533
      %11535 = vrot.lane.b32.xlu0 %v11140, 24
      %v11536 = vpop.permute.xlu0 %11535
      %11537 = vrot.lane.b32.xlu0 %v11164, 24
      %v11538 = vpop.permute.xlu0 %11537
      %11539 = vrot.lane.b32.xlu0 %v11188, 24
      %v11540 = vpop.permute.xlu0 %11539
      %v11573 = vsel %vm1459, %v10435, %v11222
      %v11574 = vsel %vm1459, %v10459, %v11224
      %v11575 = vsel %vm1459, %v10483, %v11226
      %v11576 = vsel %vm1459, %v10507, %v11228
      %v11577 = vsel %vm1459, %v10531, %v11230
      %v11578 = vsel %vm1459, %v10555, %v11232
      %v11579 = vsel %vm1459, %v10579, %v11234
      %v11580 = vsel %vm1459, %v10603, %v11236
      %v11581 = vsel %vm1459, %v10627, %v11238
      %v11582 = vsel %vm1459, %v10651, %v11240
      %v11583 = vsel %vm1459, %v10675, %v11242
      %v11584 = vsel %vm1459, %v10699, %v11244
      %v11585 = vsel %vm1459, %v10723, %v11246
      %v11586 = vsel %vm1459, %v10747, %v11248
      %v11587 = vsel %vm1459, %v10771, %v11250
      %v11588 = vsel %vm1459, %v10795, %v11252
      %v11589 = vsel %vm1459, %v10819, %v11254
      %v11590 = vsel %vm1459, %v10843, %v11256
      %v11591 = vsel %vm1459, %v10867, %v11258
      %v11592 = vsel %vm1459, %v10891, %v11260
      %v11593 = vsel %vm1459, %v10915, %v11262
      %v11594 = vsel %vm1459, %v10939, %v11264
      %v11595 = vsel %vm1459, %v10963, %v11266
      %v11596 = vsel %vm1459, %v10987, %v11268
      %v11597 = vsel %vm1459, %v11011, %v11270
      %v11598 = vsel %vm1459, %v11035, %v11272
      %v11599 = vsel %vm1459, %v11059, %v11274
      %v11600 = vsel %vm1459, %v11083, %v11276
      %v11601 = vsel %vm1459, %v11107, %v11278
      %v11602 = vsel %vm1459, %v11131, %v11280
      %v11603 = vsel %vm1459, %v11155, %v11282
      %v11604 = vsel %vm1459, %v11179, %v11284
      %vm11605 = vcmask 130048
      %v11606 = vsel %vm11605, %v11573, %v11350
      %v11607 = vsel %vm11605, %v11574, %v11352
      %v11608 = vsel %vm11605, %v11575, %v11354
      %v11609 = vsel %vm11605, %v11576, %v11356
      %v11610 = vsel %vm11605, %v11577, %v11358
      %v11611 = vsel %vm11605, %v11578, %v11360
      %v11612 = vsel %vm11605, %v11579, %v11362
      %v11613 = vsel %vm11605, %v11580, %v11364
      %v11614 = vsel %vm11605, %v11581, %v11366
      %v11615 = vsel %vm11605, %v11582, %v11368
      %v11616 = vsel %vm11605, %v11583, %v11370
      %v11617 = vsel %vm11605, %v11584, %v11372
      %v11618 = vsel %vm11605, %v11585, %v11374
      %v11619 = vsel %vm11605, %v11586, %v11376
      %v11620 = vsel %vm11605, %v11587, %v11378
      %v11621 = vsel %vm11605, %v11588, %v11380
      %v11622 = vsel %vm11605, %v11589, %v11382
      %v11623 = vsel %vm11605, %v11590, %v11384
      %v11624 = vsel %vm11605, %v11591, %v11386
      %v11625 = vsel %vm11605, %v11592, %v11388
      %v11626 = vsel %vm11605, %v11593, %v11390
      %v11627 = vsel %vm11605, %v11594, %v11392
      %v11628 = vsel %vm11605, %v11595, %v11394
      %v11629 = vsel %vm11605, %v11596, %v11396
      %v11630 = vsel %vm11605, %v11597, %v11398
      %v11631 = vsel %vm11605, %v11598, %v11400
      %v11632 = vsel %vm11605, %v11599, %v11402
      %v11633 = vsel %vm11605, %v11600, %v11404
      %v11634 = vsel %vm11605, %v11601, %v11406
      %v11635 = vsel %vm11605, %v11602, %v11408
      %v11636 = vsel %vm11605, %v11603, %v11410
      %v11637 = vsel %vm11605, %v11604, %v11412
      %vm11638 = vcmask 195584
      %v11639 = vsel %vm11638, %v11606, %v11478
      %v11640 = vsel %vm11638, %v11607, %v11480
      %v11641 = vsel %vm11638, %v11608, %v11482
      %v11642 = vsel %vm11638, %v11609, %v11484
      %v11643 = vsel %vm11638, %v11610, %v11486
      %v11644 = vsel %vm11638, %v11611, %v11488
      %v11645 = vsel %vm11638, %v11612, %v11490
      %v11646 = vsel %vm11638, %v11613, %v11492
      %v11647 = vsel %vm11638, %v11614, %v11494
      %v11648 = vsel %vm11638, %v11615, %v11496
      %v11649 = vsel %vm11638, %v11616, %v11498
      %v11650 = vsel %vm11638, %v11617, %v11500
      %v11651 = vsel %vm11638, %v11618, %v11502
      %v11652 = vsel %vm11638, %v11619, %v11504
      %v11653 = vsel %vm11638, %v11620, %v11506
      %v11654 = vsel %vm11638, %v11621, %v11508
      %v11655 = vsel %vm11638, %v11622, %v11510
      %v11656 = vsel %vm11638, %v11623, %v11512
      %v11657 = vsel %vm11638, %v11624, %v11514
      %v11658 = vsel %vm11638, %v11625, %v11516
      %v11659 = vsel %vm11638, %v11626, %v11518
      %v11660 = vsel %vm11638, %v11627, %v11520
      %v11661 = vsel %vm11638, %v11628, %v11522
      %v11662 = vsel %vm11638, %v11629, %v11524
      %v11663 = vsel %vm11638, %v11630, %v11526
      %v11664 = vsel %vm11638, %v11631, %v11528
      %v11665 = vsel %vm11638, %v11632, %v11530
      %v11666 = vsel %vm11638, %v11633, %v11532
      %v11667 = vsel %vm11638, %v11634, %v11534
      %v11668 = vsel %vm11638, %v11635, %v11536
      %v11669 = vsel %vm11638, %v11636, %v11538
      %v11670 = vsel %vm11638, %v11637, %v11540
      %v11671 = vlaneseq
      %v11672 = vshrl.u32 %v11671, 7
      %v11673 = vsub.s32 0, %v11672
      %v11674 = vrot.slane %v11639, %v11673
      %v11675 = vlaneseq
      %v11676 = vshrl.u32 %v11675, 7
      %v11677 = vsub.s32 0, %v11676
      %v11678 = vrot.slane %v11640, %v11677
      %v11679 = vlaneseq
      %v11680 = vshrl.u32 %v11679, 7
      %v11681 = vsub.s32 0, %v11680
      %v11682 = vrot.slane %v11641, %v11681
      %v11683 = vlaneseq
      %v11684 = vshrl.u32 %v11683, 7
      %v11685 = vsub.s32 0, %v11684
      %v11686 = vrot.slane %v11642, %v11685
      %v11687 = vlaneseq
      %v11688 = vshrl.u32 %v11687, 7
      %v11689 = vsub.s32 0, %v11688
      %v11690 = vrot.slane %v11643, %v11689
      %v11691 = vlaneseq
      %v11692 = vshrl.u32 %v11691, 7
      %v11693 = vsub.s32 0, %v11692
      %v11694 = vrot.slane %v11644, %v11693
      %v11695 = vlaneseq
      %v11696 = vshrl.u32 %v11695, 7
      %v11697 = vsub.s32 0, %v11696
      %v11698 = vrot.slane %v11645, %v11697
      %v11699 = vlaneseq
      %v11700 = vshrl.u32 %v11699, 7
      %v11701 = vsub.s32 0, %v11700
      %v11702 = vrot.slane %v11646, %v11701
      %v11703 = vlaneseq
      %v11704 = vshrl.u32 %v11703, 7
      %v11705 = vsub.s32 0, %v11704
      %v11706 = vrot.slane %v11647, %v11705
      %v11707 = vlaneseq
      %v11708 = vshrl.u32 %v11707, 7
      %v11709 = vsub.s32 0, %v11708
      %v11710 = vrot.slane %v11648, %v11709
      %v11711 = vlaneseq
      %v11712 = vshrl.u32 %v11711, 7
      %v11713 = vsub.s32 0, %v11712
      %v11714 = vrot.slane %v11649, %v11713
      %v11715 = vlaneseq
      %v11716 = vshrl.u32 %v11715, 7
      %v11717 = vsub.s32 0, %v11716
      %v11718 = vrot.slane %v11650, %v11717
      %v11719 = vlaneseq
      %v11720 = vshrl.u32 %v11719, 7
      %v11721 = vsub.s32 0, %v11720
      %v11722 = vrot.slane %v11651, %v11721
      %v11723 = vlaneseq
      %v11724 = vshrl.u32 %v11723, 7
      %v11725 = vsub.s32 0, %v11724
      %v11726 = vrot.slane %v11652, %v11725
      %v11727 = vlaneseq
      %v11728 = vshrl.u32 %v11727, 7
      %v11729 = vsub.s32 0, %v11728
      %v11730 = vrot.slane %v11653, %v11729
      %v11731 = vlaneseq
      %v11732 = vshrl.u32 %v11731, 7
      %v11733 = vsub.s32 0, %v11732
      %v11734 = vrot.slane %v11654, %v11733
      %v11735 = vlaneseq
      %v11736 = vshrl.u32 %v11735, 7
      %v11737 = vsub.s32 0, %v11736
      %v11738 = vrot.slane %v11655, %v11737
      %v11739 = vlaneseq
      %v11740 = vshrl.u32 %v11739, 7
      %v11741 = vsub.s32 0, %v11740
      %v11742 = vrot.slane %v11656, %v11741
      %v11743 = vlaneseq
      %v11744 = vshrl.u32 %v11743, 7
      %v11745 = vsub.s32 0, %v11744
      %v11746 = vrot.slane %v11657, %v11745
      %v11747 = vlaneseq
      %v11748 = vshrl.u32 %v11747, 7
      %v11749 = vsub.s32 0, %v11748
      %v11750 = vrot.slane %v11658, %v11749
      %v11751 = vlaneseq
      %v11752 = vshrl.u32 %v11751, 7
      %v11753 = vsub.s32 0, %v11752
      %v11754 = vrot.slane %v11659, %v11753
      %v11755 = vlaneseq
      %v11756 = vshrl.u32 %v11755, 7
      %v11757 = vsub.s32 0, %v11756
      %v11758 = vrot.slane %v11660, %v11757
      %v11759 = vlaneseq
      %v11760 = vshrl.u32 %v11759, 7
      %v11761 = vsub.s32 0, %v11760
      %v11762 = vrot.slane %v11661, %v11761
      %v11763 = vlaneseq
      %v11764 = vshrl.u32 %v11763, 7
      %v11765 = vsub.s32 0, %v11764
      %v11766 = vrot.slane %v11662, %v11765
      %v11767 = vlaneseq
      %v11768 = vshrl.u32 %v11767, 7
      %v11769 = vsub.s32 0, %v11768
      %v11770 = vrot.slane %v11663, %v11769
      %v11771 = vlaneseq
      %v11772 = vshrl.u32 %v11771, 7
      %v11773 = vsub.s32 0, %v11772
      %v11774 = vrot.slane %v11664, %v11773
      %v11775 = vlaneseq
      %v11776 = vshrl.u32 %v11775, 7
      %v11777 = vsub.s32 0, %v11776
      %v11778 = vrot.slane %v11665, %v11777
      %v11779 = vlaneseq
      %v11780 = vshrl.u32 %v11779, 7
      %v11781 = vsub.s32 0, %v11780
      %v11782 = vrot.slane %v11666, %v11781
      %v11783 = vlaneseq
      %v11784 = vshrl.u32 %v11783, 7
      %v11785 = vsub.s32 0, %v11784
      %v11786 = vrot.slane %v11667, %v11785
      %v11787 = vlaneseq
      %v11788 = vshrl.u32 %v11787, 7
      %v11789 = vsub.s32 0, %v11788
      %v11790 = vrot.slane %v11668, %v11789
      %v11791 = vlaneseq
      %v11792 = vshrl.u32 %v11791, 7
      %v11793 = vsub.s32 0, %v11792
      %v11794 = vrot.slane %v11669, %v11793
      %v11795 = vlaneseq
      %v11796 = vshrl.u32 %v11795, 7
      %v11797 = vsub.s32 0, %v11796
      %v11798 = vrot.slane %v11670, %v11797
      %11831 = vrot.lane.b32.xlu0 %v11674, 32
      %v11832 = vpop.permute.xlu0 %11831
      %11833 = vrot.lane.b32.xlu0 %v11678, 32
      %v11834 = vpop.permute.xlu0 %11833
      %11835 = vrot.lane.b32.xlu0 %v11682, 32
      %v11836 = vpop.permute.xlu0 %11835
      %11837 = vrot.lane.b32.xlu0 %v11686, 32
      %v11838 = vpop.permute.xlu0 %11837
      %11839 = vrot.lane.b32.xlu0 %v11690, 32
      %v11840 = vpop.permute.xlu0 %11839
      %11841 = vrot.lane.b32.xlu0 %v11694, 32
      %v11842 = vpop.permute.xlu0 %11841
      %11843 = vrot.lane.b32.xlu0 %v11698, 32
      %v11844 = vpop.permute.xlu0 %11843
      %11845 = vrot.lane.b32.xlu0 %v11702, 32
      %v11846 = vpop.permute.xlu0 %11845
      %11847 = vrot.lane.b32.xlu0 %v11706, 32
      %v11848 = vpop.permute.xlu0 %11847
      %11849 = vrot.lane.b32.xlu0 %v11710, 32
      %v11850 = vpop.permute.xlu0 %11849
      %11851 = vrot.lane.b32.xlu0 %v11714, 32
      %v11852 = vpop.permute.xlu0 %11851
      %11853 = vrot.lane.b32.xlu0 %v11718, 32
      %v11854 = vpop.permute.xlu0 %11853
      %11855 = vrot.lane.b32.xlu0 %v11722, 32
      %v11856 = vpop.permute.xlu0 %11855
      %11857 = vrot.lane.b32.xlu0 %v11726, 32
      %v11858 = vpop.permute.xlu0 %11857
      %11859 = vrot.lane.b32.xlu0 %v11730, 32
      %v11860 = vpop.permute.xlu0 %11859
      %11861 = vrot.lane.b32.xlu0 %v11734, 32
      %v11862 = vpop.permute.xlu0 %11861
      %11863 = vrot.lane.b32.xlu0 %v11738, 32
      %v11864 = vpop.permute.xlu0 %11863
      %11865 = vrot.lane.b32.xlu0 %v11742, 32
      %v11866 = vpop.permute.xlu0 %11865
      %11867 = vrot.lane.b32.xlu0 %v11746, 32
      %v11868 = vpop.permute.xlu0 %11867
      %11869 = vrot.lane.b32.xlu0 %v11750, 32
      %v11870 = vpop.permute.xlu0 %11869
      %11871 = vrot.lane.b32.xlu0 %v11754, 32
      %v11872 = vpop.permute.xlu0 %11871
      %11873 = vrot.lane.b32.xlu0 %v11758, 32
      %v11874 = vpop.permute.xlu0 %11873
      %11875 = vrot.lane.b32.xlu0 %v11762, 32
      %v11876 = vpop.permute.xlu0 %11875
      %11877 = vrot.lane.b32.xlu0 %v11766, 32
      %v11878 = vpop.permute.xlu0 %11877
      %11879 = vrot.lane.b32.xlu0 %v11770, 32
      %v11880 = vpop.permute.xlu0 %11879
      %11881 = vrot.lane.b32.xlu0 %v11774, 32
      %v11882 = vpop.permute.xlu0 %11881
      %11883 = vrot.lane.b32.xlu0 %v11778, 32
      %v11884 = vpop.permute.xlu0 %11883
      %11885 = vrot.lane.b32.xlu0 %v11782, 32
      %v11886 = vpop.permute.xlu0 %11885
      %11887 = vrot.lane.b32.xlu0 %v11786, 32
      %v11888 = vpop.permute.xlu0 %11887
      %11889 = vrot.lane.b32.xlu0 %v11790, 32
      %v11890 = vpop.permute.xlu0 %11889
      %11891 = vrot.lane.b32.xlu0 %v11794, 32
      %v11892 = vpop.permute.xlu0 %11891
      %11893 = vrot.lane.b32.xlu0 %v11798, 32
      %v11894 = vpop.permute.xlu0 %11893
      %v11927 = vmul.f32 %v942, %v11832
      %v11928 = vmul.f32 %v944, %v11834
      %v11929 = vmul.f32 %v946, %v11836
      %v11930 = vmul.f32 %v948, %v11838
      %v11931 = vmul.f32 %v950, %v11840
      %v11932 = vmul.f32 %v952, %v11842
      %v11933 = vmul.f32 %v954, %v11844
      %v11934 = vmul.f32 %v956, %v11846
      %v11935 = vmul.f32 %v958, %v11848
      %v11936 = vmul.f32 %v960, %v11850
      %v11937 = vmul.f32 %v962, %v11852
      %v11938 = vmul.f32 %v964, %v11854
      %v11939 = vmul.f32 %v966, %v11856
      %v11940 = vmul.f32 %v968, %v11858
      %v11941 = vmul.f32 %v970, %v11860
      %v11942 = vmul.f32 %v972, %v11862
      %v11943 = vmul.f32 %v974, %v11864
      %v11944 = vmul.f32 %v976, %v11866
      %v11945 = vmul.f32 %v978, %v11868
      %v11946 = vmul.f32 %v980, %v11870
      %v11947 = vmul.f32 %v982, %v11872
      %v11948 = vmul.f32 %v984, %v11874
      %v11949 = vmul.f32 %v986, %v11876
      %v11950 = vmul.f32 %v988, %v11878
      %v11951 = vmul.f32 %v990, %v11880
      %v11952 = vmul.f32 %v992, %v11882
      %v11953 = vmul.f32 %v994, %v11884
      %v11954 = vmul.f32 %v996, %v11886
      %v11955 = vmul.f32 %v998, %v11888
      %v11956 = vmul.f32 %v1000, %v11890
      %v11957 = vmul.f32 %v1002, %v11892
      %v11958 = vmul.f32 %v1004, %v11894
      %v11959 = vld [vmem:[%s6] sm:$0xff]
      %v11960 = vld [vmem:[%s6 + $0x8] sm:$0xff]
      %v11961 = vld [vmem:[%s6 + $0x10] sm:$0xff]
      %v11962 = vld [vmem:[%s6 + $0x18] sm:$0xff]
      %v11963 = vld [vmem:[%s7] sm:$0x1]
      %v11965 = vlaneseq
      %v11966 = vshrl.u32 %v11965, 7
      %v11967 = vsub.s32 0, %v11966
      %v11968 = vrot.slane %v11963, %v11967
      %12002 = vrot.lane.b32.xlu0 %v11927, 96
      %v12003 = vpop.permute.xlu0 %12002
      %12004 = vrot.lane.b32.xlu0 %v11928, 96
      %v12005 = vpop.permute.xlu0 %12004
      %12006 = vrot.lane.b32.xlu0 %v11929, 96
      %v12007 = vpop.permute.xlu0 %12006
      %12008 = vrot.lane.b32.xlu0 %v11930, 96
      %v12009 = vpop.permute.xlu0 %12008
      %12010 = vrot.lane.b32.xlu0 %v11931, 96
      %v12011 = vpop.permute.xlu0 %12010
      %12012 = vrot.lane.b32.xlu0 %v11932, 96
      %v12013 = vpop.permute.xlu0 %12012
      %12014 = vrot.lane.b32.xlu0 %v11933, 96
      %v12015 = vpop.permute.xlu0 %12014
      %12016 = vrot.lane.b32.xlu0 %v11934, 96
      %v12017 = vpop.permute.xlu0 %12016
      %12018 = vrot.lane.b32.xlu0 %v11935, 96
      %v12019 = vpop.permute.xlu0 %12018
      %12020 = vrot.lane.b32.xlu0 %v11936, 96
      %v12021 = vpop.permute.xlu0 %12020
      %12022 = vrot.lane.b32.xlu0 %v11937, 96
      %v12023 = vpop.permute.xlu0 %12022
      %12024 = vrot.lane.b32.xlu0 %v11938, 96
      %v12025 = vpop.permute.xlu0 %12024
      %12026 = vrot.lane.b32.xlu0 %v11939, 96
      %v12027 = vpop.permute.xlu0 %12026
      %12028 = vrot.lane.b32.xlu0 %v11940, 96
      %v12029 = vpop.permute.xlu0 %12028
      %12030 = vrot.lane.b32.xlu0 %v11941, 96
      %v12031 = vpop.permute.xlu0 %12030
      %12032 = vrot.lane.b32.xlu0 %v11942, 96
      %v12033 = vpop.permute.xlu0 %12032
      %12034 = vrot.lane.b32.xlu0 %v11943, 96
      %v12035 = vpop.permute.xlu0 %12034
      %12036 = vrot.lane.b32.xlu0 %v11944, 96
      %v12037 = vpop.permute.xlu0 %12036
      %12038 = vrot.lane.b32.xlu0 %v11945, 96
      %v12039 = vpop.permute.xlu0 %12038
      %12040 = vrot.lane.b32.xlu0 %v11946, 96
      %v12041 = vpop.permute.xlu0 %12040
      %12042 = vrot.lane.b32.xlu0 %v11947, 96
      %v12043 = vpop.permute.xlu0 %12042
      %12044 = vrot.lane.b32.xlu0 %v11948, 96
      %v12045 = vpop.permute.xlu0 %12044
      %12046 = vrot.lane.b32.xlu0 %v11949, 96
      %v12047 = vpop.permute.xlu0 %12046
      %12048 = vrot.lane.b32.xlu0 %v11950, 96
      %v12049 = vpop.permute.xlu0 %12048
      %12050 = vrot.lane.b32.xlu0 %v11951, 96
      %v12051 = vpop.permute.xlu0 %12050
      %12052 = vrot.lane.b32.xlu0 %v11952, 96
      %v12053 = vpop.permute.xlu0 %12052
      %12054 = vrot.lane.b32.xlu0 %v11953, 96
      %v12055 = vpop.permute.xlu0 %12054
      %12056 = vrot.lane.b32.xlu0 %v11954, 96
      %v12057 = vpop.permute.xlu0 %12056
      %12058 = vrot.lane.b32.xlu0 %v11955, 96
      %v12059 = vpop.permute.xlu0 %12058
      %12060 = vrot.lane.b32.xlu0 %v11956, 96
      %v12061 = vpop.permute.xlu0 %12060
      %12062 = vrot.lane.b32.xlu0 %v11957, 96
      %v12063 = vpop.permute.xlu0 %12062
      %12064 = vrot.lane.b32.xlu0 %v11958, 96
      %v12065 = vpop.permute.xlu0 %12064
      %v12066 = vsel %vm450, %v12003, 0
      %v12068 = vsel %vm450, %v12005, 0
      %v12070 = vsel %vm450, %v12007, 0
      %v12072 = vsel %vm450, %v12009, 0
      %v12074 = vsel %vm450, %v12011, 0
      %v12076 = vsel %vm450, %v12013, 0
      %v12078 = vsel %vm450, %v12015, 0
      %v12080 = vsel %vm450, %v12017, 0
      %v12082 = vsel %vm450, %v12019, 0
      %v12084 = vsel %vm450, %v12021, 0
      %v12086 = vsel %vm450, %v12023, 0
      %v12088 = vsel %vm450, %v12025, 0
      %v12090 = vsel %vm450, %v12027, 0
      %v12092 = vsel %vm450, %v12029, 0
      %v12094 = vsel %vm450, %v12031, 0
      %v12096 = vsel %vm450, %v12033, 0
      %v12098 = vsel %vm450, %v12035, 0
      %v12100 = vsel %vm450, %v12037, 0
      %v12102 = vsel %vm450, %v12039, 0
      %v12104 = vsel %vm450, %v12041, 0
      %v12106 = vsel %vm450, %v12043, 0
      %v12108 = vsel %vm450, %v12045, 0
      %v12110 = vsel %vm450, %v12047, 0
      %v12112 = vsel %vm450, %v12049, 0
      %v12114 = vsel %vm450, %v12051, 0
      %v12116 = vsel %vm450, %v12053, 0
      %v12118 = vsel %vm450, %v12055, 0
      %v12120 = vsel %vm450, %v12057, 0
      %v12122 = vsel %vm450, %v12059, 0
      %v12124 = vsel %vm450, %v12061, 0
      %v12126 = vsel %vm450, %v12063, 0
      %v12128 = vsel %vm450, %v12065, 0
      %12130 = vmatprep.subr.mxu0 0.0
      %12131 = vmatpush1.msra.mxu0 %v11959
      %12132 = vmatprep.subr.mxu0 0.0
      %12133 = vmatpush1.msra.mxu0 %v11960
      %12134 = vmatprep.subr.mxu0 0.0
      %12135 = vmatpush1.msra.mxu0 %v11961
      %12136 = vmatprep.subr.mxu0 0.0
      %12137 = vmatpush1.msra.mxu0 %v11962
      %12138 = vmatprep.subr.mxu0 0.0
      %12139 = vmatpush1.msra.mxu0 0.0
      %12140 = vmatprep.subr.mxu0 0.0
      %12141 = vmatpush1.msra.mxu0 0.0
      %12142 = vmatprep.subr.mxu0 0.0
      %12143 = vmatpush1.msra.mxu0 0.0
      %12144 = vmatprep.subr.mxu0 0.0
      %12145 = vmatpush1.msra.mxu0 0.0
      %12146 = vmatprep.subr.mxu0 0.0
      %12147 = vmatpush1.msra.mxu0 0.0
      %12148 = vmatprep.subr.mxu0 0.0
      %12149 = vmatpush1.msra.mxu0 0.0
      %12150 = vmatprep.subr.mxu0 0.0
      %12151 = vmatpush1.msra.mxu0 0.0
      %12152 = vmatprep.subr.mxu0 0.0
      %12153 = vmatpush1.msra.mxu0 0.0
      %12154 = vmatprep.subr.mxu0 0.0
      %12155 = vmatpush1.msra.mxu0 0.0
      %12156 = vmatprep.subr.mxu0 0.0
      %12157 = vmatpush1.msra.mxu0 0.0
      %12158 = vmatprep.subr.mxu0 0.0
      %12159 = vmatpush1.msra.mxu0 0.0
      %12160 = vmatprep.subr.mxu0 0.0
      %12161 = vmatpush1.msra.mxu0 0.0
      %12162 = vmatprep.subr.mxu0 0.0
      %12163 = vmatpush1.msra.mxu0 0.0
      %12164 = vmatprep.subr.mxu0 0.0
      %12165 = vmatpush1.msra.mxu0 0.0
      %12166 = vmatprep.subr.mxu0 0.0
      %12167 = vmatpush1.msra.mxu0 0.0
      %12168 = vmatprep.subr.mxu0 0.0
      %12169 = vmatpush1.msra.mxu0 0.0
      %12170 = vmatprep.subr.mxu0 0.0
      %12171 = vmatpush1.msra.mxu0 0.0
      %12172 = vmatprep.subr.mxu0 0.0
      %12173 = vmatpush1.msra.mxu0 0.0
      %12174 = vmatprep.subr.mxu0 0.0
      %12175 = vmatpush1.msra.mxu0 0.0
      %12176 = vmatprep.subr.mxu0 0.0
      %12177 = vmatpush1.msra.mxu0 0.0
      %12178 = vmatprep.subr.mxu0 0.0
      %12179 = vmatpush1.msra.mxu0 0.0
      %12180 = vmatprep.subr.mxu0 0.0
      %12181 = vmatpush1.msra.mxu0 0.0
      %12182 = vmatprep.subr.mxu0 0.0
      %12183 = vmatpush1.msra.mxu0 0.0
      %12184 = vmatprep.subr.mxu0 0.0
      %12185 = vmatpush1.msra.mxu0 0.0
      %12186 = vmatprep.subr.mxu0 0.0
      %12187 = vmatpush1.msra.mxu0 0.0
      %12188 = vmatprep.subr.mxu0 0.0
      %12189 = vmatpush1.msra.mxu0 0.0
      %12190 = vmatprep.subr.mxu0 0.0
      %12191 = vmatpush1.msra.mxu0 0.0
      %12192 = vmatprep.subr.mxu0 0.0
      %12193 = vmatpush1.msra.mxu0 0.0
      %12194 = vmatprep.mubr.f32.mxu0 0.0
      %12195 = vmatmul.mubr.f32.gmra.mrb[0].mxu0 %v12066
      %v12196 = vpop.f32.mrb[0].mxu0
      %v12197 = vadd.f32 %v11968, %v12196
      %v12198 = vpop.f32.mrb[0].mxu0
      %12199 = vmatprep.mubr.f32.mxu0 0.0
      %12200 = vmatmul.mubr.f32.gmra.mrb[0].mxu0 %v12068
      %v12201 = vpop.f32.mrb[0].mxu0
      %v12202 = vadd.f32 %v11968, %v12201
      %v12203 = vpop.f32.mrb[0].mxu0
      %12204 = vmatprep.mubr.f32.mxu0 0.0
      %12205 = vmatmul.mubr.f32.gmra.mrb[0].mxu0 %v12070
      %v12206 = vpop.f32.mrb[0].mxu0
      %v12207 = vadd.f32 %v11968, %v12206
      %v12208 = vpop.f32.mrb[0].mxu0
      %12209 = vmatprep.mubr.f32.mxu0 0.0
      %12210 = vmatmul.mubr.f32.gmra.mrb[0].mxu0 %v12072
      %v12211 = vpop.f32.mrb[0].mxu0
      %v12212 = vadd.f32 %v11968, %v12211
      %v12213 = vpop.f32.mrb[0].mxu0
      %12214 = vmatprep.mubr.f32.mxu0 0.0
      %12215 = vmatmul.mubr.f32.gmra.mrb[0].mxu0 %v12074
      %v12216 = vpop.f32.mrb[0].mxu0
      %v12217 = vadd.f32 %v11968, %v12216
      %v12218 = vpop.f32.mrb[0].mxu0
      %12219 = vmatprep.mubr.f32.mxu0 0.0
      %12220 = vmatmul.mubr.f32.gmra.mrb[0].mxu0 %v12076
      %v12221 = vpop.f32.mrb[0].mxu0
      %v12222 = vadd.f32 %v11968, %v12221
      %v12223 = vpop.f32.mrb[0].mxu0
      %12224 = vmatprep.mubr.f32.mxu0 0.0
      %12225 = vmatmul.mubr.f32.gmra.mrb[0].mxu0 %v12078
      %v12226 = vpop.f32.mrb[0].mxu0
      %v12227 = vadd.f32 %v11968, %v12226
      %v12228 = vpop.f32.mrb[0].mxu0
      %12229 = vmatprep.mubr.f32.mxu0 0.0
      %12230 = vmatmul.mubr.f32.gmra.mrb[0].mxu0 %v12080
      %v12231 = vpop.f32.mrb[0].mxu0
      %v12232 = vadd.f32 %v11968, %v12231
      %v12233 = vpop.f32.mrb[0].mxu0
      %12234 = vmatprep.mubr.f32.mxu0 0.0
      %12235 = vmatmul.mubr.f32.gmra.mrb[0].mxu0 %v12082
      %v12236 = vpop.f32.mrb[0].mxu0
      %v12237 = vadd.f32 %v11968, %v12236
      %v12238 = vpop.f32.mrb[0].mxu0
      %12239 = vmatprep.mubr.f32.mxu0 0.0
      %12240 = vmatmul.mubr.f32.gmra.mrb[0].mxu0 %v12084
      %v12241 = vpop.f32.mrb[0].mxu0
      %v12242 = vadd.f32 %v11968, %v12241
      %v12243 = vpop.f32.mrb[0].mxu0
      %12244 = vmatprep.mubr.f32.mxu0 0.0
      %12245 = vmatmul.mubr.f32.gmra.mrb[0].mxu0 %v12086
      %v12246 = vpop.f32.mrb[0].mxu0
      %v12247 = vadd.f32 %v11968, %v12246
      %v12248 = vpop.f32.mrb[0].mxu0
      %12249 = vmatprep.mubr.f32.mxu0 0.0
      %12250 = vmatmul.mubr.f32.gmra.mrb[0].mxu0 %v12088
      %v12251 = vpop.f32.mrb[0].mxu0
      %v12252 = vadd.f32 %v11968, %v12251
      %v12253 = vpop.f32.mrb[0].mxu0
      %12254 = vmatprep.mubr.f32.mxu0 0.0
      %12255 = vmatmul.mubr.f32.gmra.mrb[0].mxu0 %v12090
      %v12256 = vpop.f32.mrb[0].mxu0
      %v12257 = vadd.f32 %v11968, %v12256
      %v12258 = vpop.f32.mrb[0].mxu0
      %12259 = vmatprep.mubr.f32.mxu0 0.0
      %12260 = vmatmul.mubr.f32.gmra.mrb[0].mxu0 %v12092
      %v12261 = vpop.f32.mrb[0].mxu0
      %v12262 = vadd.f32 %v11968, %v12261
      %v12263 = vpop.f32.mrb[0].mxu0
      %12264 = vmatprep.mubr.f32.mxu0 0.0
      %12265 = vmatmul.mubr.f32.gmra.mrb[0].mxu0 %v12094
      %v12266 = vpop.f32.mrb[0].mxu0
      %v12267 = vadd.f32 %v11968, %v12266
      %v12268 = vpop.f32.mrb[0].mxu0
      %12269 = vmatprep.mubr.f32.mxu0 0.0
      %12270 = vmatmul.mubr.f32.gmra.mrb[0].mxu0 %v12096
      %v12271 = vpop.f32.mrb[0].mxu0
      %v12272 = vadd.f32 %v11968, %v12271
      %v12273 = vpop.f32.mrb[0].mxu0
      %12274 = vmatprep.mubr.f32.mxu0 0.0
      %12275 = vmatmul.mubr.f32.gmra.mrb[0].mxu0 %v12098
      %v12276 = vpop.f32.mrb[0].mxu0
      %v12277 = vadd.f32 %v11968, %v12276
      %v12278 = vpop.f32.mrb[0].mxu0
      %12279 = vmatprep.mubr.f32.mxu0 0.0
      %12280 = vmatmul.mubr.f32.gmra.mrb[0].mxu0 %v12100
      %v12281 = vpop.f32.mrb[0].mxu0
      %v12282 = vadd.f32 %v11968, %v12281
      %v12283 = vpop.f32.mrb[0].mxu0
      %12284 = vmatprep.mubr.f32.mxu0 0.0
      %12285 = vmatmul.mubr.f32.gmra.mrb[0].mxu0 %v12102
      %v12286 = vpop.f32.mrb[0].mxu0
      %v12287 = vadd.f32 %v11968, %v12286
      %v12288 = vpop.f32.mrb[0].mxu0
      %12289 = vmatprep.mubr.f32.mxu0 0.0
      %12290 = vmatmul.mubr.f32.gmra.mrb[0].mxu0 %v12104
      %v12291 = vpop.f32.mrb[0].mxu0
      %v12292 = vadd.f32 %v11968, %v12291
      %v12293 = vpop.f32.mrb[0].mxu0
      %12294 = vmatprep.mubr.f32.mxu0 0.0
      %12295 = vmatmul.mubr.f32.gmra.mrb[0].mxu0 %v12106
      %v12296 = vpop.f32.mrb[0].mxu0
      %v12297 = vadd.f32 %v11968, %v12296
      %v12298 = vpop.f32.mrb[0].mxu0
      %12299 = vmatprep.mubr.f32.mxu0 0.0
      %12300 = vmatmul.mubr.f32.gmra.mrb[0].mxu0 %v12108
      %v12301 = vpop.f32.mrb[0].mxu0
      %v12302 = vadd.f32 %v11968, %v12301
      %v12303 = vpop.f32.mrb[0].mxu0
      %12304 = vmatprep.mubr.f32.mxu0 0.0
      %12305 = vmatmul.mubr.f32.gmra.mrb[0].mxu0 %v12110
      %v12306 = vpop.f32.mrb[0].mxu0
      %v12307 = vadd.f32 %v11968, %v12306
      %v12308 = vpop.f32.mrb[0].mxu0
      %12309 = vmatprep.mubr.f32.mxu0 0.0
      %12310 = vmatmul.mubr.f32.gmra.mrb[0].mxu0 %v12112
      %v12311 = vpop.f32.mrb[0].mxu0
      %v12312 = vadd.f32 %v11968, %v12311
      %v12313 = vpop.f32.mrb[0].mxu0
      %12314 = vmatprep.mubr.f32.mxu0 0.0
      %12315 = vmatmul.mubr.f32.gmra.mrb[0].mxu0 %v12114
      %v12316 = vpop.f32.mrb[0].mxu0
      %v12317 = vadd.f32 %v11968, %v12316
      %v12318 = vpop.f32.mrb[0].mxu0
      %12319 = vmatprep.mubr.f32.mxu0 0.0
      %12320 = vmatmul.mubr.f32.gmra.mrb[0].mxu0 %v12116
      %v12321 = vpop.f32.mrb[0].mxu0
      %v12322 = vadd.f32 %v11968, %v12321
      %v12323 = vpop.f32.mrb[0].mxu0
      %12324 = vmatprep.mubr.f32.mxu0 0.0
      %12325 = vmatmul.mubr.f32.gmra.mrb[0].mxu0 %v12118
      %v12326 = vpop.f32.mrb[0].mxu0
      %v12327 = vadd.f32 %v11968, %v12326
      %v12328 = vpop.f32.mrb[0].mxu0
      %12329 = vmatprep.mubr.f32.mxu0 0.0
      %12330 = vmatmul.mubr.f32.gmra.mrb[0].mxu0 %v12120
      %v12331 = vpop.f32.mrb[0].mxu0
      %v12332 = vadd.f32 %v11968, %v12331
      %v12333 = vpop.f32.mrb[0].mxu0
      %12334 = vmatprep.mubr.f32.mxu0 0.0
      %12335 = vmatmul.mubr.f32.gmra.mrb[0].mxu0 %v12122
      %v12336 = vpop.f32.mrb[0].mxu0
      %v12337 = vadd.f32 %v11968, %v12336
      %v12338 = vpop.f32.mrb[0].mxu0
      %12339 = vmatprep.mubr.f32.mxu0 0.0
      %12340 = vmatmul.mubr.f32.gmra.mrb[0].mxu0 %v12124
      %v12341 = vpop.f32.mrb[0].mxu0
      %v12342 = vadd.f32 %v11968, %v12341
      %v12343 = vpop.f32.mrb[0].mxu0
      %12344 = vmatprep.mubr.f32.mxu0 0.0
      %12345 = vmatmul.mubr.f32.gmra.mrb[0].mxu0 %v12126
      %v12346 = vpop.f32.mrb[0].mxu0
      %v12347 = vadd.f32 %v11968, %v12346
      %v12348 = vpop.f32.mrb[0].mxu0
      %12349 = vmatprep.mubr.f32.mxu0 0.0
      %12350 = vmatmul.mubr.f32.gmra.mrb[0].mxu0 %v12128
      %v12351 = vpop.f32.mrb[0].mxu0
      %v12352 = vadd.f32 %v11968, %v12351
      %v12353 = vpop.f32.mrb[0].mxu0
      %12354 = vdwg.mxu0
      %12355 = vst.msk [vmem:[%s348] sm:$0xff] %vm450, %v12197
      %12356 = vst.msk [vmem:[%s348 + $0x8] sm:$0xff] %vm450, %v12202
      %12357 = vst.msk [vmem:[%s348 + $0x10] sm:$0xff] %vm450, %v12207
      %12358 = vst.msk [vmem:[%s348 + $0x18] sm:$0xff] %vm450, %v12212
      %12359 = vst.msk [vmem:[%s348 + $0x20] sm:$0xff] %vm450, %v12217
      %12360 = vst.msk [vmem:[%s348 + $0x28] sm:$0xff] %vm450, %v12222
      %12361 = vst.msk [vmem:[%s348 + $0x30] sm:$0xff] %vm450, %v12227
      %12362 = vst.msk [vmem:[%s348 + $0x38] sm:$0xff] %vm450, %v12232
      %12363 = vst.msk [vmem:[%s348 + $0x40] sm:$0xff] %vm450, %v12237
      %12364 = vst.msk [vmem:[%s348 + $0x48] sm:$0xff] %vm450, %v12242
      %12365 = vst.msk [vmem:[%s348 + $0x50] sm:$0xff] %vm450, %v12247
      %12366 = vst.msk [vmem:[%s348 + $0x58] sm:$0xff] %vm450, %v12252
      %12367 = vst.msk [vmem:[%s348 + $0x60] sm:$0xff] %vm450, %v12257
      %12368 = vst.msk [vmem:[%s348 + $0x68] sm:$0xff] %vm450, %v12262
      %12369 = vst.msk [vmem:[%s348 + $0x70] sm:$0xff] %vm450, %v12267
      %12370 = vst.msk [vmem:[%s348 + $0x78] sm:$0xff] %vm450, %v12272
      %12371 = vst.msk [vmem:[%s348 + $0x80] sm:$0xff] %vm450, %v12277
      %12372 = vst.msk [vmem:[%s348 + $0x88] sm:$0xff] %vm450, %v12282
      %12373 = vst.msk [vmem:[%s348 + $0x90] sm:$0xff] %vm450, %v12287
      %12374 = vst.msk [vmem:[%s348 + $0x98] sm:$0xff] %vm450, %v12292
      %12375 = vst.msk [vmem:[%s348 + $0xa0] sm:$0xff] %vm450, %v12297
      %12376 = vst.msk [vmem:[%s348 + $0xa8] sm:$0xff] %vm450, %v12302
      %12377 = vst.msk [vmem:[%s348 + $0xb0] sm:$0xff] %vm450, %v12307
      %12378 = vst.msk [vmem:[%s348 + $0xb8] sm:$0xff] %vm450, %v12312
      %12379 = vst.msk [vmem:[%s348 + $0xc0] sm:$0xff] %vm450, %v12317
      %12380 = vst.msk [vmem:[%s348 + $0xc8] sm:$0xff] %vm450, %v12322
      %12381 = vst.msk [vmem:[%s348 + $0xd0] sm:$0xff] %vm450, %v12327
      %12382 = vst.msk [vmem:[%s348 + $0xd8] sm:$0xff] %vm450, %v12332
      %12383 = vst.msk [vmem:[%s348 + $0xe0] sm:$0xff] %vm450, %v12337
      %12384 = vst.msk [vmem:[%s348 + $0xe8] sm:$0xff] %vm450, %v12342
      %12385 = vst.msk [vmem:[%s348 + $0xf0] sm:$0xff] %vm450, %v12347
      %12386 = vst.msk [vmem:[%s348 + $0xf8] sm:$0xff] %vm450, %v12352
      %s12387 = smul.u32 32, %s19
      %p12388 = scmp.lt.s32.totalorder %s12387, 63
      %s12389 = scalar_select %p12388, %s12387, 63
      %s12390 = smul.addr %s12389, 8
      %s12391 = scalar_lea.vmem %s8, %s12390
      // Predicated region
      $region53: #{tpu_custom_call.1} parent=51 // pred_check
        %p12392 = pneg %p220
      $region54: #{tpu_custom_call.1} parent=51 // pred_check_branch
        %12394 = sbr.rel (%p12392) target = $region56
      $region55: #{tpu_custom_call.1} parent=51 // pred_region
        %s12395 = smul.u32 32, %s19
      $region56: #{tpu_custom_call.1} parent=51 // pred_fallthru
        _
    $region52: #{tpu_custom_call.1} parent=5 // pred_fallthru
      _
    %p12396 = scmp.le.s32.totalorder 2, %s14
    // Predicated region
    $region57: #{tpu_custom_call.1} parent=5 // pred_check
      %p12397 = pneg %p12396
    $region58: #{tpu_custom_call.1} parent=5 // pred_check_branch
      %12399 = sbr.rel (%p12397) target = $region60
    $region59: #{tpu_custom_call.1} parent=5 // pred_region
      %s12400 = ssub.s32 %s14, 2
      // Predicated region
      $region61: #{tpu_custom_call.1} parent=59 // pred_check
        %p12401 = pneg %p226
      $region62: #{tpu_custom_call.1} parent=59 // pred_check_branch
        %12403 = sbr.rel (%p12401) target = $region64
      $region63: #{tpu_custom_call.1} parent=59 // pred_region
        %s12404 = smul.u32 32, %s20
        %p12405 = scmp.lt.s32.totalorder %s12404, 63
        %s12406 = scalar_select %p12405, %s12404, 63
        %s12407 = smul.addr %s12406, 8
        %s12408 = scalar_lea.vmem %s8, %s12407
      $region64: #{tpu_custom_call.1} parent=59 // pred_fallthru
        _
    $region60: #{tpu_custom_call.1} parent=5 // pred_fallthru
      _
  $region6: #{tpu_custom_call.1} parent=0 // loop_footer
    %s18 = sadd.s32 1, %s14
  $region7: #{tpu_custom_call.1} parent=0 // loop_footer_branch
    %13 = sbr.rel target = $region3
  $region8: #{tpu_custom_call.1} parent=0 // loop_exit
    _

</llo_original>
